<compile_context>
chip_gen: v7x
topology: tpu7x:2x2x1
jax: 0.10.0
libtpu: 0.0.40
codegen_flags: <defaults>
</compile_context>

<pallas_src>
import numpy as np
import jax
import jax.numpy as jnp
from jax.experimental import pallas as pl
from jax.experimental.pallas import tpu as pltpu

# ----- small, module-consistent synthetic sizes -----
BATCH = 2
IN_DIM = 2           # in_dim of FactorizedFNO1d
OUT_DIM = 1          # out_dim
WIDTH = 32           # FNO width
MODES = 16           # retained Fourier modes (<= NPTS // 2)
N_LAYERS = 4
NPTS = 64            # spatial length
PROJ_HIDDEN = 256    # hard-coded hidden size of the projection MLP


# --------------------------------------------------------------------------------------
# Exact (erf-based) GELU, matching torch.nn.GELU() default.  erf uses the Abramowitz &
# Stegun 7.1.26 approximation (max abs error ~1.5e-7): only exp / mul / add / where.
# --------------------------------------------------------------------------------------
_ERF_P = 0.3275911
_ERF_A = (0.254829592, -0.284496736, 1.421413741, -1.453152027, 1.061405429)


def _erf_approx(x):
    sign = jnp.where(x >= 0.0, 1.0, -1.0)
    ax = jnp.abs(x)
    t = 1.0 / (1.0 + _ERF_P * ax)
    a1, a2, a3, a4, a5 = _ERF_A
    poly = ((((a5 * t + a4) * t + a3) * t + a2) * t + a1) * t
    return sign * (1.0 - poly * jnp.exp(-ax * ax))


def _gelu(x):
    return 0.5 * x * (1.0 + _erf_approx(x * 0.7071067811865476))


# --------------------------------------------------------------------------------------
# The single fused kernel: one grid step == full forward for the whole (tiny) batch.
# --------------------------------------------------------------------------------------
def _fno_fused_kernel(x_ref, w_lift_ref, b_lift_ref,
                      fcs_ref, gcs_ref, wbig_ref, mask_ref, scol_ref,
                      w_skip_ref, b_layer_ref,
                      w_p1_ref, b_p1_ref, w_p2t_ref, b_p2_ref,
                      o_ref):
    f32 = jnp.float32
    bf16 = jnp.bfloat16
    K = MODES
    KC = MODES * WIDTH

    # ---- lifting Linear(in_dim, width): contract dim IN_DIM=2 is MXU-hostile, so keep
    #      it exact f32 on the VPU (rank-1 outer-product updates), stacked over batch.
    rows = []
    for b in range(BATCH):
        x_b = x_ref[b]                                    # (N, IN_DIM) f32
        h_b = x_b[:, 0:1] * w_lift_ref[0:1, :]
        for j in range(1, IN_DIM):
            h_b = h_b + x_b[:, j:j + 1] * w_lift_ref[j:j + 1, :]
        rows.append(h_b)
    h = jnp.concatenate(rows, axis=0) + b_lift_ref[...]   # (B*N, C) f32

    fcs = fcs_ref[...]     # (B*2K, B*N) bf16  batch-block-diag [fc; fs]   (rfft)
    gcs = gcs_ref[...]     # (B*N, B*2K) bf16  batch-block-diag [gc | gs]  (irfft, doubled)
    mask = mask_ref[...]   # (2*B*K, K*C) bf16 0/1 block-diag mode selector
    scol = scol_ref[...]   # (K*C, C)   bf16  tiled identity (lane collapse)

    for layer in range(N_LAYERS):
        hb = h.astype(bf16)                                            # (B*N, C)
        # truncated rfft (norm='forward') of BOTH batch elements in one dot:
        # rows of spec are [xr_0; xi_0; xr_1; xi_1], each K rows.
        spec = jnp.dot(fcs, hb, preferred_element_type=f32)            # (B*2K, C)
        # per-mode complex channel mixing: ONE wide dot against [Wr_wide | Wi_wide]
        # computes every (mode j, weight k, re/im) pairing; quadrants are recombined
        # with two vector adds, the 0/1 mask keeps only the j == k diagonal blocks and
        # the tiled-identity collapse dot folds the lanes back to (*, C).
        zq = jnp.dot(spec.astype(bf16), wbig_ref[layer],
                     preferred_element_type=f32)                       # (B*2K, 2*K*C)
        parts = []
        for b in range(BATCH):
            r = 2 * K * b
            xr_wr = zq[r:r + K, :KC]
            xr_wi = zq[r:r + K, KC:]
            xi_wr = zq[r + K:r + 2 * K, :KC]
            xi_wi = zq[r + K:r + 2 * K, KC:]
            parts.append(xr_wr - xi_wi)        # zr_b = xr@Wr - xi@Wi
            parts.append(xr_wi + xi_wr)        # zi_b = xr@Wi + xi@Wr
        z = jnp.concatenate(parts, axis=0).astype(bf16) * mask         # (B*2K, K*C) bf16
        yryi = jnp.dot(z, scol, preferred_element_type=f32)            # (B*2K, C): [yr0;yi0;yr1;yi1]
        # truncated irfft (norm='forward'; Hermitian doubling baked into gcs), both
        # batch elements in one dot.
        y_spec = jnp.dot(gcs, yryi.astype(bf16), preferred_element_type=f32)   # (B*N, C)
        # pointwise (1x1 conv) skip path on the stacked slab; bias = b_spec + b_skip
        y_skip = jnp.dot(hb, w_skip_ref[layer], preferred_element_type=f32)
        h = y_spec + y_skip + b_layer_ref[layer]
        if layer < N_LAYERS - 1:
            h = _gelu(h)

    # ---- projection MLP: Linear(width, 256) -> GELU -> Linear(256, out_dim),
    #      computed transposed in the last stage so the store is lane-dense.
    hp = jnp.dot(h.astype(bf16), w_p1_ref[...], preferred_element_type=f32) + b_p1_ref[...]
    hp = _gelu(hp)                                       # (B*N, 256) f32
    hp_t = jnp.transpose(hp)                             # (256, B*N) — (8,128)-aligned XLU transpose
    out_t = jnp.dot(w_p2t_ref[...], hp_t.astype(bf16),
                    preferred_element_type=f32)          # (OUT_DIM, B*N) lane-dense
    o_ref[...] = (out_t + b_p2_ref[...]).astype(o_ref.dtype)


def fno1d_forward(x, ops):
    # x: (B, in_dim, N) -- PyTorch NCW layout
    b, cin, n = x.shape
    # TODO(synk): at realistic NPTS feed NCW directly (lane-dense input DMA) and do the
    #             lift transposed; at N=64 this 1 KiB transpose is negligible.
    x_nwc = jnp.transpose(x, (0, 2, 1))                   # (B, N, in_dim)
    c2 = lambda i: (0, 0)
    c3 = lambda i: (0, 0, 0)
    out_t = pl.pallas_call(
        _fno_fused_kernel,
        out_shape=jax.ShapeDtypeStruct((OUT_DIM, b * n), jnp.float32),
        grid=(1,),
        in_specs=[
            pl.BlockSpec((b, n, IN_DIM), c3),                         # x (whole batch)
            pl.BlockSpec((IN_DIM, WIDTH), c2),                        # w_lift
            pl.BlockSpec((1, WIDTH), c2),                             # b_lift
            pl.BlockSpec((b * 2 * MODES, b * n), c2),                 # fcs (block-diag rfft)
            pl.BlockSpec((b * n, b * 2 * MODES), c2),                 # gcs (block-diag irfft)
            pl.BlockSpec((N_LAYERS, WIDTH, 2 * MODES * WIDTH), c3),   # wbig = [Wr|Wi] wide
            pl.BlockSpec((2 * b * MODES, MODES * WIDTH), c2),         # mask (bf16, 0/1)
            pl.BlockSpec((MODES * WIDTH, WIDTH), c2),                 # scol (tiled identity)
            pl.BlockSpec((N_LAYERS, WIDTH, WIDTH), c3),               # w_skip
            pl.BlockSpec((N_LAYERS, 1, WIDTH), c3),                   # b_layer
            pl.BlockSpec((WIDTH, PROJ_HIDDEN), c2),                   # w_p1
            pl.BlockSpec((1, PROJ_HIDDEN), c2),                       # b_p1
            pl.BlockSpec((OUT_DIM, PROJ_HIDDEN), c2),                 # w_p2^T
            pl.BlockSpec((OUT_DIM, 1), c2),                           # b_p2
        ],
        out_specs=pl.BlockSpec((OUT_DIM, b * n), c2),
        compiler_params=pltpu.CompilerParams(
            dimension_semantics=("arbitrary",),
            vmem_limit_bytes=32 * 1024 * 1024),
    )(x_nwc, ops["w_lift"], ops["b_lift"], ops["fcs"], ops["gcs"], ops["wbig"],
      ops["mask"], ops["scol"], ops["w_skip"], ops["b_layer"],
      ops["w_p1"], ops["b_p1"], ops["w_p2t"], ops["b_p2"])
    # (OUT_DIM, B*N) -> (B, OUT_DIM, N); with OUT_DIM == 1 this transpose is free.
    return jnp.transpose(out_t.reshape(OUT_DIM, b, n), (1, 0, 2))


# --------------------------------------------------------------------------------------
# Parameter construction ("PyTorch-equivalent" parameters, deterministic).
# --------------------------------------------------------------------------------------
def init_params(key):
    ks = jax.random.split(key, 11)
    scale_spec = 1.0 / (WIDTH * WIDTH)          # scale='auto' -> 1/(in_dim*out_dim)
    return {
        "w_lift": jax.random.normal(ks[0], (IN_DIM, WIDTH), jnp.float32) / np.sqrt(IN_DIM),
        "b_lift": jax.random.normal(ks[1], (WIDTH,), jnp.float32) * 0.1,
        "w_spec_r": jax.random.normal(ks[2], (N_LAYERS, WIDTH, WIDTH, MODES), jnp.float32) * scale_spec,
        "w_spec_i": jax.random.normal(ks[3], (N_LAYERS, WIDTH, WIDTH, MODES), jnp.float32) * scale_spec,
        "b_spec": jax.random.normal(ks[4], (N_LAYERS, WIDTH), jnp.float32) * scale_spec,
        "w_skip": jax.random.normal(ks[5], (N_LAYERS, WIDTH, WIDTH), jnp.float32) / np.sqrt(WIDTH),
        "b_skip": jax.random.normal(ks[6], (N_LAYERS, WIDTH), jnp.float32) * 0.1,
        "w_p1": jax.random.normal(ks[7], (WIDTH, PROJ_HIDDEN), jnp.float32) / np.sqrt(WIDTH),
        "b_p1": jax.random.normal(ks[8], (PROJ_HIDDEN,), jnp.float32) * 0.1,
        "w_p2": jax.random.normal(ks[9], (PROJ_HIDDEN, OUT_DIM), jnp.float32) / np.sqrt(PROJ_HIDDEN),
        "b_p2": jax.random.normal(ks[10], (OUT_DIM,), jnp.float32) * 0.1,
    }


def dft_matrices(n, k):
    kk = np.arange(k)[:, None].astype(np.float64)
    nn = np.arange(n)[None, :].astype(np.float64)
    ang = 2.0 * np.pi * kk * nn / n
    fc = np.cos(ang) / n                     # (K, N): Re of rfft(norm='forward')
    fs = -np.sin(ang) / n                    # (K, N): Im of rfft(norm='forward')
    k_idx = np.arange(k)
    # Hermitian doubling for 0 < k < N/2 (DC and Nyquist are NOT doubled).
    dbl = np.where((k_idx == 0) | (k_idx == n // 2), 1.0, 2.0)[None, :]
    gc = np.cos(ang).T * dbl                 # (N, K)
    gs = -np.sin(ang).T * dbl                # (N, K)
    return (fc.astype(np.float32), fs.astype(np.float32),
            gc.astype(np.float32), gs.astype(np.float32))


def _pack_spectral_weights(params):
    # (L, C_in, C_out, K) -> per-mode (L, K, C_in, C_out) -> wide (L, C_in, K*C_out)
    wr = np.transpose(np.asarray(params["w_spec_r"]), (0, 3, 1, 2))
    wi = np.transpose(np.asarray(params["w_spec_i"]), (0, 3, 1, 2))
    wr_wide = np.transpose(wr, (0, 2, 1, 3)).reshape(N_LAYERS, WIDTH, MODES * WIDTH)
    wi_wide = np.transpose(wi, (0, 2, 1, 3)).reshape(N_LAYERS, WIDTH, MODES * WIDTH)
    return wr_wide, wi_wide


def _check_packing(params, wr_wide, wi_wide, mask, scol):
    """Tight f32 unit test of the wide+mask+collapse mixing (layer 0) vs the einsum."""
    rng = np.random.RandomState(0)
    xr = rng.randn(MODES, WIDTH).astype(np.float32)
    xi = rng.randn(MODES, WIDTH).astype(np.float32)
    wr = np.asarray(params["w_spec_r"][0])                 # (Ci, Co, K)
    wi = np.asarray(params["w_spec_i"][0])
    yr_ref = np.einsum("ki,iok->ko", xr, wr) - np.einsum("ki,iok->ko", xi, wi)
    yi_ref = np.einsum("ki,iok->ko", xr, wi) + np.einsum("ki,iok->ko", xi, wr)
    zr = (xr @ wr_wide[0] - xi @ wi_wide[0]) * mask
    zi = (xr @ wi_wide[0] + xi @ wr_wide[0]) * mask
    np.testing.assert_allclose(zr @ scol, yr_ref, rtol=1e-4, atol=1e-6)
    np.testing.assert_allclose(zi @ scol, yi_ref, rtol=1e-4, atol=1e-6)


def prepare_operators(params):
    """One-time (outside jit) packing of parameters into kernel-ready operands."""
    fc, fs, gc, gs = dft_matrices(NPTS, MODES)
    fcs = np.concatenate([fc, fs], axis=0)                 # (2K, N)  -> xr/xi in ONE dot
    gcs = np.concatenate([gc, gs], axis=1)                 # (N, 2K)  -> irfft in ONE dot
    # Batch-block-diagonal DFT operators: the whole batch's rfft / irfft become single dots.
    fcs_bd = np.zeros((BATCH * 2 * MODES, BATCH * NPTS), np.float32)
    gcs_bd = np.zeros((BATCH * NPTS, BATCH * 2 * MODES), np.float32)
    for b in range(BATCH):
        fcs_bd[b * 2 * MODES:(b + 1) * 2 * MODES, b * NPTS:(b + 1) * NPTS] = fcs
        gcs_bd[b * NPTS:(b + 1) * NPTS, b * 2 * MODES:(b + 1) * 2 * MODES] = gcs

    wr_wide, wi_wide = _pack_spectral_weights(params)
    cols = np.arange(MODES * WIDTH)
    mask = (cols[None, :] // WIDTH == np.arange(MODES)[:, None]).astype(np.float32)   # (K, K*C)
    scol = np.tile(np.eye(WIDTH, dtype=np.float32), (MODES, 1))                       # (K*C, C)
    _check_packing(params, wr_wide, wi_wide, mask, scol)   # guard the packing refactor
    mask_full = np.tile(mask, (2 * BATCH, 1))              # rows: [zr0; zi0; zr1; zi1]
    wbig = np.concatenate([wr_wide, wi_wide], axis=-1)     # (L, C, 2*K*C) = [Wr_wide | Wi_wide]

    bf16 = jnp.bfloat16
    return {
        "w_lift": jnp.asarray(params["w_lift"], jnp.float32),
        "b_lift": jnp.asarray(params["b_lift"]).reshape(1, WIDTH).astype(jnp.float32),
        "fcs": jnp.asarray(fcs_bd).astype(bf16),
        "gcs": jnp.asarray(gcs_bd).astype(bf16),
        "wbig": jnp.asarray(wbig).astype(bf16),
        "mask": jnp.asarray(mask_full).astype(bf16),
        "scol": jnp.asarray(scol).astype(bf16),
        "w_skip": jnp.asarray(params["w_skip"]).astype(bf16),
        "b_layer": jnp.asarray(params["b_spec"] + params["b_skip"])
                      .reshape(N_LAYERS, 1, WIDTH).astype(jnp.float32),
        "w_p1": jnp.asarray(params["w_p1"]).astype(bf16),
        "b_p1": jnp.asarray(params["b_p1"]).reshape(1, PROJ_HIDDEN).astype(jnp.float32),
        "w_p2t": jnp.asarray(params["w_p2"]).T.astype(bf16),
        "b_p2": jnp.asarray(params["b_p2"]).reshape(OUT_DIM, 1).astype(jnp.float32),
    }


# --------------------------------------------------------------------------------------
# Pure-JAX reference (jnp.fft + exact GELU, f32 'highest' precision) for correctness.
# --------------------------------------------------------------------------------------
def reference_forward(x, params):
    with jax.default_matmul_precision("highest"):
        h = jnp.transpose(x, (0, 2, 1))
        h = h @ params["w_lift"] + params["b_lift"]
        hc = jnp.transpose(h, (0, 2, 1))                         # (B, C, N)
        b, c, n = hc.shape
        for layer in range(N_LAYERS):
            w = (params["w_spec_r"][layer] + 1j * params["w_spec_i"][layer]).astype(jnp.complex64)
            x_ft = jnp.fft.rfft(hc, axis=-1, norm="forward")
            mix = jnp.einsum("bik,iok->bok", x_ft[:, :, :MODES], w)
            out_ft = jnp.zeros((b, c, n // 2 + 1), jnp.complex64).at[:, :, :MODES].set(mix)
            y_spec = jnp.fft.irfft(out_ft, n=n, axis=-1, norm="forward")
            y_spec = y_spec + params["b_spec"][layer][None, :, None]
            y_skip = (jnp.einsum("bin,io->bon", hc, params["w_skip"][layer])
                      + params["b_skip"][layer][None, :, None])
            hc = y_spec + y_skip
            if layer < N_LAYERS - 1:
                hc = jax.nn.gelu(hc, approximate=False)
        h = jnp.transpose(hc, (0, 2, 1))
        h = jax.nn.gelu(h @ params["w_p1"] + params["b_p1"], approximate=False)
        h = h @ params["w_p2"] + params["b_p2"]
        return jnp.transpose(h, (0, 2, 1))


if __name__ == "__main__":
    key = jax.random.PRNGKey(0)
    k_x, k_p = jax.random.split(key)
    x = jax.random.normal(k_x, (BATCH, IN_DIM, NPTS), jnp.float32)
    params = init_params(k_p)
    ops = prepare_operators(params)          # one-time weight packing (outside the jit)

    fwd = jax.jit(fno1d_forward)
    out = jax.block_until_ready(fwd(x, ops))
    assert out.shape == (BATCH, OUT_DIM, NPTS)

    ref = reference_forward(x, params)
    # bf16-input / f32-accumulate matmuls over ~7 sequential stages -> a few 1e-3 relative
    # error vs the f32 'highest' reference; 2e-2 gives comfortable margin.
    np.testing.assert_allclose(np.asarray(out), np.asarray(ref), rtol=2e-2, atol=2e-2)
    print("KERNEL_OK")
</pallas_src>

<mosaic_0001>
module attributes {stable_mosaic.version = 11 : i64} {
  func.func @_fno_fused_kernel(%arg0: i32, %arg1: memref<2x64x2xf32, #tpu.memory_space<vmem>>, %arg2: memref<2x32xf32, #tpu.memory_space<vmem>>, %arg3: memref<1x32xf32, #tpu.memory_space<vmem>>, %arg4: memref<64x128xbf16, #tpu.memory_space<vmem>>, %arg5: memref<128x64xbf16, #tpu.memory_space<vmem>>, %arg6: memref<4x32x1024xbf16, #tpu.memory_space<vmem>>, %arg7: memref<64x512xbf16, #tpu.memory_space<vmem>>, %arg8: memref<512x32xbf16, #tpu.memory_space<vmem>>, %arg9: memref<4x32x32xbf16, #tpu.memory_space<vmem>>, %arg10: memref<4x1x32xf32, #tpu.memory_space<vmem>>, %arg11: memref<32x256xbf16, #tpu.memory_space<vmem>>, %arg12: memref<1x256xf32, #tpu.memory_space<vmem>>, %arg13: memref<1x256xbf16, #tpu.memory_space<vmem>>, %arg14: memref<1x1xf32, #tpu.memory_space<vmem>>, %arg15: memref<1x128xf32, #tpu.memory_space<vmem>>) attributes {dimension_semantics = [#tpu.dimension_semantics<arbitrary>], iteration_bounds = array<i64: 1>, scalar_prefetch = 0 : i64, scratch_operands = 0 : i64, tpu.core_type = #tpu.core_type<tc>, window_params = [{pipeline_mode = #tpu.pipeline_mode<synchronous>, transform_indices = @transform_0, window_bounds = array<i64: 2, 64, 2>}, {pipeline_mode = #tpu.pipeline_mode<synchronous>, transform_indices = @transform_1, window_bounds = array<i64: 2, 32>}, {pipeline_mode = #tpu.pipeline_mode<synchronous>, transform_indices = @transform_2, window_bounds = array<i64: 1, 32>}, {pipeline_mode = #tpu.pipeline_mode<synchronous>, transform_indices = @transform_3, window_bounds = array<i64: 64, 128>}, {pipeline_mode = #tpu.pipeline_mode<synchronous>, transform_indices = @transform_4, window_bounds = array<i64: 128, 64>}, {pipeline_mode = #tpu.pipeline_mode<synchronous>, transform_indices = @transform_5, window_bounds = array<i64: 4, 32, 1024>}, {pipeline_mode = #tpu.pipeline_mode<synchronous>, transform_indices = @transform_6, window_bounds = array<i64: 64, 512>}, {pipeline_mode = #tpu.pipeline_mode<synchronous>, transform_indices = @transform_7, window_bounds = array<i64: 512, 32>}, {pipeline_mode = #tpu.pipeline_mode<synchronous>, transform_indices = @transform_8, window_bounds = array<i64: 4, 32, 32>}, {pipeline_mode = #tpu.pipeline_mode<synchronous>, transform_indices = @transform_9, window_bounds = array<i64: 4, 1, 32>}, {pipeline_mode = #tpu.pipeline_mode<synchronous>, transform_indices = @transform_10, window_bounds = array<i64: 32, 256>}, {pipeline_mode = #tpu.pipeline_mode<synchronous>, transform_indices = @transform_11, window_bounds = array<i64: 1, 256>}, {pipeline_mode = #tpu.pipeline_mode<synchronous>, transform_indices = @transform_12, window_bounds = array<i64: 1, 256>}, {pipeline_mode = #tpu.pipeline_mode<synchronous>, transform_indices = @transform_13, window_bounds = array<i64: 1, 1>}, {pipeline_mode = #tpu.pipeline_mode<synchronous>, transform_indices = @transform_14, window_bounds = array<i64: 1, 128>}]} {
    %c0 = arith.constant 0 : index
    %c0_0 = arith.constant 0 : index
    %c0_1 = arith.constant 0 : index
    %0 = vector.load %arg1[%c0, %c0_0, %c0_1] : memref<2x64x2xf32, #tpu.memory_space<vmem>>, vector<1x64x2xf32>
    %1 = vector.shape_cast %0 : vector<1x64x2xf32> to vector<64x2xf32>
    %2 = vector.extract_strided_slice %1 {offsets = [0, 0], sizes = [64, 1], strides = [1, 1]} : vector<64x2xf32> to vector<64x1xf32>
    %c0_2 = arith.constant 0 : index
    %c0_3 = arith.constant 0 : index
    %3 = vector.load %arg2[%c0_2, %c0_3] : memref<2x32xf32, #tpu.memory_space<vmem>>, vector<1x32xf32>
    %4 = vector.broadcast %2 : vector<64x1xf32> to vector<64x32xf32>
    %5 = vector.broadcast %3 : vector<1x32xf32> to vector<64x32xf32>
    %6 = arith.mulf %4, %5 : vector<64x32xf32>
    %7 = vector.extract_strided_slice %1 {offsets = [0, 1], sizes = [64, 1], strides = [1, 1]} : vector<64x2xf32> to vector<64x1xf32>
    %c1 = arith.constant 1 : index
    %c0_4 = arith.constant 0 : index
    %8 = vector.load %arg2[%c1, %c0_4] : memref<2x32xf32, #tpu.memory_space<vmem>>, vector<1x32xf32>
    %9 = vector.broadcast %7 : vector<64x1xf32> to vector<64x32xf32>
    %10 = vector.broadcast %8 : vector<1x32xf32> to vector<64x32xf32>
    %11 = arith.mulf %9, %10 : vector<64x32xf32>
    %12 = arith.addf %6, %11 : vector<64x32xf32>
    %c1_5 = arith.constant 1 : index
    %c0_6 = arith.constant 0 : index
    %c0_7 = arith.constant 0 : index
    %13 = vector.load %arg1[%c1_5, %c0_6, %c0_7] : memref<2x64x2xf32, #tpu.memory_space<vmem>>, vector<1x64x2xf32>
    %14 = vector.shape_cast %13 : vector<1x64x2xf32> to vector<64x2xf32>
    %15 = vector.extract_strided_slice %14 {offsets = [0, 0], sizes = [64, 1], strides = [1, 1]} : vector<64x2xf32> to vector<64x1xf32>
    %c0_8 = arith.constant 0 : index
    %c0_9 = arith.constant 0 : index
    %16 = vector.load %arg2[%c0_8, %c0_9] : memref<2x32xf32, #tpu.memory_space<vmem>>, vector<1x32xf32>
    %17 = vector.broadcast %15 : vector<64x1xf32> to vector<64x32xf32>
    %18 = vector.broadcast %16 : vector<1x32xf32> to vector<64x32xf32>
    %19 = arith.mulf %17, %18 : vector<64x32xf32>
    %20 = vector.extract_strided_slice %14 {offsets = [0, 1], sizes = [64, 1], strides = [1, 1]} : vector<64x2xf32> to vector<64x1xf32>
    %c1_10 = arith.constant 1 : index
    %c0_11 = arith.constant 0 : index
    %21 = vector.load %arg2[%c1_10, %c0_11] : memref<2x32xf32, #tpu.memory_space<vmem>>, vector<1x32xf32>
    %22 = vector.broadcast %20 : vector<64x1xf32> to vector<64x32xf32>
    %23 = vector.broadcast %21 : vector<1x32xf32> to vector<64x32xf32>
    %24 = arith.mulf %22, %23 : vector<64x32xf32>
    %25 = arith.addf %19, %24 : vector<64x32xf32>
    %26 = tpu.concatenate %12, %25 in 0 : vector<64x32xf32>, vector<64x32xf32> -> vector<128x32xf32>
    %c0_12 = arith.constant 0 : index
    %c0_13 = arith.constant 0 : index
    %27 = vector.load %arg3[%c0_12, %c0_13] : memref<1x32xf32, #tpu.memory_space<vmem>>, vector<1x32xf32>
    %28 = vector.broadcast %27 : vector<1x32xf32> to vector<128x32xf32>
    %29 = arith.addf %26, %28 : vector<128x32xf32>
    %c0_14 = arith.constant 0 : index
    %c0_15 = arith.constant 0 : index
    %30 = vector.load %arg4[%c0_14, %c0_15] : memref<64x128xbf16, #tpu.memory_space<vmem>>, vector<64x128xbf16>
    %c0_16 = arith.constant 0 : index
    %c0_17 = arith.constant 0 : index
    %31 = vector.load %arg5[%c0_16, %c0_17] : memref<128x64xbf16, #tpu.memory_space<vmem>>, vector<128x64xbf16>
    %c0_18 = arith.constant 0 : index
    %c0_19 = arith.constant 0 : index
    %32 = vector.load %arg7[%c0_18, %c0_19] : memref<64x512xbf16, #tpu.memory_space<vmem>>, vector<64x512xbf16>
    %c0_20 = arith.constant 0 : index
    %c0_21 = arith.constant 0 : index
    %33 = vector.load %arg8[%c0_20, %c0_21] : memref<512x32xbf16, #tpu.memory_space<vmem>>, vector<512x32xbf16>
    %34 = arith.truncf %29 : vector<128x32xf32> to vector<128x32xbf16>
    %cst = arith.constant dense<0.000000e+00> : vector<64x32xf32>
    %35 = tpu.matmul %30, %34, %cst {dimension_numbers = #tpu.dot_dimension_numbers<[1], [0], [0], [1], [0, 0, 1, 1], [], []>} : vector<64x128xbf16>, vector<128x32xbf16>, vector<64x32xf32> -> vector<64x32xf32>
    %36 = arith.truncf %35 : vector<64x32xf32> to vector<64x32xbf16>
    %c0_22 = arith.constant 0 : index
    %c0_23 = arith.constant 0 : index
    %c0_24 = arith.constant 0 : index
    %37 = vector.load %arg6[%c0_22, %c0_23, %c0_24] : memref<4x32x1024xbf16, #tpu.memory_space<vmem>>, vector<1x32x1024xbf16>
    %38 = vector.shape_cast %37 : vector<1x32x1024xbf16> to vector<32x1024xbf16>
    %cst_25 = arith.constant dense<0.000000e+00> : vector<64x1024xf32>
    %39 = tpu.matmul %36, %38, %cst_25 {dimension_numbers = #tpu.dot_dimension_numbers<[1], [0], [0], [1], [0, 0, 1, 1], [], []>} : vector<64x32xbf16>, vector<32x1024xbf16>, vector<64x1024xf32> -> vector<64x1024xf32>
    %40 = vector.extract_strided_slice %39 {offsets = [0, 0], sizes = [16, 512], strides = [1, 1]} : vector<64x1024xf32> to vector<16x512xf32>
    %41 = vector.extract_strided_slice %39 {offsets = [0, 512], sizes = [16, 512], strides = [1, 1]} : vector<64x1024xf32> to vector<16x512xf32>
    %42 = vector.extract_strided_slice %39 {offsets = [16, 0], sizes = [16, 512], strides = [1, 1]} : vector<64x1024xf32> to vector<16x512xf32>
    %43 = vector.extract_strided_slice %39 {offsets = [16, 512], sizes = [16, 512], strides = [1, 1]} : vector<64x1024xf32> to vector<16x512xf32>
    %44 = arith.subf %40, %43 : vector<16x512xf32>
    %45 = arith.addf %41, %42 : vector<16x512xf32>
    %46 = vector.extract_strided_slice %39 {offsets = [32, 0], sizes = [16, 512], strides = [1, 1]} : vector<64x1024xf32> to vector<16x512xf32>
    %47 = vector.extract_strided_slice %39 {offsets = [32, 512], sizes = [16, 512], strides = [1, 1]} : vector<64x1024xf32> to vector<16x512xf32>
    %48 = vector.extract_strided_slice %39 {offsets = [48, 0], sizes = [16, 512], strides = [1, 1]} : vector<64x1024xf32> to vector<16x512xf32>
    %49 = vector.extract_strided_slice %39 {offsets = [48, 512], sizes = [16, 512], strides = [1, 1]} : vector<64x1024xf32> to vector<16x512xf32>
    %50 = arith.subf %46, %49 : vector<16x512xf32>
    %51 = arith.addf %47, %48 : vector<16x512xf32>
    %52 = tpu.concatenate %44, %45, %50, %51 in 0 : vector<16x512xf32>, vector<16x512xf32>, vector<16x512xf32>, vector<16x512xf32> -> vector<64x512xf32>
    %53 = arith.truncf %52 : vector<64x512xf32> to vector<64x512xbf16>
    %54 = arith.mulf %53, %32 : vector<64x512xbf16>
    %cst_26 = arith.constant dense<0.000000e+00> : vector<64x32xf32>
    %55 = tpu.matmul %54, %33, %cst_26 {dimension_numbers = #tpu.dot_dimension_numbers<[1], [0], [0], [1], [0, 0, 1, 1], [], []>} : vector<64x512xbf16>, vector<512x32xbf16>, vector<64x32xf32> -> vector<64x32xf32>
    %56 = arith.truncf %55 : vector<64x32xf32> to vector<64x32xbf16>
    %cst_27 = arith.constant dense<0.000000e+00> : vector<128x32xf32>
    %57 = tpu.matmul %31, %56, %cst_27 {dimension_numbers = #tpu.dot_dimension_numbers<[1], [0], [0], [1], [0, 0, 1, 1], [], []>} : vector<128x64xbf16>, vector<64x32xbf16>, vector<128x32xf32> -> vector<128x32xf32>
    %c0_28 = arith.constant 0 : index
    %c0_29 = arith.constant 0 : index
    %c0_30 = arith.constant 0 : index
    %58 = vector.load %arg9[%c0_28, %c0_29, %c0_30] : memref<4x32x32xbf16, #tpu.memory_space<vmem>>, vector<1x32x32xbf16>
    %59 = vector.shape_cast %58 : vector<1x32x32xbf16> to vector<32x32xbf16>
    %cst_31 = arith.constant dense<0.000000e+00> : vector<128x32xf32>
    %60 = tpu.matmul %34, %59, %cst_31 {dimension_numbers = #tpu.dot_dimension_numbers<[1], [0], [0], [1], [0, 0, 1, 1], [], []>} : vector<128x32xbf16>, vector<32x32xbf16>, vector<128x32xf32> -> vector<128x32xf32>
    %61 = arith.addf %57, %60 : vector<128x32xf32>
    %c0_32 = arith.constant 0 : index
    %c0_33 = arith.constant 0 : index
    %c0_34 = arith.constant 0 : index
    %62 = vector.load %arg10[%c0_32, %c0_33, %c0_34] : memref<4x1x32xf32, #tpu.memory_space<vmem>>, vector<1x1x32xf32>
    %63 = vector.shape_cast %62 : vector<1x1x32xf32> to vector<1x32xf32>
    %64 = vector.broadcast %63 : vector<1x32xf32> to vector<128x32xf32>
    %65 = arith.addf %61, %64 : vector<128x32xf32>
    %cst_35 = arith.constant 5.000000e-01 : f32
    %66 = vector.broadcast %cst_35 : f32 to vector<128x32xf32>
    %67 = arith.mulf %66, %65 : vector<128x32xf32>
    %cst_36 = arith.constant 0.707106769 : f32
    %68 = vector.broadcast %cst_36 : f32 to vector<128x32xf32>
    %69 = arith.mulf %65, %68 : vector<128x32xf32>
    %cst_37 = arith.constant 0.000000e+00 : f32
    %70 = vector.broadcast %cst_37 : f32 to vector<128x32xf32>
    %71 = arith.cmpf oge, %69, %70 : vector<128x32xf32>
    %cst_38 = arith.constant 1.000000e+00 : f32
    %cst_39 = arith.constant -1.000000e+00 : f32
    %72 = vector.broadcast %cst_38 : f32 to vector<128x32xf32>
    %73 = vector.broadcast %cst_39 : f32 to vector<128x32xf32>
    %74 = arith.select %71, %72, %73 : vector<128x32xi1>, vector<128x32xf32>
    %75 = math.absf %69 : vector<128x32xf32>
    %cst_40 = arith.constant 0.327591091 : f32
    %76 = vector.broadcast %cst_40 : f32 to vector<128x32xf32>
    %77 = arith.mulf %76, %75 : vector<128x32xf32>
    %cst_41 = arith.constant 1.000000e+00 : f32
    %78 = vector.broadcast %cst_41 : f32 to vector<128x32xf32>
    %79 = arith.addf %78, %77 : vector<128x32xf32>
    %cst_42 = arith.constant 1.000000e+00 : f32
    %80 = vector.broadcast %cst_42 : f32 to vector<128x32xf32>
    %81 = arith.divf %80, %79 : vector<128x32xf32>
    %cst_43 = arith.constant 1.06140542 : f32
    %82 = vector.broadcast %cst_43 : f32 to vector<128x32xf32>
    %83 = arith.mulf %82, %81 : vector<128x32xf32>
    %cst_44 = arith.constant -1.45315206 : f32
    %84 = vector.broadcast %cst_44 : f32 to vector<128x32xf32>
    %85 = arith.addf %83, %84 : vector<128x32xf32>
    %86 = arith.mulf %85, %81 : vector<128x32xf32>
    %cst_45 = arith.constant 1.42141378 : f32
    %87 = vector.broadcast %cst_45 : f32 to vector<128x32xf32>
    %88 = arith.addf %86, %87 : vector<128x32xf32>
    %89 = arith.mulf %88, %81 : vector<128x32xf32>
    %cst_46 = arith.constant -0.284496725 : f32
    %90 = vector.broadcast %cst_46 : f32 to vector<128x32xf32>
    %91 = arith.addf %89, %90 : vector<128x32xf32>
    %92 = arith.mulf %91, %81 : vector<128x32xf32>
    %cst_47 = arith.constant 0.254829586 : f32
    %93 = vector.broadcast %cst_47 : f32 to vector<128x32xf32>
    %94 = arith.addf %92, %93 : vector<128x32xf32>
    %95 = arith.mulf %94, %81 : vector<128x32xf32>
    %cst_48 = arith.constant 0.000000e+00 : f32
    %96 = vector.broadcast %cst_48 : f32 to vector<128x32xf32>
    %97 = arith.subf %96, %75 : vector<128x32xf32>
    %98 = arith.mulf %97, %75 : vector<128x32xf32>
    %99 = math.exp %98 : vector<128x32xf32>
    %100 = arith.mulf %95, %99 : vector<128x32xf32>
    %cst_49 = arith.constant 1.000000e+00 : f32
    %101 = vector.broadcast %cst_49 : f32 to vector<128x32xf32>
    %102 = arith.subf %101, %100 : vector<128x32xf32>
    %103 = arith.mulf %74, %102 : vector<128x32xf32>
    %cst_50 = arith.constant 1.000000e+00 : f32
    %104 = vector.broadcast %cst_50 : f32 to vector<128x32xf32>
    %105 = arith.addf %104, %103 : vector<128x32xf32>
    %106 = arith.mulf %67, %105 : vector<128x32xf32>
    %107 = arith.truncf %106 : vector<128x32xf32> to vector<128x32xbf16>
    %cst_51 = arith.constant dense<0.000000e+00> : vector<64x32xf32>
    %108 = tpu.matmul %30, %107, %cst_51 {dimension_numbers = #tpu.dot_dimension_numbers<[1], [0], [0], [1], [0, 0, 1, 1], [], []>} : vector<64x128xbf16>, vector<128x32xbf16>, vector<64x32xf32> -> vector<64x32xf32>
    %109 = arith.truncf %108 : vector<64x32xf32> to vector<64x32xbf16>
    %c1_52 = arith.constant 1 : index
    %c0_53 = arith.constant 0 : index
    %c0_54 = arith.constant 0 : index
    %110 = vector.load %arg6[%c1_52, %c0_53, %c0_54] : memref<4x32x1024xbf16, #tpu.memory_space<vmem>>, vector<1x32x1024xbf16>
    %111 = vector.shape_cast %110 : vector<1x32x1024xbf16> to vector<32x1024xbf16>
    %cst_55 = arith.constant dense<0.000000e+00> : vector<64x1024xf32>
    %112 = tpu.matmul %109, %111, %cst_55 {dimension_numbers = #tpu.dot_dimension_numbers<[1], [0], [0], [1], [0, 0, 1, 1], [], []>} : vector<64x32xbf16>, vector<32x1024xbf16>, vector<64x1024xf32> -> vector<64x1024xf32>
    %113 = vector.extract_strided_slice %112 {offsets = [0, 0], sizes = [16, 512], strides = [1, 1]} : vector<64x1024xf32> to vector<16x512xf32>
    %114 = vector.extract_strided_slice %112 {offsets = [0, 512], sizes = [16, 512], strides = [1, 1]} : vector<64x1024xf32> to vector<16x512xf32>
    %115 = vector.extract_strided_slice %112 {offsets = [16, 0], sizes = [16, 512], strides = [1, 1]} : vector<64x1024xf32> to vector<16x512xf32>
    %116 = vector.extract_strided_slice %112 {offsets = [16, 512], sizes = [16, 512], strides = [1, 1]} : vector<64x1024xf32> to vector<16x512xf32>
    %117 = arith.subf %113, %116 : vector<16x512xf32>
    %118 = arith.addf %114, %115 : vector<16x512xf32>
    %119 = vector.extract_strided_slice %112 {offsets = [32, 0], sizes = [16, 512], strides = [1, 1]} : vector<64x1024xf32> to vector<16x512xf32>
    %120 = vector.extract_strided_slice %112 {offsets = [32, 512], sizes = [16, 512], strides = [1, 1]} : vector<64x1024xf32> to vector<16x512xf32>
    %121 = vector.extract_strided_slice %112 {offsets = [48, 0], sizes = [16, 512], strides = [1, 1]} : vector<64x1024xf32> to vector<16x512xf32>
    %122 = vector.extract_strided_slice %112 {offsets = [48, 512], sizes = [16, 512], strides = [1, 1]} : vector<64x1024xf32> to vector<16x512xf32>
    %123 = arith.subf %119, %122 : vector<16x512xf32>
    %124 = arith.addf %120, %121 : vector<16x512xf32>
    %125 = tpu.concatenate %117, %118, %123, %124 in 0 : vector<16x512xf32>, vector<16x512xf32>, vector<16x512xf32>, vector<16x512xf32> -> vector<64x512xf32>
    %126 = arith.truncf %125 : vector<64x512xf32> to vector<64x512xbf16>
    %127 = arith.mulf %126, %32 : vector<64x512xbf16>
    %cst_56 = arith.constant dense<0.000000e+00> : vector<64x32xf32>
    %128 = tpu.matmul %127, %33, %cst_56 {dimension_numbers = #tpu.dot_dimension_numbers<[1], [0], [0], [1], [0, 0, 1, 1], [], []>} : vector<64x512xbf16>, vector<512x32xbf16>, vector<64x32xf32> -> vector<64x32xf32>
    %129 = arith.truncf %128 : vector<64x32xf32> to vector<64x32xbf16>
    %cst_57 = arith.constant dense<0.000000e+00> : vector<128x32xf32>
    %130 = tpu.matmul %31, %129, %cst_57 {dimension_numbers = #tpu.dot_dimension_numbers<[1], [0], [0], [1], [0, 0, 1, 1], [], []>} : vector<128x64xbf16>, vector<64x32xbf16>, vector<128x32xf32> -> vector<128x32xf32>
    %c1_58 = arith.constant 1 : index
    %c0_59 = arith.constant 0 : index
    %c0_60 = arith.constant 0 : index
    %131 = vector.load %arg9[%c1_58, %c0_59, %c0_60] : memref<4x32x32xbf16, #tpu.memory_space<vmem>>, vector<1x32x32xbf16>
    %132 = vector.shape_cast %131 : vector<1x32x32xbf16> to vector<32x32xbf16>
    %cst_61 = arith.constant dense<0.000000e+00> : vector<128x32xf32>
    %133 = tpu.matmul %107, %132, %cst_61 {dimension_numbers = #tpu.dot_dimension_numbers<[1], [0], [0], [1], [0, 0, 1, 1], [], []>} : vector<128x32xbf16>, vector<32x32xbf16>, vector<128x32xf32> -> vector<128x32xf32>
    %134 = arith.addf %130, %133 : vector<128x32xf32>
    %c1_62 = arith.constant 1 : index
    %c0_63 = arith.constant 0 : index
    %c0_64 = arith.constant 0 : index
    %135 = vector.load %arg10[%c1_62, %c0_63, %c0_64] : memref<4x1x32xf32, #tpu.memory_space<vmem>>, vector<1x1x32xf32>
    %136 = vector.shape_cast %135 : vector<1x1x32xf32> to vector<1x32xf32>
    %137 = vector.broadcast %136 : vector<1x32xf32> to vector<128x32xf32>
    %138 = arith.addf %134, %137 : vector<128x32xf32>
    %cst_65 = arith.constant 5.000000e-01 : f32
    %139 = vector.broadcast %cst_65 : f32 to vector<128x32xf32>
    %140 = arith.mulf %139, %138 : vector<128x32xf32>
    %cst_66 = arith.constant 0.707106769 : f32
    %141 = vector.broadcast %cst_66 : f32 to vector<128x32xf32>
    %142 = arith.mulf %138, %141 : vector<128x32xf32>
    %cst_67 = arith.constant 0.000000e+00 : f32
    %143 = vector.broadcast %cst_67 : f32 to vector<128x32xf32>
    %144 = arith.cmpf oge, %142, %143 : vector<128x32xf32>
    %cst_68 = arith.constant 1.000000e+00 : f32
    %cst_69 = arith.constant -1.000000e+00 : f32
    %145 = vector.broadcast %cst_68 : f32 to vector<128x32xf32>
    %146 = vector.broadcast %cst_69 : f32 to vector<128x32xf32>
    %147 = arith.select %144, %145, %146 : vector<128x32xi1>, vector<128x32xf32>
    %148 = math.absf %142 : vector<128x32xf32>
    %cst_70 = arith.constant 0.327591091 : f32
    %149 = vector.broadcast %cst_70 : f32 to vector<128x32xf32>
    %150 = arith.mulf %149, %148 : vector<128x32xf32>
    %cst_71 = arith.constant 1.000000e+00 : f32
    %151 = vector.broadcast %cst_71 : f32 to vector<128x32xf32>
    %152 = arith.addf %151, %150 : vector<128x32xf32>
    %cst_72 = arith.constant 1.000000e+00 : f32
    %153 = vector.broadcast %cst_72 : f32 to vector<128x32xf32>
    %154 = arith.divf %153, %152 : vector<128x32xf32>
    %cst_73 = arith.constant 1.06140542 : f32
    %155 = vector.broadcast %cst_73 : f32 to vector<128x32xf32>
    %156 = arith.mulf %155, %154 : vector<128x32xf32>
    %cst_74 = arith.constant -1.45315206 : f32
    %157 = vector.broadcast %cst_74 : f32 to vector<128x32xf32>
    %158 = arith.addf %156, %157 : vector<128x32xf32>
    %159 = arith.mulf %158, %154 : vector<128x32xf32>
    %cst_75 = arith.constant 1.42141378 : f32
    %160 = vector.broadcast %cst_75 : f32 to vector<128x32xf32>
    %161 = arith.addf %159, %160 : vector<128x32xf32>
    %162 = arith.mulf %161, %154 : vector<128x32xf32>
    %cst_76 = arith.constant -0.284496725 : f32
    %163 = vector.broadcast %cst_76 : f32 to vector<128x32xf32>
    %164 = arith.addf %162, %163 : vector<128x32xf32>
    %165 = arith.mulf %164, %154 : vector<128x32xf32>
    %cst_77 = arith.constant 0.254829586 : f32
    %166 = vector.broadcast %cst_77 : f32 to vector<128x32xf32>
    %167 = arith.addf %165, %166 : vector<128x32xf32>
    %168 = arith.mulf %167, %154 : vector<128x32xf32>
    %cst_78 = arith.constant 0.000000e+00 : f32
    %169 = vector.broadcast %cst_78 : f32 to vector<128x32xf32>
    %170 = arith.subf %169, %148 : vector<128x32xf32>
    %171 = arith.mulf %170, %148 : vector<128x32xf32>
    %172 = math.exp %171 : vector<128x32xf32>
    %173 = arith.mulf %168, %172 : vector<128x32xf32>
    %cst_79 = arith.constant 1.000000e+00 : f32
    %174 = vector.broadcast %cst_79 : f32 to vector<128x32xf32>
    %175 = arith.subf %174, %173 : vector<128x32xf32>
    %176 = arith.mulf %147, %175 : vector<128x32xf32>
    %cst_80 = arith.constant 1.000000e+00 : f32
    %177 = vector.broadcast %cst_80 : f32 to vector<128x32xf32>
    %178 = arith.addf %177, %176 : vector<128x32xf32>
    %179 = arith.mulf %140, %178 : vector<128x32xf32>
    %180 = arith.truncf %179 : vector<128x32xf32> to vector<128x32xbf16>
    %cst_81 = arith.constant dense<0.000000e+00> : vector<64x32xf32>
    %181 = tpu.matmul %30, %180, %cst_81 {dimension_numbers = #tpu.dot_dimension_numbers<[1], [0], [0], [1], [0, 0, 1, 1], [], []>} : vector<64x128xbf16>, vector<128x32xbf16>, vector<64x32xf32> -> vector<64x32xf32>
    %182 = arith.truncf %181 : vector<64x32xf32> to vector<64x32xbf16>
    %c2 = arith.constant 2 : index
    %c0_82 = arith.constant 0 : index
    %c0_83 = arith.constant 0 : index
    %183 = vector.load %arg6[%c2, %c0_82, %c0_83] : memref<4x32x1024xbf16, #tpu.memory_space<vmem>>, vector<1x32x1024xbf16>
    %184 = vector.shape_cast %183 : vector<1x32x1024xbf16> to vector<32x1024xbf16>
    %cst_84 = arith.constant dense<0.000000e+00> : vector<64x1024xf32>
    %185 = tpu.matmul %182, %184, %cst_84 {dimension_numbers = #tpu.dot_dimension_numbers<[1], [0], [0], [1], [0, 0, 1, 1], [], []>} : vector<64x32xbf16>, vector<32x1024xbf16>, vector<64x1024xf32> -> vector<64x1024xf32>
    %186 = vector.extract_strided_slice %185 {offsets = [0, 0], sizes = [16, 512], strides = [1, 1]} : vector<64x1024xf32> to vector<16x512xf32>
    %187 = vector.extract_strided_slice %185 {offsets = [0, 512], sizes = [16, 512], strides = [1, 1]} : vector<64x1024xf32> to vector<16x512xf32>
    %188 = vector.extract_strided_slice %185 {offsets = [16, 0], sizes = [16, 512], strides = [1, 1]} : vector<64x1024xf32> to vector<16x512xf32>
    %189 = vector.extract_strided_slice %185 {offsets = [16, 512], sizes = [16, 512], strides = [1, 1]} : vector<64x1024xf32> to vector<16x512xf32>
    %190 = arith.subf %186, %189 : vector<16x512xf32>
    %191 = arith.addf %187, %188 : vector<16x512xf32>
    %192 = vector.extract_strided_slice %185 {offsets = [32, 0], sizes = [16, 512], strides = [1, 1]} : vector<64x1024xf32> to vector<16x512xf32>
    %193 = vector.extract_strided_slice %185 {offsets = [32, 512], sizes = [16, 512], strides = [1, 1]} : vector<64x1024xf32> to vector<16x512xf32>
    %194 = vector.extract_strided_slice %185 {offsets = [48, 0], sizes = [16, 512], strides = [1, 1]} : vector<64x1024xf32> to vector<16x512xf32>
    %195 = vector.extract_strided_slice %185 {offsets = [48, 512], sizes = [16, 512], strides = [1, 1]} : vector<64x1024xf32> to vector<16x512xf32>
    %196 = arith.subf %192, %195 : vector<16x512xf32>
    %197 = arith.addf %193, %194 : vector<16x512xf32>
    %198 = tpu.concatenate %190, %191, %196, %197 in 0 : vector<16x512xf32>, vector<16x512xf32>, vector<16x512xf32>, vector<16x512xf32> -> vector<64x512xf32>
    %199 = arith.truncf %198 : vector<64x512xf32> to vector<64x512xbf16>
    %200 = arith.mulf %199, %32 : vector<64x512xbf16>
    %cst_85 = arith.constant dense<0.000000e+00> : vector<64x32xf32>
    %201 = tpu.matmul %200, %33, %cst_85 {dimension_numbers = #tpu.dot_dimension_numbers<[1], [0], [0], [1], [0, 0, 1, 1], [], []>} : vector<64x512xbf16>, vector<512x32xbf16>, vector<64x32xf32> -> vector<64x32xf32>
    %202 = arith.truncf %201 : vector<64x32xf32> to vector<64x32xbf16>
    %cst_86 = arith.constant dense<0.000000e+00> : vector<128x32xf32>
    %203 = tpu.matmul %31, %202, %cst_86 {dimension_numbers = #tpu.dot_dimension_numbers<[1], [0], [0], [1], [0, 0, 1, 1], [], []>} : vector<128x64xbf16>, vector<64x32xbf16>, vector<128x32xf32> -> vector<128x32xf32>
    %c2_87 = arith.constant 2 : index
    %c0_88 = arith.constant 0 : index
    %c0_89 = arith.constant 0 : index
    %204 = vector.load %arg9[%c2_87, %c0_88, %c0_89] : memref<4x32x32xbf16, #tpu.memory_space<vmem>>, vector<1x32x32xbf16>
    %205 = vector.shape_cast %204 : vector<1x32x32xbf16> to vector<32x32xbf16>
    %cst_90 = arith.constant dense<0.000000e+00> : vector<128x32xf32>
    %206 = tpu.matmul %180, %205, %cst_90 {dimension_numbers = #tpu.dot_dimension_numbers<[1], [0], [0], [1], [0, 0, 1, 1], [], []>} : vector<128x32xbf16>, vector<32x32xbf16>, vector<128x32xf32> -> vector<128x32xf32>
    %207 = arith.addf %203, %206 : vector<128x32xf32>
    %c2_91 = arith.constant 2 : index
    %c0_92 = arith.constant 0 : index
    %c0_93 = arith.constant 0 : index
    %208 = vector.load %arg10[%c2_91, %c0_92, %c0_93] : memref<4x1x32xf32, #tpu.memory_space<vmem>>, vector<1x1x32xf32>
    %209 = vector.shape_cast %208 : vector<1x1x32xf32> to vector<1x32xf32>
    %210 = vector.broadcast %209 : vector<1x32xf32> to vector<128x32xf32>
    %211 = arith.addf %207, %210 : vector<128x32xf32>
    %cst_94 = arith.constant 5.000000e-01 : f32
    %212 = vector.broadcast %cst_94 : f32 to vector<128x32xf32>
    %213 = arith.mulf %212, %211 : vector<128x32xf32>
    %cst_95 = arith.constant 0.707106769 : f32
    %214 = vector.broadcast %cst_95 : f32 to vector<128x32xf32>
    %215 = arith.mulf %211, %214 : vector<128x32xf32>
    %cst_96 = arith.constant 0.000000e+00 : f32
    %216 = vector.broadcast %cst_96 : f32 to vector<128x32xf32>
    %217 = arith.cmpf oge, %215, %216 : vector<128x32xf32>
    %cst_97 = arith.constant 1.000000e+00 : f32
    %cst_98 = arith.constant -1.000000e+00 : f32
    %218 = vector.broadcast %cst_97 : f32 to vector<128x32xf32>
    %219 = vector.broadcast %cst_98 : f32 to vector<128x32xf32>
    %220 = arith.select %217, %218, %219 : vector<128x32xi1>, vector<128x32xf32>
    %221 = math.absf %215 : vector<128x32xf32>
    %cst_99 = arith.constant 0.327591091 : f32
    %222 = vector.broadcast %cst_99 : f32 to vector<128x32xf32>
    %223 = arith.mulf %222, %221 : vector<128x32xf32>
    %cst_100 = arith.constant 1.000000e+00 : f32
    %224 = vector.broadcast %cst_100 : f32 to vector<128x32xf32>
    %225 = arith.addf %224, %223 : vector<128x32xf32>
    %cst_101 = arith.constant 1.000000e+00 : f32
    %226 = vector.broadcast %cst_101 : f32 to vector<128x32xf32>
    %227 = arith.divf %226, %225 : vector<128x32xf32>
    %cst_102 = arith.constant 1.06140542 : f32
    %228 = vector.broadcast %cst_102 : f32 to vector<128x32xf32>
    %229 = arith.mulf %228, %227 : vector<128x32xf32>
    %cst_103 = arith.constant -1.45315206 : f32
    %230 = vector.broadcast %cst_103 : f32 to vector<128x32xf32>
    %231 = arith.addf %229, %230 : vector<128x32xf32>
    %232 = arith.mulf %231, %227 : vector<128x32xf32>
    %cst_104 = arith.constant 1.42141378 : f32
    %233 = vector.broadcast %cst_104 : f32 to vector<128x32xf32>
    %234 = arith.addf %232, %233 : vector<128x32xf32>
    %235 = arith.mulf %234, %227 : vector<128x32xf32>
    %cst_105 = arith.constant -0.284496725 : f32
    %236 = vector.broadcast %cst_105 : f32 to vector<128x32xf32>
    %237 = arith.addf %235, %236 : vector<128x32xf32>
    %238 = arith.mulf %237, %227 : vector<128x32xf32>
    %cst_106 = arith.constant 0.254829586 : f32
    %239 = vector.broadcast %cst_106 : f32 to vector<128x32xf32>
    %240 = arith.addf %238, %239 : vector<128x32xf32>
    %241 = arith.mulf %240, %227 : vector<128x32xf32>
    %cst_107 = arith.constant 0.000000e+00 : f32
    %242 = vector.broadcast %cst_107 : f32 to vector<128x32xf32>
    %243 = arith.subf %242, %221 : vector<128x32xf32>
    %244 = arith.mulf %243, %221 : vector<128x32xf32>
    %245 = math.exp %244 : vector<128x32xf32>
    %246 = arith.mulf %241, %245 : vector<128x32xf32>
    %cst_108 = arith.constant 1.000000e+00 : f32
    %247 = vector.broadcast %cst_108 : f32 to vector<128x32xf32>
    %248 = arith.subf %247, %246 : vector<128x32xf32>
    %249 = arith.mulf %220, %248 : vector<128x32xf32>
    %cst_109 = arith.constant 1.000000e+00 : f32
    %250 = vector.broadcast %cst_109 : f32 to vector<128x32xf32>
    %251 = arith.addf %250, %249 : vector<128x32xf32>
    %252 = arith.mulf %213, %251 : vector<128x32xf32>
    %253 = arith.truncf %252 : vector<128x32xf32> to vector<128x32xbf16>
    %cst_110 = arith.constant dense<0.000000e+00> : vector<64x32xf32>
    %254 = tpu.matmul %30, %253, %cst_110 {dimension_numbers = #tpu.dot_dimension_numbers<[1], [0], [0], [1], [0, 0, 1, 1], [], []>} : vector<64x128xbf16>, vector<128x32xbf16>, vector<64x32xf32> -> vector<64x32xf32>
    %255 = arith.truncf %254 : vector<64x32xf32> to vector<64x32xbf16>
    %c3 = arith.constant 3 : index
    %c0_111 = arith.constant 0 : index
    %c0_112 = arith.constant 0 : index
    %256 = vector.load %arg6[%c3, %c0_111, %c0_112] : memref<4x32x1024xbf16, #tpu.memory_space<vmem>>, vector<1x32x1024xbf16>
    %257 = vector.shape_cast %256 : vector<1x32x1024xbf16> to vector<32x1024xbf16>
    %cst_113 = arith.constant dense<0.000000e+00> : vector<64x1024xf32>
    %258 = tpu.matmul %255, %257, %cst_113 {dimension_numbers = #tpu.dot_dimension_numbers<[1], [0], [0], [1], [0, 0, 1, 1], [], []>} : vector<64x32xbf16>, vector<32x1024xbf16>, vector<64x1024xf32> -> vector<64x1024xf32>
    %259 = vector.extract_strided_slice %258 {offsets = [0, 0], sizes = [16, 512], strides = [1, 1]} : vector<64x1024xf32> to vector<16x512xf32>
    %260 = vector.extract_strided_slice %258 {offsets = [0, 512], sizes = [16, 512], strides = [1, 1]} : vector<64x1024xf32> to vector<16x512xf32>
    %261 = vector.extract_strided_slice %258 {offsets = [16, 0], sizes = [16, 512], strides = [1, 1]} : vector<64x1024xf32> to vector<16x512xf32>
    %262 = vector.extract_strided_slice %258 {offsets = [16, 512], sizes = [16, 512], strides = [1, 1]} : vector<64x1024xf32> to vector<16x512xf32>
    %263 = arith.subf %259, %262 : vector<16x512xf32>
    %264 = arith.addf %260, %261 : vector<16x512xf32>
    %265 = vector.extract_strided_slice %258 {offsets = [32, 0], sizes = [16, 512], strides = [1, 1]} : vector<64x1024xf32> to vector<16x512xf32>
    %266 = vector.extract_strided_slice %258 {offsets = [32, 512], sizes = [16, 512], strides = [1, 1]} : vector<64x1024xf32> to vector<16x512xf32>
    %267 = vector.extract_strided_slice %258 {offsets = [48, 0], sizes = [16, 512], strides = [1, 1]} : vector<64x1024xf32> to vector<16x512xf32>
    %268 = vector.extract_strided_slice %258 {offsets = [48, 512], sizes = [16, 512], strides = [1, 1]} : vector<64x1024xf32> to vector<16x512xf32>
    %269 = arith.subf %265, %268 : vector<16x512xf32>
    %270 = arith.addf %266, %267 : vector<16x512xf32>
    %271 = tpu.concatenate %263, %264, %269, %270 in 0 : vector<16x512xf32>, vector<16x512xf32>, vector<16x512xf32>, vector<16x512xf32> -> vector<64x512xf32>
    %272 = arith.truncf %271 : vector<64x512xf32> to vector<64x512xbf16>
    %273 = arith.mulf %272, %32 : vector<64x512xbf16>
    %cst_114 = arith.constant dense<0.000000e+00> : vector<64x32xf32>
    %274 = tpu.matmul %273, %33, %cst_114 {dimension_numbers = #tpu.dot_dimension_numbers<[1], [0], [0], [1], [0, 0, 1, 1], [], []>} : vector<64x512xbf16>, vector<512x32xbf16>, vector<64x32xf32> -> vector<64x32xf32>
    %275 = arith.truncf %274 : vector<64x32xf32> to vector<64x32xbf16>
    %cst_115 = arith.constant dense<0.000000e+00> : vector<128x32xf32>
    %276 = tpu.matmul %31, %275, %cst_115 {dimension_numbers = #tpu.dot_dimension_numbers<[1], [0], [0], [1], [0, 0, 1, 1], [], []>} : vector<128x64xbf16>, vector<64x32xbf16>, vector<128x32xf32> -> vector<128x32xf32>
    %c3_116 = arith.constant 3 : index
    %c0_117 = arith.constant 0 : index
    %c0_118 = arith.constant 0 : index
    %277 = vector.load %arg9[%c3_116, %c0_117, %c0_118] : memref<4x32x32xbf16, #tpu.memory_space<vmem>>, vector<1x32x32xbf16>
    %278 = vector.shape_cast %277 : vector<1x32x32xbf16> to vector<32x32xbf16>
    %cst_119 = arith.constant dense<0.000000e+00> : vector<128x32xf32>
    %279 = tpu.matmul %253, %278, %cst_119 {dimension_numbers = #tpu.dot_dimension_numbers<[1], [0], [0], [1], [0, 0, 1, 1], [], []>} : vector<128x32xbf16>, vector<32x32xbf16>, vector<128x32xf32> -> vector<128x32xf32>
    %280 = arith.addf %276, %279 : vector<128x32xf32>
    %c3_120 = arith.constant 3 : index
    %c0_121 = arith.constant 0 : index
    %c0_122 = arith.constant 0 : index
    %281 = vector.load %arg10[%c3_120, %c0_121, %c0_122] : memref<4x1x32xf32, #tpu.memory_space<vmem>>, vector<1x1x32xf32>
    %282 = vector.shape_cast %281 : vector<1x1x32xf32> to vector<1x32xf32>
    %283 = vector.broadcast %282 : vector<1x32xf32> to vector<128x32xf32>
    %284 = arith.addf %280, %283 : vector<128x32xf32>
    %285 = arith.truncf %284 : vector<128x32xf32> to vector<128x32xbf16>
    %c0_123 = arith.constant 0 : index
    %c0_124 = arith.constant 0 : index
    %286 = vector.load %arg11[%c0_123, %c0_124] : memref<32x256xbf16, #tpu.memory_space<vmem>>, vector<32x256xbf16>
    %cst_125 = arith.constant dense<0.000000e+00> : vector<128x256xf32>
    %287 = tpu.matmul %285, %286, %cst_125 {dimension_numbers = #tpu.dot_dimension_numbers<[1], [0], [0], [1], [0, 0, 1, 1], [], []>} : vector<128x32xbf16>, vector<32x256xbf16>, vector<128x256xf32> -> vector<128x256xf32>
    %c0_126 = arith.constant 0 : index
    %c0_127 = arith.constant 0 : index
    %288 = vector.load %arg12[%c0_126, %c0_127] : memref<1x256xf32, #tpu.memory_space<vmem>>, vector<1x256xf32>
    %289 = vector.broadcast %288 : vector<1x256xf32> to vector<128x256xf32>
    %290 = arith.addf %287, %289 : vector<128x256xf32>
    %cst_128 = arith.constant 5.000000e-01 : f32
    %291 = vector.broadcast %cst_128 : f32 to vector<128x256xf32>
    %292 = arith.mulf %291, %290 : vector<128x256xf32>
    %cst_129 = arith.constant 0.707106769 : f32
    %293 = vector.broadcast %cst_129 : f32 to vector<128x256xf32>
    %294 = arith.mulf %290, %293 : vector<128x256xf32>
    %cst_130 = arith.constant 0.000000e+00 : f32
    %295 = vector.broadcast %cst_130 : f32 to vector<128x256xf32>
    %296 = arith.cmpf oge, %294, %295 : vector<128x256xf32>
    %cst_131 = arith.constant 1.000000e+00 : f32
    %cst_132 = arith.constant -1.000000e+00 : f32
    %297 = vector.broadcast %cst_131 : f32 to vector<128x256xf32>
    %298 = vector.broadcast %cst_132 : f32 to vector<128x256xf32>
    %299 = arith.select %296, %297, %298 : vector<128x256xi1>, vector<128x256xf32>
    %300 = math.absf %294 : vector<128x256xf32>
    %cst_133 = arith.constant 0.327591091 : f32
    %301 = vector.broadcast %cst_133 : f32 to vector<128x256xf32>
    %302 = arith.mulf %301, %300 : vector<128x256xf32>
    %cst_134 = arith.constant 1.000000e+00 : f32
    %303 = vector.broadcast %cst_134 : f32 to vector<128x256xf32>
    %304 = arith.addf %303, %302 : vector<128x256xf32>
    %cst_135 = arith.constant 1.000000e+00 : f32
    %305 = vector.broadcast %cst_135 : f32 to vector<128x256xf32>
    %306 = arith.divf %305, %304 : vector<128x256xf32>
    %cst_136 = arith.constant 1.06140542 : f32
    %307 = vector.broadcast %cst_136 : f32 to vector<128x256xf32>
    %308 = arith.mulf %307, %306 : vector<128x256xf32>
    %cst_137 = arith.constant -1.45315206 : f32
    %309 = vector.broadcast %cst_137 : f32 to vector<128x256xf32>
    %310 = arith.addf %308, %309 : vector<128x256xf32>
    %311 = arith.mulf %310, %306 : vector<128x256xf32>
    %cst_138 = arith.constant 1.42141378 : f32
    %312 = vector.broadcast %cst_138 : f32 to vector<128x256xf32>
    %313 = arith.addf %311, %312 : vector<128x256xf32>
    %314 = arith.mulf %313, %306 : vector<128x256xf32>
    %cst_139 = arith.constant -0.284496725 : f32
    %315 = vector.broadcast %cst_139 : f32 to vector<128x256xf32>
    %316 = arith.addf %314, %315 : vector<128x256xf32>
    %317 = arith.mulf %316, %306 : vector<128x256xf32>
    %cst_140 = arith.constant 0.254829586 : f32
    %318 = vector.broadcast %cst_140 : f32 to vector<128x256xf32>
    %319 = arith.addf %317, %318 : vector<128x256xf32>
    %320 = arith.mulf %319, %306 : vector<128x256xf32>
    %cst_141 = arith.constant 0.000000e+00 : f32
    %321 = vector.broadcast %cst_141 : f32 to vector<128x256xf32>
    %322 = arith.subf %321, %300 : vector<128x256xf32>
    %323 = arith.mulf %322, %300 : vector<128x256xf32>
    %324 = math.exp %323 : vector<128x256xf32>
    %325 = arith.mulf %320, %324 : vector<128x256xf32>
    %cst_142 = arith.constant 1.000000e+00 : f32
    %326 = vector.broadcast %cst_142 : f32 to vector<128x256xf32>
    %327 = arith.subf %326, %325 : vector<128x256xf32>
    %328 = arith.mulf %299, %327 : vector<128x256xf32>
    %cst_143 = arith.constant 1.000000e+00 : f32
    %329 = vector.broadcast %cst_143 : f32 to vector<128x256xf32>
    %330 = arith.addf %329, %328 : vector<128x256xf32>
    %331 = arith.mulf %292, %330 : vector<128x256xf32>
    %332 = tpu.transpose %331, [1, 0] : vector<128x256xf32> -> vector<256x128xf32>
    %c0_144 = arith.constant 0 : index
    %c0_145 = arith.constant 0 : index
    %333 = vector.load %arg13[%c0_144, %c0_145] : memref<1x256xbf16, #tpu.memory_space<vmem>>, vector<1x256xbf16>
    %334 = arith.truncf %332 : vector<256x128xf32> to vector<256x128xbf16>
    %cst_146 = arith.constant dense<0.000000e+00> : vector<1x128xf32>
    %335 = tpu.matmul %333, %334, %cst_146 {dimension_numbers = #tpu.dot_dimension_numbers<[1], [0], [0], [1], [0, 0, 1, 1], [], []>} : vector<1x256xbf16>, vector<256x128xbf16>, vector<1x128xf32> -> vector<1x128xf32>
    %c0_147 = arith.constant 0 : index
    %c0_148 = arith.constant 0 : index
    %336 = vector.load %arg14[%c0_147, %c0_148] : memref<1x1xf32, #tpu.memory_space<vmem>>, vector<1x1xf32>
    %337 = vector.broadcast %336 : vector<1x1xf32> to vector<1x128xf32>
    %338 = arith.addf %335, %337 : vector<1x128xf32>
    %c0_149 = arith.constant 0 : index
    %c0_150 = arith.constant 0 : index
    %339 = vector.load %arg15[%c0_149, %c0_150] : memref<1x128xf32, #tpu.memory_space<vmem>>, vector<1x128xf32>
    tpu.vector_store %arg15[%c0_149, %c0_150], %338 {strides = array<i32>} : memref<1x128xf32, #tpu.memory_space<vmem>>, vector<1x128xf32>,
    return
  }
  func.func @transform_0(%arg0: i32) -> (i32, i32, i32) {
    %c0_i32 = arith.constant 0 : i32
    %c0_i32_0 = arith.constant 0 : i32
    %c0_i32_1 = arith.constant 0 : i32
    %c0_i32_2 = arith.constant 0 : i32
    return %c0_i32, %c0_i32_0, %c0_i32_1 : i32, i32, i32
  }
  func.func @transform_1(%arg0: i32) -> (i32, i32) {
    %c0_i32 = arith.constant 0 : i32
    %c0_i32_0 = arith.constant 0 : i32
    %c0_i32_1 = arith.constant 0 : i32
    return %c0_i32, %c0_i32_0 : i32, i32
  }
  func.func @transform_2(%arg0: i32) -> (i32, i32) {
    %c0_i32 = arith.constant 0 : i32
    %c0_i32_0 = arith.constant 0 : i32
    %c0_i32_1 = arith.constant 0 : i32
    return %c0_i32, %c0_i32_0 : i32, i32
  }
  func.func @transform_3(%arg0: i32) -> (i32, i32) {
    %c0_i32 = arith.constant 0 : i32
    %c0_i32_0 = arith.constant 0 : i32
    %c0_i32_1 = arith.constant 0 : i32
    return %c0_i32, %c0_i32_0 : i32, i32
  }
  func.func @transform_4(%arg0: i32) -> (i32, i32) {
    %c0_i32 = arith.constant 0 : i32
    %c0_i32_0 = arith.constant 0 : i32
    %c0_i32_1 = arith.constant 0 : i32
    return %c0_i32, %c0_i32_0 : i32, i32
  }
  func.func @transform_5(%arg0: i32) -> (i32, i32, i32) {
    %c0_i32 = arith.constant 0 : i32
    %c0_i32_0 = arith.constant 0 : i32
    %c0_i32_1 = arith.constant 0 : i32
    %c0_i32_2 = arith.constant 0 : i32
    return %c0_i32, %c0_i32_0, %c0_i32_1 : i32, i32, i32
  }
  func.func @transform_6(%arg0: i32) -> (i32, i32) {
    %c0_i32 = arith.constant 0 : i32
    %c0_i32_0 = arith.constant 0 : i32
    %c0_i32_1 = arith.constant 0 : i32
    return %c0_i32, %c0_i32_0 : i32, i32
  }
  func.func @transform_7(%arg0: i32) -> (i32, i32) {
    %c0_i32 = arith.constant 0 : i32
    %c0_i32_0 = arith.constant 0 : i32
    %c0_i32_1 = arith.constant 0 : i32
    return %c0_i32, %c0_i32_0 : i32, i32
  }
  func.func @transform_8(%arg0: i32) -> (i32, i32, i32) {
    %c0_i32 = arith.constant 0 : i32
    %c0_i32_0 = arith.constant 0 : i32
    %c0_i32_1 = arith.constant 0 : i32
    %c0_i32_2 = arith.constant 0 : i32
    return %c0_i32, %c0_i32_0, %c0_i32_1 : i32, i32, i32
  }
  func.func @transform_9(%arg0: i32) -> (i32, i32, i32) {
    %c0_i32 = arith.constant 0 : i32
    %c0_i32_0 = arith.constant 0 : i32
    %c0_i32_1 = arith.constant 0 : i32
    %c0_i32_2 = arith.constant 0 : i32
    return %c0_i32, %c0_i32_0, %c0_i32_1 : i32, i32, i32
  }
  func.func @transform_10(%arg0: i32) -> (i32, i32) {
    %c0_i32 = arith.constant 0 : i32
    %c0_i32_0 = arith.constant 0 : i32
    %c0_i32_1 = arith.constant 0 : i32
    return %c0_i32, %c0_i32_0 : i32, i32
  }
  func.func @transform_11(%arg0: i32) -> (i32, i32) {
    %c0_i32 = arith.constant 0 : i32
    %c0_i32_0 = arith.constant 0 : i32
    %c0_i32_1 = arith.constant 0 : i32
    return %c0_i32, %c0_i32_0 : i32, i32
  }
  func.func @transform_12(%arg0: i32) -> (i32, i32) {
    %c0_i32 = arith.constant 0 : i32
    %c0_i32_0 = arith.constant 0 : i32
    %c0_i32_1 = arith.constant 0 : i32
    return %c0_i32, %c0_i32_0 : i32, i32
  }
  func.func @transform_13(%arg0: i32) -> (i32, i32) {
    %c0_i32 = arith.constant 0 : i32
    %c0_i32_0 = arith.constant 0 : i32
    %c0_i32_1 = arith.constant 0 : i32
    return %c0_i32, %c0_i32_0 : i32, i32
  }
  func.func @transform_14(%arg0: i32) -> (i32, i32) {
    %c0_i32 = arith.constant 0 : i32
    %c0_i32_0 = arith.constant 0 : i32
    %c0_i32_1 = arith.constant 0 : i32
    return %c0_i32, %c0_i32_0 : i32, i32
  }
}

</mosaic_0001>

<llo_original>
// kernel: fno1d_forward.1
$region0: #{fno1d_forward.1}
  #allocation0 [shape = 'u32[]', space=smem, size = 0x4, offset = 0x4, fixed_abs, tag = 'smem constant byte address 0x4 - core index']
  #allocation1 [shape = 'u32[144,128]{1,0:T(1,128)}', space=vmem, size = 0x12000, scoped, tag = 'internal scratch']
  #allocation2 [shape = 'f32[1,1]{1,0:T(1,128)S(1)}', space=vmem, size = 0x200, scoped, tag = 'scoped memory for fno1d_forward.1']
  %s0 = inlined_call_operand.vmem [shape: f32[2,64,2], index: 0, kind: input, shape index: {}]
  %s1 = inlined_call_operand.hbm [shape: f32[2,32], index: 1, kind: input, shape index: {}]
  %s2 = inlined_call_operand.vmem [shape: f32[1,32], index: 2, kind: input, shape index: {}]
  %s3 = inlined_call_operand.vmem [shape: bf16[64,128], index: 3, kind: input, shape index: {}]
  %s4 = inlined_call_operand.vmem [shape: bf16[128,64], index: 4, kind: input, shape index: {}]
  %s5 = inlined_call_operand.vmem [shape: bf16[4,32,1024], index: 5, kind: input, shape index: {}]
  %s6 = inlined_call_operand.hbm [shape: bf16[64,512], index: 6, kind: input, shape index: {}]
  %s7 = inlined_call_operand.vmem [shape: bf16[512,32], index: 7, kind: input, shape index: {}]
  %s8 = inlined_call_operand.hbm [shape: bf16[4,32,32], index: 8, kind: input, shape index: {}]
  %s9 = inlined_call_operand.vmem [shape: f32[4,1,32], index: 9, kind: input, shape index: {}]
  %s10 = inlined_call_operand.hbm [shape: bf16[32,256], index: 10, kind: input, shape index: {}]
  %s11 = inlined_call_operand.hbm [shape: f32[1,256], index: 11, kind: input, shape index: {}]
  %s12 = inlined_call_operand.hbm [shape: bf16[1,256], index: 12, kind: input, shape index: {}]
  %s13 = inlined_call_operand.<no memory space> [shape: f32[1,1], index: 13, kind: input, shape index: {}]
  %s14 = inlined_call_operand.vmem [shape: f32[1,128], index: 14, kind: output, shape index: {}]
  %s15 = sld [smem:[#allocation0]]
  $region90: #{fno1d_forward.1} parent=0
    _
  %s17 = ssub.s32 1, %s15
  %s18 = scalar_select 0, %s17, %s15
  %v19 = vstv %s13
  %20 = vst [vmem:[#allocation2] sm:$0x1] %v19
  $region1: #{fno1d_forward.1} parent=0
    #allocation3 [shape = 'u8[1024]{0}', space=vmem, size = 0x400, scoped, tag = 'input window, operand 1, single buffered']
    #allocation4 [shape = 's32[1]{0}', space=sflag, size = 0x4, scoped, tag = 'scoped memory for fno1d_forward.1']
    #allocation5 [shape = 'u8[65536]{0}', space=vmem, size = 0x10000, scoped, tag = 'input window, operand 6, single buffered']
    #allocation6 [shape = 's32[1]{0}', space=sflag, size = 0x4, scoped, tag = 'scoped memory for fno1d_forward.1']
    #allocation7 [shape = 'u8[32768]{0}', space=vmem, size = 0x8000, scoped, tag = 'input window, operand 8, single buffered']
    #allocation8 [shape = 'u8[16384]{0}', space=vmem, size = 0x4000, scoped, tag = 'input window, operand 10, single buffered']
    #allocation9 [shape = 's32[1]{0}', space=sflag, size = 0x4, scoped, tag = 'scoped memory for fno1d_forward.1']
    #allocation10 [shape = 'u8[1024]{0}', space=vmem, size = 0x400, scoped, tag = 'input window, operand 11, single buffered']
    #allocation11 [shape = 'u8[1024]{0}', space=vmem, size = 0x400, scoped, tag = 'input window, operand 12, single buffered']
    #allocation12 [shape = 's32[1]{0}', space=sflag, size = 0x4, scoped, tag = 'scoped memory for fno1d_forward.1']
    %21 = vsyncpa [#allocation4], 0
    %22 = vsyncpa [#allocation6], 0
    %23 = vsyncpa [#allocation9], 0
    %24 = vsyncpa [#allocation12], 0
    // Predicated region
    $region2: #{fno1d_forward.1} parent=1 // pred_check
      _
    $region3: #{fno1d_forward.1} parent=1 // pred_check_branch
      %26 = sbr.rel (0) target = $region5
    $region4: #{fno1d_forward.1} parent=1 // pred_region
      _
    $region5: #{fno1d_forward.1} parent=1 // pred_fallthru
      _
    // Predicated region
    $region6: #{fno1d_forward.1} parent=1 // pred_check
      _
    $region7: #{fno1d_forward.1} parent=1 // pred_check_branch
      %28 = sbr.rel (0) target = $region9
    $region8: #{fno1d_forward.1} parent=1 // pred_region
      %s30 = ssub.s32 32, 32
      %31 = vsyncadd [#allocation4], %s30
      %s33 = sshll.u32 [#allocation3], 4
      %s34 = int_to_ptr.vmem [resolvable:$true] %s33
      %36 = dma.hbm_to_vmem [thread:$0]  %s1, 32, %s34, [#allocation4]
    $region9: #{fno1d_forward.1} parent=1 // pred_fallthru
      _
    // Predicated region
    $region10: #{fno1d_forward.1} parent=1 // pred_check
      _
    $region11: #{fno1d_forward.1} parent=1 // pred_check_branch
      %38 = sbr.rel (0) target = $region13
    $region12: #{fno1d_forward.1} parent=1 // pred_region
      _
    $region13: #{fno1d_forward.1} parent=1 // pred_fallthru
      _
    // Predicated region
    $region14: #{fno1d_forward.1} parent=1 // pred_check
      _
    $region15: #{fno1d_forward.1} parent=1 // pred_check_branch
      %40 = sbr.rel (0) target = $region17
    $region16: #{fno1d_forward.1} parent=1 // pred_region
      _
    $region17: #{fno1d_forward.1} parent=1 // pred_fallthru
      _
    // Predicated region
    $region18: #{fno1d_forward.1} parent=1 // pred_check
      _
    $region19: #{fno1d_forward.1} parent=1 // pred_check_branch
      %42 = sbr.rel (0) target = $region21
    $region20: #{fno1d_forward.1} parent=1 // pred_region
      _
    $region21: #{fno1d_forward.1} parent=1 // pred_fallthru
      _
    // Predicated region
    $region22: #{fno1d_forward.1} parent=1 // pred_check
      _
    $region23: #{fno1d_forward.1} parent=1 // pred_check_branch
      %44 = sbr.rel (0) target = $region25
    $region24: #{fno1d_forward.1} parent=1 // pred_region
      _
    $region25: #{fno1d_forward.1} parent=1 // pred_fallthru
      _
    // Predicated region
    $region26: #{fno1d_forward.1} parent=1 // pred_check
      _
    $region27: #{fno1d_forward.1} parent=1 // pred_check_branch
      %46 = sbr.rel (0) target = $region29
    $region28: #{fno1d_forward.1} parent=1 // pred_region
      %s48 = ssub.s32 2048, 2048
      %49 = vsyncadd [#allocation6], %s48
      %s50 = sshll.u32 [#allocation5], 4
      %s51 = int_to_ptr.vmem [resolvable:$true] %s50
      %56 = dma.hbm_to_vmem [thread:$0]  %s6, 2048, %s51, [#allocation6], 256, 256, 16
    $region29: #{fno1d_forward.1} parent=1 // pred_fallthru
      _
    // Predicated region
    $region30: #{fno1d_forward.1} parent=1 // pred_check
      _
    $region31: #{fno1d_forward.1} parent=1 // pred_check_branch
      %58 = sbr.rel (0) target = $region33
    $region32: #{fno1d_forward.1} parent=1 // pred_region
      _
    $region33: #{fno1d_forward.1} parent=1 // pred_fallthru
      _
    // Predicated region
    $region34: #{fno1d_forward.1} parent=1 // pred_check
      _
    $region35: #{fno1d_forward.1} parent=1 // pred_check_branch
      %60 = sbr.rel (0) target = $region37
    $region36: #{fno1d_forward.1} parent=1 // pred_region
      %s62 = ssub.s32 1024, 1024
      %63 = vsyncadd [#allocation6], %s62
      %s64 = sshll.u32 [#allocation7], 4
      %s65 = int_to_ptr.vmem [resolvable:$true] %s64
      %70 = dma.hbm_to_vmem [thread:$0]  %s8, 1024, %s65, [#allocation6], 64, 64, 4
    $region37: #{fno1d_forward.1} parent=1 // pred_fallthru
      _
    // Predicated region
    $region38: #{fno1d_forward.1} parent=1 // pred_check
      _
    $region39: #{fno1d_forward.1} parent=1 // pred_check_branch
      %72 = sbr.rel (0) target = $region41
    $region40: #{fno1d_forward.1} parent=1 // pred_region
      _
    $region41: #{fno1d_forward.1} parent=1 // pred_fallthru
      _
    // Predicated region
    $region42: #{fno1d_forward.1} parent=1 // pred_check
      _
    $region43: #{fno1d_forward.1} parent=1 // pred_check_branch
      %74 = sbr.rel (0) target = $region45
    $region44: #{fno1d_forward.1} parent=1 // pred_region
      %s76 = ssub.s32 512, 512
      %77 = vsyncadd [#allocation9], %s76
      %s78 = sshll.u32 [#allocation8], 4
      %s79 = int_to_ptr.vmem [resolvable:$true] %s78
      %84 = dma.hbm_to_vmem [thread:$0]  %s10, 512, %s79, [#allocation9], 128, 128, 8
    $region45: #{fno1d_forward.1} parent=1 // pred_fallthru
      _
    // Predicated region
    $region46: #{fno1d_forward.1} parent=1 // pred_check
      _
    $region47: #{fno1d_forward.1} parent=1 // pred_check_branch
      %86 = sbr.rel (0) target = $region49
    $region48: #{fno1d_forward.1} parent=1 // pred_region
      %s88 = ssub.s32 32, 32
      %89 = vsyncadd [#allocation9], %s88
      %s91 = sshll.u32 [#allocation10], 4
      %s92 = int_to_ptr.vmem [resolvable:$true] %s91
      %94 = dma.hbm_to_vmem [thread:$0]  %s11, 32, %s92, [#allocation9]
    $region49: #{fno1d_forward.1} parent=1 // pred_fallthru
      _
    // Predicated region
    $region50: #{fno1d_forward.1} parent=1 // pred_check
      _
    $region51: #{fno1d_forward.1} parent=1 // pred_check_branch
      %96 = sbr.rel (0) target = $region53
    $region52: #{fno1d_forward.1} parent=1 // pred_region
      %s98 = ssub.s32 32, 32
      %99 = vsyncadd [#allocation12], %s98
      %s101 = sshll.u32 [#allocation11], 4
      %s102 = int_to_ptr.vmem [resolvable:$true] %s101
      %104 = dma.hbm_to_vmem [thread:$0]  %s12, 32, %s102, [#allocation12]
    $region53: #{fno1d_forward.1} parent=1 // pred_fallthru
      _
    // Predicated region
    $region54: #{fno1d_forward.1} parent=1 // pred_check
      _
    $region55: #{fno1d_forward.1} parent=1 // pred_check_branch
      %106 = sbr.rel (0) target = $region57
    $region56: #{fno1d_forward.1} parent=1 // pred_region
      _
    $region57: #{fno1d_forward.1} parent=1 // pred_fallthru
      _
    // Predicated region
    $region58: #{fno1d_forward.1} parent=1 // pred_check
      _
    $region59: #{fno1d_forward.1} parent=1 // pred_check_branch
      %108 = sbr.rel (0) target = $region61
    $region60: #{fno1d_forward.1} parent=1 // pred_region
      %109 = dma.done [#allocation4], 32
    $region61: #{fno1d_forward.1} parent=1 // pred_fallthru
      _
    // Predicated region
    $region62: #{fno1d_forward.1} parent=1 // pred_check
      _
    $region63: #{fno1d_forward.1} parent=1 // pred_check_branch
      %111 = sbr.rel (0) target = $region65
    $region64: #{fno1d_forward.1} parent=1 // pred_region
      %112 = dma.done [#allocation6], 2048
    $region65: #{fno1d_forward.1} parent=1 // pred_fallthru
      _
    // Predicated region
    $region66: #{fno1d_forward.1} parent=1 // pred_check
      _
    $region67: #{fno1d_forward.1} parent=1 // pred_check_branch
      %114 = sbr.rel (0) target = $region69
    $region68: #{fno1d_forward.1} parent=1 // pred_region
      %115 = dma.done [#allocation6], 1024
    $region69: #{fno1d_forward.1} parent=1 // pred_fallthru
      _
    // Predicated region
    $region70: #{fno1d_forward.1} parent=1 // pred_check
      _
    $region71: #{fno1d_forward.1} parent=1 // pred_check_branch
      %117 = sbr.rel (0) target = $region73
    $region72: #{fno1d_forward.1} parent=1 // pred_region
      %118 = dma.done [#allocation9], 512
    $region73: #{fno1d_forward.1} parent=1 // pred_fallthru
      _
    // Predicated region
    $region74: #{fno1d_forward.1} parent=1 // pred_check
      _
    $region75: #{fno1d_forward.1} parent=1 // pred_check_branch
      %120 = sbr.rel (0) target = $region77
    $region76: #{fno1d_forward.1} parent=1 // pred_region
      %121 = dma.done [#allocation9], 32
    $region77: #{fno1d_forward.1} parent=1 // pred_fallthru
      _
    // Predicated region
    $region78: #{fno1d_forward.1} parent=1 // pred_check
      _
    $region79: #{fno1d_forward.1} parent=1 // pred_check_branch
      %123 = sbr.rel (0) target = $region81
    $region80: #{fno1d_forward.1} parent=1 // pred_region
      %124 = dma.done [#allocation12], 32
    $region81: #{fno1d_forward.1} parent=1 // pred_fallthru
      _
    %v126 = vld [vmem:[%s0] sm:$0xff]
    %v127 = vld [vmem:[%s0 + $0x8] sm:$0xff]
    %v128 = vld [vmem:[%s0 + $0x10] sm:$0xff]
    %v129 = vld [vmem:[%s0 + $0x18] sm:$0xff]
    %v130 = vld [vmem:[%s0 + $0x20] sm:$0xff]
    %v131 = vld [vmem:[%s0 + $0x28] sm:$0xff]
    %v132 = vld [vmem:[%s0 + $0x30] sm:$0xff]
    %v133 = vld [vmem:[%s0 + $0x38] sm:$0xff]
    %v134 = vld [vmem:[#allocation3] sm:$0x1]
    %136 = vset.pattern.permute.xlu0 0
    %137 = vperm.xlu0 %136, %v126
    %v138 = vpop.permute.xlu0 %137
    %141 = vset.pattern.permute.xlu0 0
    %142 = vperm.xlu0 %141, %v127
    %v143 = vpop.permute.xlu0 %142
    %146 = vset.pattern.permute.xlu0 0
    %147 = vperm.xlu0 %146, %v128
    %v148 = vpop.permute.xlu0 %147
    %151 = vset.pattern.permute.xlu0 0
    %152 = vperm.xlu0 %151, %v129
    %v153 = vpop.permute.xlu0 %152
    %156 = vset.pattern.permute.xlu0 0
    %157 = vperm.xlu0 %156, %v130
    %v158 = vpop.permute.xlu0 %157
    %161 = vset.pattern.permute.xlu0 0
    %162 = vperm.xlu0 %161, %v131
    %v163 = vpop.permute.xlu0 %162
    %166 = vset.pattern.permute.xlu0 0
    %167 = vperm.xlu0 %166, %v132
    %v168 = vpop.permute.xlu0 %167
    %171 = vset.pattern.permute.xlu0 0
    %172 = vperm.xlu0 %171, %v133
    %v173 = vpop.permute.xlu0 %172
    %v175 = vlaneseq
    %v176 = vshrl.u32 %v175, 7
    %v177 = vsub.s32 0, %v176
    %v178 = vrot.slane %v134, %v177
    %v179 = vmul.f32 %v138, %v178
    %v180 = vmul.f32 %v143, %v178
    %v181 = vmul.f32 %v148, %v178
    %v182 = vmul.f32 %v153, %v178
    %v183 = vmul.f32 %v158, %v178
    %v184 = vmul.f32 %v163, %v178
    %v185 = vmul.f32 %v168, %v178
    %v186 = vmul.f32 %v173, %v178
    %v187 = vld [vmem:[#allocation3 + $0x1] sm:$0x1]
    %188 = vset.pattern.permute.xlu0 1
    %189 = vperm.xlu0 %188, %v126
    %v190 = vpop.permute.xlu0 %189
    %192 = vset.pattern.permute.xlu0 1
    %193 = vperm.xlu0 %192, %v127
    %v194 = vpop.permute.xlu0 %193
    %196 = vset.pattern.permute.xlu0 1
    %197 = vperm.xlu0 %196, %v128
    %v198 = vpop.permute.xlu0 %197
    %200 = vset.pattern.permute.xlu0 1
    %201 = vperm.xlu0 %200, %v129
    %v202 = vpop.permute.xlu0 %201
    %204 = vset.pattern.permute.xlu0 1
    %205 = vperm.xlu0 %204, %v130
    %v206 = vpop.permute.xlu0 %205
    %208 = vset.pattern.permute.xlu0 1
    %209 = vperm.xlu0 %208, %v131
    %v210 = vpop.permute.xlu0 %209
    %212 = vset.pattern.permute.xlu0 1
    %213 = vperm.xlu0 %212, %v132
    %v214 = vpop.permute.xlu0 %213
    %216 = vset.pattern.permute.xlu0 1
    %217 = vperm.xlu0 %216, %v133
    %v218 = vpop.permute.xlu0 %217
    %v220 = vlaneseq
    %v221 = vshrl.u32 %v220, 7
    %v222 = vsub.s32 0, %v221
    %v223 = vrot.slane %v187, %v222
    %v224 = vmul.f32 %v190, %v223
    %v225 = vmul.f32 %v194, %v223
    %v226 = vmul.f32 %v198, %v223
    %v227 = vmul.f32 %v202, %v223
    %v228 = vmul.f32 %v206, %v223
    %v229 = vmul.f32 %v210, %v223
    %v230 = vmul.f32 %v214, %v223
    %v231 = vmul.f32 %v218, %v223
    %v232 = vadd.f32 %v179, %v224
    %v233 = vadd.f32 %v180, %v225
    %v234 = vadd.f32 %v181, %v226
    %v235 = vadd.f32 %v182, %v227
    %v236 = vadd.f32 %v183, %v228
    %v237 = vadd.f32 %v184, %v229
    %v238 = vadd.f32 %v185, %v230
    %v239 = vadd.f32 %v186, %v231
    %s240 = scalar_lea.vmem %s0, 64
    %v241 = vld [vmem:[%s240] sm:$0xff]
    %v242 = vld [vmem:[%s240 + $0x8] sm:$0xff]
    %v243 = vld [vmem:[%s240 + $0x10] sm:$0xff]
    %v244 = vld [vmem:[%s240 + $0x18] sm:$0xff]
    %v245 = vld [vmem:[%s240 + $0x20] sm:$0xff]
    %v246 = vld [vmem:[%s240 + $0x28] sm:$0xff]
    %v247 = vld [vmem:[%s240 + $0x30] sm:$0xff]
    %v248 = vld [vmem:[%s240 + $0x38] sm:$0xff]
    %250 = vset.pattern.permute.xlu0 0
    %251 = vperm.xlu0 %250, %v241
    %v252 = vpop.permute.xlu0 %251
    %255 = vset.pattern.permute.xlu0 0
    %256 = vperm.xlu0 %255, %v242
    %v257 = vpop.permute.xlu0 %256
    %260 = vset.pattern.permute.xlu0 0
    %261 = vperm.xlu0 %260, %v243
    %v262 = vpop.permute.xlu0 %261
    %265 = vset.pattern.permute.xlu0 0
    %266 = vperm.xlu0 %265, %v244
    %v267 = vpop.permute.xlu0 %266
    %270 = vset.pattern.permute.xlu0 0
    %271 = vperm.xlu0 %270, %v245
    %v272 = vpop.permute.xlu0 %271
    %275 = vset.pattern.permute.xlu0 0
    %276 = vperm.xlu0 %275, %v246
    %v277 = vpop.permute.xlu0 %276
    %280 = vset.pattern.permute.xlu0 0
    %281 = vperm.xlu0 %280, %v247
    %v282 = vpop.permute.xlu0 %281
    %285 = vset.pattern.permute.xlu0 0
    %286 = vperm.xlu0 %285, %v248
    %v287 = vpop.permute.xlu0 %286
    %v289 = vmul.f32 %v252, %v178
    %v290 = vmul.f32 %v257, %v178
    %v291 = vmul.f32 %v262, %v178
    %v292 = vmul.f32 %v267, %v178
    %v293 = vmul.f32 %v272, %v178
    %v294 = vmul.f32 %v277, %v178
    %v295 = vmul.f32 %v282, %v178
    %v296 = vmul.f32 %v287, %v178
    %297 = vset.pattern.permute.xlu0 1
    %298 = vperm.xlu0 %297, %v241
    %v299 = vpop.permute.xlu0 %298
    %301 = vset.pattern.permute.xlu0 1
    %302 = vperm.xlu0 %301, %v242
    %v303 = vpop.permute.xlu0 %302
    %305 = vset.pattern.permute.xlu0 1
    %306 = vperm.xlu0 %305, %v243
    %v307 = vpop.permute.xlu0 %306
    %309 = vset.pattern.permute.xlu0 1
    %310 = vperm.xlu0 %309, %v244
    %v311 = vpop.permute.xlu0 %310
    %313 = vset.pattern.permute.xlu0 1
    %314 = vperm.xlu0 %313, %v245
    %v315 = vpop.permute.xlu0 %314
    %317 = vset.pattern.permute.xlu0 1
    %318 = vperm.xlu0 %317, %v246
    %v319 = vpop.permute.xlu0 %318
    %321 = vset.pattern.permute.xlu0 1
    %322 = vperm.xlu0 %321, %v247
    %v323 = vpop.permute.xlu0 %322
    %325 = vset.pattern.permute.xlu0 1
    %326 = vperm.xlu0 %325, %v248
    %v327 = vpop.permute.xlu0 %326
    %v329 = vmul.f32 %v299, %v223
    %v330 = vmul.f32 %v303, %v223
    %v331 = vmul.f32 %v307, %v223
    %v332 = vmul.f32 %v311, %v223
    %v333 = vmul.f32 %v315, %v223
    %v334 = vmul.f32 %v319, %v223
    %v335 = vmul.f32 %v323, %v223
    %v336 = vmul.f32 %v327, %v223
    %v337 = vadd.f32 %v289, %v329
    %v338 = vadd.f32 %v290, %v330
    %v339 = vadd.f32 %v291, %v331
    %v340 = vadd.f32 %v292, %v332
    %v341 = vadd.f32 %v293, %v333
    %v342 = vadd.f32 %v294, %v334
    %v343 = vadd.f32 %v295, %v335
    %v344 = vadd.f32 %v296, %v336
    %v345 = vld [vmem:[%s2] sm:$0x1]
    %v347 = vlaneseq
    %v348 = vshrl.u32 %v347, 7
    %v349 = vsub.s32 0, %v348
    %v350 = vrot.slane %v345, %v349
    %v352 = vadd.f32 %v232, %v350
    %v353 = vadd.f32 %v233, %v350
    %v354 = vadd.f32 %v234, %v350
    %v355 = vadd.f32 %v235, %v350
    %v356 = vadd.f32 %v236, %v350
    %v357 = vadd.f32 %v237, %v350
    %v358 = vadd.f32 %v238, %v350
    %v359 = vadd.f32 %v239, %v350
    %v360 = vadd.f32 %v337, %v350
    %v361 = vadd.f32 %v338, %v350
    %v362 = vadd.f32 %v339, %v350
    %v363 = vadd.f32 %v340, %v350
    %v364 = vadd.f32 %v341, %v350
    %v365 = vadd.f32 %v342, %v350
    %v366 = vadd.f32 %v343, %v350
    %v367 = vadd.f32 %v344, %v350
    %v368 = vld [vmem:[%s3] sm:$0xf]
    %v369 = vld [vmem:[%s3 + $0x4] sm:$0xf]
    %v370 = vld [vmem:[%s3 + $0x8] sm:$0xf]
    %v371 = vld [vmem:[%s3 + $0xc] sm:$0xf]
    %v372 = vld [vmem:[%s3 + $0x10] sm:$0xf]
    %v373 = vld [vmem:[%s3 + $0x14] sm:$0xf]
    %v374 = vld [vmem:[%s3 + $0x18] sm:$0xf]
    %v375 = vld [vmem:[%s3 + $0x1c] sm:$0xf]
    %v376 = vld [vmem:[%s4] sm:$0xf]
    %v377 = vld [vmem:[%s4 + $0x4] sm:$0xf]
    %v378 = vld [vmem:[%s4 + $0x8] sm:$0xf]
    %v379 = vld [vmem:[%s4 + $0xc] sm:$0xf]
    %v380 = vld [vmem:[%s4 + $0x10] sm:$0xf]
    %v381 = vld [vmem:[%s4 + $0x14] sm:$0xf]
    %v382 = vld [vmem:[%s4 + $0x18] sm:$0xf]
    %v383 = vld [vmem:[%s4 + $0x1c] sm:$0xf]
    %v384 = vld [vmem:[%s4 + $0x20] sm:$0xf]
    %v385 = vld [vmem:[%s4 + $0x24] sm:$0xf]
    %v386 = vld [vmem:[%s4 + $0x28] sm:$0xf]
    %v387 = vld [vmem:[%s4 + $0x2c] sm:$0xf]
    %v388 = vld [vmem:[%s4 + $0x30] sm:$0xf]
    %v389 = vld [vmem:[%s4 + $0x34] sm:$0xf]
    %v390 = vld [vmem:[%s4 + $0x38] sm:$0xf]
    %v391 = vld [vmem:[%s4 + $0x3c] sm:$0xf]
    %v392 = vld [vmem:[#allocation5] sm:$0xff]
    %v393 = vld [vmem:[#allocation5 + $0x8] sm:$0xff]
    %v394 = vld [vmem:[#allocation5 + $0x10] sm:$0xff]
    %v395 = vld [vmem:[#allocation5 + $0x18] sm:$0xff]
    %v396 = vld [vmem:[#allocation5 + $0x20] sm:$0xff]
    %v397 = vld [vmem:[#allocation5 + $0x28] sm:$0xff]
    %v398 = vld [vmem:[#allocation5 + $0x30] sm:$0xff]
    %v399 = vld [vmem:[#allocation5 + $0x38] sm:$0xff]
    %v400 = vld [vmem:[#allocation5 + $0x40] sm:$0xff]
    %v401 = vld [vmem:[#allocation5 + $0x48] sm:$0xff]
    %v402 = vld [vmem:[#allocation5 + $0x50] sm:$0xff]
    %v403 = vld [vmem:[#allocation5 + $0x58] sm:$0xff]
    %v404 = vld [vmem:[#allocation5 + $0x60] sm:$0xff]
    %v405 = vld [vmem:[#allocation5 + $0x68] sm:$0xff]
    %v406 = vld [vmem:[#allocation5 + $0x70] sm:$0xff]
    %v407 = vld [vmem:[#allocation5 + $0x78] sm:$0xff]
    %v408 = vld [vmem:[%s7] sm:$0xf]
    %v409 = vld [vmem:[%s7 + $0x4] sm:$0xf]
    %v410 = vld [vmem:[%s7 + $0x8] sm:$0xf]
    %v411 = vld [vmem:[%s7 + $0xc] sm:$0xf]
    %v412 = vld [vmem:[%s7 + $0x10] sm:$0xf]
    %v413 = vld [vmem:[%s7 + $0x14] sm:$0xf]
    %v414 = vld [vmem:[%s7 + $0x18] sm:$0xf]
    %v415 = vld [vmem:[%s7 + $0x1c] sm:$0xf]
    %v416 = vld [vmem:[%s7 + $0x20] sm:$0xf]
    %v417 = vld [vmem:[%s7 + $0x24] sm:$0xf]
    %v418 = vld [vmem:[%s7 + $0x28] sm:$0xf]
    %v419 = vld [vmem:[%s7 + $0x2c] sm:$0xf]
    %v420 = vld [vmem:[%s7 + $0x30] sm:$0xf]
    %v421 = vld [vmem:[%s7 + $0x34] sm:$0xf]
    %v422 = vld [vmem:[%s7 + $0x38] sm:$0xf]
    %v423 = vld [vmem:[%s7 + $0x3c] sm:$0xf]
    %v424 = vld [vmem:[%s7 + $0x40] sm:$0xf]
    %v425 = vld [vmem:[%s7 + $0x44] sm:$0xf]
    %v426 = vld [vmem:[%s7 + $0x48] sm:$0xf]
    %v427 = vld [vmem:[%s7 + $0x4c] sm:$0xf]
    %v428 = vld [vmem:[%s7 + $0x50] sm:$0xf]
    %v429 = vld [vmem:[%s7 + $0x54] sm:$0xf]
    %v430 = vld [vmem:[%s7 + $0x58] sm:$0xf]
    %v431 = vld [vmem:[%s7 + $0x5c] sm:$0xf]
    %v432 = vld [vmem:[%s7 + $0x60] sm:$0xf]
    %v433 = vld [vmem:[%s7 + $0x64] sm:$0xf]
    %v434 = vld [vmem:[%s7 + $0x68] sm:$0xf]
    %v435 = vld [vmem:[%s7 + $0x6c] sm:$0xf]
    %v436 = vld [vmem:[%s7 + $0x70] sm:$0xf]
    %v437 = vld [vmem:[%s7 + $0x74] sm:$0xf]
    %v438 = vld [vmem:[%s7 + $0x78] sm:$0xf]
    %v439 = vld [vmem:[%s7 + $0x7c] sm:$0xf]
    %v440 = vld [vmem:[%s7 + $0x80] sm:$0xf]
    %v441 = vld [vmem:[%s7 + $0x84] sm:$0xf]
    %v442 = vld [vmem:[%s7 + $0x88] sm:$0xf]
    %v443 = vld [vmem:[%s7 + $0x8c] sm:$0xf]
    %v444 = vld [vmem:[%s7 + $0x90] sm:$0xf]
    %v445 = vld [vmem:[%s7 + $0x94] sm:$0xf]
    %v446 = vld [vmem:[%s7 + $0x98] sm:$0xf]
    %v447 = vld [vmem:[%s7 + $0x9c] sm:$0xf]
    %v448 = vld [vmem:[%s7 + $0xa0] sm:$0xf]
    %v449 = vld [vmem:[%s7 + $0xa4] sm:$0xf]
    %v450 = vld [vmem:[%s7 + $0xa8] sm:$0xf]
    %v451 = vld [vmem:[%s7 + $0xac] sm:$0xf]
    %v452 = vld [vmem:[%s7 + $0xb0] sm:$0xf]
    %v453 = vld [vmem:[%s7 + $0xb4] sm:$0xf]
    %v454 = vld [vmem:[%s7 + $0xb8] sm:$0xf]
    %v455 = vld [vmem:[%s7 + $0xbc] sm:$0xf]
    %v456 = vld [vmem:[%s7 + $0xc0] sm:$0xf]
    %v457 = vld [vmem:[%s7 + $0xc4] sm:$0xf]
    %v458 = vld [vmem:[%s7 + $0xc8] sm:$0xf]
    %v459 = vld [vmem:[%s7 + $0xcc] sm:$0xf]
    %v460 = vld [vmem:[%s7 + $0xd0] sm:$0xf]
    %v461 = vld [vmem:[%s7 + $0xd4] sm:$0xf]
    %v462 = vld [vmem:[%s7 + $0xd8] sm:$0xf]
    %v463 = vld [vmem:[%s7 + $0xdc] sm:$0xf]
    %v464 = vld [vmem:[%s7 + $0xe0] sm:$0xf]
    %v465 = vld [vmem:[%s7 + $0xe4] sm:$0xf]
    %v466 = vld [vmem:[%s7 + $0xe8] sm:$0xf]
    %v467 = vld [vmem:[%s7 + $0xec] sm:$0xf]
    %v468 = vld [vmem:[%s7 + $0xf0] sm:$0xf]
    %v469 = vld [vmem:[%s7 + $0xf4] sm:$0xf]
    %v470 = vld [vmem:[%s7 + $0xf8] sm:$0xf]
    %v471 = vld [vmem:[%s7 + $0xfc] sm:$0xf]
    %v472 = vpack.c.bf16 %v353, %v352
    %v473 = vpack.c.bf16 %v355, %v354
    %v474 = vpack.c.bf16 %v357, %v356
    %v475 = vpack.c.bf16 %v359, %v358
    %v476 = vpack.c.bf16 %v361, %v360
    %v477 = vpack.c.bf16 %v363, %v362
    %v478 = vpack.c.bf16 %v365, %v364
    %v479 = vpack.c.bf16 %v367, %v366
    %v488 = vunpack.c.l.b16 %v368
    %v489 = vunpack.c.l.b16 %v369
    %v490 = vunpack.c.l.b16 %v370
    %v491 = vunpack.c.l.b16 %v371
    %v492 = vunpack.c.l.b16 %v372
    %v493 = vunpack.c.l.b16 %v373
    %v494 = vunpack.c.l.b16 %v374
    %v495 = vunpack.c.l.b16 %v375
    %v496 = vpack.c.b16 %v489, %v488
    %v497 = vpack.c.b16 %v491, %v490
    %v498 = vpack.c.b16 %v493, %v492
    %v499 = vpack.c.b16 %v495, %v494
    %504 = vmatprep.subr.bf16.mxu0 0
    %505 = vmatpush1.bf16.msra.mxu0 %v472
    %506 = vmatprep.subr.bf16.mxu0 0
    %507 = vmatpush1.bf16.msra.mxu0 %v473
    %508 = vmatprep.subr.bf16.mxu0 0
    %509 = vmatpush1.bf16.msra.mxu0 %v474
    %510 = vmatprep.subr.bf16.mxu0 0
    %511 = vmatpush1.bf16.msra.mxu0 %v475
    %512 = vmatprep.subr.bf16.mxu0 0
    %513 = vmatpush1.bf16.msra.mxu0 %v476
    %514 = vmatprep.subr.bf16.mxu0 0
    %515 = vmatpush1.bf16.msra.mxu0 %v477
    %516 = vmatprep.subr.bf16.mxu0 0
    %517 = vmatpush1.bf16.msra.mxu0 %v478
    %518 = vmatprep.subr.bf16.mxu0 0
    %519 = vmatpush1.bf16.msra.mxu0 %v479
    %520 = vmatprep.subr.bf16.mxu0 0
    %521 = vmatpush1.bf16.msra.mxu0 0
    %522 = vmatprep.subr.bf16.mxu0 0
    %523 = vmatpush1.bf16.msra.mxu0 0
    %524 = vmatprep.subr.bf16.mxu0 0
    %525 = vmatpush1.bf16.msra.mxu0 0
    %526 = vmatprep.subr.bf16.mxu0 0
    %527 = vmatpush1.bf16.msra.mxu0 0
    %528 = vmatprep.subr.bf16.mxu0 0
    %529 = vmatpush1.bf16.msra.mxu0 0
    %530 = vmatprep.subr.bf16.mxu0 0
    %531 = vmatpush1.bf16.msra.mxu0 0
    %532 = vmatprep.subr.bf16.mxu0 0
    %533 = vmatpush1.bf16.msra.mxu0 0
    %534 = vmatprep.subr.bf16.mxu0 0
    %535 = vmatpush1.bf16.msra.mxu0 0
    %536 = vmatprep.mubr.bf16.mxu0 0
    %537 = vmatmul.mubr.bf16.gmra.mrb[0].mxu0 %v496
    %v538 = vpop.f32.mrb[0].mxu0
    %v539 = vadd.f32 0.0, %v538
    %v540 = vpop.f32.mrb[0].mxu0
    %v541 = vpop.f32.mrb[0].mxu0
    %v542 = vadd.f32 0.0, %v541
    %v543 = vpop.f32.mrb[0].mxu0
    %544 = vmatprep.mubr.bf16.mxu0 0
    %545 = vmatmul.mubr.bf16.gmra.mrb[0].mxu0 %v497
    %v546 = vpop.f32.mrb[0].mxu0
    %v547 = vadd.f32 0.0, %v546
    %v548 = vpop.f32.mrb[0].mxu0
    %v549 = vpop.f32.mrb[0].mxu0
    %v550 = vadd.f32 0.0, %v549
    %v551 = vpop.f32.mrb[0].mxu0
    %552 = vmatprep.mubr.bf16.mxu0 0
    %553 = vmatmul.mubr.bf16.gmra.mrb[0].mxu0 %v498
    %v554 = vpop.f32.mrb[0].mxu0
    %v555 = vadd.f32 0.0, %v554
    %v556 = vpop.f32.mrb[0].mxu0
    %v557 = vpop.f32.mrb[0].mxu0
    %v558 = vadd.f32 0.0, %v557
    %v559 = vpop.f32.mrb[0].mxu0
    %560 = vmatprep.mubr.bf16.mxu0 0
    %561 = vmatmul.mubr.bf16.gmra.mrb[0].mxu0 %v499
    %v562 = vpop.f32.mrb[0].mxu0
    %v563 = vadd.f32 0.0, %v562
    %v564 = vpop.f32.mrb[0].mxu0
    %v565 = vpop.f32.mrb[0].mxu0
    %v566 = vadd.f32 0.0, %v565
    %v567 = vpop.f32.mrb[0].mxu0
    %568 = vdwg.mxu0
    %v569 = vpack.c.bf16 %v542, %v539
    %v570 = vpack.c.bf16 %v550, %v547
    %v571 = vpack.c.bf16 %v558, %v555
    %v572 = vpack.c.bf16 %v566, %v563
    %v573 = vld [vmem:[%s5] sm:$0xff]
    %v574 = vld [vmem:[%s5 + $0x8] sm:$0xff]
    %v575 = vld [vmem:[%s5 + $0x10] sm:$0xff]
    %v576 = vld [vmem:[%s5 + $0x18] sm:$0xff]
    %v577 = vld [vmem:[%s5 + $0x20] sm:$0xff]
    %v578 = vld [vmem:[%s5 + $0x28] sm:$0xff]
    %v579 = vld [vmem:[%s5 + $0x30] sm:$0xff]
    %v580 = vld [vmem:[%s5 + $0x38] sm:$0xff]
    %v581 = vld [vmem:[%s5 + $0x40] sm:$0xff]
    %v582 = vld [vmem:[%s5 + $0x48] sm:$0xff]
    %v583 = vld [vmem:[%s5 + $0x50] sm:$0xff]
    %v584 = vld [vmem:[%s5 + $0x58] sm:$0xff]
    %v585 = vld [vmem:[%s5 + $0x60] sm:$0xff]
    %v586 = vld [vmem:[%s5 + $0x68] sm:$0xff]
    %v587 = vld [vmem:[%s5 + $0x70] sm:$0xff]
    %v588 = vld [vmem:[%s5 + $0x78] sm:$0xff]
    %v605 = vunpack.c.l.b16 %v573
    %v606 = vunpack.c.h.b16 %v573
    %v607 = vunpack.c.l.b16 %v574
    %v608 = vunpack.c.h.b16 %v574
    %v609 = vunpack.c.l.b16 %v575
    %v610 = vunpack.c.h.b16 %v575
    %v611 = vunpack.c.l.b16 %v576
    %v612 = vunpack.c.h.b16 %v576
    %v613 = vunpack.c.l.b16 %v577
    %v614 = vunpack.c.h.b16 %v577
    %v615 = vunpack.c.l.b16 %v578
    %v616 = vunpack.c.h.b16 %v578
    %v617 = vunpack.c.l.b16 %v579
    %v618 = vunpack.c.h.b16 %v579
    %v619 = vunpack.c.l.b16 %v580
    %v620 = vunpack.c.h.b16 %v580
    %v621 = vunpack.c.l.b16 %v581
    %v622 = vunpack.c.h.b16 %v581
    %v623 = vunpack.c.l.b16 %v582
    %v624 = vunpack.c.h.b16 %v582
    %v625 = vunpack.c.l.b16 %v583
    %v626 = vunpack.c.h.b16 %v583
    %v627 = vunpack.c.l.b16 %v584
    %v628 = vunpack.c.h.b16 %v584
    %v629 = vunpack.c.l.b16 %v585
    %v630 = vunpack.c.h.b16 %v585
    %v631 = vunpack.c.l.b16 %v586
    %v632 = vunpack.c.h.b16 %v586
    %v633 = vunpack.c.l.b16 %v587
    %v634 = vunpack.c.h.b16 %v587
    %v635 = vunpack.c.l.b16 %v588
    %v636 = vunpack.c.h.b16 %v588
    %v637 = vpack.c.b16 %v613, %v605
    %v638 = vpack.c.b16 %v614, %v606
    %v639 = vpack.c.b16 %v615, %v607
    %v640 = vpack.c.b16 %v616, %v608
    %v641 = vpack.c.b16 %v617, %v609
    %v642 = vpack.c.b16 %v618, %v610
    %v643 = vpack.c.b16 %v619, %v611
    %v644 = vpack.c.b16 %v620, %v612
    %v645 = vpack.c.b16 %v629, %v621
    %v646 = vpack.c.b16 %v630, %v622
    %v647 = vpack.c.b16 %v631, %v623
    %v648 = vpack.c.b16 %v632, %v624
    %v649 = vpack.c.b16 %v633, %v625
    %v650 = vpack.c.b16 %v634, %v626
    %v651 = vpack.c.b16 %v635, %v627
    %v652 = vpack.c.b16 %v636, %v628
    %vm669 = vcmask 261120
    %v671 = vsel %vm669, %v569, 0
    %v674 = vsel %vm669, %v570, 0
    %v677 = vsel %vm669, %v571, 0
    %v680 = vsel %vm669, %v572, 0
    %682 = vmatprep.subr.bf16.mxu0 %v638
    %683 = vmatpush1.bf16.msra.mxu0 %v637
    %684 = vmatprep.subr.bf16.mxu0 %v646
    %685 = vmatpush1.bf16.msra.mxu0 %v645
    %686 = vmatprep.subr.bf16.mxu0 0
    %687 = vmatpush1.bf16.msra.mxu0 0
    %688 = vmatprep.subr.bf16.mxu0 0
    %689 = vmatpush1.bf16.msra.mxu0 0
    %690 = vmatprep.subr.bf16.mxu0 0
    %691 = vmatpush1.bf16.msra.mxu0 0
    %692 = vmatprep.subr.bf16.mxu0 0
    %693 = vmatpush1.bf16.msra.mxu0 0
    %694 = vmatprep.subr.bf16.mxu0 0
    %695 = vmatpush1.bf16.msra.mxu0 0
    %696 = vmatprep.subr.bf16.mxu0 0
    %697 = vmatpush1.bf16.msra.mxu0 0
    %698 = vmatprep.subr.bf16.mxu0 0
    %699 = vmatpush1.bf16.msra.mxu0 0
    %700 = vmatprep.subr.bf16.mxu0 0
    %701 = vmatpush1.bf16.msra.mxu0 0
    %702 = vmatprep.subr.bf16.mxu0 0
    %703 = vmatpush1.bf16.msra.mxu0 0
    %704 = vmatprep.subr.bf16.mxu0 0
    %705 = vmatpush1.bf16.msra.mxu0 0
    %706 = vmatprep.subr.bf16.mxu0 0
    %707 = vmatpush1.bf16.msra.mxu0 0
    %708 = vmatprep.subr.bf16.mxu0 0
    %709 = vmatpush1.bf16.msra.mxu0 0
    %710 = vmatprep.subr.bf16.mxu0 0
    %711 = vmatpush1.bf16.msra.mxu0 0
    %712 = vmatprep.subr.bf16.mxu0 0
    %713 = vmatpush1.bf16.msra.mxu0 0
    %714 = vmatprep.mubr.bf16.mxu0 0
    %715 = vmatmul.mubr.bf16.gmra.mrb[0].mxu0 %v671
    %v716 = vpop.f32.mrb[0].mxu0
    %v717 = vadd.f32 0.0, %v716
    %v718 = vpop.f32.mrb[0].mxu0
    %v719 = vadd.f32 0.0, %v718
    %v720 = vpop.f32.mrb[0].mxu0
    %v721 = vadd.f32 0.0, %v720
    %v722 = vpop.f32.mrb[0].mxu0
    %v723 = vadd.f32 0.0, %v722
    %724 = vmatprep.mubr.bf16.mxu0 0
    %725 = vmatmul.mubr.bf16.gmra.mrb[0].mxu0 %v674
    %v726 = vpop.f32.mrb[0].mxu0
    %v727 = vadd.f32 0.0, %v726
    %v728 = vpop.f32.mrb[0].mxu0
    %v729 = vadd.f32 0.0, %v728
    %v730 = vpop.f32.mrb[0].mxu0
    %v731 = vadd.f32 0.0, %v730
    %v732 = vpop.f32.mrb[0].mxu0
    %v733 = vadd.f32 0.0, %v732
    %734 = vmatprep.mubr.bf16.mxu0 0
    %735 = vmatmul.mubr.bf16.gmra.mrb[0].mxu0 %v677
    %v736 = vpop.f32.mrb[0].mxu0
    %v737 = vadd.f32 0.0, %v736
    %v738 = vpop.f32.mrb[0].mxu0
    %v739 = vadd.f32 0.0, %v738
    %v740 = vpop.f32.mrb[0].mxu0
    %v741 = vadd.f32 0.0, %v740
    %v742 = vpop.f32.mrb[0].mxu0
    %v743 = vadd.f32 0.0, %v742
    %744 = vmatprep.mubr.bf16.mxu0 0
    %745 = vmatmul.mubr.bf16.gmra.mrb[0].mxu0 %v680
    %v746 = vpop.f32.mrb[0].mxu0
    %v747 = vadd.f32 0.0, %v746
    %v748 = vpop.f32.mrb[0].mxu0
    %v749 = vadd.f32 0.0, %v748
    %v750 = vpop.f32.mrb[0].mxu0
    %v751 = vadd.f32 0.0, %v750
    %v752 = vpop.f32.mrb[0].mxu0
    %v753 = vadd.f32 0.0, %v752
    %754 = vdwg.mxu0
    %755 = vmatprep.subr.bf16.mxu0 %v640
    %756 = vmatpush1.bf16.msra.mxu0 %v639
    %757 = vmatprep.subr.bf16.mxu0 %v648
    %758 = vmatpush1.bf16.msra.mxu0 %v647
    %759 = vmatprep.subr.bf16.mxu0 0
    %760 = vmatpush1.bf16.msra.mxu0 0
    %761 = vmatprep.subr.bf16.mxu0 0
    %762 = vmatpush1.bf16.msra.mxu0 0
    %763 = vmatprep.subr.bf16.mxu0 0
    %764 = vmatpush1.bf16.msra.mxu0 0
    %765 = vmatprep.subr.bf16.mxu0 0
    %766 = vmatpush1.bf16.msra.mxu0 0
    %767 = vmatprep.subr.bf16.mxu0 0
    %768 = vmatpush1.bf16.msra.mxu0 0
    %769 = vmatprep.subr.bf16.mxu0 0
    %770 = vmatpush1.bf16.msra.mxu0 0
    %771 = vmatprep.subr.bf16.mxu0 0
    %772 = vmatpush1.bf16.msra.mxu0 0
    %773 = vmatprep.subr.bf16.mxu0 0
    %774 = vmatpush1.bf16.msra.mxu0 0
    %775 = vmatprep.subr.bf16.mxu0 0
    %776 = vmatpush1.bf16.msra.mxu0 0
    %777 = vmatprep.subr.bf16.mxu0 0
    %778 = vmatpush1.bf16.msra.mxu0 0
    %779 = vmatprep.subr.bf16.mxu0 0
    %780 = vmatpush1.bf16.msra.mxu0 0
    %781 = vmatprep.subr.bf16.mxu0 0
    %782 = vmatpush1.bf16.msra.mxu0 0
    %783 = vmatprep.subr.bf16.mxu0 0
    %784 = vmatpush1.bf16.msra.mxu0 0
    %785 = vmatprep.subr.bf16.mxu0 0
    %786 = vmatpush1.bf16.msra.mxu0 0
    %787 = vmatprep.mubr.bf16.mxu0 0
    %788 = vmatmul.mubr.bf16.gmra.mrb[0].mxu0 %v671
    %v789 = vpop.f32.mrb[0].mxu0
    %v790 = vadd.f32 0.0, %v789
    %v791 = vpop.f32.mrb[0].mxu0
    %v792 = vadd.f32 0.0, %v791
    %v793 = vpop.f32.mrb[0].mxu0
    %v794 = vadd.f32 0.0, %v793
    %v795 = vpop.f32.mrb[0].mxu0
    %v796 = vadd.f32 0.0, %v795
    %797 = vmatprep.mubr.bf16.mxu0 0
    %798 = vmatmul.mubr.bf16.gmra.mrb[0].mxu0 %v674
    %v799 = vpop.f32.mrb[0].mxu0
    %v800 = vadd.f32 0.0, %v799
    %v801 = vpop.f32.mrb[0].mxu0
    %v802 = vadd.f32 0.0, %v801
    %v803 = vpop.f32.mrb[0].mxu0
    %v804 = vadd.f32 0.0, %v803
    %v805 = vpop.f32.mrb[0].mxu0
    %v806 = vadd.f32 0.0, %v805
    %807 = vmatprep.mubr.bf16.mxu0 0
    %808 = vmatmul.mubr.bf16.gmra.mrb[0].mxu0 %v677
    %v809 = vpop.f32.mrb[0].mxu0
    %v810 = vadd.f32 0.0, %v809
    %v811 = vpop.f32.mrb[0].mxu0
    %v812 = vadd.f32 0.0, %v811
    %v813 = vpop.f32.mrb[0].mxu0
    %v814 = vadd.f32 0.0, %v813
    %v815 = vpop.f32.mrb[0].mxu0
    %v816 = vadd.f32 0.0, %v815
    %817 = vmatprep.mubr.bf16.mxu0 0
    %818 = vmatmul.mubr.bf16.gmra.mrb[0].mxu0 %v680
    %v819 = vpop.f32.mrb[0].mxu0
    %v820 = vadd.f32 0.0, %v819
    %v821 = vpop.f32.mrb[0].mxu0
    %v822 = vadd.f32 0.0, %v821
    %v823 = vpop.f32.mrb[0].mxu0
    %v824 = vadd.f32 0.0, %v823
    %v825 = vpop.f32.mrb[0].mxu0
    %v826 = vadd.f32 0.0, %v825
    %827 = vdwg.mxu0
    %828 = vmatprep.subr.bf16.mxu0 %v642
    %829 = vmatpush1.bf16.msra.mxu0 %v641
    %830 = vmatprep.subr.bf16.mxu0 %v650
    %831 = vmatpush1.bf16.msra.mxu0 %v649
    %832 = vmatprep.subr.bf16.mxu0 0
    %833 = vmatpush1.bf16.msra.mxu0 0
    %834 = vmatprep.subr.bf16.mxu0 0
    %835 = vmatpush1.bf16.msra.mxu0 0
    %836 = vmatprep.subr.bf16.mxu0 0
    %837 = vmatpush1.bf16.msra.mxu0 0
    %838 = vmatprep.subr.bf16.mxu0 0
    %839 = vmatpush1.bf16.msra.mxu0 0
    %840 = vmatprep.subr.bf16.mxu0 0
    %841 = vmatpush1.bf16.msra.mxu0 0
    %842 = vmatprep.subr.bf16.mxu0 0
    %843 = vmatpush1.bf16.msra.mxu0 0
    %844 = vmatprep.subr.bf16.mxu0 0
    %845 = vmatpush1.bf16.msra.mxu0 0
    %846 = vmatprep.subr.bf16.mxu0 0
    %847 = vmatpush1.bf16.msra.mxu0 0
    %848 = vmatprep.subr.bf16.mxu0 0
    %849 = vmatpush1.bf16.msra.mxu0 0
    %850 = vmatprep.subr.bf16.mxu0 0
    %851 = vmatpush1.bf16.msra.mxu0 0
    %852 = vmatprep.subr.bf16.mxu0 0
    %853 = vmatpush1.bf16.msra.mxu0 0
    %854 = vmatprep.subr.bf16.mxu0 0
    %855 = vmatpush1.bf16.msra.mxu0 0
    %856 = vmatprep.subr.bf16.mxu0 0
    %857 = vmatpush1.bf16.msra.mxu0 0
    %858 = vmatprep.subr.bf16.mxu0 0
    %859 = vmatpush1.bf16.msra.mxu0 0
    %860 = vmatprep.mubr.bf16.mxu0 0
    %861 = vmatmul.mubr.bf16.gmra.mrb[0].mxu0 %v671
    %v862 = vpop.f32.mrb[0].mxu0
    %v863 = vadd.f32 0.0, %v862
    %v864 = vpop.f32.mrb[0].mxu0
    %v865 = vadd.f32 0.0, %v864
    %v866 = vpop.f32.mrb[0].mxu0
    %v867 = vadd.f32 0.0, %v866
    %v868 = vpop.f32.mrb[0].mxu0
    %v869 = vadd.f32 0.0, %v868
    %870 = vmatprep.mubr.bf16.mxu0 0
    %871 = vmatmul.mubr.bf16.gmra.mrb[0].mxu0 %v674
    %v872 = vpop.f32.mrb[0].mxu0
    %v873 = vadd.f32 0.0, %v872
    %v874 = vpop.f32.mrb[0].mxu0
    %v875 = vadd.f32 0.0, %v874
    %v876 = vpop.f32.mrb[0].mxu0
    %v877 = vadd.f32 0.0, %v876
    %v878 = vpop.f32.mrb[0].mxu0
    %v879 = vadd.f32 0.0, %v878
    %880 = vmatprep.mubr.bf16.mxu0 0
    %881 = vmatmul.mubr.bf16.gmra.mrb[0].mxu0 %v677
    %v882 = vpop.f32.mrb[0].mxu0
    %v883 = vadd.f32 0.0, %v882
    %v884 = vpop.f32.mrb[0].mxu0
    %v885 = vadd.f32 0.0, %v884
    %v886 = vpop.f32.mrb[0].mxu0
    %v887 = vadd.f32 0.0, %v886
    %v888 = vpop.f32.mrb[0].mxu0
    %v889 = vadd.f32 0.0, %v888
    %890 = vmatprep.mubr.bf16.mxu0 0
    %891 = vmatmul.mubr.bf16.gmra.mrb[0].mxu0 %v680
    %v892 = vpop.f32.mrb[0].mxu0
    %v893 = vadd.f32 0.0, %v892
    %v894 = vpop.f32.mrb[0].mxu0
    %v895 = vadd.f32 0.0, %v894
    %v896 = vpop.f32.mrb[0].mxu0
    %v897 = vadd.f32 0.0, %v896
    %v898 = vpop.f32.mrb[0].mxu0
    %v899 = vadd.f32 0.0, %v898
    %900 = vdwg.mxu0
    %901 = vmatprep.subr.bf16.mxu0 %v644
    %902 = vmatpush1.bf16.msra.mxu0 %v643
    %903 = vmatprep.subr.bf16.mxu0 %v652
    %904 = vmatpush1.bf16.msra.mxu0 %v651
    %905 = vmatprep.subr.bf16.mxu0 0
    %906 = vmatpush1.bf16.msra.mxu0 0
    %907 = vmatprep.subr.bf16.mxu0 0
    %908 = vmatpush1.bf16.msra.mxu0 0
    %909 = vmatprep.subr.bf16.mxu0 0
    %910 = vmatpush1.bf16.msra.mxu0 0
    %911 = vmatprep.subr.bf16.mxu0 0
    %912 = vmatpush1.bf16.msra.mxu0 0
    %913 = vmatprep.subr.bf16.mxu0 0
    %914 = vmatpush1.bf16.msra.mxu0 0
    %915 = vmatprep.subr.bf16.mxu0 0
    %916 = vmatpush1.bf16.msra.mxu0 0
    %917 = vmatprep.subr.bf16.mxu0 0
    %918 = vmatpush1.bf16.msra.mxu0 0
    %919 = vmatprep.subr.bf16.mxu0 0
    %920 = vmatpush1.bf16.msra.mxu0 0
    %921 = vmatprep.subr.bf16.mxu0 0
    %922 = vmatpush1.bf16.msra.mxu0 0
    %923 = vmatprep.subr.bf16.mxu0 0
    %924 = vmatpush1.bf16.msra.mxu0 0
    %925 = vmatprep.subr.bf16.mxu0 0
    %926 = vmatpush1.bf16.msra.mxu0 0
    %927 = vmatprep.subr.bf16.mxu0 0
    %928 = vmatpush1.bf16.msra.mxu0 0
    %929 = vmatprep.subr.bf16.mxu0 0
    %930 = vmatpush1.bf16.msra.mxu0 0
    %931 = vmatprep.subr.bf16.mxu0 0
    %932 = vmatpush1.bf16.msra.mxu0 0
    %933 = vmatprep.mubr.bf16.mxu0 0
    %934 = vmatmul.mubr.bf16.gmra.mrb[0].mxu0 %v671
    %v935 = vpop.f32.mrb[0].mxu0
    %v936 = vadd.f32 0.0, %v935
    %v937 = vpop.f32.mrb[0].mxu0
    %v938 = vadd.f32 0.0, %v937
    %v939 = vpop.f32.mrb[0].mxu0
    %v940 = vadd.f32 0.0, %v939
    %v941 = vpop.f32.mrb[0].mxu0
    %v942 = vadd.f32 0.0, %v941
    %943 = vmatprep.mubr.bf16.mxu0 0
    %944 = vmatmul.mubr.bf16.gmra.mrb[0].mxu0 %v674
    %v945 = vpop.f32.mrb[0].mxu0
    %v946 = vadd.f32 0.0, %v945
    %v947 = vpop.f32.mrb[0].mxu0
    %v948 = vadd.f32 0.0, %v947
    %v949 = vpop.f32.mrb[0].mxu0
    %v950 = vadd.f32 0.0, %v949
    %v951 = vpop.f32.mrb[0].mxu0
    %v952 = vadd.f32 0.0, %v951
    %953 = vmatprep.mubr.bf16.mxu0 0
    %954 = vmatmul.mubr.bf16.gmra.mrb[0].mxu0 %v677
    %v955 = vpop.f32.mrb[0].mxu0
    %v956 = vadd.f32 0.0, %v955
    %v957 = vpop.f32.mrb[0].mxu0
    %v958 = vadd.f32 0.0, %v957
    %v959 = vpop.f32.mrb[0].mxu0
    %v960 = vadd.f32 0.0, %v959
    %v961 = vpop.f32.mrb[0].mxu0
    %v962 = vadd.f32 0.0, %v961
    %963 = vmatprep.mubr.bf16.mxu0 0
    %964 = vmatmul.mubr.bf16.gmra.mrb[0].mxu0 %v680
    %v965 = vpop.f32.mrb[0].mxu0
    %v966 = vadd.f32 0.0, %v965
    %v967 = vpop.f32.mrb[0].mxu0
    %v968 = vadd.f32 0.0, %v967
    %v969 = vpop.f32.mrb[0].mxu0
    %v970 = vadd.f32 0.0, %v969
    %v971 = vpop.f32.mrb[0].mxu0
    %v972 = vadd.f32 0.0, %v971
    %973 = vdwg.mxu0
    %v974 = vsub.f32 %v717, %v873
    %v975 = vsub.f32 %v719, %v875
    %v976 = vsub.f32 %v790, %v946
    %v977 = vsub.f32 %v792, %v948
    %v978 = vsub.f32 %v721, %v877
    %v979 = vsub.f32 %v723, %v879
    %v980 = vsub.f32 %v794, %v950
    %v981 = vsub.f32 %v796, %v952
    %v982 = vadd.f32 %v863, %v727
    %v983 = vadd.f32 %v865, %v729
    %v984 = vadd.f32 %v936, %v800
    %v985 = vadd.f32 %v938, %v802
    %v986 = vadd.f32 %v867, %v731
    %v987 = vadd.f32 %v869, %v733
    %v988 = vadd.f32 %v940, %v804
    %v989 = vadd.f32 %v942, %v806
    %v990 = vsub.f32 %v737, %v893
    %v991 = vsub.f32 %v739, %v895
    %v992 = vsub.f32 %v810, %v966
    %v993 = vsub.f32 %v812, %v968
    %v994 = vsub.f32 %v741, %v897
    %v995 = vsub.f32 %v743, %v899
    %v996 = vsub.f32 %v814, %v970
    %v997 = vsub.f32 %v816, %v972
    %v998 = vadd.f32 %v883, %v747
    %v999 = vadd.f32 %v885, %v749
    %v1000 = vadd.f32 %v956, %v820
    %v1001 = vadd.f32 %v958, %v822
    %v1002 = vadd.f32 %v887, %v751
    %v1003 = vadd.f32 %v889, %v753
    %v1004 = vadd.f32 %v960, %v824
    %v1005 = vadd.f32 %v962, %v826
    %v1006 = vpack.c.bf16 %v978, %v974
    %v1007 = vpack.c.bf16 %v979, %v975
    %v1008 = vpack.c.bf16 %v980, %v976
    %v1009 = vpack.c.bf16 %v981, %v977
    %v1010 = vpack.c.bf16 %v986, %v982
    %v1011 = vpack.c.bf16 %v987, %v983
    %v1012 = vpack.c.bf16 %v988, %v984
    %v1013 = vpack.c.bf16 %v989, %v985
    %v1014 = vpack.c.bf16 %v994, %v990
    %v1015 = vpack.c.bf16 %v995, %v991
    %v1016 = vpack.c.bf16 %v996, %v992
    %v1017 = vpack.c.bf16 %v997, %v993
    %v1018 = vpack.c.bf16 %v1002, %v998
    %v1019 = vpack.c.bf16 %v1003, %v999
    %v1020 = vpack.c.bf16 %v1004, %v1000
    %v1021 = vpack.c.bf16 %v1005, %v1001
    %v1038 = vunpack.c.l.b16 %v392
    %v1039 = vunpack.c.h.b16 %v392
    %v1040 = vunpack.c.l.b16 %v393
    %v1041 = vunpack.c.h.b16 %v393
    %v1042 = vunpack.c.l.b16 %v394
    %v1043 = vunpack.c.h.b16 %v394
    %v1044 = vunpack.c.l.b16 %v395
    %v1045 = vunpack.c.h.b16 %v395
    %v1046 = vunpack.c.l.b16 %v396
    %v1047 = vunpack.c.h.b16 %v396
    %v1048 = vunpack.c.l.b16 %v397
    %v1049 = vunpack.c.h.b16 %v397
    %v1050 = vunpack.c.l.b16 %v398
    %v1051 = vunpack.c.h.b16 %v398
    %v1052 = vunpack.c.l.b16 %v399
    %v1053 = vunpack.c.h.b16 %v399
    %v1054 = vunpack.c.l.b16 %v400
    %v1055 = vunpack.c.h.b16 %v400
    %v1056 = vunpack.c.l.b16 %v401
    %v1057 = vunpack.c.h.b16 %v401
    %v1058 = vunpack.c.l.b16 %v402
    %v1059 = vunpack.c.h.b16 %v402
    %v1060 = vunpack.c.l.b16 %v403
    %v1061 = vunpack.c.h.b16 %v403
    %v1062 = vunpack.c.l.b16 %v404
    %v1063 = vunpack.c.h.b16 %v404
    %v1064 = vunpack.c.l.b16 %v405
    %v1065 = vunpack.c.h.b16 %v405
    %v1066 = vunpack.c.l.b16 %v406
    %v1067 = vunpack.c.h.b16 %v406
    %v1068 = vunpack.c.l.b16 %v407
    %v1069 = vunpack.c.h.b16 %v407
    %v1070 = vpack.c.b16 %v1042, %v1038
    %v1071 = vpack.c.b16 %v1043, %v1039
    %v1072 = vpack.c.b16 %v1044, %v1040
    %v1073 = vpack.c.b16 %v1045, %v1041
    %v1074 = vpack.c.b16 %v1050, %v1046
    %v1075 = vpack.c.b16 %v1051, %v1047
    %v1076 = vpack.c.b16 %v1052, %v1048
    %v1077 = vpack.c.b16 %v1053, %v1049
    %v1078 = vpack.c.b16 %v1058, %v1054
    %v1079 = vpack.c.b16 %v1059, %v1055
    %v1080 = vpack.c.b16 %v1060, %v1056
    %v1081 = vpack.c.b16 %v1061, %v1057
    %v1082 = vpack.c.b16 %v1066, %v1062
    %v1083 = vpack.c.b16 %v1067, %v1063
    %v1084 = vpack.c.b16 %v1068, %v1064
    %v1085 = vpack.c.b16 %v1069, %v1065
    %v1102 = vmul.bf16 %v1006, %v1070
    %v1103 = vmul.bf16 %v1007, %v1071
    %v1104 = vmul.bf16 %v1008, %v1072
    %v1105 = vmul.bf16 %v1009, %v1073
    %v1106 = vmul.bf16 %v1010, %v1074
    %v1107 = vmul.bf16 %v1011, %v1075
    %v1108 = vmul.bf16 %v1012, %v1076
    %v1109 = vmul.bf16 %v1013, %v1077
    %v1110 = vmul.bf16 %v1014, %v1078
    %v1111 = vmul.bf16 %v1015, %v1079
    %v1112 = vmul.bf16 %v1016, %v1080
    %v1113 = vmul.bf16 %v1017, %v1081
    %v1114 = vmul.bf16 %v1018, %v1082
    %v1115 = vmul.bf16 %v1019, %v1083
    %v1116 = vmul.bf16 %v1020, %v1084
    %v1117 = vmul.bf16 %v1021, %v1085
    %v1182 = vunpack.c.l.b16 %v408
    %v1183 = vunpack.c.l.b16 %v409
    %v1184 = vunpack.c.l.b16 %v410
    %v1185 = vunpack.c.l.b16 %v411
    %v1186 = vunpack.c.l.b16 %v412
    %v1187 = vunpack.c.l.b16 %v413
    %v1188 = vunpack.c.l.b16 %v414
    %v1189 = vunpack.c.l.b16 %v415
    %v1190 = vunpack.c.l.b16 %v416
    %v1191 = vunpack.c.l.b16 %v417
    %v1192 = vunpack.c.l.b16 %v418
    %v1193 = vunpack.c.l.b16 %v419
    %v1194 = vunpack.c.l.b16 %v420
    %v1195 = vunpack.c.l.b16 %v421
    %v1196 = vunpack.c.l.b16 %v422
    %v1197 = vunpack.c.l.b16 %v423
    %v1198 = vunpack.c.l.b16 %v424
    %v1199 = vunpack.c.l.b16 %v425
    %v1200 = vunpack.c.l.b16 %v426
    %v1201 = vunpack.c.l.b16 %v427
    %v1202 = vunpack.c.l.b16 %v428
    %v1203 = vunpack.c.l.b16 %v429
    %v1204 = vunpack.c.l.b16 %v430
    %v1205 = vunpack.c.l.b16 %v431
    %v1206 = vunpack.c.l.b16 %v432
    %v1207 = vunpack.c.l.b16 %v433
    %v1208 = vunpack.c.l.b16 %v434
    %v1209 = vunpack.c.l.b16 %v435
    %v1210 = vunpack.c.l.b16 %v436
    %v1211 = vunpack.c.l.b16 %v437
    %v1212 = vunpack.c.l.b16 %v438
    %v1213 = vunpack.c.l.b16 %v439
    %v1214 = vunpack.c.l.b16 %v440
    %v1215 = vunpack.c.l.b16 %v441
    %v1216 = vunpack.c.l.b16 %v442
    %v1217 = vunpack.c.l.b16 %v443
    %v1218 = vunpack.c.l.b16 %v444
    %v1219 = vunpack.c.l.b16 %v445
    %v1220 = vunpack.c.l.b16 %v446
    %v1221 = vunpack.c.l.b16 %v447
    %v1222 = vunpack.c.l.b16 %v448
    %v1223 = vunpack.c.l.b16 %v449
    %v1224 = vunpack.c.l.b16 %v450
    %v1225 = vunpack.c.l.b16 %v451
    %v1226 = vunpack.c.l.b16 %v452
    %v1227 = vunpack.c.l.b16 %v453
    %v1228 = vunpack.c.l.b16 %v454
    %v1229 = vunpack.c.l.b16 %v455
    %v1230 = vunpack.c.l.b16 %v456
    %v1231 = vunpack.c.l.b16 %v457
    %v1232 = vunpack.c.l.b16 %v458
    %v1233 = vunpack.c.l.b16 %v459
    %v1234 = vunpack.c.l.b16 %v460
    %v1235 = vunpack.c.l.b16 %v461
    %v1236 = vunpack.c.l.b16 %v462
    %v1237 = vunpack.c.l.b16 %v463
    %v1238 = vunpack.c.l.b16 %v464
    %v1239 = vunpack.c.l.b16 %v465
    %v1240 = vunpack.c.l.b16 %v466
    %v1241 = vunpack.c.l.b16 %v467
    %v1242 = vunpack.c.l.b16 %v468
    %v1243 = vunpack.c.l.b16 %v469
    %v1244 = vunpack.c.l.b16 %v470
    %v1245 = vunpack.c.l.b16 %v471
    %v1246 = vpack.c.b16 %v1183, %v1182
    %v1247 = vpack.c.b16 %v1185, %v1184
    %v1248 = vpack.c.b16 %v1187, %v1186
    %v1249 = vpack.c.b16 %v1189, %v1188
    %v1250 = vpack.c.b16 %v1191, %v1190
    %v1251 = vpack.c.b16 %v1193, %v1192
    %v1252 = vpack.c.b16 %v1195, %v1194
    %v1253 = vpack.c.b16 %v1197, %v1196
    %v1254 = vpack.c.b16 %v1199, %v1198
    %v1255 = vpack.c.b16 %v1201, %v1200
    %v1256 = vpack.c.b16 %v1203, %v1202
    %v1257 = vpack.c.b16 %v1205, %v1204
    %v1258 = vpack.c.b16 %v1207, %v1206
    %v1259 = vpack.c.b16 %v1209, %v1208
    %v1260 = vpack.c.b16 %v1211, %v1210
    %v1261 = vpack.c.b16 %v1213, %v1212
    %v1262 = vpack.c.b16 %v1215, %v1214
    %v1263 = vpack.c.b16 %v1217, %v1216
    %v1264 = vpack.c.b16 %v1219, %v1218
    %v1265 = vpack.c.b16 %v1221, %v1220
    %v1266 = vpack.c.b16 %v1223, %v1222
    %v1267 = vpack.c.b16 %v1225, %v1224
    %v1268 = vpack.c.b16 %v1227, %v1226
    %v1269 = vpack.c.b16 %v1229, %v1228
    %v1270 = vpack.c.b16 %v1231, %v1230
    %v1271 = vpack.c.b16 %v1233, %v1232
    %v1272 = vpack.c.b16 %v1235, %v1234
    %v1273 = vpack.c.b16 %v1237, %v1236
    %v1274 = vpack.c.b16 %v1239, %v1238
    %v1275 = vpack.c.b16 %v1241, %v1240
    %v1276 = vpack.c.b16 %v1243, %v1242
    %v1277 = vpack.c.b16 %v1245, %v1244
    %1310 = vmatprep.subr.bf16.mxu0 0
    %1311 = vmatpush1.bf16.msra.mxu0 %v1246
    %1312 = vmatprep.subr.bf16.mxu0 0
    %1313 = vmatpush1.bf16.msra.mxu0 %v1247
    %1314 = vmatprep.subr.bf16.mxu0 0
    %1315 = vmatpush1.bf16.msra.mxu0 %v1248
    %1316 = vmatprep.subr.bf16.mxu0 0
    %1317 = vmatpush1.bf16.msra.mxu0 %v1249
    %1318 = vmatprep.subr.bf16.mxu0 0
    %1319 = vmatpush1.bf16.msra.mxu0 %v1250
    %1320 = vmatprep.subr.bf16.mxu0 0
    %1321 = vmatpush1.bf16.msra.mxu0 %v1251
    %1322 = vmatprep.subr.bf16.mxu0 0
    %1323 = vmatpush1.bf16.msra.mxu0 %v1252
    %1324 = vmatprep.subr.bf16.mxu0 0
    %1325 = vmatpush1.bf16.msra.mxu0 %v1253
    %1326 = vmatprep.subr.bf16.mxu0 0
    %1327 = vmatpush1.bf16.msra.mxu0 %v1254
    %1328 = vmatprep.subr.bf16.mxu0 0
    %1329 = vmatpush1.bf16.msra.mxu0 %v1255
    %1330 = vmatprep.subr.bf16.mxu0 0
    %1331 = vmatpush1.bf16.msra.mxu0 %v1256
    %1332 = vmatprep.subr.bf16.mxu0 0
    %1333 = vmatpush1.bf16.msra.mxu0 %v1257
    %1334 = vmatprep.subr.bf16.mxu0 0
    %1335 = vmatpush1.bf16.msra.mxu0 %v1258
    %1336 = vmatprep.subr.bf16.mxu0 0
    %1337 = vmatpush1.bf16.msra.mxu0 %v1259
    %1338 = vmatprep.subr.bf16.mxu0 0
    %1339 = vmatpush1.bf16.msra.mxu0 %v1260
    %1340 = vmatprep.subr.bf16.mxu0 0
    %1341 = vmatpush1.bf16.msra.mxu0 %v1261
    %1342 = vmatprep.mubr.bf16.mxu0 %v1103
    %1343 = vmatmul.mubr.bf16.gmra.mrb[0].mxu0 %v1102
    %v1344 = vpop.f32.mrb[0].mxu0
    %v1345 = vadd.f32 0.0, %v1344
    %v1346 = vpop.f32.mrb[0].mxu0
    %v1347 = vpop.f32.mrb[0].mxu0
    %v1348 = vadd.f32 0.0, %v1347
    %v1349 = vpop.f32.mrb[0].mxu0
    %1350 = vmatprep.mubr.bf16.mxu0 %v1107
    %1351 = vmatmul.mubr.bf16.gmra.mrb[0].mxu0 %v1106
    %v1352 = vpop.f32.mrb[0].mxu0
    %v1353 = vadd.f32 0.0, %v1352
    %v1354 = vpop.f32.mrb[0].mxu0
    %v1355 = vpop.f32.mrb[0].mxu0
    %v1356 = vadd.f32 0.0, %v1355
    %v1357 = vpop.f32.mrb[0].mxu0
    %1358 = vmatprep.mubr.bf16.mxu0 %v1111
    %1359 = vmatmul.mubr.bf16.gmra.mrb[0].mxu0 %v1110
    %v1360 = vpop.f32.mrb[0].mxu0
    %v1361 = vadd.f32 0.0, %v1360
    %v1362 = vpop.f32.mrb[0].mxu0
    %v1363 = vpop.f32.mrb[0].mxu0
    %v1364 = vadd.f32 0.0, %v1363
    %v1365 = vpop.f32.mrb[0].mxu0
    %1366 = vmatprep.mubr.bf16.mxu0 %v1115
    %1367 = vmatmul.mubr.bf16.gmra.mrb[0].mxu0 %v1114
    %v1368 = vpop.f32.mrb[0].mxu0
    %v1369 = vadd.f32 0.0, %v1368
    %v1370 = vpop.f32.mrb[0].mxu0
    %v1371 = vpop.f32.mrb[0].mxu0
    %v1372 = vadd.f32 0.0, %v1371
    %v1373 = vpop.f32.mrb[0].mxu0
    %1374 = vdwg.mxu0
    %1375 = vmatprep.subr.bf16.mxu0 0
    %1376 = vmatpush1.bf16.msra.mxu0 %v1262
    %1377 = vmatprep.subr.bf16.mxu0 0
    %1378 = vmatpush1.bf16.msra.mxu0 %v1263
    %1379 = vmatprep.subr.bf16.mxu0 0
    %1380 = vmatpush1.bf16.msra.mxu0 %v1264
    %1381 = vmatprep.subr.bf16.mxu0 0
    %1382 = vmatpush1.bf16.msra.mxu0 %v1265
    %1383 = vmatprep.subr.bf16.mxu0 0
    %1384 = vmatpush1.bf16.msra.mxu0 %v1266
    %1385 = vmatprep.subr.bf16.mxu0 0
    %1386 = vmatpush1.bf16.msra.mxu0 %v1267
    %1387 = vmatprep.subr.bf16.mxu0 0
    %1388 = vmatpush1.bf16.msra.mxu0 %v1268
    %1389 = vmatprep.subr.bf16.mxu0 0
    %1390 = vmatpush1.bf16.msra.mxu0 %v1269
    %1391 = vmatprep.subr.bf16.mxu0 0
    %1392 = vmatpush1.bf16.msra.mxu0 %v1270
    %1393 = vmatprep.subr.bf16.mxu0 0
    %1394 = vmatpush1.bf16.msra.mxu0 %v1271
    %1395 = vmatprep.subr.bf16.mxu0 0
    %1396 = vmatpush1.bf16.msra.mxu0 %v1272
    %1397 = vmatprep.subr.bf16.mxu0 0
    %1398 = vmatpush1.bf16.msra.mxu0 %v1273
    %1399 = vmatprep.subr.bf16.mxu0 0
    %1400 = vmatpush1.bf16.msra.mxu0 %v1274
    %1401 = vmatprep.subr.bf16.mxu0 0
    %1402 = vmatpush1.bf16.msra.mxu0 %v1275
    %1403 = vmatprep.subr.bf16.mxu0 0
    %1404 = vmatpush1.bf16.msra.mxu0 %v1276
    %1405 = vmatprep.subr.bf16.mxu0 0
    %1406 = vmatpush1.bf16.msra.mxu0 %v1277
    %1407 = vmatprep.mubr.bf16.mxu0 %v1105
    %1408 = vmatmul.mubr.bf16.gmra.mrb[0].mxu0 %v1104
    %v1409 = vpop.f32.mrb[0].mxu0
    %v1410 = vadd.f32 %v1345, %v1409
    %v1411 = vpop.f32.mrb[0].mxu0
    %v1412 = vpop.f32.mrb[0].mxu0
    %v1413 = vadd.f32 %v1348, %v1412
    %v1414 = vpop.f32.mrb[0].mxu0
    %1415 = vmatprep.mubr.bf16.mxu0 %v1109
    %1416 = vmatmul.mubr.bf16.gmra.mrb[0].mxu0 %v1108
    %v1417 = vpop.f32.mrb[0].mxu0
    %v1418 = vadd.f32 %v1353, %v1417
    %v1419 = vpop.f32.mrb[0].mxu0
    %v1420 = vpop.f32.mrb[0].mxu0
    %v1421 = vadd.f32 %v1356, %v1420
    %v1422 = vpop.f32.mrb[0].mxu0
    %1423 = vmatprep.mubr.bf16.mxu0 %v1113
    %1424 = vmatmul.mubr.bf16.gmra.mrb[0].mxu0 %v1112
    %v1425 = vpop.f32.mrb[0].mxu0
    %v1426 = vadd.f32 %v1361, %v1425
    %v1427 = vpop.f32.mrb[0].mxu0
    %v1428 = vpop.f32.mrb[0].mxu0
    %v1429 = vadd.f32 %v1364, %v1428
    %v1430 = vpop.f32.mrb[0].mxu0
    %1431 = vmatprep.mubr.bf16.mxu0 %v1117
    %1432 = vmatmul.mubr.bf16.gmra.mrb[0].mxu0 %v1116
    %v1433 = vpop.f32.mrb[0].mxu0
    %v1434 = vadd.f32 %v1369, %v1433
    %v1435 = vpop.f32.mrb[0].mxu0
    %v1436 = vpop.f32.mrb[0].mxu0
    %v1437 = vadd.f32 %v1372, %v1436
    %v1438 = vpop.f32.mrb[0].mxu0
    %1439 = vdwg.mxu0
    %v1440 = vpack.c.bf16 %v1413, %v1410
    %v1441 = vpack.c.bf16 %v1421, %v1418
    %v1442 = vpack.c.bf16 %v1429, %v1426
    %v1443 = vpack.c.bf16 %v1437, %v1434
    %v1444 = vld [vmem:[#allocation7] sm:$0xf]
    %v1445 = vld [vmem:[#allocation7 + $0x4] sm:$0xf]
    %v1446 = vld [vmem:[#allocation7 + $0x8] sm:$0xf]
    %v1447 = vld [vmem:[#allocation7 + $0xc] sm:$0xf]
    %v1452 = vunpack.c.l.b16 %v1444
    %v1453 = vunpack.c.l.b16 %v1445
    %v1454 = vunpack.c.l.b16 %v1446
    %v1455 = vunpack.c.l.b16 %v1447
    %v1456 = vpack.c.b16 %v1453, %v1452
    %v1457 = vpack.c.b16 %v1455, %v1454
    %v1461 = vsel %vm669, %v472, 0
    %v1464 = vsel %vm669, %v473, 0
    %v1467 = vsel %vm669, %v474, 0
    %v1470 = vsel %vm669, %v475, 0
    %v1473 = vsel %vm669, %v476, 0
    %v1476 = vsel %vm669, %v477, 0
    %v1479 = vsel %vm669, %v478, 0
    %v1482 = vsel %vm669, %v479, 0
    %1484 = vmatprep.subr.bf16.mxu0 0
    %1485 = vmatpush1.bf16.msra.mxu0 %v1456
    %1486 = vmatprep.subr.bf16.mxu0 0
    %1487 = vmatpush1.bf16.msra.mxu0 %v1457
    %1488 = vmatprep.subr.bf16.mxu0 0
    %1489 = vmatpush1.bf16.msra.mxu0 0
    %1490 = vmatprep.subr.bf16.mxu0 0
    %1491 = vmatpush1.bf16.msra.mxu0 0
    %1492 = vmatprep.subr.bf16.mxu0 0
    %1493 = vmatpush1.bf16.msra.mxu0 0
    %1494 = vmatprep.subr.bf16.mxu0 0
    %1495 = vmatpush1.bf16.msra.mxu0 0
    %1496 = vmatprep.subr.bf16.mxu0 0
    %1497 = vmatpush1.bf16.msra.mxu0 0
    %1498 = vmatprep.subr.bf16.mxu0 0
    %1499 = vmatpush1.bf16.msra.mxu0 0
    %1500 = vmatprep.subr.bf16.mxu0 0
    %1501 = vmatpush1.bf16.msra.mxu0 0
    %1502 = vmatprep.subr.bf16.mxu0 0
    %1503 = vmatpush1.bf16.msra.mxu0 0
    %1504 = vmatprep.subr.bf16.mxu0 0
    %1505 = vmatpush1.bf16.msra.mxu0 0
    %1506 = vmatprep.subr.bf16.mxu0 0
    %1507 = vmatpush1.bf16.msra.mxu0 0
    %1508 = vmatprep.subr.bf16.mxu0 0
    %1509 = vmatpush1.bf16.msra.mxu0 0
    %1510 = vmatprep.subr.bf16.mxu0 0
    %1511 = vmatpush1.bf16.msra.mxu0 0
    %1512 = vmatprep.subr.bf16.mxu0 0
    %1513 = vmatpush1.bf16.msra.mxu0 0
    %1514 = vmatprep.subr.bf16.mxu0 0
    %1515 = vmatpush1.bf16.msra.mxu0 0
    %1516 = vmatprep.mubr.bf16.mxu0 0
    %1517 = vmatmul.mubr.bf16.gmra.mrb[0].mxu0 %v1461
    %v1518 = vpop.f32.mrb[0].mxu0
    %v1519 = vadd.f32 0.0, %v1518
    %v1520 = vpop.f32.mrb[0].mxu0
    %v1521 = vpop.f32.mrb[0].mxu0
    %v1522 = vadd.f32 0.0, %v1521
    %v1523 = vpop.f32.mrb[0].mxu0
    %1524 = vmatprep.mubr.bf16.mxu0 0
    %1525 = vmatmul.mubr.bf16.gmra.mrb[0].mxu0 %v1464
    %v1526 = vpop.f32.mrb[0].mxu0
    %v1527 = vadd.f32 0.0, %v1526
    %v1528 = vpop.f32.mrb[0].mxu0
    %v1529 = vpop.f32.mrb[0].mxu0
    %v1530 = vadd.f32 0.0, %v1529
    %v1531 = vpop.f32.mrb[0].mxu0
    %1532 = vmatprep.mubr.bf16.mxu0 0
    %1533 = vmatmul.mubr.bf16.gmra.mrb[0].mxu0 %v1467
    %v1534 = vpop.f32.mrb[0].mxu0
    %v1535 = vadd.f32 0.0, %v1534
    %v1536 = vpop.f32.mrb[0].mxu0
    %v1537 = vpop.f32.mrb[0].mxu0
    %v1538 = vadd.f32 0.0, %v1537
    %v1539 = vpop.f32.mrb[0].mxu0
    %1540 = vmatprep.mubr.bf16.mxu0 0
    %1541 = vmatmul.mubr.bf16.gmra.mrb[0].mxu0 %v1470
    %v1542 = vpop.f32.mrb[0].mxu0
    %v1543 = vadd.f32 0.0, %v1542
    %v1544 = vpop.f32.mrb[0].mxu0
    %v1545 = vpop.f32.mrb[0].mxu0
    %v1546 = vadd.f32 0.0, %v1545
    %v1547 = vpop.f32.mrb[0].mxu0
    %1548 = vmatprep.mubr.bf16.mxu0 0
    %1549 = vmatmul.mubr.bf16.gmra.mrb[0].mxu0 %v1473
    %v1550 = vpop.f32.mrb[0].mxu0
    %v1551 = vadd.f32 0.0, %v1550
    %v1552 = vpop.f32.mrb[0].mxu0
    %v1553 = vpop.f32.mrb[0].mxu0
    %v1554 = vadd.f32 0.0, %v1553
    %v1555 = vpop.f32.mrb[0].mxu0
    %1556 = vmatprep.mubr.bf16.mxu0 0
    %1557 = vmatmul.mubr.bf16.gmra.mrb[0].mxu0 %v1476
    %v1558 = vpop.f32.mrb[0].mxu0
    %v1559 = vadd.f32 0.0, %v1558
    %v1560 = vpop.f32.mrb[0].mxu0
    %v1561 = vpop.f32.mrb[0].mxu0
    %v1562 = vadd.f32 0.0, %v1561
    %v1563 = vpop.f32.mrb[0].mxu0
    %1564 = vmatprep.mubr.bf16.mxu0 0
    %1565 = vmatmul.mubr.bf16.gmra.mrb[0].mxu0 %v1479
    %v1566 = vpop.f32.mrb[0].mxu0
    %v1567 = vadd.f32 0.0, %v1566
    %v1568 = vpop.f32.mrb[0].mxu0
    %v1569 = vpop.f32.mrb[0].mxu0
    %v1570 = vadd.f32 0.0, %v1569
    %v1571 = vpop.f32.mrb[0].mxu0
    %1572 = vmatprep.mubr.bf16.mxu0 0
    %1573 = vmatmul.mubr.bf16.gmra.mrb[0].mxu0 %v1482
    %v1574 = vpop.f32.mrb[0].mxu0
    %v1575 = vadd.f32 0.0, %v1574
    %v1576 = vpop.f32.mrb[0].mxu0
    %v1577 = vpop.f32.mrb[0].mxu0
    %v1578 = vadd.f32 0.0, %v1577
    %v1579 = vpop.f32.mrb[0].mxu0
    %1580 = vdwg.mxu0
    %v1597 = vunpack.c.l.b16 %v376
    %v1598 = vunpack.c.l.b16 %v377
    %v1599 = vunpack.c.l.b16 %v378
    %v1600 = vunpack.c.l.b16 %v379
    %v1601 = vunpack.c.l.b16 %v380
    %v1602 = vunpack.c.l.b16 %v381
    %v1603 = vunpack.c.l.b16 %v382
    %v1604 = vunpack.c.l.b16 %v383
    %v1605 = vunpack.c.l.b16 %v384
    %v1606 = vunpack.c.l.b16 %v385
    %v1607 = vunpack.c.l.b16 %v386
    %v1608 = vunpack.c.l.b16 %v387
    %v1609 = vunpack.c.l.b16 %v388
    %v1610 = vunpack.c.l.b16 %v389
    %v1611 = vunpack.c.l.b16 %v390
    %v1612 = vunpack.c.l.b16 %v391
    %v1613 = vpack.c.b16 %v1598, %v1597
    %v1614 = vpack.c.b16 %v1600, %v1599
    %v1615 = vpack.c.b16 %v1602, %v1601
    %v1616 = vpack.c.b16 %v1604, %v1603
    %v1617 = vpack.c.b16 %v1606, %v1605
    %v1618 = vpack.c.b16 %v1608, %v1607
    %v1619 = vpack.c.b16 %v1610, %v1609
    %v1620 = vpack.c.b16 %v1612, %v1611
    %vm1621 = vcmask 523264
    %v1623 = vsel %vm1621, %v1613, 0
    %v1626 = vsel %vm1621, %v1614, 0
    %v1629 = vsel %vm1621, %v1615, 0
    %v1632 = vsel %vm1621, %v1616, 0
    %v1635 = vsel %vm1621, %v1617, 0
    %v1638 = vsel %vm1621, %v1618, 0
    %v1641 = vsel %vm1621, %v1619, 0
    %v1644 = vsel %vm1621, %v1620, 0
    %1646 = vmatprep.subr.bf16.mxu0 0
    %1647 = vmatpush1.bf16.msra.mxu0 %v1440
    %1648 = vmatprep.subr.bf16.mxu0 0
    %1649 = vmatpush1.bf16.msra.mxu0 %v1441
    %1650 = vmatprep.subr.bf16.mxu0 0
    %1651 = vmatpush1.bf16.msra.mxu0 %v1442
    %1652 = vmatprep.subr.bf16.mxu0 0
    %1653 = vmatpush1.bf16.msra.mxu0 %v1443
    %1654 = vmatprep.subr.bf16.mxu0 0
    %1655 = vmatpush1.bf16.msra.mxu0 0
    %1656 = vmatprep.subr.bf16.mxu0 0
    %1657 = vmatpush1.bf16.msra.mxu0 0
    %1658 = vmatprep.subr.bf16.mxu0 0
    %1659 = vmatpush1.bf16.msra.mxu0 0
    %1660 = vmatprep.subr.bf16.mxu0 0
    %1661 = vmatpush1.bf16.msra.mxu0 0
    %1662 = vmatprep.subr.bf16.mxu0 0
    %1663 = vmatpush1.bf16.msra.mxu0 0
    %1664 = vmatprep.subr.bf16.mxu0 0
    %1665 = vmatpush1.bf16.msra.mxu0 0
    %1666 = vmatprep.subr.bf16.mxu0 0
    %1667 = vmatpush1.bf16.msra.mxu0 0
    %1668 = vmatprep.subr.bf16.mxu0 0
    %1669 = vmatpush1.bf16.msra.mxu0 0
    %1670 = vmatprep.subr.bf16.mxu0 0
    %1671 = vmatpush1.bf16.msra.mxu0 0
    %1672 = vmatprep.subr.bf16.mxu0 0
    %1673 = vmatpush1.bf16.msra.mxu0 0
    %1674 = vmatprep.subr.bf16.mxu0 0
    %1675 = vmatpush1.bf16.msra.mxu0 0
    %1676 = vmatprep.subr.bf16.mxu0 0
    %1677 = vmatpush1.bf16.msra.mxu0 0
    %1678 = vmatprep.mubr.bf16.mxu0 0
    %1679 = vmatmul.mubr.bf16.gmra.mrb[0].mxu0 %v1623
    %v1680 = vpop.f32.mrb[0].mxu0
    %v1681 = vadd.f32 %v1519, %v1680
    %v1682 = vpop.f32.mrb[0].mxu0
    %v1683 = vpop.f32.mrb[0].mxu0
    %v1684 = vadd.f32 %v1522, %v1683
    %v1685 = vpop.f32.mrb[0].mxu0
    %1686 = vmatprep.mubr.bf16.mxu0 0
    %1687 = vmatmul.mubr.bf16.gmra.mrb[0].mxu0 %v1626
    %v1688 = vpop.f32.mrb[0].mxu0
    %v1689 = vadd.f32 %v1527, %v1688
    %v1690 = vpop.f32.mrb[0].mxu0
    %v1691 = vpop.f32.mrb[0].mxu0
    %v1692 = vadd.f32 %v1530, %v1691
    %v1693 = vpop.f32.mrb[0].mxu0
    %1694 = vmatprep.mubr.bf16.mxu0 0
    %1695 = vmatmul.mubr.bf16.gmra.mrb[0].mxu0 %v1629
    %v1696 = vpop.f32.mrb[0].mxu0
    %v1697 = vadd.f32 %v1535, %v1696
    %v1698 = vpop.f32.mrb[0].mxu0
    %v1699 = vpop.f32.mrb[0].mxu0
    %v1700 = vadd.f32 %v1538, %v1699
    %v1701 = vpop.f32.mrb[0].mxu0
    %1702 = vmatprep.mubr.bf16.mxu0 0
    %1703 = vmatmul.mubr.bf16.gmra.mrb[0].mxu0 %v1632
    %v1704 = vpop.f32.mrb[0].mxu0
    %v1705 = vadd.f32 %v1543, %v1704
    %v1706 = vpop.f32.mrb[0].mxu0
    %v1707 = vpop.f32.mrb[0].mxu0
    %v1708 = vadd.f32 %v1546, %v1707
    %v1709 = vpop.f32.mrb[0].mxu0
    %1710 = vmatprep.mubr.bf16.mxu0 0
    %1711 = vmatmul.mubr.bf16.gmra.mrb[0].mxu0 %v1635
    %v1712 = vpop.f32.mrb[0].mxu0
    %v1713 = vadd.f32 %v1551, %v1712
    %v1714 = vpop.f32.mrb[0].mxu0
    %v1715 = vpop.f32.mrb[0].mxu0
    %v1716 = vadd.f32 %v1554, %v1715
    %v1717 = vpop.f32.mrb[0].mxu0
    %1718 = vmatprep.mubr.bf16.mxu0 0
    %1719 = vmatmul.mubr.bf16.gmra.mrb[0].mxu0 %v1638
    %v1720 = vpop.f32.mrb[0].mxu0
    %v1721 = vadd.f32 %v1559, %v1720
    %v1722 = vpop.f32.mrb[0].mxu0
    %v1723 = vpop.f32.mrb[0].mxu0
    %v1724 = vadd.f32 %v1562, %v1723
    %v1725 = vpop.f32.mrb[0].mxu0
    %1726 = vmatprep.mubr.bf16.mxu0 0
    %1727 = vmatmul.mubr.bf16.gmra.mrb[0].mxu0 %v1641
    %v1728 = vpop.f32.mrb[0].mxu0
    %v1729 = vadd.f32 %v1567, %v1728
    %v1730 = vpop.f32.mrb[0].mxu0
    %v1731 = vpop.f32.mrb[0].mxu0
    %v1732 = vadd.f32 %v1570, %v1731
    %v1733 = vpop.f32.mrb[0].mxu0
    %1734 = vmatprep.mubr.bf16.mxu0 0
    %1735 = vmatmul.mubr.bf16.gmra.mrb[0].mxu0 %v1644
    %v1736 = vpop.f32.mrb[0].mxu0
    %v1737 = vadd.f32 %v1575, %v1736
    %v1738 = vpop.f32.mrb[0].mxu0
    %v1739 = vpop.f32.mrb[0].mxu0
    %v1740 = vadd.f32 %v1578, %v1739
    %v1741 = vpop.f32.mrb[0].mxu0
    %1742 = vdwg.mxu0
    %v1743 = vld [vmem:[%s9] sm:$0x1]
    %v1745 = vlaneseq
    %v1746 = vshrl.u32 %v1745, 7
    %v1747 = vsub.s32 0, %v1746
    %v1748 = vrot.slane %v1743, %v1747
    %v1750 = vadd.f32 %v1681, %v1748
    %v1751 = vadd.f32 %v1684, %v1748
    %v1752 = vadd.f32 %v1689, %v1748
    %v1753 = vadd.f32 %v1692, %v1748
    %v1754 = vadd.f32 %v1697, %v1748
    %v1755 = vadd.f32 %v1700, %v1748
    %v1756 = vadd.f32 %v1705, %v1748
    %v1757 = vadd.f32 %v1708, %v1748
    %v1758 = vadd.f32 %v1713, %v1748
    %v1759 = vadd.f32 %v1716, %v1748
    %v1760 = vadd.f32 %v1721, %v1748
    %v1761 = vadd.f32 %v1724, %v1748
    %v1762 = vadd.f32 %v1729, %v1748
    %v1763 = vadd.f32 %v1732, %v1748
    %v1764 = vadd.f32 %v1737, %v1748
    %v1765 = vadd.f32 %v1740, %v1748
    %v1766 = vmul.f32 %v1750, 0.5
    %v1767 = vmul.f32 %v1751, 0.5
    %v1768 = vmul.f32 %v1752, 0.5
    %v1769 = vmul.f32 %v1753, 0.5
    %v1770 = vmul.f32 %v1754, 0.5
    %v1771 = vmul.f32 %v1755, 0.5
    %v1772 = vmul.f32 %v1756, 0.5
    %v1773 = vmul.f32 %v1757, 0.5
    %v1774 = vmul.f32 %v1758, 0.5
    %v1775 = vmul.f32 %v1759, 0.5
    %v1776 = vmul.f32 %v1760, 0.5
    %v1777 = vmul.f32 %v1761, 0.5
    %v1778 = vmul.f32 %v1762, 0.5
    %v1779 = vmul.f32 %v1763, 0.5
    %v1780 = vmul.f32 %v1764, 0.5
    %v1781 = vmul.f32 %v1765, 0.5
    %v1782 = vmul.f32 %v1750, 0.70710677
    %v1783 = vmul.f32 %v1751, 0.70710677
    %v1784 = vmul.f32 %v1752, 0.70710677
    %v1785 = vmul.f32 %v1753, 0.70710677
    %v1786 = vmul.f32 %v1754, 0.70710677
    %v1787 = vmul.f32 %v1755, 0.70710677
    %v1788 = vmul.f32 %v1756, 0.70710677
    %v1789 = vmul.f32 %v1757, 0.70710677
    %v1790 = vmul.f32 %v1758, 0.70710677
    %v1791 = vmul.f32 %v1759, 0.70710677
    %v1792 = vmul.f32 %v1760, 0.70710677
    %v1793 = vmul.f32 %v1761, 0.70710677
    %v1794 = vmul.f32 %v1762, 0.70710677
    %v1795 = vmul.f32 %v1763, 0.70710677
    %v1796 = vmul.f32 %v1764, 0.70710677
    %v1797 = vmul.f32 %v1765, 0.70710677
    %vm1798 = vcmp.ge.f32.partialorder %v1782, 0.0
    %vm1799 = vcmp.ge.f32.partialorder %v1783, 0.0
    %vm1800 = vcmp.ge.f32.partialorder %v1784, 0.0
    %vm1801 = vcmp.ge.f32.partialorder %v1785, 0.0
    %vm1802 = vcmp.ge.f32.partialorder %v1786, 0.0
    %vm1803 = vcmp.ge.f32.partialorder %v1787, 0.0
    %vm1804 = vcmp.ge.f32.partialorder %v1788, 0.0
    %vm1805 = vcmp.ge.f32.partialorder %v1789, 0.0
    %vm1806 = vcmp.ge.f32.partialorder %v1790, 0.0
    %vm1807 = vcmp.ge.f32.partialorder %v1791, 0.0
    %vm1808 = vcmp.ge.f32.partialorder %v1792, 0.0
    %vm1809 = vcmp.ge.f32.partialorder %v1793, 0.0
    %vm1810 = vcmp.ge.f32.partialorder %v1794, 0.0
    %vm1811 = vcmp.ge.f32.partialorder %v1795, 0.0
    %vm1812 = vcmp.ge.f32.partialorder %v1796, 0.0
    %vm1813 = vcmp.ge.f32.partialorder %v1797, 0.0
    %v1814 = vsel %vm1798, 1.0, -1.0
    %v1815 = vsel %vm1799, 1.0, -1.0
    %v1816 = vsel %vm1800, 1.0, -1.0
    %v1817 = vsel %vm1801, 1.0, -1.0
    %v1818 = vsel %vm1802, 1.0, -1.0
    %v1819 = vsel %vm1803, 1.0, -1.0
    %v1820 = vsel %vm1804, 1.0, -1.0
    %v1821 = vsel %vm1805, 1.0, -1.0
    %v1822 = vsel %vm1806, 1.0, -1.0
    %v1823 = vsel %vm1807, 1.0, -1.0
    %v1824 = vsel %vm1808, 1.0, -1.0
    %v1825 = vsel %vm1809, 1.0, -1.0
    %v1826 = vsel %vm1810, 1.0, -1.0
    %v1827 = vsel %vm1811, 1.0, -1.0
    %v1828 = vsel %vm1812, 1.0, -1.0
    %v1829 = vsel %vm1813, 1.0, -1.0
    %v1830 = vand.u32 2147483647, %v1782
    %v1831 = vand.u32 2147483647, %v1783
    %v1832 = vand.u32 2147483647, %v1784
    %v1833 = vand.u32 2147483647, %v1785
    %v1834 = vand.u32 2147483647, %v1786
    %v1835 = vand.u32 2147483647, %v1787
    %v1836 = vand.u32 2147483647, %v1788
    %v1837 = vand.u32 2147483647, %v1789
    %v1838 = vand.u32 2147483647, %v1790
    %v1839 = vand.u32 2147483647, %v1791
    %v1840 = vand.u32 2147483647, %v1792
    %v1841 = vand.u32 2147483647, %v1793
    %v1842 = vand.u32 2147483647, %v1794
    %v1843 = vand.u32 2147483647, %v1795
    %v1844 = vand.u32 2147483647, %v1796
    %v1845 = vand.u32 2147483647, %v1797
    %v1846 = vmul.f32 %v1830, 0.3275911
    %v1847 = vmul.f32 %v1831, 0.3275911
    %v1848 = vmul.f32 %v1832, 0.3275911
    %v1849 = vmul.f32 %v1833, 0.3275911
    %v1850 = vmul.f32 %v1834, 0.3275911
    %v1851 = vmul.f32 %v1835, 0.3275911
    %v1852 = vmul.f32 %v1836, 0.3275911
    %v1853 = vmul.f32 %v1837, 0.3275911
    %v1854 = vmul.f32 %v1838, 0.3275911
    %v1855 = vmul.f32 %v1839, 0.3275911
    %v1856 = vmul.f32 %v1840, 0.3275911
    %v1857 = vmul.f32 %v1841, 0.3275911
    %v1858 = vmul.f32 %v1842, 0.3275911
    %v1859 = vmul.f32 %v1843, 0.3275911
    %v1860 = vmul.f32 %v1844, 0.3275911
    %v1861 = vmul.f32 %v1845, 0.3275911
    %v1862 = vadd.f32 %v1846, 1.0
    %v1863 = vadd.f32 %v1847, 1.0
    %v1864 = vadd.f32 %v1848, 1.0
    %v1865 = vadd.f32 %v1849, 1.0
    %v1866 = vadd.f32 %v1850, 1.0
    %v1867 = vadd.f32 %v1851, 1.0
    %v1868 = vadd.f32 %v1852, 1.0
    %v1869 = vadd.f32 %v1853, 1.0
    %v1870 = vadd.f32 %v1854, 1.0
    %v1871 = vadd.f32 %v1855, 1.0
    %v1872 = vadd.f32 %v1856, 1.0
    %v1873 = vadd.f32 %v1857, 1.0
    %v1874 = vadd.f32 %v1858, 1.0
    %v1875 = vadd.f32 %v1859, 1.0
    %v1876 = vadd.f32 %v1860, 1.0
    %v1877 = vadd.f32 %v1861, 1.0
    %v1878 = vrcp.pop %v1862
    %v1879 = vmul.f32 1.0, %v1878
    %v1880 = vrcp.pop %v1863
    %v1881 = vmul.f32 1.0, %v1880
    %v1882 = vrcp.pop %v1864
    %v1883 = vmul.f32 1.0, %v1882
    %v1884 = vrcp.pop %v1865
    %v1885 = vmul.f32 1.0, %v1884
    %v1886 = vrcp.pop %v1866
    %v1887 = vmul.f32 1.0, %v1886
    %v1888 = vrcp.pop %v1867
    %v1889 = vmul.f32 1.0, %v1888
    %v1890 = vrcp.pop %v1868
    %v1891 = vmul.f32 1.0, %v1890
    %v1892 = vrcp.pop %v1869
    %v1893 = vmul.f32 1.0, %v1892
    %v1894 = vrcp.pop %v1870
    %v1895 = vmul.f32 1.0, %v1894
    %v1896 = vrcp.pop %v1871
    %v1897 = vmul.f32 1.0, %v1896
    %v1898 = vrcp.pop %v1872
    %v1899 = vmul.f32 1.0, %v1898
    %v1900 = vrcp.pop %v1873
    %v1901 = vmul.f32 1.0, %v1900
    %v1902 = vrcp.pop %v1874
    %v1903 = vmul.f32 1.0, %v1902
    %v1904 = vrcp.pop %v1875
    %v1905 = vmul.f32 1.0, %v1904
    %v1906 = vrcp.pop %v1876
    %v1907 = vmul.f32 1.0, %v1906
    %v1908 = vrcp.pop %v1877
    %v1909 = vmul.f32 1.0, %v1908
    %v1910 = vmul.f32 %v1879, 1.0614054
    %v1911 = vmul.f32 %v1881, 1.0614054
    %v1912 = vmul.f32 %v1883, 1.0614054
    %v1913 = vmul.f32 %v1885, 1.0614054
    %v1914 = vmul.f32 %v1887, 1.0614054
    %v1915 = vmul.f32 %v1889, 1.0614054
    %v1916 = vmul.f32 %v1891, 1.0614054
    %v1917 = vmul.f32 %v1893, 1.0614054
    %v1918 = vmul.f32 %v1895, 1.0614054
    %v1919 = vmul.f32 %v1897, 1.0614054
    %v1920 = vmul.f32 %v1899, 1.0614054
    %v1921 = vmul.f32 %v1901, 1.0614054
    %v1922 = vmul.f32 %v1903, 1.0614054
    %v1923 = vmul.f32 %v1905, 1.0614054
    %v1924 = vmul.f32 %v1907, 1.0614054
    %v1925 = vmul.f32 %v1909, 1.0614054
    %v1926 = vadd.f32 %v1910, -1.4531521
    %v1927 = vadd.f32 %v1911, -1.4531521
    %v1928 = vadd.f32 %v1912, -1.4531521
    %v1929 = vadd.f32 %v1913, -1.4531521
    %v1930 = vadd.f32 %v1914, -1.4531521
    %v1931 = vadd.f32 %v1915, -1.4531521
    %v1932 = vadd.f32 %v1916, -1.4531521
    %v1933 = vadd.f32 %v1917, -1.4531521
    %v1934 = vadd.f32 %v1918, -1.4531521
    %v1935 = vadd.f32 %v1919, -1.4531521
    %v1936 = vadd.f32 %v1920, -1.4531521
    %v1937 = vadd.f32 %v1921, -1.4531521
    %v1938 = vadd.f32 %v1922, -1.4531521
    %v1939 = vadd.f32 %v1923, -1.4531521
    %v1940 = vadd.f32 %v1924, -1.4531521
    %v1941 = vadd.f32 %v1925, -1.4531521
    %v1942 = vmul.f32 %v1926, %v1879
    %v1943 = vmul.f32 %v1927, %v1881
    %v1944 = vmul.f32 %v1928, %v1883
    %v1945 = vmul.f32 %v1929, %v1885
    %v1946 = vmul.f32 %v1930, %v1887
    %v1947 = vmul.f32 %v1931, %v1889
    %v1948 = vmul.f32 %v1932, %v1891
    %v1949 = vmul.f32 %v1933, %v1893
    %v1950 = vmul.f32 %v1934, %v1895
    %v1951 = vmul.f32 %v1935, %v1897
    %v1952 = vmul.f32 %v1936, %v1899
    %v1953 = vmul.f32 %v1937, %v1901
    %v1954 = vmul.f32 %v1938, %v1903
    %v1955 = vmul.f32 %v1939, %v1905
    %v1956 = vmul.f32 %v1940, %v1907
    %v1957 = vmul.f32 %v1941, %v1909
    %v1958 = vadd.f32 %v1942, 1.4214138
    %v1959 = vadd.f32 %v1943, 1.4214138
    %v1960 = vadd.f32 %v1944, 1.4214138
    %v1961 = vadd.f32 %v1945, 1.4214138
    %v1962 = vadd.f32 %v1946, 1.4214138
    %v1963 = vadd.f32 %v1947, 1.4214138
    %v1964 = vadd.f32 %v1948, 1.4214138
    %v1965 = vadd.f32 %v1949, 1.4214138
    %v1966 = vadd.f32 %v1950, 1.4214138
    %v1967 = vadd.f32 %v1951, 1.4214138
    %v1968 = vadd.f32 %v1952, 1.4214138
    %v1969 = vadd.f32 %v1953, 1.4214138
    %v1970 = vadd.f32 %v1954, 1.4214138
    %v1971 = vadd.f32 %v1955, 1.4214138
    %v1972 = vadd.f32 %v1956, 1.4214138
    %v1973 = vadd.f32 %v1957, 1.4214138
    %v1974 = vmul.f32 %v1958, %v1879
    %v1975 = vmul.f32 %v1959, %v1881
    %v1976 = vmul.f32 %v1960, %v1883
    %v1977 = vmul.f32 %v1961, %v1885
    %v1978 = vmul.f32 %v1962, %v1887
    %v1979 = vmul.f32 %v1963, %v1889
    %v1980 = vmul.f32 %v1964, %v1891
    %v1981 = vmul.f32 %v1965, %v1893
    %v1982 = vmul.f32 %v1966, %v1895
    %v1983 = vmul.f32 %v1967, %v1897
    %v1984 = vmul.f32 %v1968, %v1899
    %v1985 = vmul.f32 %v1969, %v1901
    %v1986 = vmul.f32 %v1970, %v1903
    %v1987 = vmul.f32 %v1971, %v1905
    %v1988 = vmul.f32 %v1972, %v1907
    %v1989 = vmul.f32 %v1973, %v1909
    %v1990 = vadd.f32 %v1974, -0.28449672
    %v1991 = vadd.f32 %v1975, -0.28449672
    %v1992 = vadd.f32 %v1976, -0.28449672
    %v1993 = vadd.f32 %v1977, -0.28449672
    %v1994 = vadd.f32 %v1978, -0.28449672
    %v1995 = vadd.f32 %v1979, -0.28449672
    %v1996 = vadd.f32 %v1980, -0.28449672
    %v1997 = vadd.f32 %v1981, -0.28449672
    %v1998 = vadd.f32 %v1982, -0.28449672
    %v1999 = vadd.f32 %v1983, -0.28449672
    %v2000 = vadd.f32 %v1984, -0.28449672
    %v2001 = vadd.f32 %v1985, -0.28449672
    %v2002 = vadd.f32 %v1986, -0.28449672
    %v2003 = vadd.f32 %v1987, -0.28449672
    %v2004 = vadd.f32 %v1988, -0.28449672
    %v2005 = vadd.f32 %v1989, -0.28449672
    %v2006 = vmul.f32 %v1990, %v1879
    %v2007 = vmul.f32 %v1991, %v1881
    %v2008 = vmul.f32 %v1992, %v1883
    %v2009 = vmul.f32 %v1993, %v1885
    %v2010 = vmul.f32 %v1994, %v1887
    %v2011 = vmul.f32 %v1995, %v1889
    %v2012 = vmul.f32 %v1996, %v1891
    %v2013 = vmul.f32 %v1997, %v1893
    %v2014 = vmul.f32 %v1998, %v1895
    %v2015 = vmul.f32 %v1999, %v1897
    %v2016 = vmul.f32 %v2000, %v1899
    %v2017 = vmul.f32 %v2001, %v1901
    %v2018 = vmul.f32 %v2002, %v1903
    %v2019 = vmul.f32 %v2003, %v1905
    %v2020 = vmul.f32 %v2004, %v1907
    %v2021 = vmul.f32 %v2005, %v1909
    %v2022 = vadd.f32 %v2006, 0.2548296
    %v2023 = vadd.f32 %v2007, 0.2548296
    %v2024 = vadd.f32 %v2008, 0.2548296
    %v2025 = vadd.f32 %v2009, 0.2548296
    %v2026 = vadd.f32 %v2010, 0.2548296
    %v2027 = vadd.f32 %v2011, 0.2548296
    %v2028 = vadd.f32 %v2012, 0.2548296
    %v2029 = vadd.f32 %v2013, 0.2548296
    %v2030 = vadd.f32 %v2014, 0.2548296
    %v2031 = vadd.f32 %v2015, 0.2548296
    %v2032 = vadd.f32 %v2016, 0.2548296
    %v2033 = vadd.f32 %v2017, 0.2548296
    %v2034 = vadd.f32 %v2018, 0.2548296
    %v2035 = vadd.f32 %v2019, 0.2548296
    %v2036 = vadd.f32 %v2020, 0.2548296
    %v2037 = vadd.f32 %v2021, 0.2548296
    %v2038 = vmul.f32 %v2022, %v1879
    %v2039 = vmul.f32 %v2023, %v1881
    %v2040 = vmul.f32 %v2024, %v1883
    %v2041 = vmul.f32 %v2025, %v1885
    %v2042 = vmul.f32 %v2026, %v1887
    %v2043 = vmul.f32 %v2027, %v1889
    %v2044 = vmul.f32 %v2028, %v1891
    %v2045 = vmul.f32 %v2029, %v1893
    %v2046 = vmul.f32 %v2030, %v1895
    %v2047 = vmul.f32 %v2031, %v1897
    %v2048 = vmul.f32 %v2032, %v1899
    %v2049 = vmul.f32 %v2033, %v1901
    %v2050 = vmul.f32 %v2034, %v1903
    %v2051 = vmul.f32 %v2035, %v1905
    %v2052 = vmul.f32 %v2036, %v1907
    %v2053 = vmul.f32 %v2037, %v1909
    %v2054 = vsub.f32 0.0, %v1830
    %v2055 = vsub.f32 0.0, %v1831
    %v2056 = vsub.f32 0.0, %v1832
    %v2057 = vsub.f32 0.0, %v1833
    %v2058 = vsub.f32 0.0, %v1834
    %v2059 = vsub.f32 0.0, %v1835
    %v2060 = vsub.f32 0.0, %v1836
    %v2061 = vsub.f32 0.0, %v1837
    %v2062 = vsub.f32 0.0, %v1838
    %v2063 = vsub.f32 0.0, %v1839
    %v2064 = vsub.f32 0.0, %v1840
    %v2065 = vsub.f32 0.0, %v1841
    %v2066 = vsub.f32 0.0, %v1842
    %v2067 = vsub.f32 0.0, %v1843
    %v2068 = vsub.f32 0.0, %v1844
    %v2069 = vsub.f32 0.0, %v1845
    %v2070 = vmul.f32 %v2054, %v1830
    %v2071 = vmul.f32 %v2055, %v1831
    %v2072 = vmul.f32 %v2056, %v1832
    %v2073 = vmul.f32 %v2057, %v1833
    %v2074 = vmul.f32 %v2058, %v1834
    %v2075 = vmul.f32 %v2059, %v1835
    %v2076 = vmul.f32 %v2060, %v1836
    %v2077 = vmul.f32 %v2061, %v1837
    %v2078 = vmul.f32 %v2062, %v1838
    %v2079 = vmul.f32 %v2063, %v1839
    %v2080 = vmul.f32 %v2064, %v1840
    %v2081 = vmul.f32 %v2065, %v1841
    %v2082 = vmul.f32 %v2066, %v1842
    %v2083 = vmul.f32 %v2067, %v1843
    %v2084 = vmul.f32 %v2068, %v1844
    %v2085 = vmul.f32 %v2069, %v1845
    %v2086 = vmul.f32 %v2070, 1.442695
    %v2087 = vpow.pop %v2086
    %v2088 = vmul.f32 %v2071, 1.442695
    %v2089 = vpow.pop %v2088
    %v2090 = vmul.f32 %v2072, 1.442695
    %v2091 = vpow.pop %v2090
    %v2092 = vmul.f32 %v2073, 1.442695
    %v2093 = vpow.pop %v2092
    %v2094 = vmul.f32 %v2074, 1.442695
    %v2095 = vpow.pop %v2094
    %v2096 = vmul.f32 %v2075, 1.442695
    %v2097 = vpow.pop %v2096
    %v2098 = vmul.f32 %v2076, 1.442695
    %v2099 = vpow.pop %v2098
    %v2100 = vmul.f32 %v2077, 1.442695
    %v2101 = vpow.pop %v2100
    %v2102 = vmul.f32 %v2078, 1.442695
    %v2103 = vpow.pop %v2102
    %v2104 = vmul.f32 %v2079, 1.442695
    %v2105 = vpow.pop %v2104
    %v2106 = vmul.f32 %v2080, 1.442695
    %v2107 = vpow.pop %v2106
    %v2108 = vmul.f32 %v2081, 1.442695
    %v2109 = vpow.pop %v2108
    %v2110 = vmul.f32 %v2082, 1.442695
    %v2111 = vpow.pop %v2110
    %v2112 = vmul.f32 %v2083, 1.442695
    %v2113 = vpow.pop %v2112
    %v2114 = vmul.f32 %v2084, 1.442695
    %v2115 = vpow.pop %v2114
    %v2116 = vmul.f32 %v2085, 1.442695
    %v2117 = vpow.pop %v2116
    %v2118 = vmul.f32 %v2038, %v2087
    %v2119 = vmul.f32 %v2039, %v2089
    %v2120 = vmul.f32 %v2040, %v2091
    %v2121 = vmul.f32 %v2041, %v2093
    %v2122 = vmul.f32 %v2042, %v2095
    %v2123 = vmul.f32 %v2043, %v2097
    %v2124 = vmul.f32 %v2044, %v2099
    %v2125 = vmul.f32 %v2045, %v2101
    %v2126 = vmul.f32 %v2046, %v2103
    %v2127 = vmul.f32 %v2047, %v2105
    %v2128 = vmul.f32 %v2048, %v2107
    %v2129 = vmul.f32 %v2049, %v2109
    %v2130 = vmul.f32 %v2050, %v2111
    %v2131 = vmul.f32 %v2051, %v2113
    %v2132 = vmul.f32 %v2052, %v2115
    %v2133 = vmul.f32 %v2053, %v2117
    %v2134 = vsub.f32 1.0, %v2118
    %v2135 = vsub.f32 1.0, %v2119
    %v2136 = vsub.f32 1.0, %v2120
    %v2137 = vsub.f32 1.0, %v2121
    %v2138 = vsub.f32 1.0, %v2122
    %v2139 = vsub.f32 1.0, %v2123
    %v2140 = vsub.f32 1.0, %v2124
    %v2141 = vsub.f32 1.0, %v2125
    %v2142 = vsub.f32 1.0, %v2126
    %v2143 = vsub.f32 1.0, %v2127
    %v2144 = vsub.f32 1.0, %v2128
    %v2145 = vsub.f32 1.0, %v2129
    %v2146 = vsub.f32 1.0, %v2130
    %v2147 = vsub.f32 1.0, %v2131
    %v2148 = vsub.f32 1.0, %v2132
    %v2149 = vsub.f32 1.0, %v2133
    %v2150 = vmul.f32 %v1814, %v2134
    %v2151 = vmul.f32 %v1815, %v2135
    %v2152 = vmul.f32 %v1816, %v2136
    %v2153 = vmul.f32 %v1817, %v2137
    %v2154 = vmul.f32 %v1818, %v2138
    %v2155 = vmul.f32 %v1819, %v2139
    %v2156 = vmul.f32 %v1820, %v2140
    %v2157 = vmul.f32 %v1821, %v2141
    %v2158 = vmul.f32 %v1822, %v2142
    %v2159 = vmul.f32 %v1823, %v2143
    %v2160 = vmul.f32 %v1824, %v2144
    %v2161 = vmul.f32 %v1825, %v2145
    %v2162 = vmul.f32 %v1826, %v2146
    %v2163 = vmul.f32 %v1827, %v2147
    %v2164 = vmul.f32 %v1828, %v2148
    %v2165 = vmul.f32 %v1829, %v2149
    %v2166 = vadd.f32 %v2150, 1.0
    %v2167 = vadd.f32 %v2151, 1.0
    %v2168 = vadd.f32 %v2152, 1.0
    %v2169 = vadd.f32 %v2153, 1.0
    %v2170 = vadd.f32 %v2154, 1.0
    %v2171 = vadd.f32 %v2155, 1.0
    %v2172 = vadd.f32 %v2156, 1.0
    %v2173 = vadd.f32 %v2157, 1.0
    %v2174 = vadd.f32 %v2158, 1.0
    %v2175 = vadd.f32 %v2159, 1.0
    %v2176 = vadd.f32 %v2160, 1.0
    %v2177 = vadd.f32 %v2161, 1.0
    %v2178 = vadd.f32 %v2162, 1.0
    %v2179 = vadd.f32 %v2163, 1.0
    %v2180 = vadd.f32 %v2164, 1.0
    %v2181 = vadd.f32 %v2165, 1.0
    %v2182 = vmul.f32 %v1766, %v2166
    %v2183 = vmul.f32 %v1767, %v2167
    %v2184 = vmul.f32 %v1768, %v2168
    %v2185 = vmul.f32 %v1769, %v2169
    %v2186 = vmul.f32 %v1770, %v2170
    %v2187 = vmul.f32 %v1771, %v2171
    %v2188 = vmul.f32 %v1772, %v2172
    %v2189 = vmul.f32 %v1773, %v2173
    %v2190 = vmul.f32 %v1774, %v2174
    %v2191 = vmul.f32 %v1775, %v2175
    %v2192 = vmul.f32 %v1776, %v2176
    %v2193 = vmul.f32 %v1777, %v2177
    %v2194 = vmul.f32 %v1778, %v2178
    %v2195 = vmul.f32 %v1779, %v2179
    %v2196 = vmul.f32 %v1780, %v2180
    %v2197 = vmul.f32 %v1781, %v2181
    %v2198 = vpack.c.bf16 %v2183, %v2182
    %v2199 = vpack.c.bf16 %v2185, %v2184
    %v2200 = vpack.c.bf16 %v2187, %v2186
    %v2201 = vpack.c.bf16 %v2189, %v2188
    %v2202 = vpack.c.bf16 %v2191, %v2190
    %v2203 = vpack.c.bf16 %v2193, %v2192
    %v2204 = vpack.c.bf16 %v2195, %v2194
    %v2205 = vpack.c.bf16 %v2197, %v2196
    %2206 = vmatprep.subr.bf16.mxu0 0
    %2207 = vmatpush1.bf16.msra.mxu0 %v2198
    %2208 = vmatprep.subr.bf16.mxu0 0
    %2209 = vmatpush1.bf16.msra.mxu0 %v2199
    %2210 = vmatprep.subr.bf16.mxu0 0
    %2211 = vmatpush1.bf16.msra.mxu0 %v2200
    %2212 = vmatprep.subr.bf16.mxu0 0
    %2213 = vmatpush1.bf16.msra.mxu0 %v2201
    %2214 = vmatprep.subr.bf16.mxu0 0
    %2215 = vmatpush1.bf16.msra.mxu0 %v2202
    %2216 = vmatprep.subr.bf16.mxu0 0
    %2217 = vmatpush1.bf16.msra.mxu0 %v2203
    %2218 = vmatprep.subr.bf16.mxu0 0
    %2219 = vmatpush1.bf16.msra.mxu0 %v2204
    %2220 = vmatprep.subr.bf16.mxu0 0
    %2221 = vmatpush1.bf16.msra.mxu0 %v2205
    %2222 = vmatprep.subr.bf16.mxu0 0
    %2223 = vmatpush1.bf16.msra.mxu0 0
    %2224 = vmatprep.subr.bf16.mxu0 0
    %2225 = vmatpush1.bf16.msra.mxu0 0
    %2226 = vmatprep.subr.bf16.mxu0 0
    %2227 = vmatpush1.bf16.msra.mxu0 0
    %2228 = vmatprep.subr.bf16.mxu0 0
    %2229 = vmatpush1.bf16.msra.mxu0 0
    %2230 = vmatprep.subr.bf16.mxu0 0
    %2231 = vmatpush1.bf16.msra.mxu0 0
    %2232 = vmatprep.subr.bf16.mxu0 0
    %2233 = vmatpush1.bf16.msra.mxu0 0
    %2234 = vmatprep.subr.bf16.mxu0 0
    %2235 = vmatpush1.bf16.msra.mxu0 0
    %2236 = vmatprep.subr.bf16.mxu0 0
    %2237 = vmatpush1.bf16.msra.mxu0 0
    %2238 = vmatprep.mubr.bf16.mxu0 0
    %2239 = vmatmul.mubr.bf16.gmra.mrb[0].mxu0 %v496
    %v2240 = vpop.f32.mrb[0].mxu0
    %v2241 = vadd.f32 0.0, %v2240
    %v2242 = vpop.f32.mrb[0].mxu0
    %v2243 = vpop.f32.mrb[0].mxu0
    %v2244 = vadd.f32 0.0, %v2243
    %v2245 = vpop.f32.mrb[0].mxu0
    %2246 = vmatprep.mubr.bf16.mxu0 0
    %2247 = vmatmul.mubr.bf16.gmra.mrb[0].mxu0 %v497
    %v2248 = vpop.f32.mrb[0].mxu0
    %v2249 = vadd.f32 0.0, %v2248
    %v2250 = vpop.f32.mrb[0].mxu0
    %v2251 = vpop.f32.mrb[0].mxu0
    %v2252 = vadd.f32 0.0, %v2251
    %v2253 = vpop.f32.mrb[0].mxu0
    %2254 = vmatprep.mubr.bf16.mxu0 0
    %2255 = vmatmul.mubr.bf16.gmra.mrb[0].mxu0 %v498
    %v2256 = vpop.f32.mrb[0].mxu0
    %v2257 = vadd.f32 0.0, %v2256
    %v2258 = vpop.f32.mrb[0].mxu0
    %v2259 = vpop.f32.mrb[0].mxu0
    %v2260 = vadd.f32 0.0, %v2259
    %v2261 = vpop.f32.mrb[0].mxu0
    %2262 = vmatprep.mubr.bf16.mxu0 0
    %2263 = vmatmul.mubr.bf16.gmra.mrb[0].mxu0 %v499
    %v2264 = vpop.f32.mrb[0].mxu0
    %v2265 = vadd.f32 0.0, %v2264
    %v2266 = vpop.f32.mrb[0].mxu0
    %v2267 = vpop.f32.mrb[0].mxu0
    %v2268 = vadd.f32 0.0, %v2267
    %v2269 = vpop.f32.mrb[0].mxu0
    %2270 = vdwg.mxu0
    %v2271 = vpack.c.bf16 %v2244, %v2241
    %v2272 = vpack.c.bf16 %v2252, %v2249
    %v2273 = vpack.c.bf16 %v2260, %v2257
    %v2274 = vpack.c.bf16 %v2268, %v2265
    %s2275 = scalar_lea.vmem %s5, 128
    %v2276 = vld [vmem:[%s2275] sm:$0xff]
    %v2277 = vld [vmem:[%s2275 + $0x8] sm:$0xff]
    %v2278 = vld [vmem:[%s2275 + $0x10] sm:$0xff]
    %v2279 = vld [vmem:[%s2275 + $0x18] sm:$0xff]
    %v2280 = vld [vmem:[%s2275 + $0x20] sm:$0xff]
    %v2281 = vld [vmem:[%s2275 + $0x28] sm:$0xff]
    %v2282 = vld [vmem:[%s2275 + $0x30] sm:$0xff]
    %v2283 = vld [vmem:[%s2275 + $0x38] sm:$0xff]
    %v2284 = vld [vmem:[%s2275 + $0x40] sm:$0xff]
    %v2285 = vld [vmem:[%s2275 + $0x48] sm:$0xff]
    %v2286 = vld [vmem:[%s2275 + $0x50] sm:$0xff]
    %v2287 = vld [vmem:[%s2275 + $0x58] sm:$0xff]
    %v2288 = vld [vmem:[%s2275 + $0x60] sm:$0xff]
    %v2289 = vld [vmem:[%s2275 + $0x68] sm:$0xff]
    %v2290 = vld [vmem:[%s2275 + $0x70] sm:$0xff]
    %v2291 = vld [vmem:[%s2275 + $0x78] sm:$0xff]
    %v2308 = vunpack.c.l.b16 %v2276
    %v2309 = vunpack.c.h.b16 %v2276
    %v2310 = vunpack.c.l.b16 %v2277
    %v2311 = vunpack.c.h.b16 %v2277
    %v2312 = vunpack.c.l.b16 %v2278
    %v2313 = vunpack.c.h.b16 %v2278
    %v2314 = vunpack.c.l.b16 %v2279
    %v2315 = vunpack.c.h.b16 %v2279
    %v2316 = vunpack.c.l.b16 %v2280
    %v2317 = vunpack.c.h.b16 %v2280
    %v2318 = vunpack.c.l.b16 %v2281
    %v2319 = vunpack.c.h.b16 %v2281
    %v2320 = vunpack.c.l.b16 %v2282
    %v2321 = vunpack.c.h.b16 %v2282
    %v2322 = vunpack.c.l.b16 %v2283
    %v2323 = vunpack.c.h.b16 %v2283
    %v2324 = vunpack.c.l.b16 %v2284
    %v2325 = vunpack.c.h.b16 %v2284
    %v2326 = vunpack.c.l.b16 %v2285
    %v2327 = vunpack.c.h.b16 %v2285
    %v2328 = vunpack.c.l.b16 %v2286
    %v2329 = vunpack.c.h.b16 %v2286
    %v2330 = vunpack.c.l.b16 %v2287
    %v2331 = vunpack.c.h.b16 %v2287
    %v2332 = vunpack.c.l.b16 %v2288
    %v2333 = vunpack.c.h.b16 %v2288
    %v2334 = vunpack.c.l.b16 %v2289
    %v2335 = vunpack.c.h.b16 %v2289
    %v2336 = vunpack.c.l.b16 %v2290
    %v2337 = vunpack.c.h.b16 %v2290
    %v2338 = vunpack.c.l.b16 %v2291
    %v2339 = vunpack.c.h.b16 %v2291
    %v2340 = vpack.c.b16 %v2316, %v2308
    %v2341 = vpack.c.b16 %v2317, %v2309
    %v2342 = vpack.c.b16 %v2318, %v2310
    %v2343 = vpack.c.b16 %v2319, %v2311
    %v2344 = vpack.c.b16 %v2320, %v2312
    %v2345 = vpack.c.b16 %v2321, %v2313
    %v2346 = vpack.c.b16 %v2322, %v2314
    %v2347 = vpack.c.b16 %v2323, %v2315
    %v2348 = vpack.c.b16 %v2332, %v2324
    %v2349 = vpack.c.b16 %v2333, %v2325
    %v2350 = vpack.c.b16 %v2334, %v2326
    %v2351 = vpack.c.b16 %v2335, %v2327
    %v2352 = vpack.c.b16 %v2336, %v2328
    %v2353 = vpack.c.b16 %v2337, %v2329
    %v2354 = vpack.c.b16 %v2338, %v2330
    %v2355 = vpack.c.b16 %v2339, %v2331
    %v2373 = vsel %vm669, %v2271, 0
    %v2376 = vsel %vm669, %v2272, 0
    %v2379 = vsel %vm669, %v2273, 0
    %v2382 = vsel %vm669, %v2274, 0
    %2384 = vmatprep.subr.bf16.mxu0 %v2341
    %2385 = vmatpush1.bf16.msra.mxu0 %v2340
    %2386 = vmatprep.subr.bf16.mxu0 %v2349
    %2387 = vmatpush1.bf16.msra.mxu0 %v2348
    %2388 = vmatprep.subr.bf16.mxu0 0
    %2389 = vmatpush1.bf16.msra.mxu0 0
    %2390 = vmatprep.subr.bf16.mxu0 0
    %2391 = vmatpush1.bf16.msra.mxu0 0
    %2392 = vmatprep.subr.bf16.mxu0 0
    %2393 = vmatpush1.bf16.msra.mxu0 0
    %2394 = vmatprep.subr.bf16.mxu0 0
    %2395 = vmatpush1.bf16.msra.mxu0 0
    %2396 = vmatprep.subr.bf16.mxu0 0
    %2397 = vmatpush1.bf16.msra.mxu0 0
    %2398 = vmatprep.subr.bf16.mxu0 0
    %2399 = vmatpush1.bf16.msra.mxu0 0
    %2400 = vmatprep.subr.bf16.mxu0 0
    %2401 = vmatpush1.bf16.msra.mxu0 0
    %2402 = vmatprep.subr.bf16.mxu0 0
    %2403 = vmatpush1.bf16.msra.mxu0 0
    %2404 = vmatprep.subr.bf16.mxu0 0
    %2405 = vmatpush1.bf16.msra.mxu0 0
    %2406 = vmatprep.subr.bf16.mxu0 0
    %2407 = vmatpush1.bf16.msra.mxu0 0
    %2408 = vmatprep.subr.bf16.mxu0 0
    %2409 = vmatpush1.bf16.msra.mxu0 0
    %2410 = vmatprep.subr.bf16.mxu0 0
    %2411 = vmatpush1.bf16.msra.mxu0 0
    %2412 = vmatprep.subr.bf16.mxu0 0
    %2413 = vmatpush1.bf16.msra.mxu0 0
    %2414 = vmatprep.subr.bf16.mxu0 0
    %2415 = vmatpush1.bf16.msra.mxu0 0
    %2416 = vmatprep.mubr.bf16.mxu0 0
    %2417 = vmatmul.mubr.bf16.gmra.mrb[0].mxu0 %v2373
    %v2418 = vpop.f32.mrb[0].mxu0
    %v2419 = vadd.f32 0.0, %v2418
    %v2420 = vpop.f32.mrb[0].mxu0
    %v2421 = vadd.f32 0.0, %v2420
    %v2422 = vpop.f32.mrb[0].mxu0
    %v2423 = vadd.f32 0.0, %v2422
    %v2424 = vpop.f32.mrb[0].mxu0
    %v2425 = vadd.f32 0.0, %v2424
    %2426 = vmatprep.mubr.bf16.mxu0 0
    %2427 = vmatmul.mubr.bf16.gmra.mrb[0].mxu0 %v2376
    %v2428 = vpop.f32.mrb[0].mxu0
    %v2429 = vadd.f32 0.0, %v2428
    %v2430 = vpop.f32.mrb[0].mxu0
    %v2431 = vadd.f32 0.0, %v2430
    %v2432 = vpop.f32.mrb[0].mxu0
    %v2433 = vadd.f32 0.0, %v2432
    %v2434 = vpop.f32.mrb[0].mxu0
    %v2435 = vadd.f32 0.0, %v2434
    %2436 = vmatprep.mubr.bf16.mxu0 0
    %2437 = vmatmul.mubr.bf16.gmra.mrb[0].mxu0 %v2379
    %v2438 = vpop.f32.mrb[0].mxu0
    %v2439 = vadd.f32 0.0, %v2438
    %v2440 = vpop.f32.mrb[0].mxu0
    %v2441 = vadd.f32 0.0, %v2440
    %v2442 = vpop.f32.mrb[0].mxu0
    %v2443 = vadd.f32 0.0, %v2442
    %v2444 = vpop.f32.mrb[0].mxu0
    %v2445 = vadd.f32 0.0, %v2444
    %2446 = vmatprep.mubr.bf16.mxu0 0
    %2447 = vmatmul.mubr.bf16.gmra.mrb[0].mxu0 %v2382
    %v2448 = vpop.f32.mrb[0].mxu0
    %v2449 = vadd.f32 0.0, %v2448
    %v2450 = vpop.f32.mrb[0].mxu0
    %v2451 = vadd.f32 0.0, %v2450
    %v2452 = vpop.f32.mrb[0].mxu0
    %v2453 = vadd.f32 0.0, %v2452
    %v2454 = vpop.f32.mrb[0].mxu0
    %v2455 = vadd.f32 0.0, %v2454
    %2456 = vdwg.mxu0
    %2457 = vmatprep.subr.bf16.mxu0 %v2343
    %2458 = vmatpush1.bf16.msra.mxu0 %v2342
    %2459 = vmatprep.subr.bf16.mxu0 %v2351
    %2460 = vmatpush1.bf16.msra.mxu0 %v2350
    %2461 = vmatprep.subr.bf16.mxu0 0
    %2462 = vmatpush1.bf16.msra.mxu0 0
    %2463 = vmatprep.subr.bf16.mxu0 0
    %2464 = vmatpush1.bf16.msra.mxu0 0
    %2465 = vmatprep.subr.bf16.mxu0 0
    %2466 = vmatpush1.bf16.msra.mxu0 0
    %2467 = vmatprep.subr.bf16.mxu0 0
    %2468 = vmatpush1.bf16.msra.mxu0 0
    %2469 = vmatprep.subr.bf16.mxu0 0
    %2470 = vmatpush1.bf16.msra.mxu0 0
    %2471 = vmatprep.subr.bf16.mxu0 0
    %2472 = vmatpush1.bf16.msra.mxu0 0
    %2473 = vmatprep.subr.bf16.mxu0 0
    %2474 = vmatpush1.bf16.msra.mxu0 0
    %2475 = vmatprep.subr.bf16.mxu0 0
    %2476 = vmatpush1.bf16.msra.mxu0 0
    %2477 = vmatprep.subr.bf16.mxu0 0
    %2478 = vmatpush1.bf16.msra.mxu0 0
    %2479 = vmatprep.subr.bf16.mxu0 0
    %2480 = vmatpush1.bf16.msra.mxu0 0
    %2481 = vmatprep.subr.bf16.mxu0 0
    %2482 = vmatpush1.bf16.msra.mxu0 0
    %2483 = vmatprep.subr.bf16.mxu0 0
    %2484 = vmatpush1.bf16.msra.mxu0 0
    %2485 = vmatprep.subr.bf16.mxu0 0
    %2486 = vmatpush1.bf16.msra.mxu0 0
    %2487 = vmatprep.subr.bf16.mxu0 0
    %2488 = vmatpush1.bf16.msra.mxu0 0
    %2489 = vmatprep.mubr.bf16.mxu0 0
    %2490 = vmatmul.mubr.bf16.gmra.mrb[0].mxu0 %v2373
    %v2491 = vpop.f32.mrb[0].mxu0
    %v2492 = vadd.f32 0.0, %v2491
    %v2493 = vpop.f32.mrb[0].mxu0
    %v2494 = vadd.f32 0.0, %v2493
    %v2495 = vpop.f32.mrb[0].mxu0
    %v2496 = vadd.f32 0.0, %v2495
    %v2497 = vpop.f32.mrb[0].mxu0
    %v2498 = vadd.f32 0.0, %v2497
    %2499 = vmatprep.mubr.bf16.mxu0 0
    %2500 = vmatmul.mubr.bf16.gmra.mrb[0].mxu0 %v2376
    %v2501 = vpop.f32.mrb[0].mxu0
    %v2502 = vadd.f32 0.0, %v2501
    %v2503 = vpop.f32.mrb[0].mxu0
    %v2504 = vadd.f32 0.0, %v2503
    %v2505 = vpop.f32.mrb[0].mxu0
    %v2506 = vadd.f32 0.0, %v2505
    %v2507 = vpop.f32.mrb[0].mxu0
    %v2508 = vadd.f32 0.0, %v2507
    %2509 = vmatprep.mubr.bf16.mxu0 0
    %2510 = vmatmul.mubr.bf16.gmra.mrb[0].mxu0 %v2379
    %v2511 = vpop.f32.mrb[0].mxu0
    %v2512 = vadd.f32 0.0, %v2511
    %v2513 = vpop.f32.mrb[0].mxu0
    %v2514 = vadd.f32 0.0, %v2513
    %v2515 = vpop.f32.mrb[0].mxu0
    %v2516 = vadd.f32 0.0, %v2515
    %v2517 = vpop.f32.mrb[0].mxu0
    %v2518 = vadd.f32 0.0, %v2517
    %2519 = vmatprep.mubr.bf16.mxu0 0
    %2520 = vmatmul.mubr.bf16.gmra.mrb[0].mxu0 %v2382
    %v2521 = vpop.f32.mrb[0].mxu0
    %v2522 = vadd.f32 0.0, %v2521
    %v2523 = vpop.f32.mrb[0].mxu0
    %v2524 = vadd.f32 0.0, %v2523
    %v2525 = vpop.f32.mrb[0].mxu0
    %v2526 = vadd.f32 0.0, %v2525
    %v2527 = vpop.f32.mrb[0].mxu0
    %v2528 = vadd.f32 0.0, %v2527
    %2529 = vdwg.mxu0
    %2530 = vmatprep.subr.bf16.mxu0 %v2345
    %2531 = vmatpush1.bf16.msra.mxu0 %v2344
    %2532 = vmatprep.subr.bf16.mxu0 %v2353
    %2533 = vmatpush1.bf16.msra.mxu0 %v2352
    %2534 = vmatprep.subr.bf16.mxu0 0
    %2535 = vmatpush1.bf16.msra.mxu0 0
    %2536 = vmatprep.subr.bf16.mxu0 0
    %2537 = vmatpush1.bf16.msra.mxu0 0
    %2538 = vmatprep.subr.bf16.mxu0 0
    %2539 = vmatpush1.bf16.msra.mxu0 0
    %2540 = vmatprep.subr.bf16.mxu0 0
    %2541 = vmatpush1.bf16.msra.mxu0 0
    %2542 = vmatprep.subr.bf16.mxu0 0
    %2543 = vmatpush1.bf16.msra.mxu0 0
    %2544 = vmatprep.subr.bf16.mxu0 0
    %2545 = vmatpush1.bf16.msra.mxu0 0
    %2546 = vmatprep.subr.bf16.mxu0 0
    %2547 = vmatpush1.bf16.msra.mxu0 0
    %2548 = vmatprep.subr.bf16.mxu0 0
    %2549 = vmatpush1.bf16.msra.mxu0 0
    %2550 = vmatprep.subr.bf16.mxu0 0
    %2551 = vmatpush1.bf16.msra.mxu0 0
    %2552 = vmatprep.subr.bf16.mxu0 0
    %2553 = vmatpush1.bf16.msra.mxu0 0
    %2554 = vmatprep.subr.bf16.mxu0 0
    %2555 = vmatpush1.bf16.msra.mxu0 0
    %2556 = vmatprep.subr.bf16.mxu0 0
    %2557 = vmatpush1.bf16.msra.mxu0 0
    %2558 = vmatprep.subr.bf16.mxu0 0
    %2559 = vmatpush1.bf16.msra.mxu0 0
    %2560 = vmatprep.subr.bf16.mxu0 0
    %2561 = vmatpush1.bf16.msra.mxu0 0
    %2562 = vmatprep.mubr.bf16.mxu0 0
    %2563 = vmatmul.mubr.bf16.gmra.mrb[0].mxu0 %v2373
    %v2564 = vpop.f32.mrb[0].mxu0
    %v2565 = vadd.f32 0.0, %v2564
    %v2566 = vpop.f32.mrb[0].mxu0
    %v2567 = vadd.f32 0.0, %v2566
    %v2568 = vpop.f32.mrb[0].mxu0
    %v2569 = vadd.f32 0.0, %v2568
    %v2570 = vpop.f32.mrb[0].mxu0
    %v2571 = vadd.f32 0.0, %v2570
    %2572 = vmatprep.mubr.bf16.mxu0 0
    %2573 = vmatmul.mubr.bf16.gmra.mrb[0].mxu0 %v2376
    %v2574 = vpop.f32.mrb[0].mxu0
    %v2575 = vadd.f32 0.0, %v2574
    %v2576 = vpop.f32.mrb[0].mxu0
    %v2577 = vadd.f32 0.0, %v2576
    %v2578 = vpop.f32.mrb[0].mxu0
    %v2579 = vadd.f32 0.0, %v2578
    %v2580 = vpop.f32.mrb[0].mxu0
    %v2581 = vadd.f32 0.0, %v2580
    %2582 = vmatprep.mubr.bf16.mxu0 0
    %2583 = vmatmul.mubr.bf16.gmra.mrb[0].mxu0 %v2379
    %v2584 = vpop.f32.mrb[0].mxu0
    %v2585 = vadd.f32 0.0, %v2584
    %v2586 = vpop.f32.mrb[0].mxu0
    %v2587 = vadd.f32 0.0, %v2586
    %v2588 = vpop.f32.mrb[0].mxu0
    %v2589 = vadd.f32 0.0, %v2588
    %v2590 = vpop.f32.mrb[0].mxu0
    %v2591 = vadd.f32 0.0, %v2590
    %2592 = vmatprep.mubr.bf16.mxu0 0
    %2593 = vmatmul.mubr.bf16.gmra.mrb[0].mxu0 %v2382
    %v2594 = vpop.f32.mrb[0].mxu0
    %v2595 = vadd.f32 0.0, %v2594
    %v2596 = vpop.f32.mrb[0].mxu0
    %v2597 = vadd.f32 0.0, %v2596
    %v2598 = vpop.f32.mrb[0].mxu0
    %v2599 = vadd.f32 0.0, %v2598
    %v2600 = vpop.f32.mrb[0].mxu0
    %v2601 = vadd.f32 0.0, %v2600
    %2602 = vdwg.mxu0
    %2603 = vmatprep.subr.bf16.mxu0 %v2347
    %2604 = vmatpush1.bf16.msra.mxu0 %v2346
    %2605 = vmatprep.subr.bf16.mxu0 %v2355
    %2606 = vmatpush1.bf16.msra.mxu0 %v2354
    %2607 = vmatprep.subr.bf16.mxu0 0
    %2608 = vmatpush1.bf16.msra.mxu0 0
    %2609 = vmatprep.subr.bf16.mxu0 0
    %2610 = vmatpush1.bf16.msra.mxu0 0
    %2611 = vmatprep.subr.bf16.mxu0 0
    %2612 = vmatpush1.bf16.msra.mxu0 0
    %2613 = vmatprep.subr.bf16.mxu0 0
    %2614 = vmatpush1.bf16.msra.mxu0 0
    %2615 = vmatprep.subr.bf16.mxu0 0
    %2616 = vmatpush1.bf16.msra.mxu0 0
    %2617 = vmatprep.subr.bf16.mxu0 0
    %2618 = vmatpush1.bf16.msra.mxu0 0
    %2619 = vmatprep.subr.bf16.mxu0 0
    %2620 = vmatpush1.bf16.msra.mxu0 0
    %2621 = vmatprep.subr.bf16.mxu0 0
    %2622 = vmatpush1.bf16.msra.mxu0 0
    %2623 = vmatprep.subr.bf16.mxu0 0
    %2624 = vmatpush1.bf16.msra.mxu0 0
    %2625 = vmatprep.subr.bf16.mxu0 0
    %2626 = vmatpush1.bf16.msra.mxu0 0
    %2627 = vmatprep.subr.bf16.mxu0 0
    %2628 = vmatpush1.bf16.msra.mxu0 0
    %2629 = vmatprep.subr.bf16.mxu0 0
    %2630 = vmatpush1.bf16.msra.mxu0 0
    %2631 = vmatprep.subr.bf16.mxu0 0
    %2632 = vmatpush1.bf16.msra.mxu0 0
    %2633 = vmatprep.subr.bf16.mxu0 0
    %2634 = vmatpush1.bf16.msra.mxu0 0
    %2635 = vmatprep.mubr.bf16.mxu0 0
    %2636 = vmatmul.mubr.bf16.gmra.mrb[0].mxu0 %v2373
    %v2637 = vpop.f32.mrb[0].mxu0
    %v2638 = vadd.f32 0.0, %v2637
    %v2639 = vpop.f32.mrb[0].mxu0
    %v2640 = vadd.f32 0.0, %v2639
    %v2641 = vpop.f32.mrb[0].mxu0
    %v2642 = vadd.f32 0.0, %v2641
    %v2643 = vpop.f32.mrb[0].mxu0
    %v2644 = vadd.f32 0.0, %v2643
    %2645 = vmatprep.mubr.bf16.mxu0 0
    %2646 = vmatmul.mubr.bf16.gmra.mrb[0].mxu0 %v2376
    %v2647 = vpop.f32.mrb[0].mxu0
    %v2648 = vadd.f32 0.0, %v2647
    %v2649 = vpop.f32.mrb[0].mxu0
    %v2650 = vadd.f32 0.0, %v2649
    %v2651 = vpop.f32.mrb[0].mxu0
    %v2652 = vadd.f32 0.0, %v2651
    %v2653 = vpop.f32.mrb[0].mxu0
    %v2654 = vadd.f32 0.0, %v2653
    %2655 = vmatprep.mubr.bf16.mxu0 0
    %2656 = vmatmul.mubr.bf16.gmra.mrb[0].mxu0 %v2379
    %v2657 = vpop.f32.mrb[0].mxu0
    %v2658 = vadd.f32 0.0, %v2657
    %v2659 = vpop.f32.mrb[0].mxu0
    %v2660 = vadd.f32 0.0, %v2659
    %v2661 = vpop.f32.mrb[0].mxu0
    %v2662 = vadd.f32 0.0, %v2661
    %v2663 = vpop.f32.mrb[0].mxu0
    %v2664 = vadd.f32 0.0, %v2663
    %2665 = vmatprep.mubr.bf16.mxu0 0
    %2666 = vmatmul.mubr.bf16.gmra.mrb[0].mxu0 %v2382
    %v2667 = vpop.f32.mrb[0].mxu0
    %v2668 = vadd.f32 0.0, %v2667
    %v2669 = vpop.f32.mrb[0].mxu0
    %v2670 = vadd.f32 0.0, %v2669
    %v2671 = vpop.f32.mrb[0].mxu0
    %v2672 = vadd.f32 0.0, %v2671
    %v2673 = vpop.f32.mrb[0].mxu0
    %v2674 = vadd.f32 0.0, %v2673
    %2675 = vdwg.mxu0
    %v2676 = vsub.f32 %v2419, %v2575
    %v2677 = vsub.f32 %v2421, %v2577
    %v2678 = vsub.f32 %v2492, %v2648
    %v2679 = vsub.f32 %v2494, %v2650
    %v2680 = vsub.f32 %v2423, %v2579
    %v2681 = vsub.f32 %v2425, %v2581
    %v2682 = vsub.f32 %v2496, %v2652
    %v2683 = vsub.f32 %v2498, %v2654
    %v2684 = vadd.f32 %v2565, %v2429
    %v2685 = vadd.f32 %v2567, %v2431
    %v2686 = vadd.f32 %v2638, %v2502
    %v2687 = vadd.f32 %v2640, %v2504
    %v2688 = vadd.f32 %v2569, %v2433
    %v2689 = vadd.f32 %v2571, %v2435
    %v2690 = vadd.f32 %v2642, %v2506
    %v2691 = vadd.f32 %v2644, %v2508
    %v2692 = vsub.f32 %v2439, %v2595
    %v2693 = vsub.f32 %v2441, %v2597
    %v2694 = vsub.f32 %v2512, %v2668
    %v2695 = vsub.f32 %v2514, %v2670
    %v2696 = vsub.f32 %v2443, %v2599
    %v2697 = vsub.f32 %v2445, %v2601
    %v2698 = vsub.f32 %v2516, %v2672
    %v2699 = vsub.f32 %v2518, %v2674
    %v2700 = vadd.f32 %v2585, %v2449
    %v2701 = vadd.f32 %v2587, %v2451
    %v2702 = vadd.f32 %v2658, %v2522
    %v2703 = vadd.f32 %v2660, %v2524
    %v2704 = vadd.f32 %v2589, %v2453
    %v2705 = vadd.f32 %v2591, %v2455
    %v2706 = vadd.f32 %v2662, %v2526
    %v2707 = vadd.f32 %v2664, %v2528
    %v2708 = vpack.c.bf16 %v2680, %v2676
    %v2709 = vpack.c.bf16 %v2681, %v2677
    %v2710 = vpack.c.bf16 %v2682, %v2678
    %v2711 = vpack.c.bf16 %v2683, %v2679
    %v2712 = vpack.c.bf16 %v2688, %v2684
    %v2713 = vpack.c.bf16 %v2689, %v2685
    %v2714 = vpack.c.bf16 %v2690, %v2686
    %v2715 = vpack.c.bf16 %v2691, %v2687
    %v2716 = vpack.c.bf16 %v2696, %v2692
    %v2717 = vpack.c.bf16 %v2697, %v2693
    %v2718 = vpack.c.bf16 %v2698, %v2694
    %v2719 = vpack.c.bf16 %v2699, %v2695
    %v2720 = vpack.c.bf16 %v2704, %v2700
    %v2721 = vpack.c.bf16 %v2705, %v2701
    %v2722 = vpack.c.bf16 %v2706, %v2702
    %v2723 = vpack.c.bf16 %v2707, %v2703
    %v2724 = vmul.bf16 %v2708, %v1070
    %v2725 = vmul.bf16 %v2709, %v1071
    %v2726 = vmul.bf16 %v2710, %v1072
    %v2727 = vmul.bf16 %v2711, %v1073
    %v2728 = vmul.bf16 %v2712, %v1074
    %v2729 = vmul.bf16 %v2713, %v1075
    %v2730 = vmul.bf16 %v2714, %v1076
    %v2731 = vmul.bf16 %v2715, %v1077
    %v2732 = vmul.bf16 %v2716, %v1078
    %v2733 = vmul.bf16 %v2717, %v1079
    %v2734 = vmul.bf16 %v2718, %v1080
    %v2735 = vmul.bf16 %v2719, %v1081
    %v2736 = vmul.bf16 %v2720, %v1082
    %v2737 = vmul.bf16 %v2721, %v1083
    %v2738 = vmul.bf16 %v2722, %v1084
    %v2739 = vmul.bf16 %v2723, %v1085
    %2740 = vmatprep.subr.bf16.mxu0 0
    %2741 = vmatpush1.bf16.msra.mxu0 %v1246
    %2742 = vmatprep.subr.bf16.mxu0 0
    %2743 = vmatpush1.bf16.msra.mxu0 %v1247
    %2744 = vmatprep.subr.bf16.mxu0 0
    %2745 = vmatpush1.bf16.msra.mxu0 %v1248
    %2746 = vmatprep.subr.bf16.mxu0 0
    %2747 = vmatpush1.bf16.msra.mxu0 %v1249
    %2748 = vmatprep.subr.bf16.mxu0 0
    %2749 = vmatpush1.bf16.msra.mxu0 %v1250
    %2750 = vmatprep.subr.bf16.mxu0 0
    %2751 = vmatpush1.bf16.msra.mxu0 %v1251
    %2752 = vmatprep.subr.bf16.mxu0 0
    %2753 = vmatpush1.bf16.msra.mxu0 %v1252
    %2754 = vmatprep.subr.bf16.mxu0 0
    %2755 = vmatpush1.bf16.msra.mxu0 %v1253
    %2756 = vmatprep.subr.bf16.mxu0 0
    %2757 = vmatpush1.bf16.msra.mxu0 %v1254
    %2758 = vmatprep.subr.bf16.mxu0 0
    %2759 = vmatpush1.bf16.msra.mxu0 %v1255
    %2760 = vmatprep.subr.bf16.mxu0 0
    %2761 = vmatpush1.bf16.msra.mxu0 %v1256
    %2762 = vmatprep.subr.bf16.mxu0 0
    %2763 = vmatpush1.bf16.msra.mxu0 %v1257
    %2764 = vmatprep.subr.bf16.mxu0 0
    %2765 = vmatpush1.bf16.msra.mxu0 %v1258
    %2766 = vmatprep.subr.bf16.mxu0 0
    %2767 = vmatpush1.bf16.msra.mxu0 %v1259
    %2768 = vmatprep.subr.bf16.mxu0 0
    %2769 = vmatpush1.bf16.msra.mxu0 %v1260
    %2770 = vmatprep.subr.bf16.mxu0 0
    %2771 = vmatpush1.bf16.msra.mxu0 %v1261
    %2772 = vmatprep.mubr.bf16.mxu0 %v2725
    %2773 = vmatmul.mubr.bf16.gmra.mrb[0].mxu0 %v2724
    %v2774 = vpop.f32.mrb[0].mxu0
    %v2775 = vadd.f32 0.0, %v2774
    %v2776 = vpop.f32.mrb[0].mxu0
    %v2777 = vpop.f32.mrb[0].mxu0
    %v2778 = vadd.f32 0.0, %v2777
    %v2779 = vpop.f32.mrb[0].mxu0
    %2780 = vmatprep.mubr.bf16.mxu0 %v2729
    %2781 = vmatmul.mubr.bf16.gmra.mrb[0].mxu0 %v2728
    %v2782 = vpop.f32.mrb[0].mxu0
    %v2783 = vadd.f32 0.0, %v2782
    %v2784 = vpop.f32.mrb[0].mxu0
    %v2785 = vpop.f32.mrb[0].mxu0
    %v2786 = vadd.f32 0.0, %v2785
    %v2787 = vpop.f32.mrb[0].mxu0
    %2788 = vmatprep.mubr.bf16.mxu0 %v2733
    %2789 = vmatmul.mubr.bf16.gmra.mrb[0].mxu0 %v2732
    %v2790 = vpop.f32.mrb[0].mxu0
    %v2791 = vadd.f32 0.0, %v2790
    %v2792 = vpop.f32.mrb[0].mxu0
    %v2793 = vpop.f32.mrb[0].mxu0
    %v2794 = vadd.f32 0.0, %v2793
    %v2795 = vpop.f32.mrb[0].mxu0
    %2796 = vmatprep.mubr.bf16.mxu0 %v2737
    %2797 = vmatmul.mubr.bf16.gmra.mrb[0].mxu0 %v2736
    %v2798 = vpop.f32.mrb[0].mxu0
    %v2799 = vadd.f32 0.0, %v2798
    %v2800 = vpop.f32.mrb[0].mxu0
    %v2801 = vpop.f32.mrb[0].mxu0
    %v2802 = vadd.f32 0.0, %v2801
    %v2803 = vpop.f32.mrb[0].mxu0
    %2804 = vdwg.mxu0
    %2805 = vmatprep.subr.bf16.mxu0 0
    %2806 = vmatpush1.bf16.msra.mxu0 %v1262
    %2807 = vmatprep.subr.bf16.mxu0 0
    %2808 = vmatpush1.bf16.msra.mxu0 %v1263
    %2809 = vmatprep.subr.bf16.mxu0 0
    %2810 = vmatpush1.bf16.msra.mxu0 %v1264
    %2811 = vmatprep.subr.bf16.mxu0 0
    %2812 = vmatpush1.bf16.msra.mxu0 %v1265
    %2813 = vmatprep.subr.bf16.mxu0 0
    %2814 = vmatpush1.bf16.msra.mxu0 %v1266
    %2815 = vmatprep.subr.bf16.mxu0 0
    %2816 = vmatpush1.bf16.msra.mxu0 %v1267
    %2817 = vmatprep.subr.bf16.mxu0 0
    %2818 = vmatpush1.bf16.msra.mxu0 %v1268
    %2819 = vmatprep.subr.bf16.mxu0 0
    %2820 = vmatpush1.bf16.msra.mxu0 %v1269
    %2821 = vmatprep.subr.bf16.mxu0 0
    %2822 = vmatpush1.bf16.msra.mxu0 %v1270
    %2823 = vmatprep.subr.bf16.mxu0 0
    %2824 = vmatpush1.bf16.msra.mxu0 %v1271
    %2825 = vmatprep.subr.bf16.mxu0 0
    %2826 = vmatpush1.bf16.msra.mxu0 %v1272
    %2827 = vmatprep.subr.bf16.mxu0 0
    %2828 = vmatpush1.bf16.msra.mxu0 %v1273
    %2829 = vmatprep.subr.bf16.mxu0 0
    %2830 = vmatpush1.bf16.msra.mxu0 %v1274
    %2831 = vmatprep.subr.bf16.mxu0 0
    %2832 = vmatpush1.bf16.msra.mxu0 %v1275
    %2833 = vmatprep.subr.bf16.mxu0 0
    %2834 = vmatpush1.bf16.msra.mxu0 %v1276
    %2835 = vmatprep.subr.bf16.mxu0 0
    %2836 = vmatpush1.bf16.msra.mxu0 %v1277
    %2837 = vmatprep.mubr.bf16.mxu0 %v2727
    %2838 = vmatmul.mubr.bf16.gmra.mrb[0].mxu0 %v2726
    %v2839 = vpop.f32.mrb[0].mxu0
    %v2840 = vadd.f32 %v2775, %v2839
    %v2841 = vpop.f32.mrb[0].mxu0
    %v2842 = vpop.f32.mrb[0].mxu0
    %v2843 = vadd.f32 %v2778, %v2842
    %v2844 = vpop.f32.mrb[0].mxu0
    %2845 = vmatprep.mubr.bf16.mxu0 %v2731
    %2846 = vmatmul.mubr.bf16.gmra.mrb[0].mxu0 %v2730
    %v2847 = vpop.f32.mrb[0].mxu0
    %v2848 = vadd.f32 %v2783, %v2847
    %v2849 = vpop.f32.mrb[0].mxu0
    %v2850 = vpop.f32.mrb[0].mxu0
    %v2851 = vadd.f32 %v2786, %v2850
    %v2852 = vpop.f32.mrb[0].mxu0
    %2853 = vmatprep.mubr.bf16.mxu0 %v2735
    %2854 = vmatmul.mubr.bf16.gmra.mrb[0].mxu0 %v2734
    %v2855 = vpop.f32.mrb[0].mxu0
    %v2856 = vadd.f32 %v2791, %v2855
    %v2857 = vpop.f32.mrb[0].mxu0
    %v2858 = vpop.f32.mrb[0].mxu0
    %v2859 = vadd.f32 %v2794, %v2858
    %v2860 = vpop.f32.mrb[0].mxu0
    %2861 = vmatprep.mubr.bf16.mxu0 %v2739
    %2862 = vmatmul.mubr.bf16.gmra.mrb[0].mxu0 %v2738
    %v2863 = vpop.f32.mrb[0].mxu0
    %v2864 = vadd.f32 %v2799, %v2863
    %v2865 = vpop.f32.mrb[0].mxu0
    %v2866 = vpop.f32.mrb[0].mxu0
    %v2867 = vadd.f32 %v2802, %v2866
    %v2868 = vpop.f32.mrb[0].mxu0
    %2869 = vdwg.mxu0
    %v2870 = vpack.c.bf16 %v2843, %v2840
    %v2871 = vpack.c.bf16 %v2851, %v2848
    %v2872 = vpack.c.bf16 %v2859, %v2856
    %v2873 = vpack.c.bf16 %v2867, %v2864
    %s2874 = scalar_lea.vmem [#allocation7], 16
    %v2875 = vld [vmem:[%s2874] sm:$0xf]
    %v2876 = vld [vmem:[%s2874 + $0x4] sm:$0xf]
    %v2877 = vld [vmem:[%s2874 + $0x8] sm:$0xf]
    %v2878 = vld [vmem:[%s2874 + $0xc] sm:$0xf]
    %v2883 = vunpack.c.l.b16 %v2875
    %v2884 = vunpack.c.l.b16 %v2876
    %v2885 = vunpack.c.l.b16 %v2877
    %v2886 = vunpack.c.l.b16 %v2878
    %v2887 = vpack.c.b16 %v2884, %v2883
    %v2888 = vpack.c.b16 %v2886, %v2885
    %v2892 = vsel %vm669, %v2198, 0
    %v2895 = vsel %vm669, %v2199, 0
    %v2898 = vsel %vm669, %v2200, 0
    %v2901 = vsel %vm669, %v2201, 0
    %v2904 = vsel %vm669, %v2202, 0
    %v2907 = vsel %vm669, %v2203, 0
    %v2910 = vsel %vm669, %v2204, 0
    %v2913 = vsel %vm669, %v2205, 0
    %2915 = vmatprep.subr.bf16.mxu0 0
    %2916 = vmatpush1.bf16.msra.mxu0 %v2887
    %2917 = vmatprep.subr.bf16.mxu0 0
    %2918 = vmatpush1.bf16.msra.mxu0 %v2888
    %2919 = vmatprep.subr.bf16.mxu0 0
    %2920 = vmatpush1.bf16.msra.mxu0 0
    %2921 = vmatprep.subr.bf16.mxu0 0
    %2922 = vmatpush1.bf16.msra.mxu0 0
    %2923 = vmatprep.subr.bf16.mxu0 0
    %2924 = vmatpush1.bf16.msra.mxu0 0
    %2925 = vmatprep.subr.bf16.mxu0 0
    %2926 = vmatpush1.bf16.msra.mxu0 0
    %2927 = vmatprep.subr.bf16.mxu0 0
    %2928 = vmatpush1.bf16.msra.mxu0 0
    %2929 = vmatprep.subr.bf16.mxu0 0
    %2930 = vmatpush1.bf16.msra.mxu0 0
    %2931 = vmatprep.subr.bf16.mxu0 0
    %2932 = vmatpush1.bf16.msra.mxu0 0
    %2933 = vmatprep.subr.bf16.mxu0 0
    %2934 = vmatpush1.bf16.msra.mxu0 0
    %2935 = vmatprep.subr.bf16.mxu0 0
    %2936 = vmatpush1.bf16.msra.mxu0 0
    %2937 = vmatprep.subr.bf16.mxu0 0
    %2938 = vmatpush1.bf16.msra.mxu0 0
    %2939 = vmatprep.subr.bf16.mxu0 0
    %2940 = vmatpush1.bf16.msra.mxu0 0
    %2941 = vmatprep.subr.bf16.mxu0 0
    %2942 = vmatpush1.bf16.msra.mxu0 0
    %2943 = vmatprep.subr.bf16.mxu0 0
    %2944 = vmatpush1.bf16.msra.mxu0 0
    %2945 = vmatprep.subr.bf16.mxu0 0
    %2946 = vmatpush1.bf16.msra.mxu0 0
    %2947 = vmatprep.mubr.bf16.mxu0 0
    %2948 = vmatmul.mubr.bf16.gmra.mrb[0].mxu0 %v2892
    %v2949 = vpop.f32.mrb[0].mxu0
    %v2950 = vadd.f32 0.0, %v2949
    %v2951 = vpop.f32.mrb[0].mxu0
    %v2952 = vpop.f32.mrb[0].mxu0
    %v2953 = vadd.f32 0.0, %v2952
    %v2954 = vpop.f32.mrb[0].mxu0
    %2955 = vmatprep.mubr.bf16.mxu0 0
    %2956 = vmatmul.mubr.bf16.gmra.mrb[0].mxu0 %v2895
    %v2957 = vpop.f32.mrb[0].mxu0
    %v2958 = vadd.f32 0.0, %v2957
    %v2959 = vpop.f32.mrb[0].mxu0
    %v2960 = vpop.f32.mrb[0].mxu0
    %v2961 = vadd.f32 0.0, %v2960
    %v2962 = vpop.f32.mrb[0].mxu0
    %2963 = vmatprep.mubr.bf16.mxu0 0
    %2964 = vmatmul.mubr.bf16.gmra.mrb[0].mxu0 %v2898
    %v2965 = vpop.f32.mrb[0].mxu0
    %v2966 = vadd.f32 0.0, %v2965
    %v2967 = vpop.f32.mrb[0].mxu0
    %v2968 = vpop.f32.mrb[0].mxu0
    %v2969 = vadd.f32 0.0, %v2968
    %v2970 = vpop.f32.mrb[0].mxu0
    %2971 = vmatprep.mubr.bf16.mxu0 0
    %2972 = vmatmul.mubr.bf16.gmra.mrb[0].mxu0 %v2901
    %v2973 = vpop.f32.mrb[0].mxu0
    %v2974 = vadd.f32 0.0, %v2973
    %v2975 = vpop.f32.mrb[0].mxu0
    %v2976 = vpop.f32.mrb[0].mxu0
    %v2977 = vadd.f32 0.0, %v2976
    %v2978 = vpop.f32.mrb[0].mxu0
    %2979 = vmatprep.mubr.bf16.mxu0 0
    %2980 = vmatmul.mubr.bf16.gmra.mrb[0].mxu0 %v2904
    %v2981 = vpop.f32.mrb[0].mxu0
    %v2982 = vadd.f32 0.0, %v2981
    %v2983 = vpop.f32.mrb[0].mxu0
    %v2984 = vpop.f32.mrb[0].mxu0
    %v2985 = vadd.f32 0.0, %v2984
    %v2986 = vpop.f32.mrb[0].mxu0
    %2987 = vmatprep.mubr.bf16.mxu0 0
    %2988 = vmatmul.mubr.bf16.gmra.mrb[0].mxu0 %v2907
    %v2989 = vpop.f32.mrb[0].mxu0
    %v2990 = vadd.f32 0.0, %v2989
    %v2991 = vpop.f32.mrb[0].mxu0
    %v2992 = vpop.f32.mrb[0].mxu0
    %v2993 = vadd.f32 0.0, %v2992
    %v2994 = vpop.f32.mrb[0].mxu0
    %2995 = vmatprep.mubr.bf16.mxu0 0
    %2996 = vmatmul.mubr.bf16.gmra.mrb[0].mxu0 %v2910
    %v2997 = vpop.f32.mrb[0].mxu0
    %v2998 = vadd.f32 0.0, %v2997
    %v2999 = vpop.f32.mrb[0].mxu0
    %v3000 = vpop.f32.mrb[0].mxu0
    %v3001 = vadd.f32 0.0, %v3000
    %v3002 = vpop.f32.mrb[0].mxu0
    %3003 = vmatprep.mubr.bf16.mxu0 0
    %3004 = vmatmul.mubr.bf16.gmra.mrb[0].mxu0 %v2913
    %v3005 = vpop.f32.mrb[0].mxu0
    %v3006 = vadd.f32 0.0, %v3005
    %v3007 = vpop.f32.mrb[0].mxu0
    %v3008 = vpop.f32.mrb[0].mxu0
    %v3009 = vadd.f32 0.0, %v3008
    %v3010 = vpop.f32.mrb[0].mxu0
    %3011 = vdwg.mxu0
    %3012 = vmatprep.subr.bf16.mxu0 0
    %3013 = vmatpush1.bf16.msra.mxu0 %v2870
    %3014 = vmatprep.subr.bf16.mxu0 0
    %3015 = vmatpush1.bf16.msra.mxu0 %v2871
    %3016 = vmatprep.subr.bf16.mxu0 0
    %3017 = vmatpush1.bf16.msra.mxu0 %v2872
    %3018 = vmatprep.subr.bf16.mxu0 0
    %3019 = vmatpush1.bf16.msra.mxu0 %v2873
    %3020 = vmatprep.subr.bf16.mxu0 0
    %3021 = vmatpush1.bf16.msra.mxu0 0
    %3022 = vmatprep.subr.bf16.mxu0 0
    %3023 = vmatpush1.bf16.msra.mxu0 0
    %3024 = vmatprep.subr.bf16.mxu0 0
    %3025 = vmatpush1.bf16.msra.mxu0 0
    %3026 = vmatprep.subr.bf16.mxu0 0
    %3027 = vmatpush1.bf16.msra.mxu0 0
    %3028 = vmatprep.subr.bf16.mxu0 0
    %3029 = vmatpush1.bf16.msra.mxu0 0
    %3030 = vmatprep.subr.bf16.mxu0 0
    %3031 = vmatpush1.bf16.msra.mxu0 0
    %3032 = vmatprep.subr.bf16.mxu0 0
    %3033 = vmatpush1.bf16.msra.mxu0 0
    %3034 = vmatprep.subr.bf16.mxu0 0
    %3035 = vmatpush1.bf16.msra.mxu0 0
    %3036 = vmatprep.subr.bf16.mxu0 0
    %3037 = vmatpush1.bf16.msra.mxu0 0
    %3038 = vmatprep.subr.bf16.mxu0 0
    %3039 = vmatpush1.bf16.msra.mxu0 0
    %3040 = vmatprep.subr.bf16.mxu0 0
    %3041 = vmatpush1.bf16.msra.mxu0 0
    %3042 = vmatprep.subr.bf16.mxu0 0
    %3043 = vmatpush1.bf16.msra.mxu0 0
    %3044 = vmatprep.mubr.bf16.mxu0 0
    %3045 = vmatmul.mubr.bf16.gmra.mrb[0].mxu0 %v1623
    %v3046 = vpop.f32.mrb[0].mxu0
    %v3047 = vadd.f32 %v2950, %v3046
    %v3048 = vpop.f32.mrb[0].mxu0
    %v3049 = vpop.f32.mrb[0].mxu0
    %v3050 = vadd.f32 %v2953, %v3049
    %v3051 = vpop.f32.mrb[0].mxu0
    %3052 = vmatprep.mubr.bf16.mxu0 0
    %3053 = vmatmul.mubr.bf16.gmra.mrb[0].mxu0 %v1626
    %v3054 = vpop.f32.mrb[0].mxu0
    %v3055 = vadd.f32 %v2958, %v3054
    %v3056 = vpop.f32.mrb[0].mxu0
    %v3057 = vpop.f32.mrb[0].mxu0
    %v3058 = vadd.f32 %v2961, %v3057
    %v3059 = vpop.f32.mrb[0].mxu0
    %3060 = vmatprep.mubr.bf16.mxu0 0
    %3061 = vmatmul.mubr.bf16.gmra.mrb[0].mxu0 %v1629
    %v3062 = vpop.f32.mrb[0].mxu0
    %v3063 = vadd.f32 %v2966, %v3062
    %v3064 = vpop.f32.mrb[0].mxu0
    %v3065 = vpop.f32.mrb[0].mxu0
    %v3066 = vadd.f32 %v2969, %v3065
    %v3067 = vpop.f32.mrb[0].mxu0
    %3068 = vmatprep.mubr.bf16.mxu0 0
    %3069 = vmatmul.mubr.bf16.gmra.mrb[0].mxu0 %v1632
    %v3070 = vpop.f32.mrb[0].mxu0
    %v3071 = vadd.f32 %v2974, %v3070
    %v3072 = vpop.f32.mrb[0].mxu0
    %v3073 = vpop.f32.mrb[0].mxu0
    %v3074 = vadd.f32 %v2977, %v3073
    %v3075 = vpop.f32.mrb[0].mxu0
    %3076 = vmatprep.mubr.bf16.mxu0 0
    %3077 = vmatmul.mubr.bf16.gmra.mrb[0].mxu0 %v1635
    %v3078 = vpop.f32.mrb[0].mxu0
    %v3079 = vadd.f32 %v2982, %v3078
    %v3080 = vpop.f32.mrb[0].mxu0
    %v3081 = vpop.f32.mrb[0].mxu0
    %v3082 = vadd.f32 %v2985, %v3081
    %v3083 = vpop.f32.mrb[0].mxu0
    %3084 = vmatprep.mubr.bf16.mxu0 0
    %3085 = vmatmul.mubr.bf16.gmra.mrb[0].mxu0 %v1638
    %v3086 = vpop.f32.mrb[0].mxu0
    %v3087 = vadd.f32 %v2990, %v3086
    %v3088 = vpop.f32.mrb[0].mxu0
    %v3089 = vpop.f32.mrb[0].mxu0
    %v3090 = vadd.f32 %v2993, %v3089
    %v3091 = vpop.f32.mrb[0].mxu0
    %3092 = vmatprep.mubr.bf16.mxu0 0
    %3093 = vmatmul.mubr.bf16.gmra.mrb[0].mxu0 %v1641
    %v3094 = vpop.f32.mrb[0].mxu0
    %v3095 = vadd.f32 %v2998, %v3094
    %v3096 = vpop.f32.mrb[0].mxu0
    %v3097 = vpop.f32.mrb[0].mxu0
    %v3098 = vadd.f32 %v3001, %v3097
    %v3099 = vpop.f32.mrb[0].mxu0
    %3100 = vmatprep.mubr.bf16.mxu0 0
    %3101 = vmatmul.mubr.bf16.gmra.mrb[0].mxu0 %v1644
    %v3102 = vpop.f32.mrb[0].mxu0
    %v3103 = vadd.f32 %v3006, %v3102
    %v3104 = vpop.f32.mrb[0].mxu0
    %v3105 = vpop.f32.mrb[0].mxu0
    %v3106 = vadd.f32 %v3009, %v3105
    %v3107 = vpop.f32.mrb[0].mxu0
    %3108 = vdwg.mxu0
    %s3109 = scalar_lea.vmem %s9, 1
    %v3110 = vld [vmem:[%s3109] sm:$0x1]
    %v3112 = vlaneseq
    %v3113 = vshrl.u32 %v3112, 7
    %v3114 = vsub.s32 0, %v3113
    %v3115 = vrot.slane %v3110, %v3114
    %v3117 = vadd.f32 %v3047, %v3115
    %v3118 = vadd.f32 %v3050, %v3115
    %v3119 = vadd.f32 %v3055, %v3115
    %v3120 = vadd.f32 %v3058, %v3115
    %v3121 = vadd.f32 %v3063, %v3115
    %v3122 = vadd.f32 %v3066, %v3115
    %v3123 = vadd.f32 %v3071, %v3115
    %v3124 = vadd.f32 %v3074, %v3115
    %v3125 = vadd.f32 %v3079, %v3115
    %v3126 = vadd.f32 %v3082, %v3115
    %v3127 = vadd.f32 %v3087, %v3115
    %v3128 = vadd.f32 %v3090, %v3115
    %v3129 = vadd.f32 %v3095, %v3115
    %v3130 = vadd.f32 %v3098, %v3115
    %v3131 = vadd.f32 %v3103, %v3115
    %v3132 = vadd.f32 %v3106, %v3115
    %v3133 = vmul.f32 %v3117, 0.5
    %v3134 = vmul.f32 %v3118, 0.5
    %v3135 = vmul.f32 %v3119, 0.5
    %v3136 = vmul.f32 %v3120, 0.5
    %v3137 = vmul.f32 %v3121, 0.5
    %v3138 = vmul.f32 %v3122, 0.5
    %v3139 = vmul.f32 %v3123, 0.5
    %v3140 = vmul.f32 %v3124, 0.5
    %v3141 = vmul.f32 %v3125, 0.5
    %v3142 = vmul.f32 %v3126, 0.5
    %v3143 = vmul.f32 %v3127, 0.5
    %v3144 = vmul.f32 %v3128, 0.5
    %v3145 = vmul.f32 %v3129, 0.5
    %v3146 = vmul.f32 %v3130, 0.5
    %v3147 = vmul.f32 %v3131, 0.5
    %v3148 = vmul.f32 %v3132, 0.5
    %v3149 = vmul.f32 %v3117, 0.70710677
    %v3150 = vmul.f32 %v3118, 0.70710677
    %v3151 = vmul.f32 %v3119, 0.70710677
    %v3152 = vmul.f32 %v3120, 0.70710677
    %v3153 = vmul.f32 %v3121, 0.70710677
    %v3154 = vmul.f32 %v3122, 0.70710677
    %v3155 = vmul.f32 %v3123, 0.70710677
    %v3156 = vmul.f32 %v3124, 0.70710677
    %v3157 = vmul.f32 %v3125, 0.70710677
    %v3158 = vmul.f32 %v3126, 0.70710677
    %v3159 = vmul.f32 %v3127, 0.70710677
    %v3160 = vmul.f32 %v3128, 0.70710677
    %v3161 = vmul.f32 %v3129, 0.70710677
    %v3162 = vmul.f32 %v3130, 0.70710677
    %v3163 = vmul.f32 %v3131, 0.70710677
    %v3164 = vmul.f32 %v3132, 0.70710677
    %vm3165 = vcmp.ge.f32.partialorder %v3149, 0.0
    %vm3166 = vcmp.ge.f32.partialorder %v3150, 0.0
    %vm3167 = vcmp.ge.f32.partialorder %v3151, 0.0
    %vm3168 = vcmp.ge.f32.partialorder %v3152, 0.0
    %vm3169 = vcmp.ge.f32.partialorder %v3153, 0.0
    %vm3170 = vcmp.ge.f32.partialorder %v3154, 0.0
    %vm3171 = vcmp.ge.f32.partialorder %v3155, 0.0
    %vm3172 = vcmp.ge.f32.partialorder %v3156, 0.0
    %vm3173 = vcmp.ge.f32.partialorder %v3157, 0.0
    %vm3174 = vcmp.ge.f32.partialorder %v3158, 0.0
    %vm3175 = vcmp.ge.f32.partialorder %v3159, 0.0
    %vm3176 = vcmp.ge.f32.partialorder %v3160, 0.0
    %vm3177 = vcmp.ge.f32.partialorder %v3161, 0.0
    %vm3178 = vcmp.ge.f32.partialorder %v3162, 0.0
    %vm3179 = vcmp.ge.f32.partialorder %v3163, 0.0
    %vm3180 = vcmp.ge.f32.partialorder %v3164, 0.0
    %v3181 = vsel %vm3165, 1.0, -1.0
    %v3182 = vsel %vm3166, 1.0, -1.0
    %v3183 = vsel %vm3167, 1.0, -1.0
    %v3184 = vsel %vm3168, 1.0, -1.0
    %v3185 = vsel %vm3169, 1.0, -1.0
    %v3186 = vsel %vm3170, 1.0, -1.0
    %v3187 = vsel %vm3171, 1.0, -1.0
    %v3188 = vsel %vm3172, 1.0, -1.0
    %v3189 = vsel %vm3173, 1.0, -1.0
    %v3190 = vsel %vm3174, 1.0, -1.0
    %v3191 = vsel %vm3175, 1.0, -1.0
    %v3192 = vsel %vm3176, 1.0, -1.0
    %v3193 = vsel %vm3177, 1.0, -1.0
    %v3194 = vsel %vm3178, 1.0, -1.0
    %v3195 = vsel %vm3179, 1.0, -1.0
    %v3196 = vsel %vm3180, 1.0, -1.0
    %v3197 = vand.u32 2147483647, %v3149
    %v3198 = vand.u32 2147483647, %v3150
    %v3199 = vand.u32 2147483647, %v3151
    %v3200 = vand.u32 2147483647, %v3152
    %v3201 = vand.u32 2147483647, %v3153
    %v3202 = vand.u32 2147483647, %v3154
    %v3203 = vand.u32 2147483647, %v3155
    %v3204 = vand.u32 2147483647, %v3156
    %v3205 = vand.u32 2147483647, %v3157
    %v3206 = vand.u32 2147483647, %v3158
    %v3207 = vand.u32 2147483647, %v3159
    %v3208 = vand.u32 2147483647, %v3160
    %v3209 = vand.u32 2147483647, %v3161
    %v3210 = vand.u32 2147483647, %v3162
    %v3211 = vand.u32 2147483647, %v3163
    %v3212 = vand.u32 2147483647, %v3164
    %v3213 = vmul.f32 %v3197, 0.3275911
    %v3214 = vmul.f32 %v3198, 0.3275911
    %v3215 = vmul.f32 %v3199, 0.3275911
    %v3216 = vmul.f32 %v3200, 0.3275911
    %v3217 = vmul.f32 %v3201, 0.3275911
    %v3218 = vmul.f32 %v3202, 0.3275911
    %v3219 = vmul.f32 %v3203, 0.3275911
    %v3220 = vmul.f32 %v3204, 0.3275911
    %v3221 = vmul.f32 %v3205, 0.3275911
    %v3222 = vmul.f32 %v3206, 0.3275911
    %v3223 = vmul.f32 %v3207, 0.3275911
    %v3224 = vmul.f32 %v3208, 0.3275911
    %v3225 = vmul.f32 %v3209, 0.3275911
    %v3226 = vmul.f32 %v3210, 0.3275911
    %v3227 = vmul.f32 %v3211, 0.3275911
    %v3228 = vmul.f32 %v3212, 0.3275911
    %v3229 = vadd.f32 %v3213, 1.0
    %v3230 = vadd.f32 %v3214, 1.0
    %v3231 = vadd.f32 %v3215, 1.0
    %v3232 = vadd.f32 %v3216, 1.0
    %v3233 = vadd.f32 %v3217, 1.0
    %v3234 = vadd.f32 %v3218, 1.0
    %v3235 = vadd.f32 %v3219, 1.0
    %v3236 = vadd.f32 %v3220, 1.0
    %v3237 = vadd.f32 %v3221, 1.0
    %v3238 = vadd.f32 %v3222, 1.0
    %v3239 = vadd.f32 %v3223, 1.0
    %v3240 = vadd.f32 %v3224, 1.0
    %v3241 = vadd.f32 %v3225, 1.0
    %v3242 = vadd.f32 %v3226, 1.0
    %v3243 = vadd.f32 %v3227, 1.0
    %v3244 = vadd.f32 %v3228, 1.0
    %v3245 = vrcp.pop %v3229
    %v3246 = vmul.f32 1.0, %v3245
    %v3247 = vrcp.pop %v3230
    %v3248 = vmul.f32 1.0, %v3247
    %v3249 = vrcp.pop %v3231
    %v3250 = vmul.f32 1.0, %v3249
    %v3251 = vrcp.pop %v3232
    %v3252 = vmul.f32 1.0, %v3251
    %v3253 = vrcp.pop %v3233
    %v3254 = vmul.f32 1.0, %v3253
    %v3255 = vrcp.pop %v3234
    %v3256 = vmul.f32 1.0, %v3255
    %v3257 = vrcp.pop %v3235
    %v3258 = vmul.f32 1.0, %v3257
    %v3259 = vrcp.pop %v3236
    %v3260 = vmul.f32 1.0, %v3259
    %v3261 = vrcp.pop %v3237
    %v3262 = vmul.f32 1.0, %v3261
    %v3263 = vrcp.pop %v3238
    %v3264 = vmul.f32 1.0, %v3263
    %v3265 = vrcp.pop %v3239
    %v3266 = vmul.f32 1.0, %v3265
    %v3267 = vrcp.pop %v3240
    %v3268 = vmul.f32 1.0, %v3267
    %v3269 = vrcp.pop %v3241
    %v3270 = vmul.f32 1.0, %v3269
    %v3271 = vrcp.pop %v3242
    %v3272 = vmul.f32 1.0, %v3271
    %v3273 = vrcp.pop %v3243
    %v3274 = vmul.f32 1.0, %v3273
    %v3275 = vrcp.pop %v3244
    %v3276 = vmul.f32 1.0, %v3275
    %v3277 = vmul.f32 %v3246, 1.0614054
    %v3278 = vmul.f32 %v3248, 1.0614054
    %v3279 = vmul.f32 %v3250, 1.0614054
    %v3280 = vmul.f32 %v3252, 1.0614054
    %v3281 = vmul.f32 %v3254, 1.0614054
    %v3282 = vmul.f32 %v3256, 1.0614054
    %v3283 = vmul.f32 %v3258, 1.0614054
    %v3284 = vmul.f32 %v3260, 1.0614054
    %v3285 = vmul.f32 %v3262, 1.0614054
    %v3286 = vmul.f32 %v3264, 1.0614054
    %v3287 = vmul.f32 %v3266, 1.0614054
    %v3288 = vmul.f32 %v3268, 1.0614054
    %v3289 = vmul.f32 %v3270, 1.0614054
    %v3290 = vmul.f32 %v3272, 1.0614054
    %v3291 = vmul.f32 %v3274, 1.0614054
    %v3292 = vmul.f32 %v3276, 1.0614054
    %v3293 = vadd.f32 %v3277, -1.4531521
    %v3294 = vadd.f32 %v3278, -1.4531521
    %v3295 = vadd.f32 %v3279, -1.4531521
    %v3296 = vadd.f32 %v3280, -1.4531521
    %v3297 = vadd.f32 %v3281, -1.4531521
    %v3298 = vadd.f32 %v3282, -1.4531521
    %v3299 = vadd.f32 %v3283, -1.4531521
    %v3300 = vadd.f32 %v3284, -1.4531521
    %v3301 = vadd.f32 %v3285, -1.4531521
    %v3302 = vadd.f32 %v3286, -1.4531521
    %v3303 = vadd.f32 %v3287, -1.4531521
    %v3304 = vadd.f32 %v3288, -1.4531521
    %v3305 = vadd.f32 %v3289, -1.4531521
    %v3306 = vadd.f32 %v3290, -1.4531521
    %v3307 = vadd.f32 %v3291, -1.4531521
    %v3308 = vadd.f32 %v3292, -1.4531521
    %v3309 = vmul.f32 %v3293, %v3246
    %v3310 = vmul.f32 %v3294, %v3248
    %v3311 = vmul.f32 %v3295, %v3250
    %v3312 = vmul.f32 %v3296, %v3252
    %v3313 = vmul.f32 %v3297, %v3254
    %v3314 = vmul.f32 %v3298, %v3256
    %v3315 = vmul.f32 %v3299, %v3258
    %v3316 = vmul.f32 %v3300, %v3260
    %v3317 = vmul.f32 %v3301, %v3262
    %v3318 = vmul.f32 %v3302, %v3264
    %v3319 = vmul.f32 %v3303, %v3266
    %v3320 = vmul.f32 %v3304, %v3268
    %v3321 = vmul.f32 %v3305, %v3270
    %v3322 = vmul.f32 %v3306, %v3272
    %v3323 = vmul.f32 %v3307, %v3274
    %v3324 = vmul.f32 %v3308, %v3276
    %v3325 = vadd.f32 %v3309, 1.4214138
    %v3326 = vadd.f32 %v3310, 1.4214138
    %v3327 = vadd.f32 %v3311, 1.4214138
    %v3328 = vadd.f32 %v3312, 1.4214138
    %v3329 = vadd.f32 %v3313, 1.4214138
    %v3330 = vadd.f32 %v3314, 1.4214138
    %v3331 = vadd.f32 %v3315, 1.4214138
    %v3332 = vadd.f32 %v3316, 1.4214138
    %v3333 = vadd.f32 %v3317, 1.4214138
    %v3334 = vadd.f32 %v3318, 1.4214138
    %v3335 = vadd.f32 %v3319, 1.4214138
    %v3336 = vadd.f32 %v3320, 1.4214138
    %v3337 = vadd.f32 %v3321, 1.4214138
    %v3338 = vadd.f32 %v3322, 1.4214138
    %v3339 = vadd.f32 %v3323, 1.4214138
    %v3340 = vadd.f32 %v3324, 1.4214138
    %v3341 = vmul.f32 %v3325, %v3246
    %v3342 = vmul.f32 %v3326, %v3248
    %v3343 = vmul.f32 %v3327, %v3250
    %v3344 = vmul.f32 %v3328, %v3252
    %v3345 = vmul.f32 %v3329, %v3254
    %v3346 = vmul.f32 %v3330, %v3256
    %v3347 = vmul.f32 %v3331, %v3258
    %v3348 = vmul.f32 %v3332, %v3260
    %v3349 = vmul.f32 %v3333, %v3262
    %v3350 = vmul.f32 %v3334, %v3264
    %v3351 = vmul.f32 %v3335, %v3266
    %v3352 = vmul.f32 %v3336, %v3268
    %v3353 = vmul.f32 %v3337, %v3270
    %v3354 = vmul.f32 %v3338, %v3272
    %v3355 = vmul.f32 %v3339, %v3274
    %v3356 = vmul.f32 %v3340, %v3276
    %v3357 = vadd.f32 %v3341, -0.28449672
    %v3358 = vadd.f32 %v3342, -0.28449672
    %v3359 = vadd.f32 %v3343, -0.28449672
    %v3360 = vadd.f32 %v3344, -0.28449672
    %v3361 = vadd.f32 %v3345, -0.28449672
    %v3362 = vadd.f32 %v3346, -0.28449672
    %v3363 = vadd.f32 %v3347, -0.28449672
    %v3364 = vadd.f32 %v3348, -0.28449672
    %v3365 = vadd.f32 %v3349, -0.28449672
    %v3366 = vadd.f32 %v3350, -0.28449672
    %v3367 = vadd.f32 %v3351, -0.28449672
    %v3368 = vadd.f32 %v3352, -0.28449672
    %v3369 = vadd.f32 %v3353, -0.28449672
    %v3370 = vadd.f32 %v3354, -0.28449672
    %v3371 = vadd.f32 %v3355, -0.28449672
    %v3372 = vadd.f32 %v3356, -0.28449672
    %v3373 = vmul.f32 %v3357, %v3246
    %v3374 = vmul.f32 %v3358, %v3248
    %v3375 = vmul.f32 %v3359, %v3250
    %v3376 = vmul.f32 %v3360, %v3252
    %v3377 = vmul.f32 %v3361, %v3254
    %v3378 = vmul.f32 %v3362, %v3256
    %v3379 = vmul.f32 %v3363, %v3258
    %v3380 = vmul.f32 %v3364, %v3260
    %v3381 = vmul.f32 %v3365, %v3262
    %v3382 = vmul.f32 %v3366, %v3264
    %v3383 = vmul.f32 %v3367, %v3266
    %v3384 = vmul.f32 %v3368, %v3268
    %v3385 = vmul.f32 %v3369, %v3270
    %v3386 = vmul.f32 %v3370, %v3272
    %v3387 = vmul.f32 %v3371, %v3274
    %v3388 = vmul.f32 %v3372, %v3276
    %v3389 = vadd.f32 %v3373, 0.2548296
    %v3390 = vadd.f32 %v3374, 0.2548296
    %v3391 = vadd.f32 %v3375, 0.2548296
    %v3392 = vadd.f32 %v3376, 0.2548296
    %v3393 = vadd.f32 %v3377, 0.2548296
    %v3394 = vadd.f32 %v3378, 0.2548296
    %v3395 = vadd.f32 %v3379, 0.2548296
    %v3396 = vadd.f32 %v3380, 0.2548296
    %v3397 = vadd.f32 %v3381, 0.2548296
    %v3398 = vadd.f32 %v3382, 0.2548296
    %v3399 = vadd.f32 %v3383, 0.2548296
    %v3400 = vadd.f32 %v3384, 0.2548296
    %v3401 = vadd.f32 %v3385, 0.2548296
    %v3402 = vadd.f32 %v3386, 0.2548296
    %v3403 = vadd.f32 %v3387, 0.2548296
    %v3404 = vadd.f32 %v3388, 0.2548296
    %v3405 = vmul.f32 %v3389, %v3246
    %v3406 = vmul.f32 %v3390, %v3248
    %v3407 = vmul.f32 %v3391, %v3250
    %v3408 = vmul.f32 %v3392, %v3252
    %v3409 = vmul.f32 %v3393, %v3254
    %v3410 = vmul.f32 %v3394, %v3256
    %v3411 = vmul.f32 %v3395, %v3258
    %v3412 = vmul.f32 %v3396, %v3260
    %v3413 = vmul.f32 %v3397, %v3262
    %v3414 = vmul.f32 %v3398, %v3264
    %v3415 = vmul.f32 %v3399, %v3266
    %v3416 = vmul.f32 %v3400, %v3268
    %v3417 = vmul.f32 %v3401, %v3270
    %v3418 = vmul.f32 %v3402, %v3272
    %v3419 = vmul.f32 %v3403, %v3274
    %v3420 = vmul.f32 %v3404, %v3276
    %v3421 = vsub.f32 0.0, %v3197
    %v3422 = vsub.f32 0.0, %v3198
    %v3423 = vsub.f32 0.0, %v3199
    %v3424 = vsub.f32 0.0, %v3200
    %v3425 = vsub.f32 0.0, %v3201
    %v3426 = vsub.f32 0.0, %v3202
    %v3427 = vsub.f32 0.0, %v3203
    %v3428 = vsub.f32 0.0, %v3204
    %v3429 = vsub.f32 0.0, %v3205
    %v3430 = vsub.f32 0.0, %v3206
    %v3431 = vsub.f32 0.0, %v3207
    %v3432 = vsub.f32 0.0, %v3208
    %v3433 = vsub.f32 0.0, %v3209
    %v3434 = vsub.f32 0.0, %v3210
    %v3435 = vsub.f32 0.0, %v3211
    %v3436 = vsub.f32 0.0, %v3212
    %v3437 = vmul.f32 %v3421, %v3197
    %v3438 = vmul.f32 %v3422, %v3198
    %v3439 = vmul.f32 %v3423, %v3199
    %v3440 = vmul.f32 %v3424, %v3200
    %v3441 = vmul.f32 %v3425, %v3201
    %v3442 = vmul.f32 %v3426, %v3202
    %v3443 = vmul.f32 %v3427, %v3203
    %v3444 = vmul.f32 %v3428, %v3204
    %v3445 = vmul.f32 %v3429, %v3205
    %v3446 = vmul.f32 %v3430, %v3206
    %v3447 = vmul.f32 %v3431, %v3207
    %v3448 = vmul.f32 %v3432, %v3208
    %v3449 = vmul.f32 %v3433, %v3209
    %v3450 = vmul.f32 %v3434, %v3210
    %v3451 = vmul.f32 %v3435, %v3211
    %v3452 = vmul.f32 %v3436, %v3212
    %v3453 = vmul.f32 %v3437, 1.442695
    %v3454 = vpow.pop %v3453
    %v3455 = vmul.f32 %v3438, 1.442695
    %v3456 = vpow.pop %v3455
    %v3457 = vmul.f32 %v3439, 1.442695
    %v3458 = vpow.pop %v3457
    %v3459 = vmul.f32 %v3440, 1.442695
    %v3460 = vpow.pop %v3459
    %v3461 = vmul.f32 %v3441, 1.442695
    %v3462 = vpow.pop %v3461
    %v3463 = vmul.f32 %v3442, 1.442695
    %v3464 = vpow.pop %v3463
    %v3465 = vmul.f32 %v3443, 1.442695
    %v3466 = vpow.pop %v3465
    %v3467 = vmul.f32 %v3444, 1.442695
    %v3468 = vpow.pop %v3467
    %v3469 = vmul.f32 %v3445, 1.442695
    %v3470 = vpow.pop %v3469
    %v3471 = vmul.f32 %v3446, 1.442695
    %v3472 = vpow.pop %v3471
    %v3473 = vmul.f32 %v3447, 1.442695
    %v3474 = vpow.pop %v3473
    %v3475 = vmul.f32 %v3448, 1.442695
    %v3476 = vpow.pop %v3475
    %v3477 = vmul.f32 %v3449, 1.442695
    %v3478 = vpow.pop %v3477
    %v3479 = vmul.f32 %v3450, 1.442695
    %v3480 = vpow.pop %v3479
    %v3481 = vmul.f32 %v3451, 1.442695
    %v3482 = vpow.pop %v3481
    %v3483 = vmul.f32 %v3452, 1.442695
    %v3484 = vpow.pop %v3483
    %v3485 = vmul.f32 %v3405, %v3454
    %v3486 = vmul.f32 %v3406, %v3456
    %v3487 = vmul.f32 %v3407, %v3458
    %v3488 = vmul.f32 %v3408, %v3460
    %v3489 = vmul.f32 %v3409, %v3462
    %v3490 = vmul.f32 %v3410, %v3464
    %v3491 = vmul.f32 %v3411, %v3466
    %v3492 = vmul.f32 %v3412, %v3468
    %v3493 = vmul.f32 %v3413, %v3470
    %v3494 = vmul.f32 %v3414, %v3472
    %v3495 = vmul.f32 %v3415, %v3474
    %v3496 = vmul.f32 %v3416, %v3476
    %v3497 = vmul.f32 %v3417, %v3478
    %v3498 = vmul.f32 %v3418, %v3480
    %v3499 = vmul.f32 %v3419, %v3482
    %v3500 = vmul.f32 %v3420, %v3484
    %v3501 = vsub.f32 1.0, %v3485
    %v3502 = vsub.f32 1.0, %v3486
    %v3503 = vsub.f32 1.0, %v3487
    %v3504 = vsub.f32 1.0, %v3488
    %v3505 = vsub.f32 1.0, %v3489
    %v3506 = vsub.f32 1.0, %v3490
    %v3507 = vsub.f32 1.0, %v3491
    %v3508 = vsub.f32 1.0, %v3492
    %v3509 = vsub.f32 1.0, %v3493
    %v3510 = vsub.f32 1.0, %v3494
    %v3511 = vsub.f32 1.0, %v3495
    %v3512 = vsub.f32 1.0, %v3496
    %v3513 = vsub.f32 1.0, %v3497
    %v3514 = vsub.f32 1.0, %v3498
    %v3515 = vsub.f32 1.0, %v3499
    %v3516 = vsub.f32 1.0, %v3500
    %v3517 = vmul.f32 %v3181, %v3501
    %v3518 = vmul.f32 %v3182, %v3502
    %v3519 = vmul.f32 %v3183, %v3503
    %v3520 = vmul.f32 %v3184, %v3504
    %v3521 = vmul.f32 %v3185, %v3505
    %v3522 = vmul.f32 %v3186, %v3506
    %v3523 = vmul.f32 %v3187, %v3507
    %v3524 = vmul.f32 %v3188, %v3508
    %v3525 = vmul.f32 %v3189, %v3509
    %v3526 = vmul.f32 %v3190, %v3510
    %v3527 = vmul.f32 %v3191, %v3511
    %v3528 = vmul.f32 %v3192, %v3512
    %v3529 = vmul.f32 %v3193, %v3513
    %v3530 = vmul.f32 %v3194, %v3514
    %v3531 = vmul.f32 %v3195, %v3515
    %v3532 = vmul.f32 %v3196, %v3516
    %v3533 = vadd.f32 %v3517, 1.0
    %v3534 = vadd.f32 %v3518, 1.0
    %v3535 = vadd.f32 %v3519, 1.0
    %v3536 = vadd.f32 %v3520, 1.0
    %v3537 = vadd.f32 %v3521, 1.0
    %v3538 = vadd.f32 %v3522, 1.0
    %v3539 = vadd.f32 %v3523, 1.0
    %v3540 = vadd.f32 %v3524, 1.0
    %v3541 = vadd.f32 %v3525, 1.0
    %v3542 = vadd.f32 %v3526, 1.0
    %v3543 = vadd.f32 %v3527, 1.0
    %v3544 = vadd.f32 %v3528, 1.0
    %v3545 = vadd.f32 %v3529, 1.0
    %v3546 = vadd.f32 %v3530, 1.0
    %v3547 = vadd.f32 %v3531, 1.0
    %v3548 = vadd.f32 %v3532, 1.0
    %v3549 = vmul.f32 %v3133, %v3533
    %v3550 = vmul.f32 %v3134, %v3534
    %v3551 = vmul.f32 %v3135, %v3535
    %v3552 = vmul.f32 %v3136, %v3536
    %v3553 = vmul.f32 %v3137, %v3537
    %v3554 = vmul.f32 %v3138, %v3538
    %v3555 = vmul.f32 %v3139, %v3539
    %v3556 = vmul.f32 %v3140, %v3540
    %v3557 = vmul.f32 %v3141, %v3541
    %v3558 = vmul.f32 %v3142, %v3542
    %v3559 = vmul.f32 %v3143, %v3543
    %v3560 = vmul.f32 %v3144, %v3544
    %v3561 = vmul.f32 %v3145, %v3545
    %v3562 = vmul.f32 %v3146, %v3546
    %v3563 = vmul.f32 %v3147, %v3547
    %v3564 = vmul.f32 %v3148, %v3548
    %v3565 = vpack.c.bf16 %v3550, %v3549
    %v3566 = vpack.c.bf16 %v3552, %v3551
    %v3567 = vpack.c.bf16 %v3554, %v3553
    %v3568 = vpack.c.bf16 %v3556, %v3555
    %v3569 = vpack.c.bf16 %v3558, %v3557
    %v3570 = vpack.c.bf16 %v3560, %v3559
    %v3571 = vpack.c.bf16 %v3562, %v3561
    %v3572 = vpack.c.bf16 %v3564, %v3563
    %3573 = vmatprep.subr.bf16.mxu0 0
    %3574 = vmatpush1.bf16.msra.mxu0 %v3565
    %3575 = vmatprep.subr.bf16.mxu0 0
    %3576 = vmatpush1.bf16.msra.mxu0 %v3566
    %3577 = vmatprep.subr.bf16.mxu0 0
    %3578 = vmatpush1.bf16.msra.mxu0 %v3567
    %3579 = vmatprep.subr.bf16.mxu0 0
    %3580 = vmatpush1.bf16.msra.mxu0 %v3568
    %3581 = vmatprep.subr.bf16.mxu0 0
    %3582 = vmatpush1.bf16.msra.mxu0 %v3569
    %3583 = vmatprep.subr.bf16.mxu0 0
    %3584 = vmatpush1.bf16.msra.mxu0 %v3570
    %3585 = vmatprep.subr.bf16.mxu0 0
    %3586 = vmatpush1.bf16.msra.mxu0 %v3571
    %3587 = vmatprep.subr.bf16.mxu0 0
    %3588 = vmatpush1.bf16.msra.mxu0 %v3572
    %3589 = vmatprep.subr.bf16.mxu0 0
    %3590 = vmatpush1.bf16.msra.mxu0 0
    %3591 = vmatprep.subr.bf16.mxu0 0
    %3592 = vmatpush1.bf16.msra.mxu0 0
    %3593 = vmatprep.subr.bf16.mxu0 0
    %3594 = vmatpush1.bf16.msra.mxu0 0
    %3595 = vmatprep.subr.bf16.mxu0 0
    %3596 = vmatpush1.bf16.msra.mxu0 0
    %3597 = vmatprep.subr.bf16.mxu0 0
    %3598 = vmatpush1.bf16.msra.mxu0 0
    %3599 = vmatprep.subr.bf16.mxu0 0
    %3600 = vmatpush1.bf16.msra.mxu0 0
    %3601 = vmatprep.subr.bf16.mxu0 0
    %3602 = vmatpush1.bf16.msra.mxu0 0
    %3603 = vmatprep.subr.bf16.mxu0 0
    %3604 = vmatpush1.bf16.msra.mxu0 0
    %3605 = vmatprep.mubr.bf16.mxu0 0
    %3606 = vmatmul.mubr.bf16.gmra.mrb[0].mxu0 %v496
    %v3607 = vpop.f32.mrb[0].mxu0
    %v3608 = vadd.f32 0.0, %v3607
    %v3609 = vpop.f32.mrb[0].mxu0
    %v3610 = vpop.f32.mrb[0].mxu0
    %v3611 = vadd.f32 0.0, %v3610
    %v3612 = vpop.f32.mrb[0].mxu0
    %3613 = vmatprep.mubr.bf16.mxu0 0
    %3614 = vmatmul.mubr.bf16.gmra.mrb[0].mxu0 %v497
    %v3615 = vpop.f32.mrb[0].mxu0
    %v3616 = vadd.f32 0.0, %v3615
    %v3617 = vpop.f32.mrb[0].mxu0
    %v3618 = vpop.f32.mrb[0].mxu0
    %v3619 = vadd.f32 0.0, %v3618
    %v3620 = vpop.f32.mrb[0].mxu0
    %3621 = vmatprep.mubr.bf16.mxu0 0
    %3622 = vmatmul.mubr.bf16.gmra.mrb[0].mxu0 %v498
    %v3623 = vpop.f32.mrb[0].mxu0
    %v3624 = vadd.f32 0.0, %v3623
    %v3625 = vpop.f32.mrb[0].mxu0
    %v3626 = vpop.f32.mrb[0].mxu0
    %v3627 = vadd.f32 0.0, %v3626
    %v3628 = vpop.f32.mrb[0].mxu0
    %3629 = vmatprep.mubr.bf16.mxu0 0
    %3630 = vmatmul.mubr.bf16.gmra.mrb[0].mxu0 %v499
    %v3631 = vpop.f32.mrb[0].mxu0
    %v3632 = vadd.f32 0.0, %v3631
    %v3633 = vpop.f32.mrb[0].mxu0
    %v3634 = vpop.f32.mrb[0].mxu0
    %v3635 = vadd.f32 0.0, %v3634
    %v3636 = vpop.f32.mrb[0].mxu0
    %3637 = vdwg.mxu0
    %v3638 = vpack.c.bf16 %v3611, %v3608
    %v3639 = vpack.c.bf16 %v3619, %v3616
    %v3640 = vpack.c.bf16 %v3627, %v3624
    %v3641 = vpack.c.bf16 %v3635, %v3632
    %s3642 = scalar_lea.vmem %s5, 256
    %v3643 = vld [vmem:[%s3642] sm:$0xff]
    %v3644 = vld [vmem:[%s3642 + $0x8] sm:$0xff]
    %v3645 = vld [vmem:[%s3642 + $0x10] sm:$0xff]
    %v3646 = vld [vmem:[%s3642 + $0x18] sm:$0xff]
    %v3647 = vld [vmem:[%s3642 + $0x20] sm:$0xff]
    %v3648 = vld [vmem:[%s3642 + $0x28] sm:$0xff]
    %v3649 = vld [vmem:[%s3642 + $0x30] sm:$0xff]
    %v3650 = vld [vmem:[%s3642 + $0x38] sm:$0xff]
    %v3651 = vld [vmem:[%s3642 + $0x40] sm:$0xff]
    %v3652 = vld [vmem:[%s3642 + $0x48] sm:$0xff]
    %v3653 = vld [vmem:[%s3642 + $0x50] sm:$0xff]
    %v3654 = vld [vmem:[%s3642 + $0x58] sm:$0xff]
    %v3655 = vld [vmem:[%s3642 + $0x60] sm:$0xff]
    %v3656 = vld [vmem:[%s3642 + $0x68] sm:$0xff]
    %v3657 = vld [vmem:[%s3642 + $0x70] sm:$0xff]
    %v3658 = vld [vmem:[%s3642 + $0x78] sm:$0xff]
    %v3675 = vunpack.c.l.b16 %v3643
    %v3676 = vunpack.c.h.b16 %v3643
    %v3677 = vunpack.c.l.b16 %v3644
    %v3678 = vunpack.c.h.b16 %v3644
    %v3679 = vunpack.c.l.b16 %v3645
    %v3680 = vunpack.c.h.b16 %v3645
    %v3681 = vunpack.c.l.b16 %v3646
    %v3682 = vunpack.c.h.b16 %v3646
    %v3683 = vunpack.c.l.b16 %v3647
    %v3684 = vunpack.c.h.b16 %v3647
    %v3685 = vunpack.c.l.b16 %v3648
    %v3686 = vunpack.c.h.b16 %v3648
    %v3687 = vunpack.c.l.b16 %v3649
    %v3688 = vunpack.c.h.b16 %v3649
    %v3689 = vunpack.c.l.b16 %v3650
    %v3690 = vunpack.c.h.b16 %v3650
    %v3691 = vunpack.c.l.b16 %v3651
    %v3692 = vunpack.c.h.b16 %v3651
    %v3693 = vunpack.c.l.b16 %v3652
    %v3694 = vunpack.c.h.b16 %v3652
    %v3695 = vunpack.c.l.b16 %v3653
    %v3696 = vunpack.c.h.b16 %v3653
    %v3697 = vunpack.c.l.b16 %v3654
    %v3698 = vunpack.c.h.b16 %v3654
    %v3699 = vunpack.c.l.b16 %v3655
    %v3700 = vunpack.c.h.b16 %v3655
    %v3701 = vunpack.c.l.b16 %v3656
    %v3702 = vunpack.c.h.b16 %v3656
    %v3703 = vunpack.c.l.b16 %v3657
    %v3704 = vunpack.c.h.b16 %v3657
    %v3705 = vunpack.c.l.b16 %v3658
    %v3706 = vunpack.c.h.b16 %v3658
    %v3707 = vpack.c.b16 %v3683, %v3675
    %v3708 = vpack.c.b16 %v3684, %v3676
    %v3709 = vpack.c.b16 %v3685, %v3677
    %v3710 = vpack.c.b16 %v3686, %v3678
    %v3711 = vpack.c.b16 %v3687, %v3679
    %v3712 = vpack.c.b16 %v3688, %v3680
    %v3713 = vpack.c.b16 %v3689, %v3681
    %v3714 = vpack.c.b16 %v3690, %v3682
    %v3715 = vpack.c.b16 %v3699, %v3691
    %v3716 = vpack.c.b16 %v3700, %v3692
    %v3717 = vpack.c.b16 %v3701, %v3693
    %v3718 = vpack.c.b16 %v3702, %v3694
    %v3719 = vpack.c.b16 %v3703, %v3695
    %v3720 = vpack.c.b16 %v3704, %v3696
    %v3721 = vpack.c.b16 %v3705, %v3697
    %v3722 = vpack.c.b16 %v3706, %v3698
    %v3740 = vsel %vm669, %v3638, 0
    %v3743 = vsel %vm669, %v3639, 0
    %v3746 = vsel %vm669, %v3640, 0
    %v3749 = vsel %vm669, %v3641, 0
    %3751 = vmatprep.subr.bf16.mxu0 %v3708
    %3752 = vmatpush1.bf16.msra.mxu0 %v3707
    %3753 = vmatprep.subr.bf16.mxu0 %v3716
    %3754 = vmatpush1.bf16.msra.mxu0 %v3715
    %3755 = vmatprep.subr.bf16.mxu0 0
    %3756 = vmatpush1.bf16.msra.mxu0 0
    %3757 = vmatprep.subr.bf16.mxu0 0
    %3758 = vmatpush1.bf16.msra.mxu0 0
    %3759 = vmatprep.subr.bf16.mxu0 0
    %3760 = vmatpush1.bf16.msra.mxu0 0
    %3761 = vmatprep.subr.bf16.mxu0 0
    %3762 = vmatpush1.bf16.msra.mxu0 0
    %3763 = vmatprep.subr.bf16.mxu0 0
    %3764 = vmatpush1.bf16.msra.mxu0 0
    %3765 = vmatprep.subr.bf16.mxu0 0
    %3766 = vmatpush1.bf16.msra.mxu0 0
    %3767 = vmatprep.subr.bf16.mxu0 0
    %3768 = vmatpush1.bf16.msra.mxu0 0
    %3769 = vmatprep.subr.bf16.mxu0 0
    %3770 = vmatpush1.bf16.msra.mxu0 0
    %3771 = vmatprep.subr.bf16.mxu0 0
    %3772 = vmatpush1.bf16.msra.mxu0 0
    %3773 = vmatprep.subr.bf16.mxu0 0
    %3774 = vmatpush1.bf16.msra.mxu0 0
    %3775 = vmatprep.subr.bf16.mxu0 0
    %3776 = vmatpush1.bf16.msra.mxu0 0
    %3777 = vmatprep.subr.bf16.mxu0 0
    %3778 = vmatpush1.bf16.msra.mxu0 0
    %3779 = vmatprep.subr.bf16.mxu0 0
    %3780 = vmatpush1.bf16.msra.mxu0 0
    %3781 = vmatprep.subr.bf16.mxu0 0
    %3782 = vmatpush1.bf16.msra.mxu0 0
    %3783 = vmatprep.mubr.bf16.mxu0 0
    %3784 = vmatmul.mubr.bf16.gmra.mrb[0].mxu0 %v3740
    %v3785 = vpop.f32.mrb[0].mxu0
    %v3786 = vadd.f32 0.0, %v3785
    %v3787 = vpop.f32.mrb[0].mxu0
    %v3788 = vadd.f32 0.0, %v3787
    %v3789 = vpop.f32.mrb[0].mxu0
    %v3790 = vadd.f32 0.0, %v3789
    %v3791 = vpop.f32.mrb[0].mxu0
    %v3792 = vadd.f32 0.0, %v3791
    %3793 = vmatprep.mubr.bf16.mxu0 0
    %3794 = vmatmul.mubr.bf16.gmra.mrb[0].mxu0 %v3743
    %v3795 = vpop.f32.mrb[0].mxu0
    %v3796 = vadd.f32 0.0, %v3795
    %v3797 = vpop.f32.mrb[0].mxu0
    %v3798 = vadd.f32 0.0, %v3797
    %v3799 = vpop.f32.mrb[0].mxu0
    %v3800 = vadd.f32 0.0, %v3799
    %v3801 = vpop.f32.mrb[0].mxu0
    %v3802 = vadd.f32 0.0, %v3801
    %3803 = vmatprep.mubr.bf16.mxu0 0
    %3804 = vmatmul.mubr.bf16.gmra.mrb[0].mxu0 %v3746
    %v3805 = vpop.f32.mrb[0].mxu0
    %v3806 = vadd.f32 0.0, %v3805
    %v3807 = vpop.f32.mrb[0].mxu0
    %v3808 = vadd.f32 0.0, %v3807
    %v3809 = vpop.f32.mrb[0].mxu0
    %v3810 = vadd.f32 0.0, %v3809
    %v3811 = vpop.f32.mrb[0].mxu0
    %v3812 = vadd.f32 0.0, %v3811
    %3813 = vmatprep.mubr.bf16.mxu0 0
    %3814 = vmatmul.mubr.bf16.gmra.mrb[0].mxu0 %v3749
    %v3815 = vpop.f32.mrb[0].mxu0
    %v3816 = vadd.f32 0.0, %v3815
    %v3817 = vpop.f32.mrb[0].mxu0
    %v3818 = vadd.f32 0.0, %v3817
    %v3819 = vpop.f32.mrb[0].mxu0
    %v3820 = vadd.f32 0.0, %v3819
    %v3821 = vpop.f32.mrb[0].mxu0
    %v3822 = vadd.f32 0.0, %v3821
    %3823 = vdwg.mxu0
    %3824 = vmatprep.subr.bf16.mxu0 %v3710
    %3825 = vmatpush1.bf16.msra.mxu0 %v3709
    %3826 = vmatprep.subr.bf16.mxu0 %v3718
    %3827 = vmatpush1.bf16.msra.mxu0 %v3717
    %3828 = vmatprep.subr.bf16.mxu0 0
    %3829 = vmatpush1.bf16.msra.mxu0 0
    %3830 = vmatprep.subr.bf16.mxu0 0
    %3831 = vmatpush1.bf16.msra.mxu0 0
    %3832 = vmatprep.subr.bf16.mxu0 0
    %3833 = vmatpush1.bf16.msra.mxu0 0
    %3834 = vmatprep.subr.bf16.mxu0 0
    %3835 = vmatpush1.bf16.msra.mxu0 0
    %3836 = vmatprep.subr.bf16.mxu0 0
    %3837 = vmatpush1.bf16.msra.mxu0 0
    %3838 = vmatprep.subr.bf16.mxu0 0
    %3839 = vmatpush1.bf16.msra.mxu0 0
    %3840 = vmatprep.subr.bf16.mxu0 0
    %3841 = vmatpush1.bf16.msra.mxu0 0
    %3842 = vmatprep.subr.bf16.mxu0 0
    %3843 = vmatpush1.bf16.msra.mxu0 0
    %3844 = vmatprep.subr.bf16.mxu0 0
    %3845 = vmatpush1.bf16.msra.mxu0 0
    %3846 = vmatprep.subr.bf16.mxu0 0
    %3847 = vmatpush1.bf16.msra.mxu0 0
    %3848 = vmatprep.subr.bf16.mxu0 0
    %3849 = vmatpush1.bf16.msra.mxu0 0
    %3850 = vmatprep.subr.bf16.mxu0 0
    %3851 = vmatpush1.bf16.msra.mxu0 0
    %3852 = vmatprep.subr.bf16.mxu0 0
    %3853 = vmatpush1.bf16.msra.mxu0 0
    %3854 = vmatprep.subr.bf16.mxu0 0
    %3855 = vmatpush1.bf16.msra.mxu0 0
    %3856 = vmatprep.mubr.bf16.mxu0 0
    %3857 = vmatmul.mubr.bf16.gmra.mrb[0].mxu0 %v3740
    %v3858 = vpop.f32.mrb[0].mxu0
    %v3859 = vadd.f32 0.0, %v3858
    %v3860 = vpop.f32.mrb[0].mxu0
    %v3861 = vadd.f32 0.0, %v3860
    %v3862 = vpop.f32.mrb[0].mxu0
    %v3863 = vadd.f32 0.0, %v3862
    %v3864 = vpop.f32.mrb[0].mxu0
    %v3865 = vadd.f32 0.0, %v3864
    %3866 = vmatprep.mubr.bf16.mxu0 0
    %3867 = vmatmul.mubr.bf16.gmra.mrb[0].mxu0 %v3743
    %v3868 = vpop.f32.mrb[0].mxu0
    %v3869 = vadd.f32 0.0, %v3868
    %v3870 = vpop.f32.mrb[0].mxu0
    %v3871 = vadd.f32 0.0, %v3870
    %v3872 = vpop.f32.mrb[0].mxu0
    %v3873 = vadd.f32 0.0, %v3872
    %v3874 = vpop.f32.mrb[0].mxu0
    %v3875 = vadd.f32 0.0, %v3874
    %3876 = vmatprep.mubr.bf16.mxu0 0
    %3877 = vmatmul.mubr.bf16.gmra.mrb[0].mxu0 %v3746
    %v3878 = vpop.f32.mrb[0].mxu0
    %v3879 = vadd.f32 0.0, %v3878
    %v3880 = vpop.f32.mrb[0].mxu0
    %v3881 = vadd.f32 0.0, %v3880
    %v3882 = vpop.f32.mrb[0].mxu0
    %v3883 = vadd.f32 0.0, %v3882
    %v3884 = vpop.f32.mrb[0].mxu0
    %v3885 = vadd.f32 0.0, %v3884
    %3886 = vmatprep.mubr.bf16.mxu0 0
    %3887 = vmatmul.mubr.bf16.gmra.mrb[0].mxu0 %v3749
    %v3888 = vpop.f32.mrb[0].mxu0
    %v3889 = vadd.f32 0.0, %v3888
    %v3890 = vpop.f32.mrb[0].mxu0
    %v3891 = vadd.f32 0.0, %v3890
    %v3892 = vpop.f32.mrb[0].mxu0
    %v3893 = vadd.f32 0.0, %v3892
    %v3894 = vpop.f32.mrb[0].mxu0
    %v3895 = vadd.f32 0.0, %v3894
    %3896 = vdwg.mxu0
    %3897 = vmatprep.subr.bf16.mxu0 %v3712
    %3898 = vmatpush1.bf16.msra.mxu0 %v3711
    %3899 = vmatprep.subr.bf16.mxu0 %v3720
    %3900 = vmatpush1.bf16.msra.mxu0 %v3719
    %3901 = vmatprep.subr.bf16.mxu0 0
    %3902 = vmatpush1.bf16.msra.mxu0 0
    %3903 = vmatprep.subr.bf16.mxu0 0
    %3904 = vmatpush1.bf16.msra.mxu0 0
    %3905 = vmatprep.subr.bf16.mxu0 0
    %3906 = vmatpush1.bf16.msra.mxu0 0
    %3907 = vmatprep.subr.bf16.mxu0 0
    %3908 = vmatpush1.bf16.msra.mxu0 0
    %3909 = vmatprep.subr.bf16.mxu0 0
    %3910 = vmatpush1.bf16.msra.mxu0 0
    %3911 = vmatprep.subr.bf16.mxu0 0
    %3912 = vmatpush1.bf16.msra.mxu0 0
    %3913 = vmatprep.subr.bf16.mxu0 0
    %3914 = vmatpush1.bf16.msra.mxu0 0
    %3915 = vmatprep.subr.bf16.mxu0 0
    %3916 = vmatpush1.bf16.msra.mxu0 0
    %3917 = vmatprep.subr.bf16.mxu0 0
    %3918 = vmatpush1.bf16.msra.mxu0 0
    %3919 = vmatprep.subr.bf16.mxu0 0
    %3920 = vmatpush1.bf16.msra.mxu0 0
    %3921 = vmatprep.subr.bf16.mxu0 0
    %3922 = vmatpush1.bf16.msra.mxu0 0
    %3923 = vmatprep.subr.bf16.mxu0 0
    %3924 = vmatpush1.bf16.msra.mxu0 0
    %3925 = vmatprep.subr.bf16.mxu0 0
    %3926 = vmatpush1.bf16.msra.mxu0 0
    %3927 = vmatprep.subr.bf16.mxu0 0
    %3928 = vmatpush1.bf16.msra.mxu0 0
    %3929 = vmatprep.mubr.bf16.mxu0 0
    %3930 = vmatmul.mubr.bf16.gmra.mrb[0].mxu0 %v3740
    %v3931 = vpop.f32.mrb[0].mxu0
    %v3932 = vadd.f32 0.0, %v3931
    %v3933 = vpop.f32.mrb[0].mxu0
    %v3934 = vadd.f32 0.0, %v3933
    %v3935 = vpop.f32.mrb[0].mxu0
    %v3936 = vadd.f32 0.0, %v3935
    %v3937 = vpop.f32.mrb[0].mxu0
    %v3938 = vadd.f32 0.0, %v3937
    %3939 = vmatprep.mubr.bf16.mxu0 0
    %3940 = vmatmul.mubr.bf16.gmra.mrb[0].mxu0 %v3743
    %v3941 = vpop.f32.mrb[0].mxu0
    %v3942 = vadd.f32 0.0, %v3941
    %v3943 = vpop.f32.mrb[0].mxu0
    %v3944 = vadd.f32 0.0, %v3943
    %v3945 = vpop.f32.mrb[0].mxu0
    %v3946 = vadd.f32 0.0, %v3945
    %v3947 = vpop.f32.mrb[0].mxu0
    %v3948 = vadd.f32 0.0, %v3947
    %3949 = vmatprep.mubr.bf16.mxu0 0
    %3950 = vmatmul.mubr.bf16.gmra.mrb[0].mxu0 %v3746
    %v3951 = vpop.f32.mrb[0].mxu0
    %v3952 = vadd.f32 0.0, %v3951
    %v3953 = vpop.f32.mrb[0].mxu0
    %v3954 = vadd.f32 0.0, %v3953
    %v3955 = vpop.f32.mrb[0].mxu0
    %v3956 = vadd.f32 0.0, %v3955
    %v3957 = vpop.f32.mrb[0].mxu0
    %v3958 = vadd.f32 0.0, %v3957
    %3959 = vmatprep.mubr.bf16.mxu0 0
    %3960 = vmatmul.mubr.bf16.gmra.mrb[0].mxu0 %v3749
    %v3961 = vpop.f32.mrb[0].mxu0
    %v3962 = vadd.f32 0.0, %v3961
    %v3963 = vpop.f32.mrb[0].mxu0
    %v3964 = vadd.f32 0.0, %v3963
    %v3965 = vpop.f32.mrb[0].mxu0
    %v3966 = vadd.f32 0.0, %v3965
    %v3967 = vpop.f32.mrb[0].mxu0
    %v3968 = vadd.f32 0.0, %v3967
    %3969 = vdwg.mxu0
    %3970 = vmatprep.subr.bf16.mxu0 %v3714
    %3971 = vmatpush1.bf16.msra.mxu0 %v3713
    %3972 = vmatprep.subr.bf16.mxu0 %v3722
    %3973 = vmatpush1.bf16.msra.mxu0 %v3721
    %3974 = vmatprep.subr.bf16.mxu0 0
    %3975 = vmatpush1.bf16.msra.mxu0 0
    %3976 = vmatprep.subr.bf16.mxu0 0
    %3977 = vmatpush1.bf16.msra.mxu0 0
    %3978 = vmatprep.subr.bf16.mxu0 0
    %3979 = vmatpush1.bf16.msra.mxu0 0
    %3980 = vmatprep.subr.bf16.mxu0 0
    %3981 = vmatpush1.bf16.msra.mxu0 0
    %3982 = vmatprep.subr.bf16.mxu0 0
    %3983 = vmatpush1.bf16.msra.mxu0 0
    %3984 = vmatprep.subr.bf16.mxu0 0
    %3985 = vmatpush1.bf16.msra.mxu0 0
    %3986 = vmatprep.subr.bf16.mxu0 0
    %3987 = vmatpush1.bf16.msra.mxu0 0
    %3988 = vmatprep.subr.bf16.mxu0 0
    %3989 = vmatpush1.bf16.msra.mxu0 0
    %3990 = vmatprep.subr.bf16.mxu0 0
    %3991 = vmatpush1.bf16.msra.mxu0 0
    %3992 = vmatprep.subr.bf16.mxu0 0
    %3993 = vmatpush1.bf16.msra.mxu0 0
    %3994 = vmatprep.subr.bf16.mxu0 0
    %3995 = vmatpush1.bf16.msra.mxu0 0
    %3996 = vmatprep.subr.bf16.mxu0 0
    %3997 = vmatpush1.bf16.msra.mxu0 0
    %3998 = vmatprep.subr.bf16.mxu0 0
    %3999 = vmatpush1.bf16.msra.mxu0 0
    %4000 = vmatprep.subr.bf16.mxu0 0
    %4001 = vmatpush1.bf16.msra.mxu0 0
    %4002 = vmatprep.mubr.bf16.mxu0 0
    %4003 = vmatmul.mubr.bf16.gmra.mrb[0].mxu0 %v3740
    %v4004 = vpop.f32.mrb[0].mxu0
    %v4005 = vadd.f32 0.0, %v4004
    %v4006 = vpop.f32.mrb[0].mxu0
    %v4007 = vadd.f32 0.0, %v4006
    %v4008 = vpop.f32.mrb[0].mxu0
    %v4009 = vadd.f32 0.0, %v4008
    %v4010 = vpop.f32.mrb[0].mxu0
    %v4011 = vadd.f32 0.0, %v4010
    %4012 = vmatprep.mubr.bf16.mxu0 0
    %4013 = vmatmul.mubr.bf16.gmra.mrb[0].mxu0 %v3743
    %v4014 = vpop.f32.mrb[0].mxu0
    %v4015 = vadd.f32 0.0, %v4014
    %v4016 = vpop.f32.mrb[0].mxu0
    %v4017 = vadd.f32 0.0, %v4016
    %v4018 = vpop.f32.mrb[0].mxu0
    %v4019 = vadd.f32 0.0, %v4018
    %v4020 = vpop.f32.mrb[0].mxu0
    %v4021 = vadd.f32 0.0, %v4020
    %4022 = vmatprep.mubr.bf16.mxu0 0
    %4023 = vmatmul.mubr.bf16.gmra.mrb[0].mxu0 %v3746
    %v4024 = vpop.f32.mrb[0].mxu0
    %v4025 = vadd.f32 0.0, %v4024
    %v4026 = vpop.f32.mrb[0].mxu0
    %v4027 = vadd.f32 0.0, %v4026
    %v4028 = vpop.f32.mrb[0].mxu0
    %v4029 = vadd.f32 0.0, %v4028
    %v4030 = vpop.f32.mrb[0].mxu0
    %v4031 = vadd.f32 0.0, %v4030
    %4032 = vmatprep.mubr.bf16.mxu0 0
    %4033 = vmatmul.mubr.bf16.gmra.mrb[0].mxu0 %v3749
    %v4034 = vpop.f32.mrb[0].mxu0
    %v4035 = vadd.f32 0.0, %v4034
    %v4036 = vpop.f32.mrb[0].mxu0
    %v4037 = vadd.f32 0.0, %v4036
    %v4038 = vpop.f32.mrb[0].mxu0
    %v4039 = vadd.f32 0.0, %v4038
    %v4040 = vpop.f32.mrb[0].mxu0
    %v4041 = vadd.f32 0.0, %v4040
    %4042 = vdwg.mxu0
    %v4043 = vsub.f32 %v3786, %v3942
    %v4044 = vsub.f32 %v3788, %v3944
    %v4045 = vsub.f32 %v3859, %v4015
    %v4046 = vsub.f32 %v3861, %v4017
    %v4047 = vsub.f32 %v3790, %v3946
    %v4048 = vsub.f32 %v3792, %v3948
    %v4049 = vsub.f32 %v3863, %v4019
    %v4050 = vsub.f32 %v3865, %v4021
    %v4051 = vadd.f32 %v3932, %v3796
    %v4052 = vadd.f32 %v3934, %v3798
    %v4053 = vadd.f32 %v4005, %v3869
    %v4054 = vadd.f32 %v4007, %v3871
    %v4055 = vadd.f32 %v3936, %v3800
    %v4056 = vadd.f32 %v3938, %v3802
    %v4057 = vadd.f32 %v4009, %v3873
    %v4058 = vadd.f32 %v4011, %v3875
    %v4059 = vsub.f32 %v3806, %v3962
    %v4060 = vsub.f32 %v3808, %v3964
    %v4061 = vsub.f32 %v3879, %v4035
    %v4062 = vsub.f32 %v3881, %v4037
    %v4063 = vsub.f32 %v3810, %v3966
    %v4064 = vsub.f32 %v3812, %v3968
    %v4065 = vsub.f32 %v3883, %v4039
    %v4066 = vsub.f32 %v3885, %v4041
    %v4067 = vadd.f32 %v3952, %v3816
    %v4068 = vadd.f32 %v3954, %v3818
    %v4069 = vadd.f32 %v4025, %v3889
    %v4070 = vadd.f32 %v4027, %v3891
    %v4071 = vadd.f32 %v3956, %v3820
    %v4072 = vadd.f32 %v3958, %v3822
    %v4073 = vadd.f32 %v4029, %v3893
    %v4074 = vadd.f32 %v4031, %v3895
    %v4075 = vpack.c.bf16 %v4047, %v4043
    %v4076 = vpack.c.bf16 %v4048, %v4044
    %v4077 = vpack.c.bf16 %v4049, %v4045
    %v4078 = vpack.c.bf16 %v4050, %v4046
    %v4079 = vpack.c.bf16 %v4055, %v4051
    %v4080 = vpack.c.bf16 %v4056, %v4052
    %v4081 = vpack.c.bf16 %v4057, %v4053
    %v4082 = vpack.c.bf16 %v4058, %v4054
    %v4083 = vpack.c.bf16 %v4063, %v4059
    %v4084 = vpack.c.bf16 %v4064, %v4060
    %v4085 = vpack.c.bf16 %v4065, %v4061
    %v4086 = vpack.c.bf16 %v4066, %v4062
    %v4087 = vpack.c.bf16 %v4071, %v4067
    %v4088 = vpack.c.bf16 %v4072, %v4068
    %v4089 = vpack.c.bf16 %v4073, %v4069
    %v4090 = vpack.c.bf16 %v4074, %v4070
    %v4091 = vmul.bf16 %v4075, %v1070
    %v4092 = vmul.bf16 %v4076, %v1071
    %v4093 = vmul.bf16 %v4077, %v1072
    %v4094 = vmul.bf16 %v4078, %v1073
    %v4095 = vmul.bf16 %v4079, %v1074
    %v4096 = vmul.bf16 %v4080, %v1075
    %v4097 = vmul.bf16 %v4081, %v1076
    %v4098 = vmul.bf16 %v4082, %v1077
    %v4099 = vmul.bf16 %v4083, %v1078
    %v4100 = vmul.bf16 %v4084, %v1079
    %v4101 = vmul.bf16 %v4085, %v1080
    %v4102 = vmul.bf16 %v4086, %v1081
    %v4103 = vmul.bf16 %v4087, %v1082
    %v4104 = vmul.bf16 %v4088, %v1083
    %v4105 = vmul.bf16 %v4089, %v1084
    %v4106 = vmul.bf16 %v4090, %v1085
    %4107 = vmatprep.subr.bf16.mxu0 0
    %4108 = vmatpush1.bf16.msra.mxu0 %v1246
    %4109 = vmatprep.subr.bf16.mxu0 0
    %4110 = vmatpush1.bf16.msra.mxu0 %v1247
    %4111 = vmatprep.subr.bf16.mxu0 0
    %4112 = vmatpush1.bf16.msra.mxu0 %v1248
    %4113 = vmatprep.subr.bf16.mxu0 0
    %4114 = vmatpush1.bf16.msra.mxu0 %v1249
    %4115 = vmatprep.subr.bf16.mxu0 0
    %4116 = vmatpush1.bf16.msra.mxu0 %v1250
    %4117 = vmatprep.subr.bf16.mxu0 0
    %4118 = vmatpush1.bf16.msra.mxu0 %v1251
    %4119 = vmatprep.subr.bf16.mxu0 0
    %4120 = vmatpush1.bf16.msra.mxu0 %v1252
    %4121 = vmatprep.subr.bf16.mxu0 0
    %4122 = vmatpush1.bf16.msra.mxu0 %v1253
    %4123 = vmatprep.subr.bf16.mxu0 0
    %4124 = vmatpush1.bf16.msra.mxu0 %v1254
    %4125 = vmatprep.subr.bf16.mxu0 0
    %4126 = vmatpush1.bf16.msra.mxu0 %v1255
    %4127 = vmatprep.subr.bf16.mxu0 0
    %4128 = vmatpush1.bf16.msra.mxu0 %v1256
    %4129 = vmatprep.subr.bf16.mxu0 0
    %4130 = vmatpush1.bf16.msra.mxu0 %v1257
    %4131 = vmatprep.subr.bf16.mxu0 0
    %4132 = vmatpush1.bf16.msra.mxu0 %v1258
    %4133 = vmatprep.subr.bf16.mxu0 0
    %4134 = vmatpush1.bf16.msra.mxu0 %v1259
    %4135 = vmatprep.subr.bf16.mxu0 0
    %4136 = vmatpush1.bf16.msra.mxu0 %v1260
    %4137 = vmatprep.subr.bf16.mxu0 0
    %4138 = vmatpush1.bf16.msra.mxu0 %v1261
    %4139 = vmatprep.mubr.bf16.mxu0 %v4092
    %4140 = vmatmul.mubr.bf16.gmra.mrb[0].mxu0 %v4091
    %v4141 = vpop.f32.mrb[0].mxu0
    %v4142 = vadd.f32 0.0, %v4141
    %v4143 = vpop.f32.mrb[0].mxu0
    %v4144 = vpop.f32.mrb[0].mxu0
    %v4145 = vadd.f32 0.0, %v4144
    %v4146 = vpop.f32.mrb[0].mxu0
    %4147 = vmatprep.mubr.bf16.mxu0 %v4096
    %4148 = vmatmul.mubr.bf16.gmra.mrb[0].mxu0 %v4095
    %v4149 = vpop.f32.mrb[0].mxu0
    %v4150 = vadd.f32 0.0, %v4149
    %v4151 = vpop.f32.mrb[0].mxu0
    %v4152 = vpop.f32.mrb[0].mxu0
    %v4153 = vadd.f32 0.0, %v4152
    %v4154 = vpop.f32.mrb[0].mxu0
    %4155 = vmatprep.mubr.bf16.mxu0 %v4100
    %4156 = vmatmul.mubr.bf16.gmra.mrb[0].mxu0 %v4099
    %v4157 = vpop.f32.mrb[0].mxu0
    %v4158 = vadd.f32 0.0, %v4157
    %v4159 = vpop.f32.mrb[0].mxu0
    %v4160 = vpop.f32.mrb[0].mxu0
    %v4161 = vadd.f32 0.0, %v4160
    %v4162 = vpop.f32.mrb[0].mxu0
    %4163 = vmatprep.mubr.bf16.mxu0 %v4104
    %4164 = vmatmul.mubr.bf16.gmra.mrb[0].mxu0 %v4103
    %v4165 = vpop.f32.mrb[0].mxu0
    %v4166 = vadd.f32 0.0, %v4165
    %v4167 = vpop.f32.mrb[0].mxu0
    %v4168 = vpop.f32.mrb[0].mxu0
    %v4169 = vadd.f32 0.0, %v4168
    %v4170 = vpop.f32.mrb[0].mxu0
    %4171 = vdwg.mxu0
    %4172 = vmatprep.subr.bf16.mxu0 0
    %4173 = vmatpush1.bf16.msra.mxu0 %v1262
    %4174 = vmatprep.subr.bf16.mxu0 0
    %4175 = vmatpush1.bf16.msra.mxu0 %v1263
    %4176 = vmatprep.subr.bf16.mxu0 0
    %4177 = vmatpush1.bf16.msra.mxu0 %v1264
    %4178 = vmatprep.subr.bf16.mxu0 0
    %4179 = vmatpush1.bf16.msra.mxu0 %v1265
    %4180 = vmatprep.subr.bf16.mxu0 0
    %4181 = vmatpush1.bf16.msra.mxu0 %v1266
    %4182 = vmatprep.subr.bf16.mxu0 0
    %4183 = vmatpush1.bf16.msra.mxu0 %v1267
    %4184 = vmatprep.subr.bf16.mxu0 0
    %4185 = vmatpush1.bf16.msra.mxu0 %v1268
    %4186 = vmatprep.subr.bf16.mxu0 0
    %4187 = vmatpush1.bf16.msra.mxu0 %v1269
    %4188 = vmatprep.subr.bf16.mxu0 0
    %4189 = vmatpush1.bf16.msra.mxu0 %v1270
    %4190 = vmatprep.subr.bf16.mxu0 0
    %4191 = vmatpush1.bf16.msra.mxu0 %v1271
    %4192 = vmatprep.subr.bf16.mxu0 0
    %4193 = vmatpush1.bf16.msra.mxu0 %v1272
    %4194 = vmatprep.subr.bf16.mxu0 0
    %4195 = vmatpush1.bf16.msra.mxu0 %v1273
    %4196 = vmatprep.subr.bf16.mxu0 0
    %4197 = vmatpush1.bf16.msra.mxu0 %v1274
    %4198 = vmatprep.subr.bf16.mxu0 0
    %4199 = vmatpush1.bf16.msra.mxu0 %v1275
    %4200 = vmatprep.subr.bf16.mxu0 0
    %4201 = vmatpush1.bf16.msra.mxu0 %v1276
    %4202 = vmatprep.subr.bf16.mxu0 0
    %4203 = vmatpush1.bf16.msra.mxu0 %v1277
    %4204 = vmatprep.mubr.bf16.mxu0 %v4094
    %4205 = vmatmul.mubr.bf16.gmra.mrb[0].mxu0 %v4093
    %v4206 = vpop.f32.mrb[0].mxu0
    %v4207 = vadd.f32 %v4142, %v4206
    %v4208 = vpop.f32.mrb[0].mxu0
    %v4209 = vpop.f32.mrb[0].mxu0
    %v4210 = vadd.f32 %v4145, %v4209
    %v4211 = vpop.f32.mrb[0].mxu0
    %4212 = vmatprep.mubr.bf16.mxu0 %v4098
    %4213 = vmatmul.mubr.bf16.gmra.mrb[0].mxu0 %v4097
    %v4214 = vpop.f32.mrb[0].mxu0
    %v4215 = vadd.f32 %v4150, %v4214
    %v4216 = vpop.f32.mrb[0].mxu0
    %v4217 = vpop.f32.mrb[0].mxu0
    %v4218 = vadd.f32 %v4153, %v4217
    %v4219 = vpop.f32.mrb[0].mxu0
    %4220 = vmatprep.mubr.bf16.mxu0 %v4102
    %4221 = vmatmul.mubr.bf16.gmra.mrb[0].mxu0 %v4101
    %v4222 = vpop.f32.mrb[0].mxu0
    %v4223 = vadd.f32 %v4158, %v4222
    %v4224 = vpop.f32.mrb[0].mxu0
    %v4225 = vpop.f32.mrb[0].mxu0
    %v4226 = vadd.f32 %v4161, %v4225
    %v4227 = vpop.f32.mrb[0].mxu0
    %4228 = vmatprep.mubr.bf16.mxu0 %v4106
    %4229 = vmatmul.mubr.bf16.gmra.mrb[0].mxu0 %v4105
    %v4230 = vpop.f32.mrb[0].mxu0
    %v4231 = vadd.f32 %v4166, %v4230
    %v4232 = vpop.f32.mrb[0].mxu0
    %v4233 = vpop.f32.mrb[0].mxu0
    %v4234 = vadd.f32 %v4169, %v4233
    %v4235 = vpop.f32.mrb[0].mxu0
    %4236 = vdwg.mxu0
    %v4237 = vpack.c.bf16 %v4210, %v4207
    %v4238 = vpack.c.bf16 %v4218, %v4215
    %v4239 = vpack.c.bf16 %v4226, %v4223
    %v4240 = vpack.c.bf16 %v4234, %v4231
    %s4241 = scalar_lea.vmem [#allocation7], 32
    %v4242 = vld [vmem:[%s4241] sm:$0xf]
    %v4243 = vld [vmem:[%s4241 + $0x4] sm:$0xf]
    %v4244 = vld [vmem:[%s4241 + $0x8] sm:$0xf]
    %v4245 = vld [vmem:[%s4241 + $0xc] sm:$0xf]
    %v4250 = vunpack.c.l.b16 %v4242
    %v4251 = vunpack.c.l.b16 %v4243
    %v4252 = vunpack.c.l.b16 %v4244
    %v4253 = vunpack.c.l.b16 %v4245
    %v4254 = vpack.c.b16 %v4251, %v4250
    %v4255 = vpack.c.b16 %v4253, %v4252
    %v4259 = vsel %vm669, %v3565, 0
    %v4262 = vsel %vm669, %v3566, 0
    %v4265 = vsel %vm669, %v3567, 0
    %v4268 = vsel %vm669, %v3568, 0
    %v4271 = vsel %vm669, %v3569, 0
    %v4274 = vsel %vm669, %v3570, 0
    %v4277 = vsel %vm669, %v3571, 0
    %v4280 = vsel %vm669, %v3572, 0
    %4282 = vmatprep.subr.bf16.mxu0 0
    %4283 = vmatpush1.bf16.msra.mxu0 %v4254
    %4284 = vmatprep.subr.bf16.mxu0 0
    %4285 = vmatpush1.bf16.msra.mxu0 %v4255
    %4286 = vmatprep.subr.bf16.mxu0 0
    %4287 = vmatpush1.bf16.msra.mxu0 0
    %4288 = vmatprep.subr.bf16.mxu0 0
    %4289 = vmatpush1.bf16.msra.mxu0 0
    %4290 = vmatprep.subr.bf16.mxu0 0
    %4291 = vmatpush1.bf16.msra.mxu0 0
    %4292 = vmatprep.subr.bf16.mxu0 0
    %4293 = vmatpush1.bf16.msra.mxu0 0
    %4294 = vmatprep.subr.bf16.mxu0 0
    %4295 = vmatpush1.bf16.msra.mxu0 0
    %4296 = vmatprep.subr.bf16.mxu0 0
    %4297 = vmatpush1.bf16.msra.mxu0 0
    %4298 = vmatprep.subr.bf16.mxu0 0
    %4299 = vmatpush1.bf16.msra.mxu0 0
    %4300 = vmatprep.subr.bf16.mxu0 0
    %4301 = vmatpush1.bf16.msra.mxu0 0
    %4302 = vmatprep.subr.bf16.mxu0 0
    %4303 = vmatpush1.bf16.msra.mxu0 0
    %4304 = vmatprep.subr.bf16.mxu0 0
    %4305 = vmatpush1.bf16.msra.mxu0 0
    %4306 = vmatprep.subr.bf16.mxu0 0
    %4307 = vmatpush1.bf16.msra.mxu0 0
    %4308 = vmatprep.subr.bf16.mxu0 0
    %4309 = vmatpush1.bf16.msra.mxu0 0
    %4310 = vmatprep.subr.bf16.mxu0 0
    %4311 = vmatpush1.bf16.msra.mxu0 0
    %4312 = vmatprep.subr.bf16.mxu0 0
    %4313 = vmatpush1.bf16.msra.mxu0 0
    %4314 = vmatprep.mubr.bf16.mxu0 0
    %4315 = vmatmul.mubr.bf16.gmra.mrb[0].mxu0 %v4259
    %v4316 = vpop.f32.mrb[0].mxu0
    %v4317 = vadd.f32 0.0, %v4316
    %v4318 = vpop.f32.mrb[0].mxu0
    %v4319 = vpop.f32.mrb[0].mxu0
    %v4320 = vadd.f32 0.0, %v4319
    %v4321 = vpop.f32.mrb[0].mxu0
    %4322 = vmatprep.mubr.bf16.mxu0 0
    %4323 = vmatmul.mubr.bf16.gmra.mrb[0].mxu0 %v4262
    %v4324 = vpop.f32.mrb[0].mxu0
    %v4325 = vadd.f32 0.0, %v4324
    %v4326 = vpop.f32.mrb[0].mxu0
    %v4327 = vpop.f32.mrb[0].mxu0
    %v4328 = vadd.f32 0.0, %v4327
    %v4329 = vpop.f32.mrb[0].mxu0
    %4330 = vmatprep.mubr.bf16.mxu0 0
    %4331 = vmatmul.mubr.bf16.gmra.mrb[0].mxu0 %v4265
    %v4332 = vpop.f32.mrb[0].mxu0
    %v4333 = vadd.f32 0.0, %v4332
    %v4334 = vpop.f32.mrb[0].mxu0
    %v4335 = vpop.f32.mrb[0].mxu0
    %v4336 = vadd.f32 0.0, %v4335
    %v4337 = vpop.f32.mrb[0].mxu0
    %4338 = vmatprep.mubr.bf16.mxu0 0
    %4339 = vmatmul.mubr.bf16.gmra.mrb[0].mxu0 %v4268
    %v4340 = vpop.f32.mrb[0].mxu0
    %v4341 = vadd.f32 0.0, %v4340
    %v4342 = vpop.f32.mrb[0].mxu0
    %v4343 = vpop.f32.mrb[0].mxu0
    %v4344 = vadd.f32 0.0, %v4343
    %v4345 = vpop.f32.mrb[0].mxu0
    %4346 = vmatprep.mubr.bf16.mxu0 0
    %4347 = vmatmul.mubr.bf16.gmra.mrb[0].mxu0 %v4271
    %v4348 = vpop.f32.mrb[0].mxu0
    %v4349 = vadd.f32 0.0, %v4348
    %v4350 = vpop.f32.mrb[0].mxu0
    %v4351 = vpop.f32.mrb[0].mxu0
    %v4352 = vadd.f32 0.0, %v4351
    %v4353 = vpop.f32.mrb[0].mxu0
    %4354 = vmatprep.mubr.bf16.mxu0 0
    %4355 = vmatmul.mubr.bf16.gmra.mrb[0].mxu0 %v4274
    %v4356 = vpop.f32.mrb[0].mxu0
    %v4357 = vadd.f32 0.0, %v4356
    %v4358 = vpop.f32.mrb[0].mxu0
    %v4359 = vpop.f32.mrb[0].mxu0
    %v4360 = vadd.f32 0.0, %v4359
    %v4361 = vpop.f32.mrb[0].mxu0
    %4362 = vmatprep.mubr.bf16.mxu0 0
    %4363 = vmatmul.mubr.bf16.gmra.mrb[0].mxu0 %v4277
    %v4364 = vpop.f32.mrb[0].mxu0
    %v4365 = vadd.f32 0.0, %v4364
    %v4366 = vpop.f32.mrb[0].mxu0
    %v4367 = vpop.f32.mrb[0].mxu0
    %v4368 = vadd.f32 0.0, %v4367
    %v4369 = vpop.f32.mrb[0].mxu0
    %4370 = vmatprep.mubr.bf16.mxu0 0
    %4371 = vmatmul.mubr.bf16.gmra.mrb[0].mxu0 %v4280
    %v4372 = vpop.f32.mrb[0].mxu0
    %v4373 = vadd.f32 0.0, %v4372
    %v4374 = vpop.f32.mrb[0].mxu0
    %v4375 = vpop.f32.mrb[0].mxu0
    %v4376 = vadd.f32 0.0, %v4375
    %v4377 = vpop.f32.mrb[0].mxu0
    %4378 = vdwg.mxu0
    %4379 = vmatprep.subr.bf16.mxu0 0
    %4380 = vmatpush1.bf16.msra.mxu0 %v4237
    %4381 = vmatprep.subr.bf16.mxu0 0
    %4382 = vmatpush1.bf16.msra.mxu0 %v4238
    %4383 = vmatprep.subr.bf16.mxu0 0
    %4384 = vmatpush1.bf16.msra.mxu0 %v4239
    %4385 = vmatprep.subr.bf16.mxu0 0
    %4386 = vmatpush1.bf16.msra.mxu0 %v4240
    %4387 = vmatprep.subr.bf16.mxu0 0
    %4388 = vmatpush1.bf16.msra.mxu0 0
    %4389 = vmatprep.subr.bf16.mxu0 0
    %4390 = vmatpush1.bf16.msra.mxu0 0
    %4391 = vmatprep.subr.bf16.mxu0 0
    %4392 = vmatpush1.bf16.msra.mxu0 0
    %4393 = vmatprep.subr.bf16.mxu0 0
    %4394 = vmatpush1.bf16.msra.mxu0 0
    %4395 = vmatprep.subr.bf16.mxu0 0
    %4396 = vmatpush1.bf16.msra.mxu0 0
    %4397 = vmatprep.subr.bf16.mxu0 0
    %4398 = vmatpush1.bf16.msra.mxu0 0
    %4399 = vmatprep.subr.bf16.mxu0 0
    %4400 = vmatpush1.bf16.msra.mxu0 0
    %4401 = vmatprep.subr.bf16.mxu0 0
    %4402 = vmatpush1.bf16.msra.mxu0 0
    %4403 = vmatprep.subr.bf16.mxu0 0
    %4404 = vmatpush1.bf16.msra.mxu0 0
    %4405 = vmatprep.subr.bf16.mxu0 0
    %4406 = vmatpush1.bf16.msra.mxu0 0
    %4407 = vmatprep.subr.bf16.mxu0 0
    %4408 = vmatpush1.bf16.msra.mxu0 0
    %4409 = vmatprep.subr.bf16.mxu0 0
    %4410 = vmatpush1.bf16.msra.mxu0 0
    %4411 = vmatprep.mubr.bf16.mxu0 0
    %4412 = vmatmul.mubr.bf16.gmra.mrb[0].mxu0 %v1623
    %v4413 = vpop.f32.mrb[0].mxu0
    %v4414 = vadd.f32 %v4317, %v4413
    %v4415 = vpop.f32.mrb[0].mxu0
    %v4416 = vpop.f32.mrb[0].mxu0
    %v4417 = vadd.f32 %v4320, %v4416
    %v4418 = vpop.f32.mrb[0].mxu0
    %4419 = vmatprep.mubr.bf16.mxu0 0
    %4420 = vmatmul.mubr.bf16.gmra.mrb[0].mxu0 %v1626
    %v4421 = vpop.f32.mrb[0].mxu0
    %v4422 = vadd.f32 %v4325, %v4421
    %v4423 = vpop.f32.mrb[0].mxu0
    %v4424 = vpop.f32.mrb[0].mxu0
    %v4425 = vadd.f32 %v4328, %v4424
    %v4426 = vpop.f32.mrb[0].mxu0
    %4427 = vmatprep.mubr.bf16.mxu0 0
    %4428 = vmatmul.mubr.bf16.gmra.mrb[0].mxu0 %v1629
    %v4429 = vpop.f32.mrb[0].mxu0
    %v4430 = vadd.f32 %v4333, %v4429
    %v4431 = vpop.f32.mrb[0].mxu0
    %v4432 = vpop.f32.mrb[0].mxu0
    %v4433 = vadd.f32 %v4336, %v4432
    %v4434 = vpop.f32.mrb[0].mxu0
    %4435 = vmatprep.mubr.bf16.mxu0 0
    %4436 = vmatmul.mubr.bf16.gmra.mrb[0].mxu0 %v1632
    %v4437 = vpop.f32.mrb[0].mxu0
    %v4438 = vadd.f32 %v4341, %v4437
    %v4439 = vpop.f32.mrb[0].mxu0
    %v4440 = vpop.f32.mrb[0].mxu0
    %v4441 = vadd.f32 %v4344, %v4440
    %v4442 = vpop.f32.mrb[0].mxu0
    %4443 = vmatprep.mubr.bf16.mxu0 0
    %4444 = vmatmul.mubr.bf16.gmra.mrb[0].mxu0 %v1635
    %v4445 = vpop.f32.mrb[0].mxu0
    %v4446 = vadd.f32 %v4349, %v4445
    %v4447 = vpop.f32.mrb[0].mxu0
    %v4448 = vpop.f32.mrb[0].mxu0
    %v4449 = vadd.f32 %v4352, %v4448
    %v4450 = vpop.f32.mrb[0].mxu0
    %4451 = vmatprep.mubr.bf16.mxu0 0
    %4452 = vmatmul.mubr.bf16.gmra.mrb[0].mxu0 %v1638
    %v4453 = vpop.f32.mrb[0].mxu0
    %v4454 = vadd.f32 %v4357, %v4453
    %v4455 = vpop.f32.mrb[0].mxu0
    %v4456 = vpop.f32.mrb[0].mxu0
    %v4457 = vadd.f32 %v4360, %v4456
    %v4458 = vpop.f32.mrb[0].mxu0
    %4459 = vmatprep.mubr.bf16.mxu0 0
    %4460 = vmatmul.mubr.bf16.gmra.mrb[0].mxu0 %v1641
    %v4461 = vpop.f32.mrb[0].mxu0
    %v4462 = vadd.f32 %v4365, %v4461
    %v4463 = vpop.f32.mrb[0].mxu0
    %v4464 = vpop.f32.mrb[0].mxu0
    %v4465 = vadd.f32 %v4368, %v4464
    %v4466 = vpop.f32.mrb[0].mxu0
    %4467 = vmatprep.mubr.bf16.mxu0 0
    %4468 = vmatmul.mubr.bf16.gmra.mrb[0].mxu0 %v1644
    %v4469 = vpop.f32.mrb[0].mxu0
    %v4470 = vadd.f32 %v4373, %v4469
    %v4471 = vpop.f32.mrb[0].mxu0
    %v4472 = vpop.f32.mrb[0].mxu0
    %v4473 = vadd.f32 %v4376, %v4472
    %v4474 = vpop.f32.mrb[0].mxu0
    %4475 = vdwg.mxu0
    %s4476 = scalar_lea.vmem %s9, 2
    %v4477 = vld [vmem:[%s4476] sm:$0x1]
    %v4479 = vlaneseq
    %v4480 = vshrl.u32 %v4479, 7
    %v4481 = vsub.s32 0, %v4480
    %v4482 = vrot.slane %v4477, %v4481
    %v4484 = vadd.f32 %v4414, %v4482
    %v4485 = vadd.f32 %v4417, %v4482
    %v4486 = vadd.f32 %v4422, %v4482
    %v4487 = vadd.f32 %v4425, %v4482
    %v4488 = vadd.f32 %v4430, %v4482
    %v4489 = vadd.f32 %v4433, %v4482
    %v4490 = vadd.f32 %v4438, %v4482
    %v4491 = vadd.f32 %v4441, %v4482
    %v4492 = vadd.f32 %v4446, %v4482
    %v4493 = vadd.f32 %v4449, %v4482
    %v4494 = vadd.f32 %v4454, %v4482
    %v4495 = vadd.f32 %v4457, %v4482
    %v4496 = vadd.f32 %v4462, %v4482
    %v4497 = vadd.f32 %v4465, %v4482
    %v4498 = vadd.f32 %v4470, %v4482
    %v4499 = vadd.f32 %v4473, %v4482
    %v4500 = vmul.f32 %v4484, 0.5
    %v4501 = vmul.f32 %v4485, 0.5
    %v4502 = vmul.f32 %v4486, 0.5
    %v4503 = vmul.f32 %v4487, 0.5
    %v4504 = vmul.f32 %v4488, 0.5
    %v4505 = vmul.f32 %v4489, 0.5
    %v4506 = vmul.f32 %v4490, 0.5
    %v4507 = vmul.f32 %v4491, 0.5
    %v4508 = vmul.f32 %v4492, 0.5
    %v4509 = vmul.f32 %v4493, 0.5
    %v4510 = vmul.f32 %v4494, 0.5
    %v4511 = vmul.f32 %v4495, 0.5
    %v4512 = vmul.f32 %v4496, 0.5
    %v4513 = vmul.f32 %v4497, 0.5
    %v4514 = vmul.f32 %v4498, 0.5
    %v4515 = vmul.f32 %v4499, 0.5
    %v4516 = vmul.f32 %v4484, 0.70710677
    %v4517 = vmul.f32 %v4485, 0.70710677
    %v4518 = vmul.f32 %v4486, 0.70710677
    %v4519 = vmul.f32 %v4487, 0.70710677
    %v4520 = vmul.f32 %v4488, 0.70710677
    %v4521 = vmul.f32 %v4489, 0.70710677
    %v4522 = vmul.f32 %v4490, 0.70710677
    %v4523 = vmul.f32 %v4491, 0.70710677
    %v4524 = vmul.f32 %v4492, 0.70710677
    %v4525 = vmul.f32 %v4493, 0.70710677
    %v4526 = vmul.f32 %v4494, 0.70710677
    %v4527 = vmul.f32 %v4495, 0.70710677
    %v4528 = vmul.f32 %v4496, 0.70710677
    %v4529 = vmul.f32 %v4497, 0.70710677
    %v4530 = vmul.f32 %v4498, 0.70710677
    %v4531 = vmul.f32 %v4499, 0.70710677
    %vm4532 = vcmp.ge.f32.partialorder %v4516, 0.0
    %vm4533 = vcmp.ge.f32.partialorder %v4517, 0.0
    %vm4534 = vcmp.ge.f32.partialorder %v4518, 0.0
    %vm4535 = vcmp.ge.f32.partialorder %v4519, 0.0
    %vm4536 = vcmp.ge.f32.partialorder %v4520, 0.0
    %vm4537 = vcmp.ge.f32.partialorder %v4521, 0.0
    %vm4538 = vcmp.ge.f32.partialorder %v4522, 0.0
    %vm4539 = vcmp.ge.f32.partialorder %v4523, 0.0
    %vm4540 = vcmp.ge.f32.partialorder %v4524, 0.0
    %vm4541 = vcmp.ge.f32.partialorder %v4525, 0.0
    %vm4542 = vcmp.ge.f32.partialorder %v4526, 0.0
    %vm4543 = vcmp.ge.f32.partialorder %v4527, 0.0
    %vm4544 = vcmp.ge.f32.partialorder %v4528, 0.0
    %vm4545 = vcmp.ge.f32.partialorder %v4529, 0.0
    %vm4546 = vcmp.ge.f32.partialorder %v4530, 0.0
    %vm4547 = vcmp.ge.f32.partialorder %v4531, 0.0
    %v4548 = vsel %vm4532, 1.0, -1.0
    %v4549 = vsel %vm4533, 1.0, -1.0
    %v4550 = vsel %vm4534, 1.0, -1.0
    %v4551 = vsel %vm4535, 1.0, -1.0
    %v4552 = vsel %vm4536, 1.0, -1.0
    %v4553 = vsel %vm4537, 1.0, -1.0
    %v4554 = vsel %vm4538, 1.0, -1.0
    %v4555 = vsel %vm4539, 1.0, -1.0
    %v4556 = vsel %vm4540, 1.0, -1.0
    %v4557 = vsel %vm4541, 1.0, -1.0
    %v4558 = vsel %vm4542, 1.0, -1.0
    %v4559 = vsel %vm4543, 1.0, -1.0
    %v4560 = vsel %vm4544, 1.0, -1.0
    %v4561 = vsel %vm4545, 1.0, -1.0
    %v4562 = vsel %vm4546, 1.0, -1.0
    %v4563 = vsel %vm4547, 1.0, -1.0
    %v4564 = vand.u32 2147483647, %v4516
    %v4565 = vand.u32 2147483647, %v4517
    %v4566 = vand.u32 2147483647, %v4518
    %v4567 = vand.u32 2147483647, %v4519
    %v4568 = vand.u32 2147483647, %v4520
    %v4569 = vand.u32 2147483647, %v4521
    %v4570 = vand.u32 2147483647, %v4522
    %v4571 = vand.u32 2147483647, %v4523
    %v4572 = vand.u32 2147483647, %v4524
    %v4573 = vand.u32 2147483647, %v4525
    %v4574 = vand.u32 2147483647, %v4526
    %v4575 = vand.u32 2147483647, %v4527
    %v4576 = vand.u32 2147483647, %v4528
    %v4577 = vand.u32 2147483647, %v4529
    %v4578 = vand.u32 2147483647, %v4530
    %v4579 = vand.u32 2147483647, %v4531
    %v4580 = vmul.f32 %v4564, 0.3275911
    %v4581 = vmul.f32 %v4565, 0.3275911
    %v4582 = vmul.f32 %v4566, 0.3275911
    %v4583 = vmul.f32 %v4567, 0.3275911
    %v4584 = vmul.f32 %v4568, 0.3275911
    %v4585 = vmul.f32 %v4569, 0.3275911
    %v4586 = vmul.f32 %v4570, 0.3275911
    %v4587 = vmul.f32 %v4571, 0.3275911
    %v4588 = vmul.f32 %v4572, 0.3275911
    %v4589 = vmul.f32 %v4573, 0.3275911
    %v4590 = vmul.f32 %v4574, 0.3275911
    %v4591 = vmul.f32 %v4575, 0.3275911
    %v4592 = vmul.f32 %v4576, 0.3275911
    %v4593 = vmul.f32 %v4577, 0.3275911
    %v4594 = vmul.f32 %v4578, 0.3275911
    %v4595 = vmul.f32 %v4579, 0.3275911
    %v4596 = vadd.f32 %v4580, 1.0
    %v4597 = vadd.f32 %v4581, 1.0
    %v4598 = vadd.f32 %v4582, 1.0
    %v4599 = vadd.f32 %v4583, 1.0
    %v4600 = vadd.f32 %v4584, 1.0
    %v4601 = vadd.f32 %v4585, 1.0
    %v4602 = vadd.f32 %v4586, 1.0
    %v4603 = vadd.f32 %v4587, 1.0
    %v4604 = vadd.f32 %v4588, 1.0
    %v4605 = vadd.f32 %v4589, 1.0
    %v4606 = vadd.f32 %v4590, 1.0
    %v4607 = vadd.f32 %v4591, 1.0
    %v4608 = vadd.f32 %v4592, 1.0
    %v4609 = vadd.f32 %v4593, 1.0
    %v4610 = vadd.f32 %v4594, 1.0
    %v4611 = vadd.f32 %v4595, 1.0
    %v4612 = vrcp.pop %v4596
    %v4613 = vmul.f32 1.0, %v4612
    %v4614 = vrcp.pop %v4597
    %v4615 = vmul.f32 1.0, %v4614
    %v4616 = vrcp.pop %v4598
    %v4617 = vmul.f32 1.0, %v4616
    %v4618 = vrcp.pop %v4599
    %v4619 = vmul.f32 1.0, %v4618
    %v4620 = vrcp.pop %v4600
    %v4621 = vmul.f32 1.0, %v4620
    %v4622 = vrcp.pop %v4601
    %v4623 = vmul.f32 1.0, %v4622
    %v4624 = vrcp.pop %v4602
    %v4625 = vmul.f32 1.0, %v4624
    %v4626 = vrcp.pop %v4603
    %v4627 = vmul.f32 1.0, %v4626
    %v4628 = vrcp.pop %v4604
    %v4629 = vmul.f32 1.0, %v4628
    %v4630 = vrcp.pop %v4605
    %v4631 = vmul.f32 1.0, %v4630
    %v4632 = vrcp.pop %v4606
    %v4633 = vmul.f32 1.0, %v4632
    %v4634 = vrcp.pop %v4607
    %v4635 = vmul.f32 1.0, %v4634
    %v4636 = vrcp.pop %v4608
    %v4637 = vmul.f32 1.0, %v4636
    %v4638 = vrcp.pop %v4609
    %v4639 = vmul.f32 1.0, %v4638
    %v4640 = vrcp.pop %v4610
    %v4641 = vmul.f32 1.0, %v4640
    %v4642 = vrcp.pop %v4611
    %v4643 = vmul.f32 1.0, %v4642
    %v4644 = vmul.f32 %v4613, 1.0614054
    %v4645 = vmul.f32 %v4615, 1.0614054
    %v4646 = vmul.f32 %v4617, 1.0614054
    %v4647 = vmul.f32 %v4619, 1.0614054
    %v4648 = vmul.f32 %v4621, 1.0614054
    %v4649 = vmul.f32 %v4623, 1.0614054
    %v4650 = vmul.f32 %v4625, 1.0614054
    %v4651 = vmul.f32 %v4627, 1.0614054
    %v4652 = vmul.f32 %v4629, 1.0614054
    %v4653 = vmul.f32 %v4631, 1.0614054
    %v4654 = vmul.f32 %v4633, 1.0614054
    %v4655 = vmul.f32 %v4635, 1.0614054
    %v4656 = vmul.f32 %v4637, 1.0614054
    %v4657 = vmul.f32 %v4639, 1.0614054
    %v4658 = vmul.f32 %v4641, 1.0614054
    %v4659 = vmul.f32 %v4643, 1.0614054
    %v4660 = vadd.f32 %v4644, -1.4531521
    %v4661 = vadd.f32 %v4645, -1.4531521
    %v4662 = vadd.f32 %v4646, -1.4531521
    %v4663 = vadd.f32 %v4647, -1.4531521
    %v4664 = vadd.f32 %v4648, -1.4531521
    %v4665 = vadd.f32 %v4649, -1.4531521
    %v4666 = vadd.f32 %v4650, -1.4531521
    %v4667 = vadd.f32 %v4651, -1.4531521
    %v4668 = vadd.f32 %v4652, -1.4531521
    %v4669 = vadd.f32 %v4653, -1.4531521
    %v4670 = vadd.f32 %v4654, -1.4531521
    %v4671 = vadd.f32 %v4655, -1.4531521
    %v4672 = vadd.f32 %v4656, -1.4531521
    %v4673 = vadd.f32 %v4657, -1.4531521
    %v4674 = vadd.f32 %v4658, -1.4531521
    %v4675 = vadd.f32 %v4659, -1.4531521
    %v4676 = vmul.f32 %v4660, %v4613
    %v4677 = vmul.f32 %v4661, %v4615
    %v4678 = vmul.f32 %v4662, %v4617
    %v4679 = vmul.f32 %v4663, %v4619
    %v4680 = vmul.f32 %v4664, %v4621
    %v4681 = vmul.f32 %v4665, %v4623
    %v4682 = vmul.f32 %v4666, %v4625
    %v4683 = vmul.f32 %v4667, %v4627
    %v4684 = vmul.f32 %v4668, %v4629
    %v4685 = vmul.f32 %v4669, %v4631
    %v4686 = vmul.f32 %v4670, %v4633
    %v4687 = vmul.f32 %v4671, %v4635
    %v4688 = vmul.f32 %v4672, %v4637
    %v4689 = vmul.f32 %v4673, %v4639
    %v4690 = vmul.f32 %v4674, %v4641
    %v4691 = vmul.f32 %v4675, %v4643
    %v4692 = vadd.f32 %v4676, 1.4214138
    %v4693 = vadd.f32 %v4677, 1.4214138
    %v4694 = vadd.f32 %v4678, 1.4214138
    %v4695 = vadd.f32 %v4679, 1.4214138
    %v4696 = vadd.f32 %v4680, 1.4214138
    %v4697 = vadd.f32 %v4681, 1.4214138
    %v4698 = vadd.f32 %v4682, 1.4214138
    %v4699 = vadd.f32 %v4683, 1.4214138
    %v4700 = vadd.f32 %v4684, 1.4214138
    %v4701 = vadd.f32 %v4685, 1.4214138
    %v4702 = vadd.f32 %v4686, 1.4214138
    %v4703 = vadd.f32 %v4687, 1.4214138
    %v4704 = vadd.f32 %v4688, 1.4214138
    %v4705 = vadd.f32 %v4689, 1.4214138
    %v4706 = vadd.f32 %v4690, 1.4214138
    %v4707 = vadd.f32 %v4691, 1.4214138
    %v4708 = vmul.f32 %v4692, %v4613
    %v4709 = vmul.f32 %v4693, %v4615
    %v4710 = vmul.f32 %v4694, %v4617
    %v4711 = vmul.f32 %v4695, %v4619
    %v4712 = vmul.f32 %v4696, %v4621
    %v4713 = vmul.f32 %v4697, %v4623
    %v4714 = vmul.f32 %v4698, %v4625
    %v4715 = vmul.f32 %v4699, %v4627
    %v4716 = vmul.f32 %v4700, %v4629
    %v4717 = vmul.f32 %v4701, %v4631
    %v4718 = vmul.f32 %v4702, %v4633
    %v4719 = vmul.f32 %v4703, %v4635
    %v4720 = vmul.f32 %v4704, %v4637
    %v4721 = vmul.f32 %v4705, %v4639
    %v4722 = vmul.f32 %v4706, %v4641
    %v4723 = vmul.f32 %v4707, %v4643
    %v4724 = vadd.f32 %v4708, -0.28449672
    %v4725 = vadd.f32 %v4709, -0.28449672
    %v4726 = vadd.f32 %v4710, -0.28449672
    %v4727 = vadd.f32 %v4711, -0.28449672
    %v4728 = vadd.f32 %v4712, -0.28449672
    %v4729 = vadd.f32 %v4713, -0.28449672
    %v4730 = vadd.f32 %v4714, -0.28449672
    %v4731 = vadd.f32 %v4715, -0.28449672
    %v4732 = vadd.f32 %v4716, -0.28449672
    %v4733 = vadd.f32 %v4717, -0.28449672
    %v4734 = vadd.f32 %v4718, -0.28449672
    %v4735 = vadd.f32 %v4719, -0.28449672
    %v4736 = vadd.f32 %v4720, -0.28449672
    %v4737 = vadd.f32 %v4721, -0.28449672
    %v4738 = vadd.f32 %v4722, -0.28449672
    %v4739 = vadd.f32 %v4723, -0.28449672
    %v4740 = vmul.f32 %v4724, %v4613
    %v4741 = vmul.f32 %v4725, %v4615
    %v4742 = vmul.f32 %v4726, %v4617
    %v4743 = vmul.f32 %v4727, %v4619
    %v4744 = vmul.f32 %v4728, %v4621
    %v4745 = vmul.f32 %v4729, %v4623
    %v4746 = vmul.f32 %v4730, %v4625
    %v4747 = vmul.f32 %v4731, %v4627
    %v4748 = vmul.f32 %v4732, %v4629
    %v4749 = vmul.f32 %v4733, %v4631
    %v4750 = vmul.f32 %v4734, %v4633
    %v4751 = vmul.f32 %v4735, %v4635
    %v4752 = vmul.f32 %v4736, %v4637
    %v4753 = vmul.f32 %v4737, %v4639
    %v4754 = vmul.f32 %v4738, %v4641
    %v4755 = vmul.f32 %v4739, %v4643
    %v4756 = vadd.f32 %v4740, 0.2548296
    %v4757 = vadd.f32 %v4741, 0.2548296
    %v4758 = vadd.f32 %v4742, 0.2548296
    %v4759 = vadd.f32 %v4743, 0.2548296
    %v4760 = vadd.f32 %v4744, 0.2548296
    %v4761 = vadd.f32 %v4745, 0.2548296
    %v4762 = vadd.f32 %v4746, 0.2548296
    %v4763 = vadd.f32 %v4747, 0.2548296
    %v4764 = vadd.f32 %v4748, 0.2548296
    %v4765 = vadd.f32 %v4749, 0.2548296
    %v4766 = vadd.f32 %v4750, 0.2548296
    %v4767 = vadd.f32 %v4751, 0.2548296
    %v4768 = vadd.f32 %v4752, 0.2548296
    %v4769 = vadd.f32 %v4753, 0.2548296
    %v4770 = vadd.f32 %v4754, 0.2548296
    %v4771 = vadd.f32 %v4755, 0.2548296
    %v4772 = vmul.f32 %v4756, %v4613
    %v4773 = vmul.f32 %v4757, %v4615
    %v4774 = vmul.f32 %v4758, %v4617
    %v4775 = vmul.f32 %v4759, %v4619
    %v4776 = vmul.f32 %v4760, %v4621
    %v4777 = vmul.f32 %v4761, %v4623
    %v4778 = vmul.f32 %v4762, %v4625
    %v4779 = vmul.f32 %v4763, %v4627
    %v4780 = vmul.f32 %v4764, %v4629
    %v4781 = vmul.f32 %v4765, %v4631
    %v4782 = vmul.f32 %v4766, %v4633
    %v4783 = vmul.f32 %v4767, %v4635
    %v4784 = vmul.f32 %v4768, %v4637
    %v4785 = vmul.f32 %v4769, %v4639
    %v4786 = vmul.f32 %v4770, %v4641
    %v4787 = vmul.f32 %v4771, %v4643
    %v4788 = vsub.f32 0.0, %v4564
    %v4789 = vsub.f32 0.0, %v4565
    %v4790 = vsub.f32 0.0, %v4566
    %v4791 = vsub.f32 0.0, %v4567
    %v4792 = vsub.f32 0.0, %v4568
    %v4793 = vsub.f32 0.0, %v4569
    %v4794 = vsub.f32 0.0, %v4570
    %v4795 = vsub.f32 0.0, %v4571
    %v4796 = vsub.f32 0.0, %v4572
    %v4797 = vsub.f32 0.0, %v4573
    %v4798 = vsub.f32 0.0, %v4574
    %v4799 = vsub.f32 0.0, %v4575
    %v4800 = vsub.f32 0.0, %v4576
    %v4801 = vsub.f32 0.0, %v4577
    %v4802 = vsub.f32 0.0, %v4578
    %v4803 = vsub.f32 0.0, %v4579
    %v4804 = vmul.f32 %v4788, %v4564
    %v4805 = vmul.f32 %v4789, %v4565
    %v4806 = vmul.f32 %v4790, %v4566
    %v4807 = vmul.f32 %v4791, %v4567
    %v4808 = vmul.f32 %v4792, %v4568
    %v4809 = vmul.f32 %v4793, %v4569
    %v4810 = vmul.f32 %v4794, %v4570
    %v4811 = vmul.f32 %v4795, %v4571
    %v4812 = vmul.f32 %v4796, %v4572
    %v4813 = vmul.f32 %v4797, %v4573
    %v4814 = vmul.f32 %v4798, %v4574
    %v4815 = vmul.f32 %v4799, %v4575
    %v4816 = vmul.f32 %v4800, %v4576
    %v4817 = vmul.f32 %v4801, %v4577
    %v4818 = vmul.f32 %v4802, %v4578
    %v4819 = vmul.f32 %v4803, %v4579
    %v4820 = vmul.f32 %v4804, 1.442695
    %v4821 = vpow.pop %v4820
    %v4822 = vmul.f32 %v4805, 1.442695
    %v4823 = vpow.pop %v4822
    %v4824 = vmul.f32 %v4806, 1.442695
    %v4825 = vpow.pop %v4824
    %v4826 = vmul.f32 %v4807, 1.442695
    %v4827 = vpow.pop %v4826
    %v4828 = vmul.f32 %v4808, 1.442695
    %v4829 = vpow.pop %v4828
    %v4830 = vmul.f32 %v4809, 1.442695
    %v4831 = vpow.pop %v4830
    %v4832 = vmul.f32 %v4810, 1.442695
    %v4833 = vpow.pop %v4832
    %v4834 = vmul.f32 %v4811, 1.442695
    %v4835 = vpow.pop %v4834
    %v4836 = vmul.f32 %v4812, 1.442695
    %v4837 = vpow.pop %v4836
    %v4838 = vmul.f32 %v4813, 1.442695
    %v4839 = vpow.pop %v4838
    %v4840 = vmul.f32 %v4814, 1.442695
    %v4841 = vpow.pop %v4840
    %v4842 = vmul.f32 %v4815, 1.442695
    %v4843 = vpow.pop %v4842
    %v4844 = vmul.f32 %v4816, 1.442695
    %v4845 = vpow.pop %v4844
    %v4846 = vmul.f32 %v4817, 1.442695
    %v4847 = vpow.pop %v4846
    %v4848 = vmul.f32 %v4818, 1.442695
    %v4849 = vpow.pop %v4848
    %v4850 = vmul.f32 %v4819, 1.442695
    %v4851 = vpow.pop %v4850
    %v4852 = vmul.f32 %v4772, %v4821
    %v4853 = vmul.f32 %v4773, %v4823
    %v4854 = vmul.f32 %v4774, %v4825
    %v4855 = vmul.f32 %v4775, %v4827
    %v4856 = vmul.f32 %v4776, %v4829
    %v4857 = vmul.f32 %v4777, %v4831
    %v4858 = vmul.f32 %v4778, %v4833
    %v4859 = vmul.f32 %v4779, %v4835
    %v4860 = vmul.f32 %v4780, %v4837
    %v4861 = vmul.f32 %v4781, %v4839
    %v4862 = vmul.f32 %v4782, %v4841
    %v4863 = vmul.f32 %v4783, %v4843
    %v4864 = vmul.f32 %v4784, %v4845
    %v4865 = vmul.f32 %v4785, %v4847
    %v4866 = vmul.f32 %v4786, %v4849
    %v4867 = vmul.f32 %v4787, %v4851
    %v4868 = vsub.f32 1.0, %v4852
    %v4869 = vsub.f32 1.0, %v4853
    %v4870 = vsub.f32 1.0, %v4854
    %v4871 = vsub.f32 1.0, %v4855
    %v4872 = vsub.f32 1.0, %v4856
    %v4873 = vsub.f32 1.0, %v4857
    %v4874 = vsub.f32 1.0, %v4858
    %v4875 = vsub.f32 1.0, %v4859
    %v4876 = vsub.f32 1.0, %v4860
    %v4877 = vsub.f32 1.0, %v4861
    %v4878 = vsub.f32 1.0, %v4862
    %v4879 = vsub.f32 1.0, %v4863
    %v4880 = vsub.f32 1.0, %v4864
    %v4881 = vsub.f32 1.0, %v4865
    %v4882 = vsub.f32 1.0, %v4866
    %v4883 = vsub.f32 1.0, %v4867
    %v4884 = vmul.f32 %v4548, %v4868
    %v4885 = vmul.f32 %v4549, %v4869
    %v4886 = vmul.f32 %v4550, %v4870
    %v4887 = vmul.f32 %v4551, %v4871
    %v4888 = vmul.f32 %v4552, %v4872
    %v4889 = vmul.f32 %v4553, %v4873
    %v4890 = vmul.f32 %v4554, %v4874
    %v4891 = vmul.f32 %v4555, %v4875
    %v4892 = vmul.f32 %v4556, %v4876
    %v4893 = vmul.f32 %v4557, %v4877
    %v4894 = vmul.f32 %v4558, %v4878
    %v4895 = vmul.f32 %v4559, %v4879
    %v4896 = vmul.f32 %v4560, %v4880
    %v4897 = vmul.f32 %v4561, %v4881
    %v4898 = vmul.f32 %v4562, %v4882
    %v4899 = vmul.f32 %v4563, %v4883
    %v4900 = vadd.f32 %v4884, 1.0
    %v4901 = vadd.f32 %v4885, 1.0
    %v4902 = vadd.f32 %v4886, 1.0
    %v4903 = vadd.f32 %v4887, 1.0
    %v4904 = vadd.f32 %v4888, 1.0
    %v4905 = vadd.f32 %v4889, 1.0
    %v4906 = vadd.f32 %v4890, 1.0
    %v4907 = vadd.f32 %v4891, 1.0
    %v4908 = vadd.f32 %v4892, 1.0
    %v4909 = vadd.f32 %v4893, 1.0
    %v4910 = vadd.f32 %v4894, 1.0
    %v4911 = vadd.f32 %v4895, 1.0
    %v4912 = vadd.f32 %v4896, 1.0
    %v4913 = vadd.f32 %v4897, 1.0
    %v4914 = vadd.f32 %v4898, 1.0
    %v4915 = vadd.f32 %v4899, 1.0
    %v4916 = vmul.f32 %v4500, %v4900
    %v4917 = vmul.f32 %v4501, %v4901
    %v4918 = vmul.f32 %v4502, %v4902
    %v4919 = vmul.f32 %v4503, %v4903
    %v4920 = vmul.f32 %v4504, %v4904
    %v4921 = vmul.f32 %v4505, %v4905
    %v4922 = vmul.f32 %v4506, %v4906
    %v4923 = vmul.f32 %v4507, %v4907
    %v4924 = vmul.f32 %v4508, %v4908
    %v4925 = vmul.f32 %v4509, %v4909
    %v4926 = vmul.f32 %v4510, %v4910
    %v4927 = vmul.f32 %v4511, %v4911
    %v4928 = vmul.f32 %v4512, %v4912
    %v4929 = vmul.f32 %v4513, %v4913
    %v4930 = vmul.f32 %v4514, %v4914
    %v4931 = vmul.f32 %v4515, %v4915
    %v4932 = vpack.c.bf16 %v4917, %v4916
    %v4933 = vpack.c.bf16 %v4919, %v4918
    %v4934 = vpack.c.bf16 %v4921, %v4920
    %v4935 = vpack.c.bf16 %v4923, %v4922
    %v4936 = vpack.c.bf16 %v4925, %v4924
    %v4937 = vpack.c.bf16 %v4927, %v4926
    %v4938 = vpack.c.bf16 %v4929, %v4928
    %v4939 = vpack.c.bf16 %v4931, %v4930
    %4940 = vmatprep.subr.bf16.mxu0 0
    %4941 = vmatpush1.bf16.msra.mxu0 %v4932
    %4942 = vmatprep.subr.bf16.mxu0 0
    %4943 = vmatpush1.bf16.msra.mxu0 %v4933
    %4944 = vmatprep.subr.bf16.mxu0 0
    %4945 = vmatpush1.bf16.msra.mxu0 %v4934
    %4946 = vmatprep.subr.bf16.mxu0 0
    %4947 = vmatpush1.bf16.msra.mxu0 %v4935
    %4948 = vmatprep.subr.bf16.mxu0 0
    %4949 = vmatpush1.bf16.msra.mxu0 %v4936
    %4950 = vmatprep.subr.bf16.mxu0 0
    %4951 = vmatpush1.bf16.msra.mxu0 %v4937
    %4952 = vmatprep.subr.bf16.mxu0 0
    %4953 = vmatpush1.bf16.msra.mxu0 %v4938
    %4954 = vmatprep.subr.bf16.mxu0 0
    %4955 = vmatpush1.bf16.msra.mxu0 %v4939
    %4956 = vmatprep.subr.bf16.mxu0 0
    %4957 = vmatpush1.bf16.msra.mxu0 0
    %4958 = vmatprep.subr.bf16.mxu0 0
    %4959 = vmatpush1.bf16.msra.mxu0 0
    %4960 = vmatprep.subr.bf16.mxu0 0
    %4961 = vmatpush1.bf16.msra.mxu0 0
    %4962 = vmatprep.subr.bf16.mxu0 0
    %4963 = vmatpush1.bf16.msra.mxu0 0
    %4964 = vmatprep.subr.bf16.mxu0 0
    %4965 = vmatpush1.bf16.msra.mxu0 0
    %4966 = vmatprep.subr.bf16.mxu0 0
    %4967 = vmatpush1.bf16.msra.mxu0 0
    %4968 = vmatprep.subr.bf16.mxu0 0
    %4969 = vmatpush1.bf16.msra.mxu0 0
    %4970 = vmatprep.subr.bf16.mxu0 0
    %4971 = vmatpush1.bf16.msra.mxu0 0
    %4972 = vmatprep.mubr.bf16.mxu0 0
    %4973 = vmatmul.mubr.bf16.gmra.mrb[0].mxu0 %v496
    %v4974 = vpop.f32.mrb[0].mxu0
    %v4975 = vadd.f32 0.0, %v4974
    %v4976 = vpop.f32.mrb[0].mxu0
    %v4977 = vpop.f32.mrb[0].mxu0
    %v4978 = vadd.f32 0.0, %v4977
    %v4979 = vpop.f32.mrb[0].mxu0
    %4980 = vmatprep.mubr.bf16.mxu0 0
    %4981 = vmatmul.mubr.bf16.gmra.mrb[0].mxu0 %v497
    %v4982 = vpop.f32.mrb[0].mxu0
    %v4983 = vadd.f32 0.0, %v4982
    %v4984 = vpop.f32.mrb[0].mxu0
    %v4985 = vpop.f32.mrb[0].mxu0
    %v4986 = vadd.f32 0.0, %v4985
    %v4987 = vpop.f32.mrb[0].mxu0
    %4988 = vmatprep.mubr.bf16.mxu0 0
    %4989 = vmatmul.mubr.bf16.gmra.mrb[0].mxu0 %v498
    %v4990 = vpop.f32.mrb[0].mxu0
    %v4991 = vadd.f32 0.0, %v4990
    %v4992 = vpop.f32.mrb[0].mxu0
    %v4993 = vpop.f32.mrb[0].mxu0
    %v4994 = vadd.f32 0.0, %v4993
    %v4995 = vpop.f32.mrb[0].mxu0
    %4996 = vmatprep.mubr.bf16.mxu0 0
    %4997 = vmatmul.mubr.bf16.gmra.mrb[0].mxu0 %v499
    %v4998 = vpop.f32.mrb[0].mxu0
    %v4999 = vadd.f32 0.0, %v4998
    %v5000 = vpop.f32.mrb[0].mxu0
    %v5001 = vpop.f32.mrb[0].mxu0
    %v5002 = vadd.f32 0.0, %v5001
    %v5003 = vpop.f32.mrb[0].mxu0
    %5004 = vdwg.mxu0
    %v5005 = vpack.c.bf16 %v4978, %v4975
    %v5006 = vpack.c.bf16 %v4986, %v4983
    %v5007 = vpack.c.bf16 %v4994, %v4991
    %v5008 = vpack.c.bf16 %v5002, %v4999
    %s5009 = scalar_lea.vmem %s5, 384
    %v5010 = vld [vmem:[%s5009] sm:$0xff]
    %v5011 = vld [vmem:[%s5009 + $0x8] sm:$0xff]
    %v5012 = vld [vmem:[%s5009 + $0x10] sm:$0xff]
    %v5013 = vld [vmem:[%s5009 + $0x18] sm:$0xff]
    %v5014 = vld [vmem:[%s5009 + $0x20] sm:$0xff]
    %v5015 = vld [vmem:[%s5009 + $0x28] sm:$0xff]
    %v5016 = vld [vmem:[%s5009 + $0x30] sm:$0xff]
    %v5017 = vld [vmem:[%s5009 + $0x38] sm:$0xff]
    %v5018 = vld [vmem:[%s5009 + $0x40] sm:$0xff]
    %v5019 = vld [vmem:[%s5009 + $0x48] sm:$0xff]
    %v5020 = vld [vmem:[%s5009 + $0x50] sm:$0xff]
    %v5021 = vld [vmem:[%s5009 + $0x58] sm:$0xff]
    %v5022 = vld [vmem:[%s5009 + $0x60] sm:$0xff]
    %v5023 = vld [vmem:[%s5009 + $0x68] sm:$0xff]
    %v5024 = vld [vmem:[%s5009 + $0x70] sm:$0xff]
    %v5025 = vld [vmem:[%s5009 + $0x78] sm:$0xff]
    %v5042 = vunpack.c.l.b16 %v5010
    %v5043 = vunpack.c.h.b16 %v5010
    %v5044 = vunpack.c.l.b16 %v5011
    %v5045 = vunpack.c.h.b16 %v5011
    %v5046 = vunpack.c.l.b16 %v5012
    %v5047 = vunpack.c.h.b16 %v5012
    %v5048 = vunpack.c.l.b16 %v5013
    %v5049 = vunpack.c.h.b16 %v5013
    %v5050 = vunpack.c.l.b16 %v5014
    %v5051 = vunpack.c.h.b16 %v5014
    %v5052 = vunpack.c.l.b16 %v5015
    %v5053 = vunpack.c.h.b16 %v5015
    %v5054 = vunpack.c.l.b16 %v5016
    %v5055 = vunpack.c.h.b16 %v5016
    %v5056 = vunpack.c.l.b16 %v5017
    %v5057 = vunpack.c.h.b16 %v5017
    %v5058 = vunpack.c.l.b16 %v5018
    %v5059 = vunpack.c.h.b16 %v5018
    %v5060 = vunpack.c.l.b16 %v5019
    %v5061 = vunpack.c.h.b16 %v5019
    %v5062 = vunpack.c.l.b16 %v5020
    %v5063 = vunpack.c.h.b16 %v5020
    %v5064 = vunpack.c.l.b16 %v5021
    %v5065 = vunpack.c.h.b16 %v5021
    %v5066 = vunpack.c.l.b16 %v5022
    %v5067 = vunpack.c.h.b16 %v5022
    %v5068 = vunpack.c.l.b16 %v5023
    %v5069 = vunpack.c.h.b16 %v5023
    %v5070 = vunpack.c.l.b16 %v5024
    %v5071 = vunpack.c.h.b16 %v5024
    %v5072 = vunpack.c.l.b16 %v5025
    %v5073 = vunpack.c.h.b16 %v5025
    %v5074 = vpack.c.b16 %v5050, %v5042
    %v5075 = vpack.c.b16 %v5051, %v5043
    %v5076 = vpack.c.b16 %v5052, %v5044
    %v5077 = vpack.c.b16 %v5053, %v5045
    %v5078 = vpack.c.b16 %v5054, %v5046
    %v5079 = vpack.c.b16 %v5055, %v5047
    %v5080 = vpack.c.b16 %v5056, %v5048
    %v5081 = vpack.c.b16 %v5057, %v5049
    %v5082 = vpack.c.b16 %v5066, %v5058
    %v5083 = vpack.c.b16 %v5067, %v5059
    %v5084 = vpack.c.b16 %v5068, %v5060
    %v5085 = vpack.c.b16 %v5069, %v5061
    %v5086 = vpack.c.b16 %v5070, %v5062
    %v5087 = vpack.c.b16 %v5071, %v5063
    %v5088 = vpack.c.b16 %v5072, %v5064
    %v5089 = vpack.c.b16 %v5073, %v5065
    %v5107 = vsel %vm669, %v5005, 0
    %v5110 = vsel %vm669, %v5006, 0
    %v5113 = vsel %vm669, %v5007, 0
    %v5116 = vsel %vm669, %v5008, 0
    %5118 = vmatprep.subr.bf16.mxu0 %v5075
    %5119 = vmatpush1.bf16.msra.mxu0 %v5074
    %5120 = vmatprep.subr.bf16.mxu0 %v5083
    %5121 = vmatpush1.bf16.msra.mxu0 %v5082
    %5122 = vmatprep.subr.bf16.mxu0 0
    %5123 = vmatpush1.bf16.msra.mxu0 0
    %5124 = vmatprep.subr.bf16.mxu0 0
    %5125 = vmatpush1.bf16.msra.mxu0 0
    %5126 = vmatprep.subr.bf16.mxu0 0
    %5127 = vmatpush1.bf16.msra.mxu0 0
    %5128 = vmatprep.subr.bf16.mxu0 0
    %5129 = vmatpush1.bf16.msra.mxu0 0
    %5130 = vmatprep.subr.bf16.mxu0 0
    %5131 = vmatpush1.bf16.msra.mxu0 0
    %5132 = vmatprep.subr.bf16.mxu0 0
    %5133 = vmatpush1.bf16.msra.mxu0 0
    %5134 = vmatprep.subr.bf16.mxu0 0
    %5135 = vmatpush1.bf16.msra.mxu0 0
    %5136 = vmatprep.subr.bf16.mxu0 0
    %5137 = vmatpush1.bf16.msra.mxu0 0
    %5138 = vmatprep.subr.bf16.mxu0 0
    %5139 = vmatpush1.bf16.msra.mxu0 0
    %5140 = vmatprep.subr.bf16.mxu0 0
    %5141 = vmatpush1.bf16.msra.mxu0 0
    %5142 = vmatprep.subr.bf16.mxu0 0
    %5143 = vmatpush1.bf16.msra.mxu0 0
    %5144 = vmatprep.subr.bf16.mxu0 0
    %5145 = vmatpush1.bf16.msra.mxu0 0
    %5146 = vmatprep.subr.bf16.mxu0 0
    %5147 = vmatpush1.bf16.msra.mxu0 0
    %5148 = vmatprep.subr.bf16.mxu0 0
    %5149 = vmatpush1.bf16.msra.mxu0 0
    %5150 = vmatprep.mubr.bf16.mxu0 0
    %5151 = vmatmul.mubr.bf16.gmra.mrb[0].mxu0 %v5107
    %v5152 = vpop.f32.mrb[0].mxu0
    %v5153 = vadd.f32 0.0, %v5152
    %v5154 = vpop.f32.mrb[0].mxu0
    %v5155 = vadd.f32 0.0, %v5154
    %v5156 = vpop.f32.mrb[0].mxu0
    %v5157 = vadd.f32 0.0, %v5156
    %v5158 = vpop.f32.mrb[0].mxu0
    %v5159 = vadd.f32 0.0, %v5158
    %5160 = vmatprep.mubr.bf16.mxu0 0
    %5161 = vmatmul.mubr.bf16.gmra.mrb[0].mxu0 %v5110
    %v5162 = vpop.f32.mrb[0].mxu0
    %v5163 = vadd.f32 0.0, %v5162
    %v5164 = vpop.f32.mrb[0].mxu0
    %v5165 = vadd.f32 0.0, %v5164
    %v5166 = vpop.f32.mrb[0].mxu0
    %v5167 = vadd.f32 0.0, %v5166
    %v5168 = vpop.f32.mrb[0].mxu0
    %v5169 = vadd.f32 0.0, %v5168
    %5170 = vmatprep.mubr.bf16.mxu0 0
    %5171 = vmatmul.mubr.bf16.gmra.mrb[0].mxu0 %v5113
    %v5172 = vpop.f32.mrb[0].mxu0
    %v5173 = vadd.f32 0.0, %v5172
    %v5174 = vpop.f32.mrb[0].mxu0
    %v5175 = vadd.f32 0.0, %v5174
    %v5176 = vpop.f32.mrb[0].mxu0
    %v5177 = vadd.f32 0.0, %v5176
    %v5178 = vpop.f32.mrb[0].mxu0
    %v5179 = vadd.f32 0.0, %v5178
    %5180 = vmatprep.mubr.bf16.mxu0 0
    %5181 = vmatmul.mubr.bf16.gmra.mrb[0].mxu0 %v5116
    %v5182 = vpop.f32.mrb[0].mxu0
    %v5183 = vadd.f32 0.0, %v5182
    %v5184 = vpop.f32.mrb[0].mxu0
    %v5185 = vadd.f32 0.0, %v5184
    %v5186 = vpop.f32.mrb[0].mxu0
    %v5187 = vadd.f32 0.0, %v5186
    %v5188 = vpop.f32.mrb[0].mxu0
    %v5189 = vadd.f32 0.0, %v5188
    %5190 = vdwg.mxu0
    %5191 = vmatprep.subr.bf16.mxu0 %v5077
    %5192 = vmatpush1.bf16.msra.mxu0 %v5076
    %5193 = vmatprep.subr.bf16.mxu0 %v5085
    %5194 = vmatpush1.bf16.msra.mxu0 %v5084
    %5195 = vmatprep.subr.bf16.mxu0 0
    %5196 = vmatpush1.bf16.msra.mxu0 0
    %5197 = vmatprep.subr.bf16.mxu0 0
    %5198 = vmatpush1.bf16.msra.mxu0 0
    %5199 = vmatprep.subr.bf16.mxu0 0
    %5200 = vmatpush1.bf16.msra.mxu0 0
    %5201 = vmatprep.subr.bf16.mxu0 0
    %5202 = vmatpush1.bf16.msra.mxu0 0
    %5203 = vmatprep.subr.bf16.mxu0 0
    %5204 = vmatpush1.bf16.msra.mxu0 0
    %5205 = vmatprep.subr.bf16.mxu0 0
    %5206 = vmatpush1.bf16.msra.mxu0 0
    %5207 = vmatprep.subr.bf16.mxu0 0
    %5208 = vmatpush1.bf16.msra.mxu0 0
    %5209 = vmatprep.subr.bf16.mxu0 0
    %5210 = vmatpush1.bf16.msra.mxu0 0
    %5211 = vmatprep.subr.bf16.mxu0 0
    %5212 = vmatpush1.bf16.msra.mxu0 0
    %5213 = vmatprep.subr.bf16.mxu0 0
    %5214 = vmatpush1.bf16.msra.mxu0 0
    %5215 = vmatprep.subr.bf16.mxu0 0
    %5216 = vmatpush1.bf16.msra.mxu0 0
    %5217 = vmatprep.subr.bf16.mxu0 0
    %5218 = vmatpush1.bf16.msra.mxu0 0
    %5219 = vmatprep.subr.bf16.mxu0 0
    %5220 = vmatpush1.bf16.msra.mxu0 0
    %5221 = vmatprep.subr.bf16.mxu0 0
    %5222 = vmatpush1.bf16.msra.mxu0 0
    %5223 = vmatprep.mubr.bf16.mxu0 0
    %5224 = vmatmul.mubr.bf16.gmra.mrb[0].mxu0 %v5107
    %v5225 = vpop.f32.mrb[0].mxu0
    %v5226 = vadd.f32 0.0, %v5225
    %v5227 = vpop.f32.mrb[0].mxu0
    %v5228 = vadd.f32 0.0, %v5227
    %v5229 = vpop.f32.mrb[0].mxu0
    %v5230 = vadd.f32 0.0, %v5229
    %v5231 = vpop.f32.mrb[0].mxu0
    %v5232 = vadd.f32 0.0, %v5231
    %5233 = vmatprep.mubr.bf16.mxu0 0
    %5234 = vmatmul.mubr.bf16.gmra.mrb[0].mxu0 %v5110
    %v5235 = vpop.f32.mrb[0].mxu0
    %v5236 = vadd.f32 0.0, %v5235
    %v5237 = vpop.f32.mrb[0].mxu0
    %v5238 = vadd.f32 0.0, %v5237
    %v5239 = vpop.f32.mrb[0].mxu0
    %v5240 = vadd.f32 0.0, %v5239
    %v5241 = vpop.f32.mrb[0].mxu0
    %v5242 = vadd.f32 0.0, %v5241
    %5243 = vmatprep.mubr.bf16.mxu0 0
    %5244 = vmatmul.mubr.bf16.gmra.mrb[0].mxu0 %v5113
    %v5245 = vpop.f32.mrb[0].mxu0
    %v5246 = vadd.f32 0.0, %v5245
    %v5247 = vpop.f32.mrb[0].mxu0
    %v5248 = vadd.f32 0.0, %v5247
    %v5249 = vpop.f32.mrb[0].mxu0
    %v5250 = vadd.f32 0.0, %v5249
    %v5251 = vpop.f32.mrb[0].mxu0
    %v5252 = vadd.f32 0.0, %v5251
    %5253 = vmatprep.mubr.bf16.mxu0 0
    %5254 = vmatmul.mubr.bf16.gmra.mrb[0].mxu0 %v5116
    %v5255 = vpop.f32.mrb[0].mxu0
    %v5256 = vadd.f32 0.0, %v5255
    %v5257 = vpop.f32.mrb[0].mxu0
    %v5258 = vadd.f32 0.0, %v5257
    %v5259 = vpop.f32.mrb[0].mxu0
    %v5260 = vadd.f32 0.0, %v5259
    %v5261 = vpop.f32.mrb[0].mxu0
    %v5262 = vadd.f32 0.0, %v5261
    %5263 = vdwg.mxu0
    %5264 = vmatprep.subr.bf16.mxu0 %v5079
    %5265 = vmatpush1.bf16.msra.mxu0 %v5078
    %5266 = vmatprep.subr.bf16.mxu0 %v5087
    %5267 = vmatpush1.bf16.msra.mxu0 %v5086
    %5268 = vmatprep.subr.bf16.mxu0 0
    %5269 = vmatpush1.bf16.msra.mxu0 0
    %5270 = vmatprep.subr.bf16.mxu0 0
    %5271 = vmatpush1.bf16.msra.mxu0 0
    %5272 = vmatprep.subr.bf16.mxu0 0
    %5273 = vmatpush1.bf16.msra.mxu0 0
    %5274 = vmatprep.subr.bf16.mxu0 0
    %5275 = vmatpush1.bf16.msra.mxu0 0
    %5276 = vmatprep.subr.bf16.mxu0 0
    %5277 = vmatpush1.bf16.msra.mxu0 0
    %5278 = vmatprep.subr.bf16.mxu0 0
    %5279 = vmatpush1.bf16.msra.mxu0 0
    %5280 = vmatprep.subr.bf16.mxu0 0
    %5281 = vmatpush1.bf16.msra.mxu0 0
    %5282 = vmatprep.subr.bf16.mxu0 0
    %5283 = vmatpush1.bf16.msra.mxu0 0
    %5284 = vmatprep.subr.bf16.mxu0 0
    %5285 = vmatpush1.bf16.msra.mxu0 0
    %5286 = vmatprep.subr.bf16.mxu0 0
    %5287 = vmatpush1.bf16.msra.mxu0 0
    %5288 = vmatprep.subr.bf16.mxu0 0
    %5289 = vmatpush1.bf16.msra.mxu0 0
    %5290 = vmatprep.subr.bf16.mxu0 0
    %5291 = vmatpush1.bf16.msra.mxu0 0
    %5292 = vmatprep.subr.bf16.mxu0 0
    %5293 = vmatpush1.bf16.msra.mxu0 0
    %5294 = vmatprep.subr.bf16.mxu0 0
    %5295 = vmatpush1.bf16.msra.mxu0 0
    %5296 = vmatprep.mubr.bf16.mxu0 0
    %5297 = vmatmul.mubr.bf16.gmra.mrb[0].mxu0 %v5107
    %v5298 = vpop.f32.mrb[0].mxu0
    %v5299 = vadd.f32 0.0, %v5298
    %v5300 = vpop.f32.mrb[0].mxu0
    %v5301 = vadd.f32 0.0, %v5300
    %v5302 = vpop.f32.mrb[0].mxu0
    %v5303 = vadd.f32 0.0, %v5302
    %v5304 = vpop.f32.mrb[0].mxu0
    %v5305 = vadd.f32 0.0, %v5304
    %5306 = vmatprep.mubr.bf16.mxu0 0
    %5307 = vmatmul.mubr.bf16.gmra.mrb[0].mxu0 %v5110
    %v5308 = vpop.f32.mrb[0].mxu0
    %v5309 = vadd.f32 0.0, %v5308
    %v5310 = vpop.f32.mrb[0].mxu0
    %v5311 = vadd.f32 0.0, %v5310
    %v5312 = vpop.f32.mrb[0].mxu0
    %v5313 = vadd.f32 0.0, %v5312
    %v5314 = vpop.f32.mrb[0].mxu0
    %v5315 = vadd.f32 0.0, %v5314
    %5316 = vmatprep.mubr.bf16.mxu0 0
    %5317 = vmatmul.mubr.bf16.gmra.mrb[0].mxu0 %v5113
    %v5318 = vpop.f32.mrb[0].mxu0
    %v5319 = vadd.f32 0.0, %v5318
    %v5320 = vpop.f32.mrb[0].mxu0
    %v5321 = vadd.f32 0.0, %v5320
    %v5322 = vpop.f32.mrb[0].mxu0
    %v5323 = vadd.f32 0.0, %v5322
    %v5324 = vpop.f32.mrb[0].mxu0
    %v5325 = vadd.f32 0.0, %v5324
    %5326 = vmatprep.mubr.bf16.mxu0 0
    %5327 = vmatmul.mubr.bf16.gmra.mrb[0].mxu0 %v5116
    %v5328 = vpop.f32.mrb[0].mxu0
    %v5329 = vadd.f32 0.0, %v5328
    %v5330 = vpop.f32.mrb[0].mxu0
    %v5331 = vadd.f32 0.0, %v5330
    %v5332 = vpop.f32.mrb[0].mxu0
    %v5333 = vadd.f32 0.0, %v5332
    %v5334 = vpop.f32.mrb[0].mxu0
    %v5335 = vadd.f32 0.0, %v5334
    %5336 = vdwg.mxu0
    %5337 = vmatprep.subr.bf16.mxu0 %v5081
    %5338 = vmatpush1.bf16.msra.mxu0 %v5080
    %5339 = vmatprep.subr.bf16.mxu0 %v5089
    %5340 = vmatpush1.bf16.msra.mxu0 %v5088
    %5341 = vmatprep.subr.bf16.mxu0 0
    %5342 = vmatpush1.bf16.msra.mxu0 0
    %5343 = vmatprep.subr.bf16.mxu0 0
    %5344 = vmatpush1.bf16.msra.mxu0 0
    %5345 = vmatprep.subr.bf16.mxu0 0
    %5346 = vmatpush1.bf16.msra.mxu0 0
    %5347 = vmatprep.subr.bf16.mxu0 0
    %5348 = vmatpush1.bf16.msra.mxu0 0
    %5349 = vmatprep.subr.bf16.mxu0 0
    %5350 = vmatpush1.bf16.msra.mxu0 0
    %5351 = vmatprep.subr.bf16.mxu0 0
    %5352 = vmatpush1.bf16.msra.mxu0 0
    %5353 = vmatprep.subr.bf16.mxu0 0
    %5354 = vmatpush1.bf16.msra.mxu0 0
    %5355 = vmatprep.subr.bf16.mxu0 0
    %5356 = vmatpush1.bf16.msra.mxu0 0
    %5357 = vmatprep.subr.bf16.mxu0 0
    %5358 = vmatpush1.bf16.msra.mxu0 0
    %5359 = vmatprep.subr.bf16.mxu0 0
    %5360 = vmatpush1.bf16.msra.mxu0 0
    %5361 = vmatprep.subr.bf16.mxu0 0
    %5362 = vmatpush1.bf16.msra.mxu0 0
    %5363 = vmatprep.subr.bf16.mxu0 0
    %5364 = vmatpush1.bf16.msra.mxu0 0
    %5365 = vmatprep.subr.bf16.mxu0 0
    %5366 = vmatpush1.bf16.msra.mxu0 0
    %5367 = vmatprep.subr.bf16.mxu0 0
    %5368 = vmatpush1.bf16.msra.mxu0 0
    %5369 = vmatprep.mubr.bf16.mxu0 0
    %5370 = vmatmul.mubr.bf16.gmra.mrb[0].mxu0 %v5107
    %v5371 = vpop.f32.mrb[0].mxu0
    %v5372 = vadd.f32 0.0, %v5371
    %v5373 = vpop.f32.mrb[0].mxu0
    %v5374 = vadd.f32 0.0, %v5373
    %v5375 = vpop.f32.mrb[0].mxu0
    %v5376 = vadd.f32 0.0, %v5375
    %v5377 = vpop.f32.mrb[0].mxu0
    %v5378 = vadd.f32 0.0, %v5377
    %5379 = vmatprep.mubr.bf16.mxu0 0
    %5380 = vmatmul.mubr.bf16.gmra.mrb[0].mxu0 %v5110
    %v5381 = vpop.f32.mrb[0].mxu0
    %v5382 = vadd.f32 0.0, %v5381
    %v5383 = vpop.f32.mrb[0].mxu0
    %v5384 = vadd.f32 0.0, %v5383
    %v5385 = vpop.f32.mrb[0].mxu0
    %v5386 = vadd.f32 0.0, %v5385
    %v5387 = vpop.f32.mrb[0].mxu0
    %v5388 = vadd.f32 0.0, %v5387
    %5389 = vmatprep.mubr.bf16.mxu0 0
    %5390 = vmatmul.mubr.bf16.gmra.mrb[0].mxu0 %v5113
    %v5391 = vpop.f32.mrb[0].mxu0
    %v5392 = vadd.f32 0.0, %v5391
    %v5393 = vpop.f32.mrb[0].mxu0
    %v5394 = vadd.f32 0.0, %v5393
    %v5395 = vpop.f32.mrb[0].mxu0
    %v5396 = vadd.f32 0.0, %v5395
    %v5397 = vpop.f32.mrb[0].mxu0
    %v5398 = vadd.f32 0.0, %v5397
    %5399 = vmatprep.mubr.bf16.mxu0 0
    %5400 = vmatmul.mubr.bf16.gmra.mrb[0].mxu0 %v5116
    %v5401 = vpop.f32.mrb[0].mxu0
    %v5402 = vadd.f32 0.0, %v5401
    %v5403 = vpop.f32.mrb[0].mxu0
    %v5404 = vadd.f32 0.0, %v5403
    %v5405 = vpop.f32.mrb[0].mxu0
    %v5406 = vadd.f32 0.0, %v5405
    %v5407 = vpop.f32.mrb[0].mxu0
    %v5408 = vadd.f32 0.0, %v5407
    %5409 = vdwg.mxu0
    %v5410 = vsub.f32 %v5153, %v5309
    %v5411 = vsub.f32 %v5155, %v5311
    %v5412 = vsub.f32 %v5226, %v5382
    %v5413 = vsub.f32 %v5228, %v5384
    %v5414 = vsub.f32 %v5157, %v5313
    %v5415 = vsub.f32 %v5159, %v5315
    %v5416 = vsub.f32 %v5230, %v5386
    %v5417 = vsub.f32 %v5232, %v5388
    %v5418 = vadd.f32 %v5299, %v5163
    %v5419 = vadd.f32 %v5301, %v5165
    %v5420 = vadd.f32 %v5372, %v5236
    %v5421 = vadd.f32 %v5374, %v5238
    %v5422 = vadd.f32 %v5303, %v5167
    %v5423 = vadd.f32 %v5305, %v5169
    %v5424 = vadd.f32 %v5376, %v5240
    %v5425 = vadd.f32 %v5378, %v5242
    %v5426 = vsub.f32 %v5173, %v5329
    %v5427 = vsub.f32 %v5175, %v5331
    %v5428 = vsub.f32 %v5246, %v5402
    %v5429 = vsub.f32 %v5248, %v5404
    %v5430 = vsub.f32 %v5177, %v5333
    %v5431 = vsub.f32 %v5179, %v5335
    %v5432 = vsub.f32 %v5250, %v5406
    %v5433 = vsub.f32 %v5252, %v5408
    %v5434 = vadd.f32 %v5319, %v5183
    %v5435 = vadd.f32 %v5321, %v5185
    %v5436 = vadd.f32 %v5392, %v5256
    %v5437 = vadd.f32 %v5394, %v5258
    %v5438 = vadd.f32 %v5323, %v5187
    %v5439 = vadd.f32 %v5325, %v5189
    %v5440 = vadd.f32 %v5396, %v5260
    %v5441 = vadd.f32 %v5398, %v5262
    %v5442 = vpack.c.bf16 %v5414, %v5410
    %v5443 = vpack.c.bf16 %v5415, %v5411
    %v5444 = vpack.c.bf16 %v5416, %v5412
    %v5445 = vpack.c.bf16 %v5417, %v5413
    %v5446 = vpack.c.bf16 %v5422, %v5418
    %v5447 = vpack.c.bf16 %v5423, %v5419
    %v5448 = vpack.c.bf16 %v5424, %v5420
    %v5449 = vpack.c.bf16 %v5425, %v5421
    %v5450 = vpack.c.bf16 %v5430, %v5426
    %v5451 = vpack.c.bf16 %v5431, %v5427
    %v5452 = vpack.c.bf16 %v5432, %v5428
    %v5453 = vpack.c.bf16 %v5433, %v5429
    %v5454 = vpack.c.bf16 %v5438, %v5434
    %v5455 = vpack.c.bf16 %v5439, %v5435
    %v5456 = vpack.c.bf16 %v5440, %v5436
    %v5457 = vpack.c.bf16 %v5441, %v5437
    %v5458 = vmul.bf16 %v5442, %v1070
    %v5459 = vmul.bf16 %v5443, %v1071
    %v5460 = vmul.bf16 %v5444, %v1072
    %v5461 = vmul.bf16 %v5445, %v1073
    %v5462 = vmul.bf16 %v5446, %v1074
    %v5463 = vmul.bf16 %v5447, %v1075
    %v5464 = vmul.bf16 %v5448, %v1076
    %v5465 = vmul.bf16 %v5449, %v1077
    %v5466 = vmul.bf16 %v5450, %v1078
    %v5467 = vmul.bf16 %v5451, %v1079
    %v5468 = vmul.bf16 %v5452, %v1080
    %v5469 = vmul.bf16 %v5453, %v1081
    %v5470 = vmul.bf16 %v5454, %v1082
    %v5471 = vmul.bf16 %v5455, %v1083
    %v5472 = vmul.bf16 %v5456, %v1084
    %v5473 = vmul.bf16 %v5457, %v1085
    %5474 = vmatprep.subr.bf16.mxu0 0
    %5475 = vmatpush1.bf16.msra.mxu0 %v1246
    %5476 = vmatprep.subr.bf16.mxu0 0
    %5477 = vmatpush1.bf16.msra.mxu0 %v1247
    %5478 = vmatprep.subr.bf16.mxu0 0
    %5479 = vmatpush1.bf16.msra.mxu0 %v1248
    %5480 = vmatprep.subr.bf16.mxu0 0
    %5481 = vmatpush1.bf16.msra.mxu0 %v1249
    %5482 = vmatprep.subr.bf16.mxu0 0
    %5483 = vmatpush1.bf16.msra.mxu0 %v1250
    %5484 = vmatprep.subr.bf16.mxu0 0
    %5485 = vmatpush1.bf16.msra.mxu0 %v1251
    %5486 = vmatprep.subr.bf16.mxu0 0
    %5487 = vmatpush1.bf16.msra.mxu0 %v1252
    %5488 = vmatprep.subr.bf16.mxu0 0
    %5489 = vmatpush1.bf16.msra.mxu0 %v1253
    %5490 = vmatprep.subr.bf16.mxu0 0
    %5491 = vmatpush1.bf16.msra.mxu0 %v1254
    %5492 = vmatprep.subr.bf16.mxu0 0
    %5493 = vmatpush1.bf16.msra.mxu0 %v1255
    %5494 = vmatprep.subr.bf16.mxu0 0
    %5495 = vmatpush1.bf16.msra.mxu0 %v1256
    %5496 = vmatprep.subr.bf16.mxu0 0
    %5497 = vmatpush1.bf16.msra.mxu0 %v1257
    %5498 = vmatprep.subr.bf16.mxu0 0
    %5499 = vmatpush1.bf16.msra.mxu0 %v1258
    %5500 = vmatprep.subr.bf16.mxu0 0
    %5501 = vmatpush1.bf16.msra.mxu0 %v1259
    %5502 = vmatprep.subr.bf16.mxu0 0
    %5503 = vmatpush1.bf16.msra.mxu0 %v1260
    %5504 = vmatprep.subr.bf16.mxu0 0
    %5505 = vmatpush1.bf16.msra.mxu0 %v1261
    %5506 = vmatprep.mubr.bf16.mxu0 %v5459
    %5507 = vmatmul.mubr.bf16.gmra.mrb[0].mxu0 %v5458
    %v5508 = vpop.f32.mrb[0].mxu0
    %v5509 = vadd.f32 0.0, %v5508
    %v5510 = vpop.f32.mrb[0].mxu0
    %v5511 = vpop.f32.mrb[0].mxu0
    %v5512 = vadd.f32 0.0, %v5511
    %v5513 = vpop.f32.mrb[0].mxu0
    %5514 = vmatprep.mubr.bf16.mxu0 %v5463
    %5515 = vmatmul.mubr.bf16.gmra.mrb[0].mxu0 %v5462
    %v5516 = vpop.f32.mrb[0].mxu0
    %v5517 = vadd.f32 0.0, %v5516
    %v5518 = vpop.f32.mrb[0].mxu0
    %v5519 = vpop.f32.mrb[0].mxu0
    %v5520 = vadd.f32 0.0, %v5519
    %v5521 = vpop.f32.mrb[0].mxu0
    %5522 = vmatprep.mubr.bf16.mxu0 %v5467
    %5523 = vmatmul.mubr.bf16.gmra.mrb[0].mxu0 %v5466
    %v5524 = vpop.f32.mrb[0].mxu0
    %v5525 = vadd.f32 0.0, %v5524
    %v5526 = vpop.f32.mrb[0].mxu0
    %v5527 = vpop.f32.mrb[0].mxu0
    %v5528 = vadd.f32 0.0, %v5527
    %v5529 = vpop.f32.mrb[0].mxu0
    %5530 = vmatprep.mubr.bf16.mxu0 %v5471
    %5531 = vmatmul.mubr.bf16.gmra.mrb[0].mxu0 %v5470
    %v5532 = vpop.f32.mrb[0].mxu0
    %v5533 = vadd.f32 0.0, %v5532
    %v5534 = vpop.f32.mrb[0].mxu0
    %v5535 = vpop.f32.mrb[0].mxu0
    %v5536 = vadd.f32 0.0, %v5535
    %v5537 = vpop.f32.mrb[0].mxu0
    %5538 = vdwg.mxu0
    %5539 = vmatprep.subr.bf16.mxu0 0
    %5540 = vmatpush1.bf16.msra.mxu0 %v1262
    %5541 = vmatprep.subr.bf16.mxu0 0
    %5542 = vmatpush1.bf16.msra.mxu0 %v1263
    %5543 = vmatprep.subr.bf16.mxu0 0
    %5544 = vmatpush1.bf16.msra.mxu0 %v1264
    %5545 = vmatprep.subr.bf16.mxu0 0
    %5546 = vmatpush1.bf16.msra.mxu0 %v1265
    %5547 = vmatprep.subr.bf16.mxu0 0
    %5548 = vmatpush1.bf16.msra.mxu0 %v1266
    %5549 = vmatprep.subr.bf16.mxu0 0
    %5550 = vmatpush1.bf16.msra.mxu0 %v1267
    %5551 = vmatprep.subr.bf16.mxu0 0
    %5552 = vmatpush1.bf16.msra.mxu0 %v1268
    %5553 = vmatprep.subr.bf16.mxu0 0
    %5554 = vmatpush1.bf16.msra.mxu0 %v1269
    %5555 = vmatprep.subr.bf16.mxu0 0
    %5556 = vmatpush1.bf16.msra.mxu0 %v1270
    %5557 = vmatprep.subr.bf16.mxu0 0
    %5558 = vmatpush1.bf16.msra.mxu0 %v1271
    %5559 = vmatprep.subr.bf16.mxu0 0
    %5560 = vmatpush1.bf16.msra.mxu0 %v1272
    %5561 = vmatprep.subr.bf16.mxu0 0
    %5562 = vmatpush1.bf16.msra.mxu0 %v1273
    %5563 = vmatprep.subr.bf16.mxu0 0
    %5564 = vmatpush1.bf16.msra.mxu0 %v1274
    %5565 = vmatprep.subr.bf16.mxu0 0
    %5566 = vmatpush1.bf16.msra.mxu0 %v1275
    %5567 = vmatprep.subr.bf16.mxu0 0
    %5568 = vmatpush1.bf16.msra.mxu0 %v1276
    %5569 = vmatprep.subr.bf16.mxu0 0
    %5570 = vmatpush1.bf16.msra.mxu0 %v1277
    %5571 = vmatprep.mubr.bf16.mxu0 %v5461
    %5572 = vmatmul.mubr.bf16.gmra.mrb[0].mxu0 %v5460
    %v5573 = vpop.f32.mrb[0].mxu0
    %v5574 = vadd.f32 %v5509, %v5573
    %v5575 = vpop.f32.mrb[0].mxu0
    %v5576 = vpop.f32.mrb[0].mxu0
    %v5577 = vadd.f32 %v5512, %v5576
    %v5578 = vpop.f32.mrb[0].mxu0
    %5579 = vmatprep.mubr.bf16.mxu0 %v5465
    %5580 = vmatmul.mubr.bf16.gmra.mrb[0].mxu0 %v5464
    %v5581 = vpop.f32.mrb[0].mxu0
    %v5582 = vadd.f32 %v5517, %v5581
    %v5583 = vpop.f32.mrb[0].mxu0
    %v5584 = vpop.f32.mrb[0].mxu0
    %v5585 = vadd.f32 %v5520, %v5584
    %v5586 = vpop.f32.mrb[0].mxu0
    %5587 = vmatprep.mubr.bf16.mxu0 %v5469
    %5588 = vmatmul.mubr.bf16.gmra.mrb[0].mxu0 %v5468
    %v5589 = vpop.f32.mrb[0].mxu0
    %v5590 = vadd.f32 %v5525, %v5589
    %v5591 = vpop.f32.mrb[0].mxu0
    %v5592 = vpop.f32.mrb[0].mxu0
    %v5593 = vadd.f32 %v5528, %v5592
    %v5594 = vpop.f32.mrb[0].mxu0
    %5595 = vmatprep.mubr.bf16.mxu0 %v5473
    %5596 = vmatmul.mubr.bf16.gmra.mrb[0].mxu0 %v5472
    %v5597 = vpop.f32.mrb[0].mxu0
    %v5598 = vadd.f32 %v5533, %v5597
    %v5599 = vpop.f32.mrb[0].mxu0
    %v5600 = vpop.f32.mrb[0].mxu0
    %v5601 = vadd.f32 %v5536, %v5600
    %v5602 = vpop.f32.mrb[0].mxu0
    %5603 = vdwg.mxu0
    %v5604 = vpack.c.bf16 %v5577, %v5574
    %v5605 = vpack.c.bf16 %v5585, %v5582
    %v5606 = vpack.c.bf16 %v5593, %v5590
    %v5607 = vpack.c.bf16 %v5601, %v5598
    %s5608 = scalar_lea.vmem [#allocation7], 48
    %v5609 = vld [vmem:[%s5608] sm:$0xf]
    %v5610 = vld [vmem:[%s5608 + $0x4] sm:$0xf]
    %v5611 = vld [vmem:[%s5608 + $0x8] sm:$0xf]
    %v5612 = vld [vmem:[%s5608 + $0xc] sm:$0xf]
    %v5617 = vunpack.c.l.b16 %v5609
    %v5618 = vunpack.c.l.b16 %v5610
    %v5619 = vunpack.c.l.b16 %v5611
    %v5620 = vunpack.c.l.b16 %v5612
    %v5621 = vpack.c.b16 %v5618, %v5617
    %v5622 = vpack.c.b16 %v5620, %v5619
    %v5626 = vsel %vm669, %v4932, 0
    %v5629 = vsel %vm669, %v4933, 0
    %v5632 = vsel %vm669, %v4934, 0
    %v5635 = vsel %vm669, %v4935, 0
    %v5638 = vsel %vm669, %v4936, 0
    %v5641 = vsel %vm669, %v4937, 0
    %v5644 = vsel %vm669, %v4938, 0
    %v5647 = vsel %vm669, %v4939, 0
    %5649 = vmatprep.subr.bf16.mxu0 0
    %5650 = vmatpush1.bf16.msra.mxu0 %v5621
    %5651 = vmatprep.subr.bf16.mxu0 0
    %5652 = vmatpush1.bf16.msra.mxu0 %v5622
    %5653 = vmatprep.subr.bf16.mxu0 0
    %5654 = vmatpush1.bf16.msra.mxu0 0
    %5655 = vmatprep.subr.bf16.mxu0 0
    %5656 = vmatpush1.bf16.msra.mxu0 0
    %5657 = vmatprep.subr.bf16.mxu0 0
    %5658 = vmatpush1.bf16.msra.mxu0 0
    %5659 = vmatprep.subr.bf16.mxu0 0
    %5660 = vmatpush1.bf16.msra.mxu0 0
    %5661 = vmatprep.subr.bf16.mxu0 0
    %5662 = vmatpush1.bf16.msra.mxu0 0
    %5663 = vmatprep.subr.bf16.mxu0 0
    %5664 = vmatpush1.bf16.msra.mxu0 0
    %5665 = vmatprep.subr.bf16.mxu0 0
    %5666 = vmatpush1.bf16.msra.mxu0 0
    %5667 = vmatprep.subr.bf16.mxu0 0
    %5668 = vmatpush1.bf16.msra.mxu0 0
    %5669 = vmatprep.subr.bf16.mxu0 0
    %5670 = vmatpush1.bf16.msra.mxu0 0
    %5671 = vmatprep.subr.bf16.mxu0 0
    %5672 = vmatpush1.bf16.msra.mxu0 0
    %5673 = vmatprep.subr.bf16.mxu0 0
    %5674 = vmatpush1.bf16.msra.mxu0 0
    %5675 = vmatprep.subr.bf16.mxu0 0
    %5676 = vmatpush1.bf16.msra.mxu0 0
    %5677 = vmatprep.subr.bf16.mxu0 0
    %5678 = vmatpush1.bf16.msra.mxu0 0
    %5679 = vmatprep.subr.bf16.mxu0 0
    %5680 = vmatpush1.bf16.msra.mxu0 0
    %5681 = vmatprep.mubr.bf16.mxu0 0
    %5682 = vmatmul.mubr.bf16.gmra.mrb[0].mxu0 %v5626
    %v5683 = vpop.f32.mrb[0].mxu0
    %v5684 = vadd.f32 0.0, %v5683
    %v5685 = vpop.f32.mrb[0].mxu0
    %v5686 = vpop.f32.mrb[0].mxu0
    %v5687 = vadd.f32 0.0, %v5686
    %v5688 = vpop.f32.mrb[0].mxu0
    %5689 = vmatprep.mubr.bf16.mxu0 0
    %5690 = vmatmul.mubr.bf16.gmra.mrb[0].mxu0 %v5629
    %v5691 = vpop.f32.mrb[0].mxu0
    %v5692 = vadd.f32 0.0, %v5691
    %v5693 = vpop.f32.mrb[0].mxu0
    %v5694 = vpop.f32.mrb[0].mxu0
    %v5695 = vadd.f32 0.0, %v5694
    %v5696 = vpop.f32.mrb[0].mxu0
    %5697 = vmatprep.mubr.bf16.mxu0 0
    %5698 = vmatmul.mubr.bf16.gmra.mrb[0].mxu0 %v5632
    %v5699 = vpop.f32.mrb[0].mxu0
    %v5700 = vadd.f32 0.0, %v5699
    %v5701 = vpop.f32.mrb[0].mxu0
    %v5702 = vpop.f32.mrb[0].mxu0
    %v5703 = vadd.f32 0.0, %v5702
    %v5704 = vpop.f32.mrb[0].mxu0
    %5705 = vmatprep.mubr.bf16.mxu0 0
    %5706 = vmatmul.mubr.bf16.gmra.mrb[0].mxu0 %v5635
    %v5707 = vpop.f32.mrb[0].mxu0
    %v5708 = vadd.f32 0.0, %v5707
    %v5709 = vpop.f32.mrb[0].mxu0
    %v5710 = vpop.f32.mrb[0].mxu0
    %v5711 = vadd.f32 0.0, %v5710
    %v5712 = vpop.f32.mrb[0].mxu0
    %5713 = vmatprep.mubr.bf16.mxu0 0
    %5714 = vmatmul.mubr.bf16.gmra.mrb[0].mxu0 %v5638
    %v5715 = vpop.f32.mrb[0].mxu0
    %v5716 = vadd.f32 0.0, %v5715
    %v5717 = vpop.f32.mrb[0].mxu0
    %v5718 = vpop.f32.mrb[0].mxu0
    %v5719 = vadd.f32 0.0, %v5718
    %v5720 = vpop.f32.mrb[0].mxu0
    %5721 = vmatprep.mubr.bf16.mxu0 0
    %5722 = vmatmul.mubr.bf16.gmra.mrb[0].mxu0 %v5641
    %v5723 = vpop.f32.mrb[0].mxu0
    %v5724 = vadd.f32 0.0, %v5723
    %v5725 = vpop.f32.mrb[0].mxu0
    %v5726 = vpop.f32.mrb[0].mxu0
    %v5727 = vadd.f32 0.0, %v5726
    %v5728 = vpop.f32.mrb[0].mxu0
    %5729 = vmatprep.mubr.bf16.mxu0 0
    %5730 = vmatmul.mubr.bf16.gmra.mrb[0].mxu0 %v5644
    %v5731 = vpop.f32.mrb[0].mxu0
    %v5732 = vadd.f32 0.0, %v5731
    %v5733 = vpop.f32.mrb[0].mxu0
    %v5734 = vpop.f32.mrb[0].mxu0
    %v5735 = vadd.f32 0.0, %v5734
    %v5736 = vpop.f32.mrb[0].mxu0
    %5737 = vmatprep.mubr.bf16.mxu0 0
    %5738 = vmatmul.mubr.bf16.gmra.mrb[0].mxu0 %v5647
    %v5739 = vpop.f32.mrb[0].mxu0
    %v5740 = vadd.f32 0.0, %v5739
    %v5741 = vpop.f32.mrb[0].mxu0
    %v5742 = vpop.f32.mrb[0].mxu0
    %v5743 = vadd.f32 0.0, %v5742
    %v5744 = vpop.f32.mrb[0].mxu0
    %5745 = vdwg.mxu0
    %5746 = vmatprep.subr.bf16.mxu0 0
    %5747 = vmatpush1.bf16.msra.mxu0 %v5604
    %5748 = vmatprep.subr.bf16.mxu0 0
    %5749 = vmatpush1.bf16.msra.mxu0 %v5605
    %5750 = vmatprep.subr.bf16.mxu0 0
    %5751 = vmatpush1.bf16.msra.mxu0 %v5606
    %5752 = vmatprep.subr.bf16.mxu0 0
    %5753 = vmatpush1.bf16.msra.mxu0 %v5607
    %5754 = vmatprep.subr.bf16.mxu0 0
    %5755 = vmatpush1.bf16.msra.mxu0 0
    %5756 = vmatprep.subr.bf16.mxu0 0
    %5757 = vmatpush1.bf16.msra.mxu0 0
    %5758 = vmatprep.subr.bf16.mxu0 0
    %5759 = vmatpush1.bf16.msra.mxu0 0
    %5760 = vmatprep.subr.bf16.mxu0 0
    %5761 = vmatpush1.bf16.msra.mxu0 0
    %5762 = vmatprep.subr.bf16.mxu0 0
    %5763 = vmatpush1.bf16.msra.mxu0 0
    %5764 = vmatprep.subr.bf16.mxu0 0
    %5765 = vmatpush1.bf16.msra.mxu0 0
    %5766 = vmatprep.subr.bf16.mxu0 0
    %5767 = vmatpush1.bf16.msra.mxu0 0
    %5768 = vmatprep.subr.bf16.mxu0 0
    %5769 = vmatpush1.bf16.msra.mxu0 0
    %5770 = vmatprep.subr.bf16.mxu0 0
    %5771 = vmatpush1.bf16.msra.mxu0 0
    %5772 = vmatprep.subr.bf16.mxu0 0
    %5773 = vmatpush1.bf16.msra.mxu0 0
    %5774 = vmatprep.subr.bf16.mxu0 0
    %5775 = vmatpush1.bf16.msra.mxu0 0
    %5776 = vmatprep.subr.bf16.mxu0 0
    %5777 = vmatpush1.bf16.msra.mxu0 0
    %5778 = vmatprep.mubr.bf16.mxu0 0
    %5779 = vmatmul.mubr.bf16.gmra.mrb[0].mxu0 %v1623
    %v5780 = vpop.f32.mrb[0].mxu0
    %v5781 = vadd.f32 %v5684, %v5780
    %v5782 = vpop.f32.mrb[0].mxu0
    %v5783 = vpop.f32.mrb[0].mxu0
    %v5784 = vadd.f32 %v5687, %v5783
    %v5785 = vpop.f32.mrb[0].mxu0
    %5786 = vmatprep.mubr.bf16.mxu0 0
    %5787 = vmatmul.mubr.bf16.gmra.mrb[0].mxu0 %v1626
    %v5788 = vpop.f32.mrb[0].mxu0
    %v5789 = vadd.f32 %v5692, %v5788
    %v5790 = vpop.f32.mrb[0].mxu0
    %v5791 = vpop.f32.mrb[0].mxu0
    %v5792 = vadd.f32 %v5695, %v5791
    %v5793 = vpop.f32.mrb[0].mxu0
    %5794 = vmatprep.mubr.bf16.mxu0 0
    %5795 = vmatmul.mubr.bf16.gmra.mrb[0].mxu0 %v1629
    %v5796 = vpop.f32.mrb[0].mxu0
    %v5797 = vadd.f32 %v5700, %v5796
    %v5798 = vpop.f32.mrb[0].mxu0
    %v5799 = vpop.f32.mrb[0].mxu0
    %v5800 = vadd.f32 %v5703, %v5799
    %v5801 = vpop.f32.mrb[0].mxu0
    %5802 = vmatprep.mubr.bf16.mxu0 0
    %5803 = vmatmul.mubr.bf16.gmra.mrb[0].mxu0 %v1632
    %v5804 = vpop.f32.mrb[0].mxu0
    %v5805 = vadd.f32 %v5708, %v5804
    %v5806 = vpop.f32.mrb[0].mxu0
    %v5807 = vpop.f32.mrb[0].mxu0
    %v5808 = vadd.f32 %v5711, %v5807
    %v5809 = vpop.f32.mrb[0].mxu0
    %5810 = vmatprep.mubr.bf16.mxu0 0
    %5811 = vmatmul.mubr.bf16.gmra.mrb[0].mxu0 %v1635
    %v5812 = vpop.f32.mrb[0].mxu0
    %v5813 = vadd.f32 %v5716, %v5812
    %v5814 = vpop.f32.mrb[0].mxu0
    %v5815 = vpop.f32.mrb[0].mxu0
    %v5816 = vadd.f32 %v5719, %v5815
    %v5817 = vpop.f32.mrb[0].mxu0
    %5818 = vmatprep.mubr.bf16.mxu0 0
    %5819 = vmatmul.mubr.bf16.gmra.mrb[0].mxu0 %v1638
    %v5820 = vpop.f32.mrb[0].mxu0
    %v5821 = vadd.f32 %v5724, %v5820
    %v5822 = vpop.f32.mrb[0].mxu0
    %v5823 = vpop.f32.mrb[0].mxu0
    %v5824 = vadd.f32 %v5727, %v5823
    %v5825 = vpop.f32.mrb[0].mxu0
    %5826 = vmatprep.mubr.bf16.mxu0 0
    %5827 = vmatmul.mubr.bf16.gmra.mrb[0].mxu0 %v1641
    %v5828 = vpop.f32.mrb[0].mxu0
    %v5829 = vadd.f32 %v5732, %v5828
    %v5830 = vpop.f32.mrb[0].mxu0
    %v5831 = vpop.f32.mrb[0].mxu0
    %v5832 = vadd.f32 %v5735, %v5831
    %v5833 = vpop.f32.mrb[0].mxu0
    %5834 = vmatprep.mubr.bf16.mxu0 0
    %5835 = vmatmul.mubr.bf16.gmra.mrb[0].mxu0 %v1644
    %v5836 = vpop.f32.mrb[0].mxu0
    %v5837 = vadd.f32 %v5740, %v5836
    %v5838 = vpop.f32.mrb[0].mxu0
    %v5839 = vpop.f32.mrb[0].mxu0
    %v5840 = vadd.f32 %v5743, %v5839
    %v5841 = vpop.f32.mrb[0].mxu0
    %5842 = vdwg.mxu0
    %s5843 = scalar_lea.vmem %s9, 3
    %v5844 = vld [vmem:[%s5843] sm:$0x1]
    %v5846 = vlaneseq
    %v5847 = vshrl.u32 %v5846, 7
    %v5848 = vsub.s32 0, %v5847
    %v5849 = vrot.slane %v5844, %v5848
    %v5851 = vadd.f32 %v5781, %v5849
    %v5852 = vadd.f32 %v5784, %v5849
    %v5853 = vadd.f32 %v5789, %v5849
    %v5854 = vadd.f32 %v5792, %v5849
    %v5855 = vadd.f32 %v5797, %v5849
    %v5856 = vadd.f32 %v5800, %v5849
    %v5857 = vadd.f32 %v5805, %v5849
    %v5858 = vadd.f32 %v5808, %v5849
    %v5859 = vadd.f32 %v5813, %v5849
    %v5860 = vadd.f32 %v5816, %v5849
    %v5861 = vadd.f32 %v5821, %v5849
    %v5862 = vadd.f32 %v5824, %v5849
    %v5863 = vadd.f32 %v5829, %v5849
    %v5864 = vadd.f32 %v5832, %v5849
    %v5865 = vadd.f32 %v5837, %v5849
    %v5866 = vadd.f32 %v5840, %v5849
    %v5867 = vpack.c.bf16 %v5852, %v5851
    %v5868 = vpack.c.bf16 %v5854, %v5853
    %v5869 = vpack.c.bf16 %v5856, %v5855
    %v5870 = vpack.c.bf16 %v5858, %v5857
    %v5871 = vpack.c.bf16 %v5860, %v5859
    %v5872 = vpack.c.bf16 %v5862, %v5861
    %v5873 = vpack.c.bf16 %v5864, %v5863
    %v5874 = vpack.c.bf16 %v5866, %v5865
    %v5875 = vld [vmem:[#allocation8] sm:$0xff]
    %v5876 = vld [vmem:[#allocation8 + $0x8] sm:$0xff]
    %v5877 = vld [vmem:[#allocation8 + $0x10] sm:$0xff]
    %v5878 = vld [vmem:[#allocation8 + $0x18] sm:$0xff]
    %v5879 = vld [vmem:[#allocation10] sm:$0x3]
    %v5881 = vlaneseq
    %v5882 = vshrl.u32 %v5881, 7
    %v5883 = vsub.s32 0, %v5882
    %v5884 = vrot.slane %v5879, %v5883
    %v5885 = vlaneseq
    %v5886 = vshrl.u32 %v5885, 7
    %v5887 = vsub.s32 1, %v5886
    %v5888 = vrot.slane %v5879, %v5887
    %v5895 = vunpack.c.l.b16 %v5875
    %v5896 = vunpack.c.h.b16 %v5875
    %v5897 = vunpack.c.l.b16 %v5876
    %v5898 = vunpack.c.h.b16 %v5876
    %v5899 = vunpack.c.l.b16 %v5877
    %v5900 = vunpack.c.h.b16 %v5877
    %v5901 = vunpack.c.l.b16 %v5878
    %v5902 = vunpack.c.h.b16 %v5878
    %v5903 = vpack.c.b16 %v5897, %v5895
    %v5904 = vpack.c.b16 %v5898, %v5896
    %v5905 = vpack.c.b16 %v5901, %v5899
    %v5906 = vpack.c.b16 %v5902, %v5900
    %v5912 = vsel %vm669, %v5867, 0
    %v5915 = vsel %vm669, %v5868, 0
    %v5918 = vsel %vm669, %v5869, 0
    %v5921 = vsel %vm669, %v5870, 0
    %v5924 = vsel %vm669, %v5871, 0
    %v5927 = vsel %vm669, %v5872, 0
    %v5930 = vsel %vm669, %v5873, 0
    %v5933 = vsel %vm669, %v5874, 0
    %5935 = vmatprep.subr.bf16.mxu0 %v5904
    %5936 = vmatpush1.bf16.msra.mxu0 %v5903
    %5937 = vmatprep.subr.bf16.mxu0 %v5906
    %5938 = vmatpush1.bf16.msra.mxu0 %v5905
    %5939 = vmatprep.subr.bf16.mxu0 0
    %5940 = vmatpush1.bf16.msra.mxu0 0
    %5941 = vmatprep.subr.bf16.mxu0 0
    %5942 = vmatpush1.bf16.msra.mxu0 0
    %5943 = vmatprep.subr.bf16.mxu0 0
    %5944 = vmatpush1.bf16.msra.mxu0 0
    %5945 = vmatprep.subr.bf16.mxu0 0
    %5946 = vmatpush1.bf16.msra.mxu0 0
    %5947 = vmatprep.subr.bf16.mxu0 0
    %5948 = vmatpush1.bf16.msra.mxu0 0
    %5949 = vmatprep.subr.bf16.mxu0 0
    %5950 = vmatpush1.bf16.msra.mxu0 0
    %5951 = vmatprep.subr.bf16.mxu0 0
    %5952 = vmatpush1.bf16.msra.mxu0 0
    %5953 = vmatprep.subr.bf16.mxu0 0
    %5954 = vmatpush1.bf16.msra.mxu0 0
    %5955 = vmatprep.subr.bf16.mxu0 0
    %5956 = vmatpush1.bf16.msra.mxu0 0
    %5957 = vmatprep.subr.bf16.mxu0 0
    %5958 = vmatpush1.bf16.msra.mxu0 0
    %5959 = vmatprep.subr.bf16.mxu0 0
    %5960 = vmatpush1.bf16.msra.mxu0 0
    %5961 = vmatprep.subr.bf16.mxu0 0
    %5962 = vmatpush1.bf16.msra.mxu0 0
    %5963 = vmatprep.subr.bf16.mxu0 0
    %5964 = vmatpush1.bf16.msra.mxu0 0
    %5965 = vmatprep.subr.bf16.mxu0 0
    %5966 = vmatpush1.bf16.msra.mxu0 0
    %5967 = vmatprep.mubr.bf16.mxu0 0
    %5968 = vmatmul.mubr.bf16.gmra.mrb[0].mxu0 %v5912
    %v5969 = vpop.f32.mrb[0].mxu0
    %v5970 = vadd.f32 %v5884, %v5969
    %v5971 = vpop.f32.mrb[0].mxu0
    %v5972 = vadd.f32 %v5888, %v5971
    %v5973 = vpop.f32.mrb[0].mxu0
    %v5974 = vadd.f32 %v5884, %v5973
    %v5975 = vpop.f32.mrb[0].mxu0
    %v5976 = vadd.f32 %v5888, %v5975
    %5977 = vmatprep.mubr.bf16.mxu0 0
    %5978 = vmatmul.mubr.bf16.gmra.mrb[0].mxu0 %v5915
    %v5979 = vpop.f32.mrb[0].mxu0
    %v5980 = vadd.f32 %v5884, %v5979
    %v5981 = vpop.f32.mrb[0].mxu0
    %v5982 = vadd.f32 %v5888, %v5981
    %v5983 = vpop.f32.mrb[0].mxu0
    %v5984 = vadd.f32 %v5884, %v5983
    %v5985 = vpop.f32.mrb[0].mxu0
    %v5986 = vadd.f32 %v5888, %v5985
    %5987 = vmatprep.mubr.bf16.mxu0 0
    %5988 = vmatmul.mubr.bf16.gmra.mrb[0].mxu0 %v5918
    %v5989 = vpop.f32.mrb[0].mxu0
    %v5990 = vadd.f32 %v5884, %v5989
    %v5991 = vpop.f32.mrb[0].mxu0
    %v5992 = vadd.f32 %v5888, %v5991
    %v5993 = vpop.f32.mrb[0].mxu0
    %v5994 = vadd.f32 %v5884, %v5993
    %v5995 = vpop.f32.mrb[0].mxu0
    %v5996 = vadd.f32 %v5888, %v5995
    %5997 = vmatprep.mubr.bf16.mxu0 0
    %5998 = vmatmul.mubr.bf16.gmra.mrb[0].mxu0 %v5921
    %v5999 = vpop.f32.mrb[0].mxu0
    %v6000 = vadd.f32 %v5884, %v5999
    %v6001 = vpop.f32.mrb[0].mxu0
    %v6002 = vadd.f32 %v5888, %v6001
    %v6003 = vpop.f32.mrb[0].mxu0
    %v6004 = vadd.f32 %v5884, %v6003
    %v6005 = vpop.f32.mrb[0].mxu0
    %v6006 = vadd.f32 %v5888, %v6005
    %6007 = vmatprep.mubr.bf16.mxu0 0
    %6008 = vmatmul.mubr.bf16.gmra.mrb[0].mxu0 %v5924
    %v6009 = vpop.f32.mrb[0].mxu0
    %v6010 = vadd.f32 %v5884, %v6009
    %v6011 = vpop.f32.mrb[0].mxu0
    %v6012 = vadd.f32 %v5888, %v6011
    %v6013 = vpop.f32.mrb[0].mxu0
    %v6014 = vadd.f32 %v5884, %v6013
    %v6015 = vpop.f32.mrb[0].mxu0
    %v6016 = vadd.f32 %v5888, %v6015
    %6017 = vmatprep.mubr.bf16.mxu0 0
    %6018 = vmatmul.mubr.bf16.gmra.mrb[0].mxu0 %v5927
    %v6019 = vpop.f32.mrb[0].mxu0
    %v6020 = vadd.f32 %v5884, %v6019
    %v6021 = vpop.f32.mrb[0].mxu0
    %v6022 = vadd.f32 %v5888, %v6021
    %v6023 = vpop.f32.mrb[0].mxu0
    %v6024 = vadd.f32 %v5884, %v6023
    %v6025 = vpop.f32.mrb[0].mxu0
    %v6026 = vadd.f32 %v5888, %v6025
    %6027 = vmatprep.mubr.bf16.mxu0 0
    %6028 = vmatmul.mubr.bf16.gmra.mrb[0].mxu0 %v5930
    %v6029 = vpop.f32.mrb[0].mxu0
    %v6030 = vadd.f32 %v5884, %v6029
    %v6031 = vpop.f32.mrb[0].mxu0
    %v6032 = vadd.f32 %v5888, %v6031
    %v6033 = vpop.f32.mrb[0].mxu0
    %v6034 = vadd.f32 %v5884, %v6033
    %v6035 = vpop.f32.mrb[0].mxu0
    %v6036 = vadd.f32 %v5888, %v6035
    %6037 = vmatprep.mubr.bf16.mxu0 0
    %6038 = vmatmul.mubr.bf16.gmra.mrb[0].mxu0 %v5933
    %v6039 = vpop.f32.mrb[0].mxu0
    %v6040 = vadd.f32 %v5884, %v6039
    %v6041 = vpop.f32.mrb[0].mxu0
    %v6042 = vadd.f32 %v5888, %v6041
    %v6043 = vpop.f32.mrb[0].mxu0
    %v6044 = vadd.f32 %v5884, %v6043
    %v6045 = vpop.f32.mrb[0].mxu0
    %v6046 = vadd.f32 %v5888, %v6045
    %6047 = vdwg.mxu0
    %v6048 = vmul.f32 %v5970, 0.5
    %v6049 = vmul.f32 %v5972, 0.5
    %v6050 = vmul.f32 %v5974, 0.5
    %v6051 = vmul.f32 %v5976, 0.5
    %v6052 = vmul.f32 %v5980, 0.5
    %v6053 = vmul.f32 %v5982, 0.5
    %v6054 = vmul.f32 %v5984, 0.5
    %v6055 = vmul.f32 %v5986, 0.5
    %v6056 = vmul.f32 %v5990, 0.5
    %v6057 = vmul.f32 %v5992, 0.5
    %v6058 = vmul.f32 %v5994, 0.5
    %v6059 = vmul.f32 %v5996, 0.5
    %v6060 = vmul.f32 %v6000, 0.5
    %v6061 = vmul.f32 %v6002, 0.5
    %v6062 = vmul.f32 %v6004, 0.5
    %v6063 = vmul.f32 %v6006, 0.5
    %v6064 = vmul.f32 %v6010, 0.5
    %v6065 = vmul.f32 %v6012, 0.5
    %v6066 = vmul.f32 %v6014, 0.5
    %v6067 = vmul.f32 %v6016, 0.5
    %v6068 = vmul.f32 %v6020, 0.5
    %v6069 = vmul.f32 %v6022, 0.5
    %v6070 = vmul.f32 %v6024, 0.5
    %v6071 = vmul.f32 %v6026, 0.5
    %v6072 = vmul.f32 %v6030, 0.5
    %v6073 = vmul.f32 %v6032, 0.5
    %v6074 = vmul.f32 %v6034, 0.5
    %v6075 = vmul.f32 %v6036, 0.5
    %v6076 = vmul.f32 %v6040, 0.5
    %v6077 = vmul.f32 %v6042, 0.5
    %v6078 = vmul.f32 %v6044, 0.5
    %v6079 = vmul.f32 %v6046, 0.5
    %v6080 = vmul.f32 %v5970, 0.70710677
    %v6081 = vmul.f32 %v5972, 0.70710677
    %v6082 = vmul.f32 %v5974, 0.70710677
    %v6083 = vmul.f32 %v5976, 0.70710677
    %v6084 = vmul.f32 %v5980, 0.70710677
    %v6085 = vmul.f32 %v5982, 0.70710677
    %v6086 = vmul.f32 %v5984, 0.70710677
    %v6087 = vmul.f32 %v5986, 0.70710677
    %v6088 = vmul.f32 %v5990, 0.70710677
    %v6089 = vmul.f32 %v5992, 0.70710677
    %v6090 = vmul.f32 %v5994, 0.70710677
    %v6091 = vmul.f32 %v5996, 0.70710677
    %v6092 = vmul.f32 %v6000, 0.70710677
    %v6093 = vmul.f32 %v6002, 0.70710677
    %v6094 = vmul.f32 %v6004, 0.70710677
    %v6095 = vmul.f32 %v6006, 0.70710677
    %v6096 = vmul.f32 %v6010, 0.70710677
    %v6097 = vmul.f32 %v6012, 0.70710677
    %v6098 = vmul.f32 %v6014, 0.70710677
    %v6099 = vmul.f32 %v6016, 0.70710677
    %v6100 = vmul.f32 %v6020, 0.70710677
    %v6101 = vmul.f32 %v6022, 0.70710677
    %v6102 = vmul.f32 %v6024, 0.70710677
    %v6103 = vmul.f32 %v6026, 0.70710677
    %v6104 = vmul.f32 %v6030, 0.70710677
    %v6105 = vmul.f32 %v6032, 0.70710677
    %v6106 = vmul.f32 %v6034, 0.70710677
    %v6107 = vmul.f32 %v6036, 0.70710677
    %v6108 = vmul.f32 %v6040, 0.70710677
    %v6109 = vmul.f32 %v6042, 0.70710677
    %v6110 = vmul.f32 %v6044, 0.70710677
    %v6111 = vmul.f32 %v6046, 0.70710677
    %vm6112 = vcmp.ge.f32.partialorder %v6080, 0.0
    %vm6113 = vcmp.ge.f32.partialorder %v6081, 0.0
    %vm6114 = vcmp.ge.f32.partialorder %v6082, 0.0
    %vm6115 = vcmp.ge.f32.partialorder %v6083, 0.0
    %vm6116 = vcmp.ge.f32.partialorder %v6084, 0.0
    %vm6117 = vcmp.ge.f32.partialorder %v6085, 0.0
    %vm6118 = vcmp.ge.f32.partialorder %v6086, 0.0
    %vm6119 = vcmp.ge.f32.partialorder %v6087, 0.0
    %vm6120 = vcmp.ge.f32.partialorder %v6088, 0.0
    %vm6121 = vcmp.ge.f32.partialorder %v6089, 0.0
    %vm6122 = vcmp.ge.f32.partialorder %v6090, 0.0
    %vm6123 = vcmp.ge.f32.partialorder %v6091, 0.0
    %vm6124 = vcmp.ge.f32.partialorder %v6092, 0.0
    %vm6125 = vcmp.ge.f32.partialorder %v6093, 0.0
    %vm6126 = vcmp.ge.f32.partialorder %v6094, 0.0
    %vm6127 = vcmp.ge.f32.partialorder %v6095, 0.0
    %vm6128 = vcmp.ge.f32.partialorder %v6096, 0.0
    %vm6129 = vcmp.ge.f32.partialorder %v6097, 0.0
    %vm6130 = vcmp.ge.f32.partialorder %v6098, 0.0
    %vm6131 = vcmp.ge.f32.partialorder %v6099, 0.0
    %vm6132 = vcmp.ge.f32.partialorder %v6100, 0.0
    %vm6133 = vcmp.ge.f32.partialorder %v6101, 0.0
    %vm6134 = vcmp.ge.f32.partialorder %v6102, 0.0
    %vm6135 = vcmp.ge.f32.partialorder %v6103, 0.0
    %vm6136 = vcmp.ge.f32.partialorder %v6104, 0.0
    %vm6137 = vcmp.ge.f32.partialorder %v6105, 0.0
    %vm6138 = vcmp.ge.f32.partialorder %v6106, 0.0
    %vm6139 = vcmp.ge.f32.partialorder %v6107, 0.0
    %vm6140 = vcmp.ge.f32.partialorder %v6108, 0.0
    %vm6141 = vcmp.ge.f32.partialorder %v6109, 0.0
    %vm6142 = vcmp.ge.f32.partialorder %v6110, 0.0
    %vm6143 = vcmp.ge.f32.partialorder %v6111, 0.0
    %v6144 = vsel %vm6112, 1.0, -1.0
    %v6145 = vsel %vm6113, 1.0, -1.0
    %v6146 = vsel %vm6114, 1.0, -1.0
    %v6147 = vsel %vm6115, 1.0, -1.0
    %v6148 = vsel %vm6116, 1.0, -1.0
    %v6149 = vsel %vm6117, 1.0, -1.0
    %v6150 = vsel %vm6118, 1.0, -1.0
    %v6151 = vsel %vm6119, 1.0, -1.0
    %v6152 = vsel %vm6120, 1.0, -1.0
    %v6153 = vsel %vm6121, 1.0, -1.0
    %v6154 = vsel %vm6122, 1.0, -1.0
    %v6155 = vsel %vm6123, 1.0, -1.0
    %v6156 = vsel %vm6124, 1.0, -1.0
    %v6157 = vsel %vm6125, 1.0, -1.0
    %v6158 = vsel %vm6126, 1.0, -1.0
    %v6159 = vsel %vm6127, 1.0, -1.0
    %v6160 = vsel %vm6128, 1.0, -1.0
    %v6161 = vsel %vm6129, 1.0, -1.0
    %v6162 = vsel %vm6130, 1.0, -1.0
    %v6163 = vsel %vm6131, 1.0, -1.0
    %v6164 = vsel %vm6132, 1.0, -1.0
    %v6165 = vsel %vm6133, 1.0, -1.0
    %v6166 = vsel %vm6134, 1.0, -1.0
    %v6167 = vsel %vm6135, 1.0, -1.0
    %v6168 = vsel %vm6136, 1.0, -1.0
    %v6169 = vsel %vm6137, 1.0, -1.0
    %v6170 = vsel %vm6138, 1.0, -1.0
    %v6171 = vsel %vm6139, 1.0, -1.0
    %v6172 = vsel %vm6140, 1.0, -1.0
    %v6173 = vsel %vm6141, 1.0, -1.0
    %v6174 = vsel %vm6142, 1.0, -1.0
    %v6175 = vsel %vm6143, 1.0, -1.0
    %v6176 = vand.u32 2147483647, %v6080
    %v6177 = vand.u32 2147483647, %v6081
    %v6178 = vand.u32 2147483647, %v6082
    %v6179 = vand.u32 2147483647, %v6083
    %v6180 = vand.u32 2147483647, %v6084
    %v6181 = vand.u32 2147483647, %v6085
    %v6182 = vand.u32 2147483647, %v6086
    %v6183 = vand.u32 2147483647, %v6087
    %v6184 = vand.u32 2147483647, %v6088
    %v6185 = vand.u32 2147483647, %v6089
    %v6186 = vand.u32 2147483647, %v6090
    %v6187 = vand.u32 2147483647, %v6091
    %v6188 = vand.u32 2147483647, %v6092
    %v6189 = vand.u32 2147483647, %v6093
    %v6190 = vand.u32 2147483647, %v6094
    %v6191 = vand.u32 2147483647, %v6095
    %v6192 = vand.u32 2147483647, %v6096
    %v6193 = vand.u32 2147483647, %v6097
    %v6194 = vand.u32 2147483647, %v6098
    %v6195 = vand.u32 2147483647, %v6099
    %v6196 = vand.u32 2147483647, %v6100
    %v6197 = vand.u32 2147483647, %v6101
    %v6198 = vand.u32 2147483647, %v6102
    %v6199 = vand.u32 2147483647, %v6103
    %v6200 = vand.u32 2147483647, %v6104
    %v6201 = vand.u32 2147483647, %v6105
    %v6202 = vand.u32 2147483647, %v6106
    %v6203 = vand.u32 2147483647, %v6107
    %v6204 = vand.u32 2147483647, %v6108
    %v6205 = vand.u32 2147483647, %v6109
    %v6206 = vand.u32 2147483647, %v6110
    %v6207 = vand.u32 2147483647, %v6111
    %v6208 = vmul.f32 %v6176, 0.3275911
    %v6209 = vmul.f32 %v6177, 0.3275911
    %v6210 = vmul.f32 %v6178, 0.3275911
    %v6211 = vmul.f32 %v6179, 0.3275911
    %v6212 = vmul.f32 %v6180, 0.3275911
    %v6213 = vmul.f32 %v6181, 0.3275911
    %v6214 = vmul.f32 %v6182, 0.3275911
    %v6215 = vmul.f32 %v6183, 0.3275911
    %v6216 = vmul.f32 %v6184, 0.3275911
    %v6217 = vmul.f32 %v6185, 0.3275911
    %v6218 = vmul.f32 %v6186, 0.3275911
    %v6219 = vmul.f32 %v6187, 0.3275911
    %v6220 = vmul.f32 %v6188, 0.3275911
    %v6221 = vmul.f32 %v6189, 0.3275911
    %v6222 = vmul.f32 %v6190, 0.3275911
    %v6223 = vmul.f32 %v6191, 0.3275911
    %v6224 = vmul.f32 %v6192, 0.3275911
    %v6225 = vmul.f32 %v6193, 0.3275911
    %v6226 = vmul.f32 %v6194, 0.3275911
    %v6227 = vmul.f32 %v6195, 0.3275911
    %v6228 = vmul.f32 %v6196, 0.3275911
    %v6229 = vmul.f32 %v6197, 0.3275911
    %v6230 = vmul.f32 %v6198, 0.3275911
    %v6231 = vmul.f32 %v6199, 0.3275911
    %v6232 = vmul.f32 %v6200, 0.3275911
    %v6233 = vmul.f32 %v6201, 0.3275911
    %v6234 = vmul.f32 %v6202, 0.3275911
    %v6235 = vmul.f32 %v6203, 0.3275911
    %v6236 = vmul.f32 %v6204, 0.3275911
    %v6237 = vmul.f32 %v6205, 0.3275911
    %v6238 = vmul.f32 %v6206, 0.3275911
    %v6239 = vmul.f32 %v6207, 0.3275911
    %v6240 = vadd.f32 %v6208, 1.0
    %v6241 = vadd.f32 %v6209, 1.0
    %v6242 = vadd.f32 %v6210, 1.0
    %v6243 = vadd.f32 %v6211, 1.0
    %v6244 = vadd.f32 %v6212, 1.0
    %v6245 = vadd.f32 %v6213, 1.0
    %v6246 = vadd.f32 %v6214, 1.0
    %v6247 = vadd.f32 %v6215, 1.0
    %v6248 = vadd.f32 %v6216, 1.0
    %v6249 = vadd.f32 %v6217, 1.0
    %v6250 = vadd.f32 %v6218, 1.0
    %v6251 = vadd.f32 %v6219, 1.0
    %v6252 = vadd.f32 %v6220, 1.0
    %v6253 = vadd.f32 %v6221, 1.0
    %v6254 = vadd.f32 %v6222, 1.0
    %v6255 = vadd.f32 %v6223, 1.0
    %v6256 = vadd.f32 %v6224, 1.0
    %v6257 = vadd.f32 %v6225, 1.0
    %v6258 = vadd.f32 %v6226, 1.0
    %v6259 = vadd.f32 %v6227, 1.0
    %v6260 = vadd.f32 %v6228, 1.0
    %v6261 = vadd.f32 %v6229, 1.0
    %v6262 = vadd.f32 %v6230, 1.0
    %v6263 = vadd.f32 %v6231, 1.0
    %v6264 = vadd.f32 %v6232, 1.0
    %v6265 = vadd.f32 %v6233, 1.0
    %v6266 = vadd.f32 %v6234, 1.0
    %v6267 = vadd.f32 %v6235, 1.0
    %v6268 = vadd.f32 %v6236, 1.0
    %v6269 = vadd.f32 %v6237, 1.0
    %v6270 = vadd.f32 %v6238, 1.0
    %v6271 = vadd.f32 %v6239, 1.0
    %v6272 = vrcp.pop %v6240
    %v6273 = vmul.f32 1.0, %v6272
    %v6274 = vrcp.pop %v6241
    %v6275 = vmul.f32 1.0, %v6274
    %v6276 = vrcp.pop %v6242
    %v6277 = vmul.f32 1.0, %v6276
    %v6278 = vrcp.pop %v6243
    %v6279 = vmul.f32 1.0, %v6278
    %v6280 = vrcp.pop %v6244
    %v6281 = vmul.f32 1.0, %v6280
    %v6282 = vrcp.pop %v6245
    %v6283 = vmul.f32 1.0, %v6282
    %v6284 = vrcp.pop %v6246
    %v6285 = vmul.f32 1.0, %v6284
    %v6286 = vrcp.pop %v6247
    %v6287 = vmul.f32 1.0, %v6286
    %v6288 = vrcp.pop %v6248
    %v6289 = vmul.f32 1.0, %v6288
    %v6290 = vrcp.pop %v6249
    %v6291 = vmul.f32 1.0, %v6290
    %v6292 = vrcp.pop %v6250
    %v6293 = vmul.f32 1.0, %v6292
    %v6294 = vrcp.pop %v6251
    %v6295 = vmul.f32 1.0, %v6294
    %v6296 = vrcp.pop %v6252
    %v6297 = vmul.f32 1.0, %v6296
    %v6298 = vrcp.pop %v6253
    %v6299 = vmul.f32 1.0, %v6298
    %v6300 = vrcp.pop %v6254
    %v6301 = vmul.f32 1.0, %v6300
    %v6302 = vrcp.pop %v6255
    %v6303 = vmul.f32 1.0, %v6302
    %v6304 = vrcp.pop %v6256
    %v6305 = vmul.f32 1.0, %v6304
    %v6306 = vrcp.pop %v6257
    %v6307 = vmul.f32 1.0, %v6306
    %v6308 = vrcp.pop %v6258
    %v6309 = vmul.f32 1.0, %v6308
    %v6310 = vrcp.pop %v6259
    %v6311 = vmul.f32 1.0, %v6310
    %v6312 = vrcp.pop %v6260
    %v6313 = vmul.f32 1.0, %v6312
    %v6314 = vrcp.pop %v6261
    %v6315 = vmul.f32 1.0, %v6314
    %v6316 = vrcp.pop %v6262
    %v6317 = vmul.f32 1.0, %v6316
    %v6318 = vrcp.pop %v6263
    %v6319 = vmul.f32 1.0, %v6318
    %v6320 = vrcp.pop %v6264
    %v6321 = vmul.f32 1.0, %v6320
    %v6322 = vrcp.pop %v6265
    %v6323 = vmul.f32 1.0, %v6322
    %v6324 = vrcp.pop %v6266
    %v6325 = vmul.f32 1.0, %v6324
    %v6326 = vrcp.pop %v6267
    %v6327 = vmul.f32 1.0, %v6326
    %v6328 = vrcp.pop %v6268
    %v6329 = vmul.f32 1.0, %v6328
    %v6330 = vrcp.pop %v6269
    %v6331 = vmul.f32 1.0, %v6330
    %v6332 = vrcp.pop %v6270
    %v6333 = vmul.f32 1.0, %v6332
    %v6334 = vrcp.pop %v6271
    %v6335 = vmul.f32 1.0, %v6334
    %v6336 = vmul.f32 %v6273, 1.0614054
    %v6337 = vmul.f32 %v6275, 1.0614054
    %v6338 = vmul.f32 %v6277, 1.0614054
    %v6339 = vmul.f32 %v6279, 1.0614054
    %v6340 = vmul.f32 %v6281, 1.0614054
    %v6341 = vmul.f32 %v6283, 1.0614054
    %v6342 = vmul.f32 %v6285, 1.0614054
    %v6343 = vmul.f32 %v6287, 1.0614054
    %v6344 = vmul.f32 %v6289, 1.0614054
    %v6345 = vmul.f32 %v6291, 1.0614054
    %v6346 = vmul.f32 %v6293, 1.0614054
    %v6347 = vmul.f32 %v6295, 1.0614054
    %v6348 = vmul.f32 %v6297, 1.0614054
    %v6349 = vmul.f32 %v6299, 1.0614054
    %v6350 = vmul.f32 %v6301, 1.0614054
    %v6351 = vmul.f32 %v6303, 1.0614054
    %v6352 = vmul.f32 %v6305, 1.0614054
    %v6353 = vmul.f32 %v6307, 1.0614054
    %v6354 = vmul.f32 %v6309, 1.0614054
    %v6355 = vmul.f32 %v6311, 1.0614054
    %v6356 = vmul.f32 %v6313, 1.0614054
    %v6357 = vmul.f32 %v6315, 1.0614054
    %v6358 = vmul.f32 %v6317, 1.0614054
    %v6359 = vmul.f32 %v6319, 1.0614054
    %v6360 = vmul.f32 %v6321, 1.0614054
    %v6361 = vmul.f32 %v6323, 1.0614054
    %v6362 = vmul.f32 %v6325, 1.0614054
    %v6363 = vmul.f32 %v6327, 1.0614054
    %v6364 = vmul.f32 %v6329, 1.0614054
    %v6365 = vmul.f32 %v6331, 1.0614054
    %v6366 = vmul.f32 %v6333, 1.0614054
    %v6367 = vmul.f32 %v6335, 1.0614054
    %v6368 = vadd.f32 %v6336, -1.4531521
    %v6369 = vadd.f32 %v6337, -1.4531521
    %v6370 = vadd.f32 %v6338, -1.4531521
    %v6371 = vadd.f32 %v6339, -1.4531521
    %v6372 = vadd.f32 %v6340, -1.4531521
    %v6373 = vadd.f32 %v6341, -1.4531521
    %v6374 = vadd.f32 %v6342, -1.4531521
    %v6375 = vadd.f32 %v6343, -1.4531521
    %v6376 = vadd.f32 %v6344, -1.4531521
    %v6377 = vadd.f32 %v6345, -1.4531521
    %v6378 = vadd.f32 %v6346, -1.4531521
    %v6379 = vadd.f32 %v6347, -1.4531521
    %v6380 = vadd.f32 %v6348, -1.4531521
    %v6381 = vadd.f32 %v6349, -1.4531521
    %v6382 = vadd.f32 %v6350, -1.4531521
    %v6383 = vadd.f32 %v6351, -1.4531521
    %v6384 = vadd.f32 %v6352, -1.4531521
    %v6385 = vadd.f32 %v6353, -1.4531521
    %v6386 = vadd.f32 %v6354, -1.4531521
    %v6387 = vadd.f32 %v6355, -1.4531521
    %v6388 = vadd.f32 %v6356, -1.4531521
    %v6389 = vadd.f32 %v6357, -1.4531521
    %v6390 = vadd.f32 %v6358, -1.4531521
    %v6391 = vadd.f32 %v6359, -1.4531521
    %v6392 = vadd.f32 %v6360, -1.4531521
    %v6393 = vadd.f32 %v6361, -1.4531521
    %v6394 = vadd.f32 %v6362, -1.4531521
    %v6395 = vadd.f32 %v6363, -1.4531521
    %v6396 = vadd.f32 %v6364, -1.4531521
    %v6397 = vadd.f32 %v6365, -1.4531521
    %v6398 = vadd.f32 %v6366, -1.4531521
    %v6399 = vadd.f32 %v6367, -1.4531521
    %v6400 = vmul.f32 %v6368, %v6273
    %v6401 = vmul.f32 %v6369, %v6275
    %v6402 = vmul.f32 %v6370, %v6277
    %v6403 = vmul.f32 %v6371, %v6279
    %v6404 = vmul.f32 %v6372, %v6281
    %v6405 = vmul.f32 %v6373, %v6283
    %v6406 = vmul.f32 %v6374, %v6285
    %v6407 = vmul.f32 %v6375, %v6287
    %v6408 = vmul.f32 %v6376, %v6289
    %v6409 = vmul.f32 %v6377, %v6291
    %v6410 = vmul.f32 %v6378, %v6293
    %v6411 = vmul.f32 %v6379, %v6295
    %v6412 = vmul.f32 %v6380, %v6297
    %v6413 = vmul.f32 %v6381, %v6299
    %v6414 = vmul.f32 %v6382, %v6301
    %v6415 = vmul.f32 %v6383, %v6303
    %v6416 = vmul.f32 %v6384, %v6305
    %v6417 = vmul.f32 %v6385, %v6307
    %v6418 = vmul.f32 %v6386, %v6309
    %v6419 = vmul.f32 %v6387, %v6311
    %v6420 = vmul.f32 %v6388, %v6313
    %v6421 = vmul.f32 %v6389, %v6315
    %v6422 = vmul.f32 %v6390, %v6317
    %v6423 = vmul.f32 %v6391, %v6319
    %v6424 = vmul.f32 %v6392, %v6321
    %v6425 = vmul.f32 %v6393, %v6323
    %v6426 = vmul.f32 %v6394, %v6325
    %v6427 = vmul.f32 %v6395, %v6327
    %v6428 = vmul.f32 %v6396, %v6329
    %v6429 = vmul.f32 %v6397, %v6331
    %v6430 = vmul.f32 %v6398, %v6333
    %v6431 = vmul.f32 %v6399, %v6335
    %v6432 = vadd.f32 %v6400, 1.4214138
    %v6433 = vadd.f32 %v6401, 1.4214138
    %v6434 = vadd.f32 %v6402, 1.4214138
    %v6435 = vadd.f32 %v6403, 1.4214138
    %v6436 = vadd.f32 %v6404, 1.4214138
    %v6437 = vadd.f32 %v6405, 1.4214138
    %v6438 = vadd.f32 %v6406, 1.4214138
    %v6439 = vadd.f32 %v6407, 1.4214138
    %v6440 = vadd.f32 %v6408, 1.4214138
    %v6441 = vadd.f32 %v6409, 1.4214138
    %v6442 = vadd.f32 %v6410, 1.4214138
    %v6443 = vadd.f32 %v6411, 1.4214138
    %v6444 = vadd.f32 %v6412, 1.4214138
    %v6445 = vadd.f32 %v6413, 1.4214138
    %v6446 = vadd.f32 %v6414, 1.4214138
    %v6447 = vadd.f32 %v6415, 1.4214138
    %v6448 = vadd.f32 %v6416, 1.4214138
    %v6449 = vadd.f32 %v6417, 1.4214138
    %v6450 = vadd.f32 %v6418, 1.4214138
    %v6451 = vadd.f32 %v6419, 1.4214138
    %v6452 = vadd.f32 %v6420, 1.4214138
    %v6453 = vadd.f32 %v6421, 1.4214138
    %v6454 = vadd.f32 %v6422, 1.4214138
    %v6455 = vadd.f32 %v6423, 1.4214138
    %v6456 = vadd.f32 %v6424, 1.4214138
    %v6457 = vadd.f32 %v6425, 1.4214138
    %v6458 = vadd.f32 %v6426, 1.4214138
    %v6459 = vadd.f32 %v6427, 1.4214138
    %v6460 = vadd.f32 %v6428, 1.4214138
    %v6461 = vadd.f32 %v6429, 1.4214138
    %v6462 = vadd.f32 %v6430, 1.4214138
    %v6463 = vadd.f32 %v6431, 1.4214138
    %v6464 = vmul.f32 %v6432, %v6273
    %v6465 = vmul.f32 %v6433, %v6275
    %v6466 = vmul.f32 %v6434, %v6277
    %v6467 = vmul.f32 %v6435, %v6279
    %v6468 = vmul.f32 %v6436, %v6281
    %v6469 = vmul.f32 %v6437, %v6283
    %v6470 = vmul.f32 %v6438, %v6285
    %v6471 = vmul.f32 %v6439, %v6287
    %v6472 = vmul.f32 %v6440, %v6289
    %v6473 = vmul.f32 %v6441, %v6291
    %v6474 = vmul.f32 %v6442, %v6293
    %v6475 = vmul.f32 %v6443, %v6295
    %v6476 = vmul.f32 %v6444, %v6297
    %v6477 = vmul.f32 %v6445, %v6299
    %v6478 = vmul.f32 %v6446, %v6301
    %v6479 = vmul.f32 %v6447, %v6303
    %v6480 = vmul.f32 %v6448, %v6305
    %v6481 = vmul.f32 %v6449, %v6307
    %v6482 = vmul.f32 %v6450, %v6309
    %v6483 = vmul.f32 %v6451, %v6311
    %v6484 = vmul.f32 %v6452, %v6313
    %v6485 = vmul.f32 %v6453, %v6315
    %v6486 = vmul.f32 %v6454, %v6317
    %v6487 = vmul.f32 %v6455, %v6319
    %v6488 = vmul.f32 %v6456, %v6321
    %v6489 = vmul.f32 %v6457, %v6323
    %v6490 = vmul.f32 %v6458, %v6325
    %v6491 = vmul.f32 %v6459, %v6327
    %v6492 = vmul.f32 %v6460, %v6329
    %v6493 = vmul.f32 %v6461, %v6331
    %v6494 = vmul.f32 %v6462, %v6333
    %v6495 = vmul.f32 %v6463, %v6335
    %v6496 = vadd.f32 %v6464, -0.28449672
    %v6497 = vadd.f32 %v6465, -0.28449672
    %v6498 = vadd.f32 %v6466, -0.28449672
    %v6499 = vadd.f32 %v6467, -0.28449672
    %v6500 = vadd.f32 %v6468, -0.28449672
    %v6501 = vadd.f32 %v6469, -0.28449672
    %v6502 = vadd.f32 %v6470, -0.28449672
    %v6503 = vadd.f32 %v6471, -0.28449672
    %v6504 = vadd.f32 %v6472, -0.28449672
    %v6505 = vadd.f32 %v6473, -0.28449672
    %v6506 = vadd.f32 %v6474, -0.28449672
    %v6507 = vadd.f32 %v6475, -0.28449672
    %v6508 = vadd.f32 %v6476, -0.28449672
    %v6509 = vadd.f32 %v6477, -0.28449672
    %v6510 = vadd.f32 %v6478, -0.28449672
    %v6511 = vadd.f32 %v6479, -0.28449672
    %v6512 = vadd.f32 %v6480, -0.28449672
    %v6513 = vadd.f32 %v6481, -0.28449672
    %v6514 = vadd.f32 %v6482, -0.28449672
    %v6515 = vadd.f32 %v6483, -0.28449672
    %v6516 = vadd.f32 %v6484, -0.28449672
    %v6517 = vadd.f32 %v6485, -0.28449672
    %v6518 = vadd.f32 %v6486, -0.28449672
    %v6519 = vadd.f32 %v6487, -0.28449672
    %v6520 = vadd.f32 %v6488, -0.28449672
    %v6521 = vadd.f32 %v6489, -0.28449672
    %v6522 = vadd.f32 %v6490, -0.28449672
    %v6523 = vadd.f32 %v6491, -0.28449672
    %v6524 = vadd.f32 %v6492, -0.28449672
    %v6525 = vadd.f32 %v6493, -0.28449672
    %v6526 = vadd.f32 %v6494, -0.28449672
    %v6527 = vadd.f32 %v6495, -0.28449672
    %v6528 = vmul.f32 %v6496, %v6273
    %v6529 = vmul.f32 %v6497, %v6275
    %v6530 = vmul.f32 %v6498, %v6277
    %v6531 = vmul.f32 %v6499, %v6279
    %v6532 = vmul.f32 %v6500, %v6281
    %v6533 = vmul.f32 %v6501, %v6283
    %v6534 = vmul.f32 %v6502, %v6285
    %v6535 = vmul.f32 %v6503, %v6287
    %v6536 = vmul.f32 %v6504, %v6289
    %v6537 = vmul.f32 %v6505, %v6291
    %v6538 = vmul.f32 %v6506, %v6293
    %v6539 = vmul.f32 %v6507, %v6295
    %v6540 = vmul.f32 %v6508, %v6297
    %v6541 = vmul.f32 %v6509, %v6299
    %v6542 = vmul.f32 %v6510, %v6301
    %v6543 = vmul.f32 %v6511, %v6303
    %v6544 = vmul.f32 %v6512, %v6305
    %v6545 = vmul.f32 %v6513, %v6307
    %v6546 = vmul.f32 %v6514, %v6309
    %v6547 = vmul.f32 %v6515, %v6311
    %v6548 = vmul.f32 %v6516, %v6313
    %v6549 = vmul.f32 %v6517, %v6315
    %v6550 = vmul.f32 %v6518, %v6317
    %v6551 = vmul.f32 %v6519, %v6319
    %v6552 = vmul.f32 %v6520, %v6321
    %v6553 = vmul.f32 %v6521, %v6323
    %v6554 = vmul.f32 %v6522, %v6325
    %v6555 = vmul.f32 %v6523, %v6327
    %v6556 = vmul.f32 %v6524, %v6329
    %v6557 = vmul.f32 %v6525, %v6331
    %v6558 = vmul.f32 %v6526, %v6333
    %v6559 = vmul.f32 %v6527, %v6335
    %v6560 = vadd.f32 %v6528, 0.2548296
    %v6561 = vadd.f32 %v6529, 0.2548296
    %v6562 = vadd.f32 %v6530, 0.2548296
    %v6563 = vadd.f32 %v6531, 0.2548296
    %v6564 = vadd.f32 %v6532, 0.2548296
    %v6565 = vadd.f32 %v6533, 0.2548296
    %v6566 = vadd.f32 %v6534, 0.2548296
    %v6567 = vadd.f32 %v6535, 0.2548296
    %v6568 = vadd.f32 %v6536, 0.2548296
    %v6569 = vadd.f32 %v6537, 0.2548296
    %v6570 = vadd.f32 %v6538, 0.2548296
    %v6571 = vadd.f32 %v6539, 0.2548296
    %v6572 = vadd.f32 %v6540, 0.2548296
    %v6573 = vadd.f32 %v6541, 0.2548296
    %v6574 = vadd.f32 %v6542, 0.2548296
    %v6575 = vadd.f32 %v6543, 0.2548296
    %v6576 = vadd.f32 %v6544, 0.2548296
    %v6577 = vadd.f32 %v6545, 0.2548296
    %v6578 = vadd.f32 %v6546, 0.2548296
    %v6579 = vadd.f32 %v6547, 0.2548296
    %v6580 = vadd.f32 %v6548, 0.2548296
    %v6581 = vadd.f32 %v6549, 0.2548296
    %v6582 = vadd.f32 %v6550, 0.2548296
    %v6583 = vadd.f32 %v6551, 0.2548296
    %v6584 = vadd.f32 %v6552, 0.2548296
    %v6585 = vadd.f32 %v6553, 0.2548296
    %v6586 = vadd.f32 %v6554, 0.2548296
    %v6587 = vadd.f32 %v6555, 0.2548296
    %v6588 = vadd.f32 %v6556, 0.2548296
    %v6589 = vadd.f32 %v6557, 0.2548296
    %v6590 = vadd.f32 %v6558, 0.2548296
    %v6591 = vadd.f32 %v6559, 0.2548296
    %v6592 = vmul.f32 %v6560, %v6273
    %v6593 = vmul.f32 %v6561, %v6275
    %v6594 = vmul.f32 %v6562, %v6277
    %v6595 = vmul.f32 %v6563, %v6279
    %v6596 = vmul.f32 %v6564, %v6281
    %v6597 = vmul.f32 %v6565, %v6283
    %v6598 = vmul.f32 %v6566, %v6285
    %v6599 = vmul.f32 %v6567, %v6287
    %v6600 = vmul.f32 %v6568, %v6289
    %v6601 = vmul.f32 %v6569, %v6291
    %v6602 = vmul.f32 %v6570, %v6293
    %v6603 = vmul.f32 %v6571, %v6295
    %v6604 = vmul.f32 %v6572, %v6297
    %v6605 = vmul.f32 %v6573, %v6299
    %v6606 = vmul.f32 %v6574, %v6301
    %v6607 = vmul.f32 %v6575, %v6303
    %v6608 = vmul.f32 %v6576, %v6305
    %v6609 = vmul.f32 %v6577, %v6307
    %v6610 = vmul.f32 %v6578, %v6309
    %v6611 = vmul.f32 %v6579, %v6311
    %v6612 = vmul.f32 %v6580, %v6313
    %v6613 = vmul.f32 %v6581, %v6315
    %v6614 = vmul.f32 %v6582, %v6317
    %v6615 = vmul.f32 %v6583, %v6319
    %v6616 = vmul.f32 %v6584, %v6321
    %v6617 = vmul.f32 %v6585, %v6323
    %v6618 = vmul.f32 %v6586, %v6325
    %v6619 = vmul.f32 %v6587, %v6327
    %v6620 = vmul.f32 %v6588, %v6329
    %v6621 = vmul.f32 %v6589, %v6331
    %v6622 = vmul.f32 %v6590, %v6333
    %v6623 = vmul.f32 %v6591, %v6335
    %v6624 = vsub.f32 0.0, %v6176
    %v6625 = vsub.f32 0.0, %v6177
    %v6626 = vsub.f32 0.0, %v6178
    %v6627 = vsub.f32 0.0, %v6179
    %v6628 = vsub.f32 0.0, %v6180
    %v6629 = vsub.f32 0.0, %v6181
    %v6630 = vsub.f32 0.0, %v6182
    %v6631 = vsub.f32 0.0, %v6183
    %v6632 = vsub.f32 0.0, %v6184
    %v6633 = vsub.f32 0.0, %v6185
    %v6634 = vsub.f32 0.0, %v6186
    %v6635 = vsub.f32 0.0, %v6187
    %v6636 = vsub.f32 0.0, %v6188
    %v6637 = vsub.f32 0.0, %v6189
    %v6638 = vsub.f32 0.0, %v6190
    %v6639 = vsub.f32 0.0, %v6191
    %v6640 = vsub.f32 0.0, %v6192
    %v6641 = vsub.f32 0.0, %v6193
    %v6642 = vsub.f32 0.0, %v6194
    %v6643 = vsub.f32 0.0, %v6195
    %v6644 = vsub.f32 0.0, %v6196
    %v6645 = vsub.f32 0.0, %v6197
    %v6646 = vsub.f32 0.0, %v6198
    %v6647 = vsub.f32 0.0, %v6199
    %v6648 = vsub.f32 0.0, %v6200
    %v6649 = vsub.f32 0.0, %v6201
    %v6650 = vsub.f32 0.0, %v6202
    %v6651 = vsub.f32 0.0, %v6203
    %v6652 = vsub.f32 0.0, %v6204
    %v6653 = vsub.f32 0.0, %v6205
    %v6654 = vsub.f32 0.0, %v6206
    %v6655 = vsub.f32 0.0, %v6207
    %v6656 = vmul.f32 %v6624, %v6176
    %v6657 = vmul.f32 %v6625, %v6177
    %v6658 = vmul.f32 %v6626, %v6178
    %v6659 = vmul.f32 %v6627, %v6179
    %v6660 = vmul.f32 %v6628, %v6180
    %v6661 = vmul.f32 %v6629, %v6181
    %v6662 = vmul.f32 %v6630, %v6182
    %v6663 = vmul.f32 %v6631, %v6183
    %v6664 = vmul.f32 %v6632, %v6184
    %v6665 = vmul.f32 %v6633, %v6185
    %v6666 = vmul.f32 %v6634, %v6186
    %v6667 = vmul.f32 %v6635, %v6187
    %v6668 = vmul.f32 %v6636, %v6188
    %v6669 = vmul.f32 %v6637, %v6189
    %v6670 = vmul.f32 %v6638, %v6190
    %v6671 = vmul.f32 %v6639, %v6191
    %v6672 = vmul.f32 %v6640, %v6192
    %v6673 = vmul.f32 %v6641, %v6193
    %v6674 = vmul.f32 %v6642, %v6194
    %v6675 = vmul.f32 %v6643, %v6195
    %v6676 = vmul.f32 %v6644, %v6196
    %v6677 = vmul.f32 %v6645, %v6197
    %v6678 = vmul.f32 %v6646, %v6198
    %v6679 = vmul.f32 %v6647, %v6199
    %v6680 = vmul.f32 %v6648, %v6200
    %v6681 = vmul.f32 %v6649, %v6201
    %v6682 = vmul.f32 %v6650, %v6202
    %v6683 = vmul.f32 %v6651, %v6203
    %v6684 = vmul.f32 %v6652, %v6204
    %v6685 = vmul.f32 %v6653, %v6205
    %v6686 = vmul.f32 %v6654, %v6206
    %v6687 = vmul.f32 %v6655, %v6207
    %v6688 = vmul.f32 %v6656, 1.442695
    %v6689 = vpow.pop %v6688
    %v6690 = vmul.f32 %v6657, 1.442695
    %v6691 = vpow.pop %v6690
    %v6692 = vmul.f32 %v6658, 1.442695
    %v6693 = vpow.pop %v6692
    %v6694 = vmul.f32 %v6659, 1.442695
    %v6695 = vpow.pop %v6694
    %v6696 = vmul.f32 %v6660, 1.442695
    %v6697 = vpow.pop %v6696
    %v6698 = vmul.f32 %v6661, 1.442695
    %v6699 = vpow.pop %v6698
    %v6700 = vmul.f32 %v6662, 1.442695
    %v6701 = vpow.pop %v6700
    %v6702 = vmul.f32 %v6663, 1.442695
    %v6703 = vpow.pop %v6702
    %v6704 = vmul.f32 %v6664, 1.442695
    %v6705 = vpow.pop %v6704
    %v6706 = vmul.f32 %v6665, 1.442695
    %v6707 = vpow.pop %v6706
    %v6708 = vmul.f32 %v6666, 1.442695
    %v6709 = vpow.pop %v6708
    %v6710 = vmul.f32 %v6667, 1.442695
    %v6711 = vpow.pop %v6710
    %v6712 = vmul.f32 %v6668, 1.442695
    %v6713 = vpow.pop %v6712
    %v6714 = vmul.f32 %v6669, 1.442695
    %v6715 = vpow.pop %v6714
    %v6716 = vmul.f32 %v6670, 1.442695
    %v6717 = vpow.pop %v6716
    %v6718 = vmul.f32 %v6671, 1.442695
    %v6719 = vpow.pop %v6718
    %v6720 = vmul.f32 %v6672, 1.442695
    %v6721 = vpow.pop %v6720
    %v6722 = vmul.f32 %v6673, 1.442695
    %v6723 = vpow.pop %v6722
    %v6724 = vmul.f32 %v6674, 1.442695
    %v6725 = vpow.pop %v6724
    %v6726 = vmul.f32 %v6675, 1.442695
    %v6727 = vpow.pop %v6726
    %v6728 = vmul.f32 %v6676, 1.442695
    %v6729 = vpow.pop %v6728
    %v6730 = vmul.f32 %v6677, 1.442695
    %v6731 = vpow.pop %v6730
    %v6732 = vmul.f32 %v6678, 1.442695
    %v6733 = vpow.pop %v6732
    %v6734 = vmul.f32 %v6679, 1.442695
    %v6735 = vpow.pop %v6734
    %v6736 = vmul.f32 %v6680, 1.442695
    %v6737 = vpow.pop %v6736
    %v6738 = vmul.f32 %v6681, 1.442695
    %v6739 = vpow.pop %v6738
    %v6740 = vmul.f32 %v6682, 1.442695
    %v6741 = vpow.pop %v6740
    %v6742 = vmul.f32 %v6683, 1.442695
    %v6743 = vpow.pop %v6742
    %v6744 = vmul.f32 %v6684, 1.442695
    %v6745 = vpow.pop %v6744
    %v6746 = vmul.f32 %v6685, 1.442695
    %v6747 = vpow.pop %v6746
    %v6748 = vmul.f32 %v6686, 1.442695
    %v6749 = vpow.pop %v6748
    %v6750 = vmul.f32 %v6687, 1.442695
    %v6751 = vpow.pop %v6750
    %v6752 = vmul.f32 %v6592, %v6689
    %v6753 = vmul.f32 %v6593, %v6691
    %v6754 = vmul.f32 %v6594, %v6693
    %v6755 = vmul.f32 %v6595, %v6695
    %v6756 = vmul.f32 %v6596, %v6697
    %v6757 = vmul.f32 %v6597, %v6699
    %v6758 = vmul.f32 %v6598, %v6701
    %v6759 = vmul.f32 %v6599, %v6703
    %v6760 = vmul.f32 %v6600, %v6705
    %v6761 = vmul.f32 %v6601, %v6707
    %v6762 = vmul.f32 %v6602, %v6709
    %v6763 = vmul.f32 %v6603, %v6711
    %v6764 = vmul.f32 %v6604, %v6713
    %v6765 = vmul.f32 %v6605, %v6715
    %v6766 = vmul.f32 %v6606, %v6717
    %v6767 = vmul.f32 %v6607, %v6719
    %v6768 = vmul.f32 %v6608, %v6721
    %v6769 = vmul.f32 %v6609, %v6723
    %v6770 = vmul.f32 %v6610, %v6725
    %v6771 = vmul.f32 %v6611, %v6727
    %v6772 = vmul.f32 %v6612, %v6729
    %v6773 = vmul.f32 %v6613, %v6731
    %v6774 = vmul.f32 %v6614, %v6733
    %v6775 = vmul.f32 %v6615, %v6735
    %v6776 = vmul.f32 %v6616, %v6737
    %v6777 = vmul.f32 %v6617, %v6739
    %v6778 = vmul.f32 %v6618, %v6741
    %v6779 = vmul.f32 %v6619, %v6743
    %v6780 = vmul.f32 %v6620, %v6745
    %v6781 = vmul.f32 %v6621, %v6747
    %v6782 = vmul.f32 %v6622, %v6749
    %v6783 = vmul.f32 %v6623, %v6751
    %v6784 = vsub.f32 1.0, %v6752
    %v6785 = vsub.f32 1.0, %v6753
    %v6786 = vsub.f32 1.0, %v6754
    %v6787 = vsub.f32 1.0, %v6755
    %v6788 = vsub.f32 1.0, %v6756
    %v6789 = vsub.f32 1.0, %v6757
    %v6790 = vsub.f32 1.0, %v6758
    %v6791 = vsub.f32 1.0, %v6759
    %v6792 = vsub.f32 1.0, %v6760
    %v6793 = vsub.f32 1.0, %v6761
    %v6794 = vsub.f32 1.0, %v6762
    %v6795 = vsub.f32 1.0, %v6763
    %v6796 = vsub.f32 1.0, %v6764
    %v6797 = vsub.f32 1.0, %v6765
    %v6798 = vsub.f32 1.0, %v6766
    %v6799 = vsub.f32 1.0, %v6767
    %v6800 = vsub.f32 1.0, %v6768
    %v6801 = vsub.f32 1.0, %v6769
    %v6802 = vsub.f32 1.0, %v6770
    %v6803 = vsub.f32 1.0, %v6771
    %v6804 = vsub.f32 1.0, %v6772
    %v6805 = vsub.f32 1.0, %v6773
    %v6806 = vsub.f32 1.0, %v6774
    %v6807 = vsub.f32 1.0, %v6775
    %v6808 = vsub.f32 1.0, %v6776
    %v6809 = vsub.f32 1.0, %v6777
    %v6810 = vsub.f32 1.0, %v6778
    %v6811 = vsub.f32 1.0, %v6779
    %v6812 = vsub.f32 1.0, %v6780
    %v6813 = vsub.f32 1.0, %v6781
    %v6814 = vsub.f32 1.0, %v6782
    %v6815 = vsub.f32 1.0, %v6783
    %v6816 = vmul.f32 %v6144, %v6784
    %v6817 = vmul.f32 %v6145, %v6785
    %v6818 = vmul.f32 %v6146, %v6786
    %v6819 = vmul.f32 %v6147, %v6787
    %v6820 = vmul.f32 %v6148, %v6788
    %v6821 = vmul.f32 %v6149, %v6789
    %v6822 = vmul.f32 %v6150, %v6790
    %v6823 = vmul.f32 %v6151, %v6791
    %v6824 = vmul.f32 %v6152, %v6792
    %v6825 = vmul.f32 %v6153, %v6793
    %v6826 = vmul.f32 %v6154, %v6794
    %v6827 = vmul.f32 %v6155, %v6795
    %v6828 = vmul.f32 %v6156, %v6796
    %v6829 = vmul.f32 %v6157, %v6797
    %v6830 = vmul.f32 %v6158, %v6798
    %v6831 = vmul.f32 %v6159, %v6799
    %v6832 = vmul.f32 %v6160, %v6800
    %v6833 = vmul.f32 %v6161, %v6801
    %v6834 = vmul.f32 %v6162, %v6802
    %v6835 = vmul.f32 %v6163, %v6803
    %v6836 = vmul.f32 %v6164, %v6804
    %v6837 = vmul.f32 %v6165, %v6805
    %v6838 = vmul.f32 %v6166, %v6806
    %v6839 = vmul.f32 %v6167, %v6807
    %v6840 = vmul.f32 %v6168, %v6808
    %v6841 = vmul.f32 %v6169, %v6809
    %v6842 = vmul.f32 %v6170, %v6810
    %v6843 = vmul.f32 %v6171, %v6811
    %v6844 = vmul.f32 %v6172, %v6812
    %v6845 = vmul.f32 %v6173, %v6813
    %v6846 = vmul.f32 %v6174, %v6814
    %v6847 = vmul.f32 %v6175, %v6815
    %v6848 = vadd.f32 %v6816, 1.0
    %v6849 = vadd.f32 %v6817, 1.0
    %v6850 = vadd.f32 %v6818, 1.0
    %v6851 = vadd.f32 %v6819, 1.0
    %v6852 = vadd.f32 %v6820, 1.0
    %v6853 = vadd.f32 %v6821, 1.0
    %v6854 = vadd.f32 %v6822, 1.0
    %v6855 = vadd.f32 %v6823, 1.0
    %v6856 = vadd.f32 %v6824, 1.0
    %v6857 = vadd.f32 %v6825, 1.0
    %v6858 = vadd.f32 %v6826, 1.0
    %v6859 = vadd.f32 %v6827, 1.0
    %v6860 = vadd.f32 %v6828, 1.0
    %v6861 = vadd.f32 %v6829, 1.0
    %v6862 = vadd.f32 %v6830, 1.0
    %v6863 = vadd.f32 %v6831, 1.0
    %v6864 = vadd.f32 %v6832, 1.0
    %v6865 = vadd.f32 %v6833, 1.0
    %v6866 = vadd.f32 %v6834, 1.0
    %v6867 = vadd.f32 %v6835, 1.0
    %v6868 = vadd.f32 %v6836, 1.0
    %v6869 = vadd.f32 %v6837, 1.0
    %v6870 = vadd.f32 %v6838, 1.0
    %v6871 = vadd.f32 %v6839, 1.0
    %v6872 = vadd.f32 %v6840, 1.0
    %v6873 = vadd.f32 %v6841, 1.0
    %v6874 = vadd.f32 %v6842, 1.0
    %v6875 = vadd.f32 %v6843, 1.0
    %v6876 = vadd.f32 %v6844, 1.0
    %v6877 = vadd.f32 %v6845, 1.0
    %v6878 = vadd.f32 %v6846, 1.0
    %v6879 = vadd.f32 %v6847, 1.0
    %v6880 = vmul.f32 %v6048, %v6848
    %v6881 = vmul.f32 %v6049, %v6849
    %v6882 = vmul.f32 %v6050, %v6850
    %v6883 = vmul.f32 %v6051, %v6851
    %v6884 = vmul.f32 %v6052, %v6852
    %v6885 = vmul.f32 %v6053, %v6853
    %v6886 = vmul.f32 %v6054, %v6854
    %v6887 = vmul.f32 %v6055, %v6855
    %v6888 = vmul.f32 %v6056, %v6856
    %v6889 = vmul.f32 %v6057, %v6857
    %v6890 = vmul.f32 %v6058, %v6858
    %v6891 = vmul.f32 %v6059, %v6859
    %v6892 = vmul.f32 %v6060, %v6860
    %v6893 = vmul.f32 %v6061, %v6861
    %v6894 = vmul.f32 %v6062, %v6862
    %v6895 = vmul.f32 %v6063, %v6863
    %v6896 = vmul.f32 %v6064, %v6864
    %v6897 = vmul.f32 %v6065, %v6865
    %v6898 = vmul.f32 %v6066, %v6866
    %v6899 = vmul.f32 %v6067, %v6867
    %v6900 = vmul.f32 %v6068, %v6868
    %v6901 = vmul.f32 %v6069, %v6869
    %v6902 = vmul.f32 %v6070, %v6870
    %v6903 = vmul.f32 %v6071, %v6871
    %v6904 = vmul.f32 %v6072, %v6872
    %v6905 = vmul.f32 %v6073, %v6873
    %v6906 = vmul.f32 %v6074, %v6874
    %v6907 = vmul.f32 %v6075, %v6875
    %v6908 = vmul.f32 %v6076, %v6876
    %v6909 = vmul.f32 %v6077, %v6877
    %v6910 = vmul.f32 %v6078, %v6878
    %v6911 = vmul.f32 %v6079, %v6879
    %6912 = vxpose.xlu0.b32.start [1/16] %v6880, 128
    %6913 = vxpose.xlu0.b32.cont [2/16] %v6882, 128
    %6914 = vxpose.xlu0.b32.cont [3/16] %v6884, 128
    %6915 = vxpose.xlu0.b32.cont [4/16] %v6886, 128
    %6916 = vxpose.xlu0.b32.cont [5/16] %v6888, 128
    %6917 = vxpose.xlu0.b32.cont [6/16] %v6890, 128
    %6918 = vxpose.xlu0.b32.cont [7/16] %v6892, 128
    %6919 = vxpose.xlu0.b32.cont [8/16] %v6894, 128
    %6920 = vxpose.xlu0.b32.cont [9/16] %v6896, 128
    %6921 = vxpose.xlu0.b32.cont [10/16] %v6898, 128
    %6922 = vxpose.xlu0.b32.cont [11/16] %v6900, 128
    %6923 = vxpose.xlu0.b32.cont [12/16] %v6902, 128
    %6924 = vxpose.xlu0.b32.cont [13/16] %v6904, 128
    %6925 = vxpose.xlu0.b32.cont [14/16] %v6906, 128
    %6926 = vxpose.xlu0.b32.cont [15/16] %v6908, 128
    %6927 = vxpose.xlu0.b32.end [16/16] %v6910, 128
    %v6928 = vpop.trf.xlu0
    %v6929 = vpop.trf.xlu0
    %v6930 = vpop.trf.xlu0
    %v6931 = vpop.trf.xlu0
    %v6932 = vpop.trf.xlu0
    %v6933 = vpop.trf.xlu0
    %v6934 = vpop.trf.xlu0
    %v6935 = vpop.trf.xlu0
    %v6936 = vpop.trf.xlu0
    %v6937 = vpop.trf.xlu0
    %v6938 = vpop.trf.xlu0
    %v6939 = vpop.trf.xlu0
    %v6940 = vpop.trf.xlu0
    %v6941 = vpop.trf.xlu0
    %v6942 = vpop.trf.xlu0
    %v6943 = vpop.trf.xlu0
    %6944 = vxpose.xlu0.b32.start [1/16] %v6881, 128
    %6945 = vxpose.xlu0.b32.cont [2/16] %v6883, 128
    %6946 = vxpose.xlu0.b32.cont [3/16] %v6885, 128
    %6947 = vxpose.xlu0.b32.cont [4/16] %v6887, 128
    %6948 = vxpose.xlu0.b32.cont [5/16] %v6889, 128
    %6949 = vxpose.xlu0.b32.cont [6/16] %v6891, 128
    %6950 = vxpose.xlu0.b32.cont [7/16] %v6893, 128
    %6951 = vxpose.xlu0.b32.cont [8/16] %v6895, 128
    %6952 = vxpose.xlu0.b32.cont [9/16] %v6897, 128
    %6953 = vxpose.xlu0.b32.cont [10/16] %v6899, 128
    %6954 = vxpose.xlu0.b32.cont [11/16] %v6901, 128
    %6955 = vxpose.xlu0.b32.cont [12/16] %v6903, 128
    %6956 = vxpose.xlu0.b32.cont [13/16] %v6905, 128
    %6957 = vxpose.xlu0.b32.cont [14/16] %v6907, 128
    %6958 = vxpose.xlu0.b32.cont [15/16] %v6909, 128
    %6959 = vxpose.xlu0.b32.end [16/16] %v6911, 128
    %v6960 = vpop.trf.xlu0
    %v6961 = vpop.trf.xlu0
    %v6962 = vpop.trf.xlu0
    %v6963 = vpop.trf.xlu0
    %v6964 = vpop.trf.xlu0
    %v6965 = vpop.trf.xlu0
    %v6966 = vpop.trf.xlu0
    %v6967 = vpop.trf.xlu0
    %v6968 = vpop.trf.xlu0
    %v6969 = vpop.trf.xlu0
    %v6970 = vpop.trf.xlu0
    %v6971 = vpop.trf.xlu0
    %v6972 = vpop.trf.xlu0
    %v6973 = vpop.trf.xlu0
    %v6974 = vpop.trf.xlu0
    %v6975 = vpop.trf.xlu0
    %v6976 = vld [vmem:[#allocation11] sm:$0x3]
    %v6977 = vpack.c.bf16 %v6929, %v6928
    %v6978 = vpack.c.bf16 %v6931, %v6930
    %v6979 = vpack.c.bf16 %v6933, %v6932
    %v6980 = vpack.c.bf16 %v6935, %v6934
    %v6981 = vpack.c.bf16 %v6937, %v6936
    %v6982 = vpack.c.bf16 %v6939, %v6938
    %v6983 = vpack.c.bf16 %v6941, %v6940
    %v6984 = vpack.c.bf16 %v6943, %v6942
    %v6985 = vpack.c.bf16 %v6961, %v6960
    %v6986 = vpack.c.bf16 %v6963, %v6962
    %v6987 = vpack.c.bf16 %v6965, %v6964
    %v6988 = vpack.c.bf16 %v6967, %v6966
    %v6989 = vpack.c.bf16 %v6969, %v6968
    %v6990 = vpack.c.bf16 %v6971, %v6970
    %v6991 = vpack.c.bf16 %v6973, %v6972
    %v6992 = vpack.c.bf16 %v6975, %v6974
    %v6993 = vld [vmem:[#allocation2] sm:$0x1]
    %6995 = vset.pattern.permute.xlu0 0
    %6996 = vperm.xlu0 %6995, %v6993
    %v6997 = vpop.permute.xlu0 %6996
    %v6999 = vlaneseq
    %v7000 = vshrl.u32 %v6999, 7
    %v7001 = vsub.s32 0, %v7000
    %v7002 = vrot.slane %v6997, %v7001
    %v7005 = vunpack.c.l.s4 1966171168
    %v7006 = vunpack.c.0.s8 %v7005
    %v7007 = vlaneseq
    %v7008 = vshrl.u32 %v7007, 7
    %v7009 = vsub.s32 %v7006, %v7008
    %v7010 = vrot.slane %v6976, %v7009
    %v7011 = vcombine.high %v7010, %v7010
    %v7013 = vunpack.c.l.s4 1966171168
    %v7014 = vunpack.c.0.s8 %v7013
    %v7015 = vlaneseq
    %v7016 = vshrl.u32 %v7015, 7
    %v7017 = vsub.s32 %v7014, %v7016
    %v7018 = vrot.slane %v7010, %v7017
    %v7020 = vunpack.c.l.s4 1966171168
    %v7021 = vunpack.c.0.s8 %v7020
    %v7022 = vlaneseq
    %v7023 = vshrl.u32 %v7022, 7
    %v7024 = vsub.s32 %v7021, %v7023
    %v7025 = vrot.slane %v7011, %v7024
    %7028 = vmatprep.subr.bf16.mxu0 0
    %7029 = vmatpush1.bf16.msra.mxu0 %v6977
    %7030 = vmatprep.subr.bf16.mxu0 0
    %7031 = vmatpush1.bf16.msra.mxu0 %v6978
    %7032 = vmatprep.subr.bf16.mxu0 0
    %7033 = vmatpush1.bf16.msra.mxu0 %v6979
    %7034 = vmatprep.subr.bf16.mxu0 0
    %7035 = vmatpush1.bf16.msra.mxu0 %v6980
    %7036 = vmatprep.subr.bf16.mxu0 0
    %7037 = vmatpush1.bf16.msra.mxu0 %v6981
    %7038 = vmatprep.subr.bf16.mxu0 0
    %7039 = vmatpush1.bf16.msra.mxu0 %v6982
    %7040 = vmatprep.subr.bf16.mxu0 0
    %7041 = vmatpush1.bf16.msra.mxu0 %v6983
    %7042 = vmatprep.subr.bf16.mxu0 0
    %7043 = vmatpush1.bf16.msra.mxu0 %v6984
    %7044 = vmatprep.subr.bf16.mxu0 0
    %7045 = vmatpush1.bf16.msra.mxu0 %v6985
    %7046 = vmatprep.subr.bf16.mxu0 0
    %7047 = vmatpush1.bf16.msra.mxu0 %v6986
    %7048 = vmatprep.subr.bf16.mxu0 0
    %7049 = vmatpush1.bf16.msra.mxu0 %v6987
    %7050 = vmatprep.subr.bf16.mxu0 0
    %7051 = vmatpush1.bf16.msra.mxu0 %v6988
    %7052 = vmatprep.subr.bf16.mxu0 0
    %7053 = vmatpush1.bf16.msra.mxu0 %v6989
    %7054 = vmatprep.subr.bf16.mxu0 0
    %7055 = vmatpush1.bf16.msra.mxu0 %v6990
    %7056 = vmatprep.subr.bf16.mxu0 0
    %7057 = vmatpush1.bf16.msra.mxu0 %v6991
    %7058 = vmatprep.subr.bf16.mxu0 0
    %7059 = vmatpush1.bf16.msra.mxu0 %v6992
    %7060 = vmatprep.mubr.bf16.mxu0 %v7025
    %7061 = vmatmul.mubr.bf16.gmra.mrb[0].mxu0 %v7018
    %v7062 = vpop.f32.mrb[0].mxu0
    %v7063 = vadd.f32 %v7002, %v7062
    %v7064 = vpop.f32.mrb[0].mxu0
    %v7065 = vpop.f32.mrb[0].mxu0
    %v7066 = vpop.f32.mrb[0].mxu0
    %7067 = vdwg.mxu0
    %7068 = vst [vmem:[%s14] sm:$0x1] %v7063
    // Predicated region
    $region82: #{fno1d_forward.1} parent=1 // pred_check
      _
    $region83: #{fno1d_forward.1} parent=1 // pred_check_branch
      %7070 = sbr.rel (0) target = $region85
    $region84: #{fno1d_forward.1} parent=1 // pred_region
      _
    $region85: #{fno1d_forward.1} parent=1 // pred_fallthru
      _
    // Predicated region
    $region86: #{fno1d_forward.1} parent=1 // pred_check
      _
    $region87: #{fno1d_forward.1} parent=1 // pred_check_branch
      %7072 = sbr.rel (0) target = $region89
    $region88: #{fno1d_forward.1} parent=1 // pred_region
      _
    $region89: #{fno1d_forward.1} parent=1 // pred_fallthru
      _
    %7073 = vsyncpa [#allocation4], 1
    %7074 = vsyncpa [#allocation6], 1
    %7075 = vsyncpa [#allocation9], 1
    %7076 = vsyncpa [#allocation12], 1

</llo_original>
